<compile_context>
chip_gen: v7x
topology: tpu7x:2x2x1
jax: 0.10.0
libtpu: 0.0.40
codegen_flags: <defaults>
</compile_context>

<pallas_src>
import functools

import jax
import jax.numpy as jnp
from jax.experimental import pallas as pl
from jax.experimental.pallas import tpu as pltpu


SKIP, NO_SKIP, ZERO_SKIP = "SKIP", "NO_SKIP", "ZERO_SKIP"

_TAPS_3x3 = tuple((di, dj) for di in range(3) for dj in range(3))
_TAPS_2x2 = ((0, 0), (0, 1), (1, 0), (1, 1))        # sub-pixel shifts (s_i, s_j)


# ----------------------------- Pallas kernel ------------------------------ #

def _conv_taps_kernel(*refs, n_in, cins, taps, th, w_out, apply_relu, fold,
                      compute_dtype):
    """Generic folded-tap conv.

    refs = (x_0, ..., x_{n_in-1}, w, b, o)
      x_i : (1, Hp_i, Wp_i, Cin_i)  padded full image for this batch element
      w   : (sum_i len(taps)*Cin_i, Cout)   folded weight (bf16)
      b   : (1, Cout)                        f32 bias
      o   : (1, th, w_out, Cout)             output row tile
    """
    in_refs = refs[:n_in]
    w_ref, b_ref, o_ref = refs[n_in], refs[n_in + 1], refs[n_in + 2]
    co = o_ref.shape[-1]

    r0 = pl.multiple_of(pl.program_id(1) * th, th)   # first output row of tile

    def patch(x_ref, di, dj):
        return x_ref[0, pl.ds(r0 + di, th), pl.ds(dj, w_out), :].astype(
            compute_dtype)

    if fold:
        # Small-Cin regime: one matmul with K = taps * sum(Cin).  Channel order
        # is (input-major, tap-major, cin-minor), matching the folded weight.
        cols = [patch(x_ref, di, dj) for x_ref in in_refs for di, dj in taps]
        lhs = jnp.concatenate(cols, axis=-1).reshape(th * w_out, -1)
        acc = jnp.dot(lhs, w_ref[...], preferred_element_type=jnp.float32)
    else:
        # Large-Cin regime: per-tap matmuls accumulated in f32; avoids the
        # materialized (th*w_out, taps*Cin) im2col temp.
        acc = jnp.zeros((th * w_out, co), jnp.float32)
        row = 0
        for x_ref, cin in zip(in_refs, cins):
            for di, dj in taps:
                lhs = patch(x_ref, di, dj).reshape(th * w_out, cin)
                acc = acc + jnp.dot(lhs, w_ref[row:row + cin, :],
                                    preferred_element_type=jnp.float32)
                row += cin

    acc = acc + b_ref[...]                           # (1, Cout) broadcast
    if apply_relu:
        acc = jnp.maximum(acc, 0.0)
    o_ref[0] = acc.reshape(th, w_out, co).astype(o_ref.dtype)


# ------------------------------ helpers ------------------------------------ #

@functools.lru_cache(maxsize=None)
def _vmem_limit_bytes():
    """Generation-aware VMEM limit (~3/4 of physical): ~96 MiB on v5e/v6e,
    ~48 MiB on v7x; conservative fallback if the query is unavailable."""
    cap = 64 * 1024 * 1024
    try:
        info = pltpu.get_tpu_info()
        cap = int(getattr(info, "vmem_capacity_bytes", cap) or cap)
    except Exception:
        pass
    return int(min(cap * 3 // 4, 100 * 1024 * 1024))


def _round_up(x, m):
    return (x + m - 1) // m * m


def _pick_row_tile(ho, wo, k_total, co, vmem_limit):
    """Largest row tile whose per-tile working set fits a slice of VMEM."""
    # bytes/output-row: bf16 im2col strip + f32 accumulator + bf16 out buffers
    per_row = wo * (2 * k_total + 4 * co + 4 * co)
    th = max(1, (vmem_limit // 8) // max(per_row, 1))
    th = min(th, 256, ho)
    if 8 < th < ho:
        th -= th % 8                 # keep dynamic row starts sublane-aligned
    return max(th, 1)


def _conv_taps(inputs, w_folded, bias, out_shape, taps, *, apply_relu,
               out_dtype, compute_dtype):
    """Run the folded-tap conv kernel over a (batch, row-tile) grid."""
    N, Ho, Wo, Co = out_shape
    max_di = max(di for di, _ in taps)
    max_dj = max(dj for _, dj in taps)
    cins = tuple(int(t.shape[-1]) for t in inputs)
    k_total = len(taps) * sum(cins)

    vmem_limit = _vmem_limit_bytes()
    th = _pick_row_tile(Ho, Wo, k_total, Co, vmem_limit)
    n_row = pl.cdiv(Ho, th)

    # Sublane-aligned kernel-visible output width so the in-kernel
    # (th, Wo, K) <-> (th*Wo, K) reshapes stay layout-preserving views.
    wo_k = max(8, _round_up(Wo, 8))

    # Extend inputs (zeros) so every in-kernel row/col window stays in bounds,
    # even for a partial last row tile or the padded output width.
    need_h, need_w = n_row * th + max_di, wo_k + max_dj
    exts = []
    for t in inputs:
        eh, ew = max(0, need_h - t.shape[1]), max(0, need_w - t.shape[2])
        exts.append(jnp.pad(t, ((0, 0), (0, eh), (0, ew), (0, 0)))
                    if (eh or ew) else t)
    inputs = exts

    # Inputs: one (small, padded) full image per batch element; the constant
    # row index means the block is revisited (DMA'd once) across the row axis.
    in_specs = [pl.BlockSpec((1,) + t.shape[1:], lambda n, h: (n, 0, 0, 0))
                for t in inputs]
    in_specs.append(pl.BlockSpec(w_folded.shape, lambda n, h: (0, 0)))
    in_specs.append(pl.BlockSpec(bias.shape, lambda n, h: (0, 0)))
    out_specs = pl.BlockSpec((1, th, wo_k, Co), lambda n, h: (n, h, 0, 0))

    kernel = functools.partial(
        _conv_taps_kernel, n_in=len(inputs), cins=cins, taps=tuple(taps),
        th=th, w_out=wo_k, apply_relu=apply_relu,
        fold=max(cins) < 128, compute_dtype=compute_dtype)

    out = pl.pallas_call(
        kernel,
        out_shape=jax.ShapeDtypeStruct((N, Ho, wo_k, Co), out_dtype),
        grid=(N, n_row),
        in_specs=in_specs,
        out_specs=out_specs,
        compiler_params=pltpu.CompilerParams(
            # batch and row tiles are fully independent -> both parallel
            # (keeps both v7x TensorCores busy even at batch 1-2).
            dimension_semantics=("parallel", "parallel"),
            vmem_limit_bytes=vmem_limit),
    )(*inputs, w_folded, bias)
    return out if wo_k == Wo else out[:, :, :Wo, :]


# ------------------------- weight preparation ------------------------------ #

def _fold_upconv_weight(w_eq):
    """Fold the equivalent regular-conv HWIO weight (3,3,Cin,Cout) of the
    stride-2 transposed conv into the (4*Cin, 4*Cout) sub-pixel block matrix.

    Row block s = 2*s_i + s_j  <-> input shift u[i+s_i, j+s_j]
    Col block p = 2*a  + b     <-> output phase y[2i+a, 2j+b]
    """
    cin, cout = w_eq.shape[2], w_eq.shape[3]
    zero = jnp.zeros((cin, cout), w_eq.dtype)

    def tap(phase_bit, shift):
        if phase_bit == 0:                  # even output row/col
            return 1 if shift == 0 else None
        return 0 if shift == 0 else 2       # odd output row/col

    rows = []
    for s_i in (0, 1):
        for s_j in (0, 1):
            blocks = []
            for a in (0, 1):
                for b in (0, 1):
                    r, c = tap(a, s_i), tap(b, s_j)
                    blocks.append(zero if r is None or c is None else w_eq[r, c])
            rows.append(jnp.concatenate(blocks, axis=1))    # (Cin, 4*Cout)
    return jnp.concatenate(rows, axis=0)                    # (4*Cin, 4*Cout)


def _fold_conv_weight(w_hwio):
    """(3,3,Cin,Cout) HWIO -> (9*Cin, Cout), row order (di, dj, cin)."""
    kh, kw, cin, cout = w_hwio.shape
    return w_hwio.reshape(kh * kw * cin, cout)


def prepare_folded_params(params, skip=SKIP, compute_dtype=jnp.bfloat16):
    """Fold / cast all weights ONCE (outside the jitted forward)."""
    ch_out = params["conv2_w"].shape[-1]
    w1 = params["conv1_w"]                                   # (3,3,Cin1,ch_out)
    if skip == SKIP:
        w1_parts = [w1[:, :, :ch_out, :], w1[:, :, ch_out:, :]]   # [x | up]
    elif skip == ZERO_SKIP:
        w1_parts = [w1[:, :, ch_out:, :]]   # zeroed skip channels drop out
    else:                                   # NO_SKIP: Cin1 == 2*ch_out
        w1_parts = [w1]
    return {
        "upconv_wf": _fold_upconv_weight(params["upconv_w"]).astype(compute_dtype),
        "upconv_bf": jnp.tile(params["upconv_b"], 4).reshape(1, -1).astype(jnp.float32),
        "conv1_wf": jnp.concatenate([_fold_conv_weight(p) for p in w1_parts],
                                    axis=0).astype(compute_dtype),
        "conv1_bf": params["conv1_b"].reshape(1, -1).astype(jnp.float32),
        "conv2_wf": _fold_conv_weight(params["conv2_w"]).astype(compute_dtype),
        "conv2_bf": params["conv2_b"].reshape(1, -1).astype(jnp.float32),
    }


# ------------------------------ UpBlock ------------------------------------ #

def upblock_forward(fparams, x_nchw, u_nchw=None, skip=SKIP, padding=None,
                    compute_dtype=jnp.bfloat16):
    """UpBlock forward; `fparams` come from prepare_folded_params(...)."""
    if u_nchw is None and skip != NO_SKIP:
        raise ValueError("Expected skip connection")
    if padding is None:
        # PyTorch: padding = [x.shape[2] % 2, x.shape[3] % 2] == [H % 2, W % 2]
        padding = [x_nchw.shape[2] % 2, x_nchw.shape[3] % 2]

    ch_out = fparams["conv2_wf"].shape[-1]
    # NCHW -> NHWC in bf16 (halves inter-kernel HBM traffic & VMEM blocks).
    x = jnp.transpose(x_nchw, (0, 2, 3, 1)).astype(compute_dtype)
    u = jnp.transpose(u_nchw, (0, 2, 3, 1)).astype(compute_dtype)
    N, Hh, Wh, C2 = u.shape

    # ---- upconv: ConvTranspose2d(k3,s2,p1,op1) via 4-phase sub-pixel conv ----
    u_pad = jnp.pad(u, ((0, 0), (0, 1), (0, 1), (0, 0)))     # bottom/right halo
    phases = _conv_taps([u_pad], fparams["upconv_wf"], fparams["upconv_bf"],
                        (N, Hh, Wh, 4 * C2), _TAPS_2x2, apply_relu=False,
                        out_dtype=compute_dtype, compute_dtype=compute_dtype)
    # interleave the 4 phase channel-groups -> (N, 2*Hh, 2*Wh, C2)
    uu = phases.reshape(N, Hh, Wh, 2, 2, C2)
    uu = jnp.transpose(uu, (0, 1, 3, 2, 4, 5)).reshape(N, 2 * Hh, 2 * Wh, C2)
    # F.pad(u, [padding[1], 0, padding[0], 0]): W-left = padding[1], H-top = padding[0]
    uu = jnp.pad(uu, ((0, 0), (padding[0], 0), (padding[1], 0), (0, 0)))

    # ---- conv1 + ReLU (skip concat avoided: channel-split folded weights) ----
    Hx, Wx = x.shape[1], x.shape[2]
    ins = [x, uu] if skip == SKIP else [uu]
    ins_p = [jnp.pad(t, ((0, 0), (1, 1), (1, 1), (0, 0))) for t in ins]
    x2 = _conv_taps(ins_p, fparams["conv1_wf"], fparams["conv1_bf"],
                    (N, Hx, Wx, ch_out), _TAPS_3x3, apply_relu=True,
                    out_dtype=compute_dtype, compute_dtype=compute_dtype)

    # ---- conv2 + ReLU ----
    x2_p = jnp.pad(x2, ((0, 0), (1, 1), (1, 1), (0, 0)))
    x3 = _conv_taps([x2_p], fparams["conv2_wf"], fparams["conv2_bf"],
                    (N, Hx, Wx, ch_out), _TAPS_3x3, apply_relu=True,
                    out_dtype=jnp.float32, compute_dtype=compute_dtype)

    # TODO(synk): dropout is None in this config; nn.Dropout not implemented.
    return jnp.transpose(x3, (0, 3, 1, 2))                   # NHWC -> NCHW


def init_params(key, ch_out):
    """Deterministic init; PyTorch-layout weights converted to HWIO."""
    c2, c3 = 2 * ch_out, 3 * ch_out
    ks = jax.random.split(key, 6)

    def uni(k, shape, fan_in):
        bound = 1.0 / (fan_in ** 0.5)
        return jax.random.uniform(k, shape, jnp.float32, -bound, bound)

    # ConvTranspose2d(c2, c2, 3): PyTorch weight layout [Cin, Cout, kH, kW]
    upconv_w_pt = uni(ks[0], (c2, c2, 3, 3), c2 * 9)
    upconv_b = uni(ks[1], (c2,), c2 * 9)
    # Conv2d(c3, ch_out, 3): PyTorch weight layout [Cout, Cin, kH, kW]
    conv1_w_pt = uni(ks[2], (ch_out, c3, 3, 3), c3 * 9)
    conv1_b = uni(ks[3], (ch_out,), c3 * 9)
    conv2_w_pt = uni(ks[4], (ch_out, ch_out, 3, 3), ch_out * 9)
    conv2_b = uni(ks[5], (ch_out,), ch_out * 9)

    return {
        # transposed-conv weight -> equivalent regular-conv HWIO weight
        "upconv_w": jnp.transpose(upconv_w_pt[:, :, ::-1, ::-1], (2, 3, 0, 1)),
        "upconv_b": upconv_b,
        "conv1_w": jnp.transpose(conv1_w_pt, (2, 3, 1, 0)),
        "conv1_b": conv1_b,
        "conv2_w": jnp.transpose(conv2_w_pt, (2, 3, 1, 0)),
        "conv2_b": conv2_b,
    }


# ------------------------- pure-JAX reference ------------------------------ #

def ref_forward(params, x_nchw, u_nchw, skip=SKIP, compute_dtype=jnp.bfloat16):
    dn = ("NHWC", "HWIO", "NHWC")
    cd = compute_dtype
    x = jnp.transpose(x_nchw, (0, 2, 3, 1))
    u = jnp.transpose(u_nchw, (0, 2, 3, 1))
    up = jax.lax.conv_general_dilated(
        u.astype(cd), params["upconv_w"].astype(cd), (1, 1), ((1, 2), (1, 2)),
        lhs_dilation=(2, 2), dimension_numbers=dn,
        preferred_element_type=jnp.float32) + params["upconv_b"]
    ph, pw = x_nchw.shape[2] % 2, x_nchw.shape[3] % 2
    up = jnp.pad(up, ((0, 0), (ph, 0), (pw, 0), (0, 0)))
    if skip == SKIP:
        x1 = jnp.concatenate([x, up], axis=-1)
    elif skip == ZERO_SKIP:
        x1 = jnp.concatenate([jnp.zeros_like(x), up], axis=-1)
    else:
        x1 = up
    x2 = jax.nn.relu(jax.lax.conv_general_dilated(
        x1.astype(cd), params["conv1_w"].astype(cd), (1, 1), ((1, 1), (1, 1)),
        dimension_numbers=dn, preferred_element_type=jnp.float32)
        + params["conv1_b"])
    x3 = jax.nn.relu(jax.lax.conv_general_dilated(
        x2.astype(cd), params["conv2_w"].astype(cd), (1, 1), ((1, 1), (1, 1)),
        dimension_numbers=dn, preferred_element_type=jnp.float32)
        + params["conv2_b"])
    return jnp.transpose(x3, (0, 3, 1, 2))


# --------------------------------- main ------------------------------------ #

if __name__ == "__main__":
    key = jax.random.PRNGKey(0)
    ch_out = 4
    k_params, k_x, k_u, k_x2, k_u2 = jax.random.split(key, 5)
    params = init_params(k_params, ch_out)
    fparams_skip = prepare_folded_params(params, skip=SKIP)
    fparams_zero = prepare_folded_params(params, skip=ZERO_SKIP)

    def check(out, ref, tag):
        err = float(jnp.max(jnp.abs(out - ref)))
        assert bool(jnp.allclose(out, ref, atol=3e-2, rtol=3e-2)), \
            f"{tag}: mismatch vs reference (max abs err {err})"

    # ---- primary: even H/W, SKIP path ----
    N, H, W = 2, 16, 16
    x = jax.random.normal(k_x, (N, ch_out, H, W), jnp.float32)
    u = jax.random.normal(k_u, (N, 2 * ch_out, H // 2, W // 2), jnp.float32)
    fwd = jax.jit(functools.partial(upblock_forward, skip=SKIP))
    out = jax.block_until_ready(fwd(fparams_skip, x, u))
    assert out.shape == (N, ch_out, H, W), out.shape
    check(out, jax.block_until_ready(ref_forward(params, x, u, skip=SKIP)),
          "SKIP/even")

    # ---- odd H/W (exercises padding=[1,1] top/left shift), SKIP path ----
    Ho_, Wo_ = 17, 15
    x_o = jax.random.normal(k_x2, (1, ch_out, Ho_, Wo_), jnp.float32)
    u_o = jax.random.normal(k_u2, (1, 2 * ch_out, Ho_ // 2, Wo_ // 2),
                            jnp.float32)
    out_o = jax.block_until_ready(fwd(fparams_skip, x_o, u_o))
    assert out_o.shape == (1, ch_out, Ho_, Wo_), out_o.shape
    check(out_o, ref_forward(params, x_o, u_o, skip=SKIP), "SKIP/odd")

    # ---- ZERO_SKIP path ----
    fwd_z = jax.jit(functools.partial(upblock_forward, skip=ZERO_SKIP))
    out_z = jax.block_until_ready(fwd_z(fparams_zero, x, u))
    check(out_z, ref_forward(params, x, u, skip=ZERO_SKIP), "ZERO_SKIP/even")

    print("KERNEL_OK")
</pallas_src>

<mosaic_0001>
module attributes {stable_mosaic.version = 11 : i64} {
  func.func @_conv_taps_kernel(%arg0: i32, %arg1: i32, %arg2: memref<1x9x9x8xbf16, #tpu.memory_space<vmem>>, %arg3: memref<32x32xbf16, #tpu.memory_space<vmem>>, %arg4: memref<1x32xf32, #tpu.memory_space<vmem>>, %arg5: memref<1x8x8x32xbf16, #tpu.memory_space<vmem>>) attributes {dimension_semantics = [#tpu.dimension_semantics<parallel>, #tpu.dimension_semantics<parallel>], iteration_bounds = array<i64: 2, 1>, scalar_prefetch = 0 : i64, scratch_operands = 0 : i64, tpu.core_type = #tpu.core_type<tc>, window_params = [{transform_indices = @transform_0, window_bounds = array<i64: 1, 9, 9, 8>}, {pipeline_mode = #tpu.pipeline_mode<synchronous>, transform_indices = @transform_1, window_bounds = array<i64: 32, 32>}, {pipeline_mode = #tpu.pipeline_mode<synchronous>, transform_indices = @transform_2, window_bounds = array<i64: 1, 32>}, {transform_indices = @transform_3, window_bounds = array<i64: 1, 8, 8, 32>}]} {
    %c8_i32 = arith.constant 8 : i32
    %0 = arith.muli %arg1, %c8_i32 : i32
    %1 = tpu.assume_multiple %0, 8 : i32
    %c0_i32 = arith.constant 0 : i32
    %2 = arith.addi %1, %c0_i32 : i32
    %c0 = arith.constant 0 : index
    %3 = arith.index_cast %2 : i32 to index
    %c0_0 = arith.constant 0 : index
    %c0_1 = arith.constant 0 : index
    %4 = vector.load %arg2[%c0, %3, %c0_0, %c0_1] : memref<1x9x9x8xbf16, #tpu.memory_space<vmem>>, vector<1x8x8x8xbf16>
    %5 = vector.shape_cast %4 : vector<1x8x8x8xbf16> to vector<8x8x8xbf16>
    %c0_i32_2 = arith.constant 0 : i32
    %6 = arith.addi %1, %c0_i32_2 : i32
    %c0_3 = arith.constant 0 : index
    %7 = arith.index_cast %6 : i32 to index
    %c1 = arith.constant 1 : index
    %c0_4 = arith.constant 0 : index
    %8 = vector.load %arg2[%c0_3, %7, %c1, %c0_4] : memref<1x9x9x8xbf16, #tpu.memory_space<vmem>>, vector<1x8x8x8xbf16>
    %9 = vector.shape_cast %8 : vector<1x8x8x8xbf16> to vector<8x8x8xbf16>
    %c1_i32 = arith.constant 1 : i32
    %10 = arith.addi %1, %c1_i32 : i32
    %c0_5 = arith.constant 0 : index
    %11 = arith.index_cast %10 : i32 to index
    %c0_6 = arith.constant 0 : index
    %c0_7 = arith.constant 0 : index
    %12 = vector.load %arg2[%c0_5, %11, %c0_6, %c0_7] : memref<1x9x9x8xbf16, #tpu.memory_space<vmem>>, vector<1x8x8x8xbf16>
    %13 = vector.shape_cast %12 : vector<1x8x8x8xbf16> to vector<8x8x8xbf16>
    %c1_i32_8 = arith.constant 1 : i32
    %14 = arith.addi %1, %c1_i32_8 : i32
    %c0_9 = arith.constant 0 : index
    %15 = arith.index_cast %14 : i32 to index
    %c1_10 = arith.constant 1 : index
    %c0_11 = arith.constant 0 : index
    %16 = vector.load %arg2[%c0_9, %15, %c1_10, %c0_11] : memref<1x9x9x8xbf16, #tpu.memory_space<vmem>>, vector<1x8x8x8xbf16>
    %17 = vector.shape_cast %16 : vector<1x8x8x8xbf16> to vector<8x8x8xbf16>
    %18 = tpu.concatenate %5, %9, %13, %17 in 2 : vector<8x8x8xbf16>, vector<8x8x8xbf16>, vector<8x8x8xbf16>, vector<8x8x8xbf16> -> vector<8x8x32xbf16>
    %19 = vector.shape_cast %18 : vector<8x8x32xbf16> to vector<64x32xbf16>
    %c0_12 = arith.constant 0 : index
    %c0_13 = arith.constant 0 : index
    %20 = vector.load %arg3[%c0_12, %c0_13] : memref<32x32xbf16, #tpu.memory_space<vmem>>, vector<32x32xbf16>
    %cst = arith.constant dense<0.000000e+00> : vector<64x32xf32>
    %21 = tpu.matmul %19, %20, %cst {dimension_numbers = #tpu.dot_dimension_numbers<[1], [0], [0], [1], [0, 0, 1, 1], [], []>} : vector<64x32xbf16>, vector<32x32xbf16>, vector<64x32xf32> -> vector<64x32xf32>
    %c0_14 = arith.constant 0 : index
    %c0_15 = arith.constant 0 : index
    %22 = vector.load %arg4[%c0_14, %c0_15] : memref<1x32xf32, #tpu.memory_space<vmem>>, vector<1x32xf32>
    %23 = vector.broadcast %22 : vector<1x32xf32> to vector<64x32xf32>
    %24 = arith.addf %21, %23 : vector<64x32xf32>
    %25 = vector.shape_cast %24 : vector<64x32xf32> to vector<8x8x32xf32>
    %26 = arith.truncf %25 : vector<8x8x32xf32> to vector<8x8x32xbf16>
    %c0_16 = arith.constant 0 : index
    %c0_17 = arith.constant 0 : index
    %c0_18 = arith.constant 0 : index
    %c0_19 = arith.constant 0 : index
    %27 = vector.load %arg5[%c0_16, %c0_17, %c0_18, %c0_19] : memref<1x8x8x32xbf16, #tpu.memory_space<vmem>>, vector<1x8x8x32xbf16>
    %28 = vector.shape_cast %27 : vector<1x8x8x32xbf16> to vector<8x8x32xbf16>
    %29 = vector.shape_cast %26 : vector<8x8x32xbf16> to vector<1x8x8x32xbf16>
    tpu.vector_store %arg5[%c0_16, %c0_17, %c0_18, %c0_19], %29 {strides = array<i32>} : memref<1x8x8x32xbf16, #tpu.memory_space<vmem>>, vector<1x8x8x32xbf16>,
    return
  }
  func.func @transform_0(%arg0: i32, %arg1: i32) -> (i32, i32, i32, i32) {
    %c0_i32 = arith.constant 0 : i32
    %c0_i32_0 = arith.constant 0 : i32
    %c0_i32_1 = arith.constant 0 : i32
    %c0_i32_2 = arith.constant 0 : i32
    return %arg0, %c0_i32, %c0_i32_0, %c0_i32_1 : i32, i32, i32, i32
  }
  func.func @transform_1(%arg0: i32, %arg1: i32) -> (i32, i32) {
    %c0_i32 = arith.constant 0 : i32
    %c0_i32_0 = arith.constant 0 : i32
    %c0_i32_1 = arith.constant 0 : i32
    return %c0_i32, %c0_i32_0 : i32, i32
  }
  func.func @transform_2(%arg0: i32, %arg1: i32) -> (i32, i32) {
    %c0_i32 = arith.constant 0 : i32
    %c0_i32_0 = arith.constant 0 : i32
    %c0_i32_1 = arith.constant 0 : i32
    return %c0_i32, %c0_i32_0 : i32, i32
  }
  func.func @transform_3(%arg0: i32, %arg1: i32) -> (i32, i32, i32, i32) {
    %c0_i32 = arith.constant 0 : i32
    %c0_i32_0 = arith.constant 0 : i32
    %c0_i32_1 = arith.constant 0 : i32
    return %arg0, %arg1, %c0_i32, %c0_i32_0 : i32, i32, i32, i32
  }
}

module attributes {stable_mosaic.version = 11 : i64} {
  func.func @_conv_taps_kernel(%arg0: i32, %arg1: i32, %arg2: memref<1x18x18x4xbf16, #tpu.memory_space<vmem>>, %arg3: memref<1x18x18x8xbf16, #tpu.memory_space<vmem>>, %arg4: memref<108x4xbf16, #tpu.memory_space<vmem>>, %arg5: memref<1x4xf32, #tpu.memory_space<vmem>>, %arg6: memref<1x16x16x4xbf16, #tpu.memory_space<vmem>>) attributes {dimension_semantics = [#tpu.dimension_semantics<parallel>, #tpu.dimension_semantics<parallel>], iteration_bounds = array<i64: 2, 1>, scalar_prefetch = 0 : i64, scratch_operands = 0 : i64, tpu.core_type = #tpu.core_type<tc>, window_params = [{transform_indices = @transform_0, window_bounds = array<i64: 1, 18, 18, 4>}, {transform_indices = @transform_1, window_bounds = array<i64: 1, 18, 18, 8>}, {pipeline_mode = #tpu.pipeline_mode<synchronous>, transform_indices = @transform_2, window_bounds = array<i64: 108, 4>}, {pipeline_mode = #tpu.pipeline_mode<synchronous>, transform_indices = @transform_3, window_bounds = array<i64: 1, 4>}, {transform_indices = @transform_4, window_bounds = array<i64: 1, 16, 16, 4>}]} {
    %c16_i32 = arith.constant 16 : i32
    %0 = arith.muli %arg1, %c16_i32 : i32
    %1 = tpu.assume_multiple %0, 16 : i32
    %c0_i32 = arith.constant 0 : i32
    %2 = arith.addi %1, %c0_i32 : i32
    %c0 = arith.constant 0 : index
    %3 = arith.index_cast %2 : i32 to index
    %c0_0 = arith.constant 0 : index
    %c0_1 = arith.constant 0 : index
    %4 = vector.load %arg2[%c0, %3, %c0_0, %c0_1] : memref<1x18x18x4xbf16, #tpu.memory_space<vmem>>, vector<1x16x16x4xbf16>
    %5 = vector.shape_cast %4 : vector<1x16x16x4xbf16> to vector<16x16x4xbf16>
    %c0_i32_2 = arith.constant 0 : i32
    %6 = arith.addi %1, %c0_i32_2 : i32
    %c0_3 = arith.constant 0 : index
    %7 = arith.index_cast %6 : i32 to index
    %c1 = arith.constant 1 : index
    %c0_4 = arith.constant 0 : index
    %8 = vector.load %arg2[%c0_3, %7, %c1, %c0_4] : memref<1x18x18x4xbf16, #tpu.memory_space<vmem>>, vector<1x16x16x4xbf16>
    %9 = vector.shape_cast %8 : vector<1x16x16x4xbf16> to vector<16x16x4xbf16>
    %c0_i32_5 = arith.constant 0 : i32
    %10 = arith.addi %1, %c0_i32_5 : i32
    %c0_6 = arith.constant 0 : index
    %11 = arith.index_cast %10 : i32 to index
    %c2 = arith.constant 2 : index
    %c0_7 = arith.constant 0 : index
    %12 = vector.load %arg2[%c0_6, %11, %c2, %c0_7] : memref<1x18x18x4xbf16, #tpu.memory_space<vmem>>, vector<1x16x16x4xbf16>
    %13 = vector.shape_cast %12 : vector<1x16x16x4xbf16> to vector<16x16x4xbf16>
    %c1_i32 = arith.constant 1 : i32
    %14 = arith.addi %1, %c1_i32 : i32
    %c0_8 = arith.constant 0 : index
    %15 = arith.index_cast %14 : i32 to index
    %c0_9 = arith.constant 0 : index
    %c0_10 = arith.constant 0 : index
    %16 = vector.load %arg2[%c0_8, %15, %c0_9, %c0_10] : memref<1x18x18x4xbf16, #tpu.memory_space<vmem>>, vector<1x16x16x4xbf16>
    %17 = vector.shape_cast %16 : vector<1x16x16x4xbf16> to vector<16x16x4xbf16>
    %c1_i32_11 = arith.constant 1 : i32
    %18 = arith.addi %1, %c1_i32_11 : i32
    %c0_12 = arith.constant 0 : index
    %19 = arith.index_cast %18 : i32 to index
    %c1_13 = arith.constant 1 : index
    %c0_14 = arith.constant 0 : index
    %20 = vector.load %arg2[%c0_12, %19, %c1_13, %c0_14] : memref<1x18x18x4xbf16, #tpu.memory_space<vmem>>, vector<1x16x16x4xbf16>
    %21 = vector.shape_cast %20 : vector<1x16x16x4xbf16> to vector<16x16x4xbf16>
    %c1_i32_15 = arith.constant 1 : i32
    %22 = arith.addi %1, %c1_i32_15 : i32
    %c0_16 = arith.constant 0 : index
    %23 = arith.index_cast %22 : i32 to index
    %c2_17 = arith.constant 2 : index
    %c0_18 = arith.constant 0 : index
    %24 = vector.load %arg2[%c0_16, %23, %c2_17, %c0_18] : memref<1x18x18x4xbf16, #tpu.memory_space<vmem>>, vector<1x16x16x4xbf16>
    %25 = vector.shape_cast %24 : vector<1x16x16x4xbf16> to vector<16x16x4xbf16>
    %c2_i32 = arith.constant 2 : i32
    %26 = arith.addi %1, %c2_i32 : i32
    %c0_19 = arith.constant 0 : index
    %27 = arith.index_cast %26 : i32 to index
    %c0_20 = arith.constant 0 : index
    %c0_21 = arith.constant 0 : index
    %28 = vector.load %arg2[%c0_19, %27, %c0_20, %c0_21] : memref<1x18x18x4xbf16, #tpu.memory_space<vmem>>, vector<1x16x16x4xbf16>
    %29 = vector.shape_cast %28 : vector<1x16x16x4xbf16> to vector<16x16x4xbf16>
    %c2_i32_22 = arith.constant 2 : i32
    %30 = arith.addi %1, %c2_i32_22 : i32
    %c0_23 = arith.constant 0 : index
    %31 = arith.index_cast %30 : i32 to index
    %c1_24 = arith.constant 1 : index
    %c0_25 = arith.constant 0 : index
    %32 = vector.load %arg2[%c0_23, %31, %c1_24, %c0_25] : memref<1x18x18x4xbf16, #tpu.memory_space<vmem>>, vector<1x16x16x4xbf16>
    %33 = vector.shape_cast %32 : vector<1x16x16x4xbf16> to vector<16x16x4xbf16>
    %c2_i32_26 = arith.constant 2 : i32
    %34 = arith.addi %1, %c2_i32_26 : i32
    %c0_27 = arith.constant 0 : index
    %35 = arith.index_cast %34 : i32 to index
    %c2_28 = arith.constant 2 : index
    %c0_29 = arith.constant 0 : index
    %36 = vector.load %arg2[%c0_27, %35, %c2_28, %c0_29] : memref<1x18x18x4xbf16, #tpu.memory_space<vmem>>, vector<1x16x16x4xbf16>
    %37 = vector.shape_cast %36 : vector<1x16x16x4xbf16> to vector<16x16x4xbf16>
    %c0_i32_30 = arith.constant 0 : i32
    %38 = arith.addi %1, %c0_i32_30 : i32
    %c0_31 = arith.constant 0 : index
    %39 = arith.index_cast %38 : i32 to index
    %c0_32 = arith.constant 0 : index
    %c0_33 = arith.constant 0 : index
    %40 = vector.load %arg3[%c0_31, %39, %c0_32, %c0_33] : memref<1x18x18x8xbf16, #tpu.memory_space<vmem>>, vector<1x16x16x8xbf16>
    %41 = vector.shape_cast %40 : vector<1x16x16x8xbf16> to vector<16x16x8xbf16>
    %c0_i32_34 = arith.constant 0 : i32
    %42 = arith.addi %1, %c0_i32_34 : i32
    %c0_35 = arith.constant 0 : index
    %43 = arith.index_cast %42 : i32 to index
    %c1_36 = arith.constant 1 : index
    %c0_37 = arith.constant 0 : index
    %44 = vector.load %arg3[%c0_35, %43, %c1_36, %c0_37] : memref<1x18x18x8xbf16, #tpu.memory_space<vmem>>, vector<1x16x16x8xbf16>
    %45 = vector.shape_cast %44 : vector<1x16x16x8xbf16> to vector<16x16x8xbf16>
    %c0_i32_38 = arith.constant 0 : i32
    %46 = arith.addi %1, %c0_i32_38 : i32
    %c0_39 = arith.constant 0 : index
    %47 = arith.index_cast %46 : i32 to index
    %c2_40 = arith.constant 2 : index
    %c0_41 = arith.constant 0 : index
    %48 = vector.load %arg3[%c0_39, %47, %c2_40, %c0_41] : memref<1x18x18x8xbf16, #tpu.memory_space<vmem>>, vector<1x16x16x8xbf16>
    %49 = vector.shape_cast %48 : vector<1x16x16x8xbf16> to vector<16x16x8xbf16>
    %c1_i32_42 = arith.constant 1 : i32
    %50 = arith.addi %1, %c1_i32_42 : i32
    %c0_43 = arith.constant 0 : index
    %51 = arith.index_cast %50 : i32 to index
    %c0_44 = arith.constant 0 : index
    %c0_45 = arith.constant 0 : index
    %52 = vector.load %arg3[%c0_43, %51, %c0_44, %c0_45] : memref<1x18x18x8xbf16, #tpu.memory_space<vmem>>, vector<1x16x16x8xbf16>
    %53 = vector.shape_cast %52 : vector<1x16x16x8xbf16> to vector<16x16x8xbf16>
    %c1_i32_46 = arith.constant 1 : i32
    %54 = arith.addi %1, %c1_i32_46 : i32
    %c0_47 = arith.constant 0 : index
    %55 = arith.index_cast %54 : i32 to index
    %c1_48 = arith.constant 1 : index
    %c0_49 = arith.constant 0 : index
    %56 = vector.load %arg3[%c0_47, %55, %c1_48, %c0_49] : memref<1x18x18x8xbf16, #tpu.memory_space<vmem>>, vector<1x16x16x8xbf16>
    %57 = vector.shape_cast %56 : vector<1x16x16x8xbf16> to vector<16x16x8xbf16>
    %c1_i32_50 = arith.constant 1 : i32
    %58 = arith.addi %1, %c1_i32_50 : i32
    %c0_51 = arith.constant 0 : index
    %59 = arith.index_cast %58 : i32 to index
    %c2_52 = arith.constant 2 : index
    %c0_53 = arith.constant 0 : index
    %60 = vector.load %arg3[%c0_51, %59, %c2_52, %c0_53] : memref<1x18x18x8xbf16, #tpu.memory_space<vmem>>, vector<1x16x16x8xbf16>
    %61 = vector.shape_cast %60 : vector<1x16x16x8xbf16> to vector<16x16x8xbf16>
    %c2_i32_54 = arith.constant 2 : i32
    %62 = arith.addi %1, %c2_i32_54 : i32
    %c0_55 = arith.constant 0 : index
    %63 = arith.index_cast %62 : i32 to index
    %c0_56 = arith.constant 0 : index
    %c0_57 = arith.constant 0 : index
    %64 = vector.load %arg3[%c0_55, %63, %c0_56, %c0_57] : memref<1x18x18x8xbf16, #tpu.memory_space<vmem>>, vector<1x16x16x8xbf16>
    %65 = vector.shape_cast %64 : vector<1x16x16x8xbf16> to vector<16x16x8xbf16>
    %c2_i32_58 = arith.constant 2 : i32
    %66 = arith.addi %1, %c2_i32_58 : i32
    %c0_59 = arith.constant 0 : index
    %67 = arith.index_cast %66 : i32 to index
    %c1_60 = arith.constant 1 : index
    %c0_61 = arith.constant 0 : index
    %68 = vector.load %arg3[%c0_59, %67, %c1_60, %c0_61] : memref<1x18x18x8xbf16, #tpu.memory_space<vmem>>, vector<1x16x16x8xbf16>
    %69 = vector.shape_cast %68 : vector<1x16x16x8xbf16> to vector<16x16x8xbf16>
    %c2_i32_62 = arith.constant 2 : i32
    %70 = arith.addi %1, %c2_i32_62 : i32
    %c0_63 = arith.constant 0 : index
    %71 = arith.index_cast %70 : i32 to index
    %c2_64 = arith.constant 2 : index
    %c0_65 = arith.constant 0 : index
    %72 = vector.load %arg3[%c0_63, %71, %c2_64, %c0_65] : memref<1x18x18x8xbf16, #tpu.memory_space<vmem>>, vector<1x16x16x8xbf16>
    %73 = vector.shape_cast %72 : vector<1x16x16x8xbf16> to vector<16x16x8xbf16>
    %74 = tpu.concatenate %5, %9, %13, %17, %21, %25, %29, %33, %37, %41, %45, %49, %53, %57, %61, %65 in 2 : vector<16x16x4xbf16>, vector<16x16x4xbf16>, vector<16x16x4xbf16>, vector<16x16x4xbf16>, vector<16x16x4xbf16>, vector<16x16x4xbf16>, vector<16x16x4xbf16>, vector<16x16x4xbf16>, vector<16x16x4xbf16>, vector<16x16x8xbf16>, vector<16x16x8xbf16>, vector<16x16x8xbf16>, vector<16x16x8xbf16>, vector<16x16x8xbf16>, vector<16x16x8xbf16>, vector<16x16x8xbf16> -> vector<16x16x92xbf16>
    %75 = tpu.concatenate %69, %73 in 2 : vector<16x16x8xbf16>, vector<16x16x8xbf16> -> vector<16x16x16xbf16>
    %76 = tpu.concatenate %74, %75 in 2 : vector<16x16x92xbf16>, vector<16x16x16xbf16> -> vector<16x16x108xbf16>
    %77 = vector.shape_cast %76 : vector<16x16x108xbf16> to vector<256x108xbf16>
    %c0_66 = arith.constant 0 : index
    %c0_67 = arith.constant 0 : index
    %78 = vector.load %arg4[%c0_66, %c0_67] : memref<108x4xbf16, #tpu.memory_space<vmem>>, vector<108x4xbf16>
    %cst = arith.constant dense<0.000000e+00> : vector<256x4xf32>
    %79 = tpu.matmul %77, %78, %cst {dimension_numbers = #tpu.dot_dimension_numbers<[1], [0], [0], [1], [0, 0, 1, 1], [], []>} : vector<256x108xbf16>, vector<108x4xbf16>, vector<256x4xf32> -> vector<256x4xf32>
    %c0_68 = arith.constant 0 : index
    %c0_69 = arith.constant 0 : index
    %80 = vector.load %arg5[%c0_68, %c0_69] : memref<1x4xf32, #tpu.memory_space<vmem>>, vector<1x4xf32>
    %81 = vector.broadcast %80 : vector<1x4xf32> to vector<256x4xf32>
    %82 = arith.addf %79, %81 : vector<256x4xf32>
    %cst_70 = arith.constant 0.000000e+00 : f32
    %83 = vector.broadcast %cst_70 : f32 to vector<256x4xf32>
    %84 = arith.maximumf %82, %83 : vector<256x4xf32>
    %85 = vector.shape_cast %84 : vector<256x4xf32> to vector<16x16x4xf32>
    %86 = arith.truncf %85 : vector<16x16x4xf32> to vector<16x16x4xbf16>
    %c0_71 = arith.constant 0 : index
    %c0_72 = arith.constant 0 : index
    %c0_73 = arith.constant 0 : index
    %c0_74 = arith.constant 0 : index
    %87 = vector.load %arg6[%c0_71, %c0_72, %c0_73, %c0_74] : memref<1x16x16x4xbf16, #tpu.memory_space<vmem>>, vector<1x16x16x4xbf16>
    %88 = vector.shape_cast %87 : vector<1x16x16x4xbf16> to vector<16x16x4xbf16>
    %89 = vector.shape_cast %86 : vector<16x16x4xbf16> to vector<1x16x16x4xbf16>
    tpu.vector_store %arg6[%c0_71, %c0_72, %c0_73, %c0_74], %89 {strides = array<i32>} : memref<1x16x16x4xbf16, #tpu.memory_space<vmem>>, vector<1x16x16x4xbf16>,
    return
  }
  func.func @transform_0(%arg0: i32, %arg1: i32) -> (i32, i32, i32, i32) {
    %c0_i32 = arith.constant 0 : i32
    %c0_i32_0 = arith.constant 0 : i32
    %c0_i32_1 = arith.constant 0 : i32
    %c0_i32_2 = arith.constant 0 : i32
    return %arg0, %c0_i32, %c0_i32_0, %c0_i32_1 : i32, i32, i32, i32
  }
  func.func @transform_1(%arg0: i32, %arg1: i32) -> (i32, i32, i32, i32) {
    %c0_i32 = arith.constant 0 : i32
    %c0_i32_0 = arith.constant 0 : i32
    %c0_i32_1 = arith.constant 0 : i32
    %c0_i32_2 = arith.constant 0 : i32
    return %arg0, %c0_i32, %c0_i32_0, %c0_i32_1 : i32, i32, i32, i32
  }
  func.func @transform_2(%arg0: i32, %arg1: i32) -> (i32, i32) {
    %c0_i32 = arith.constant 0 : i32
    %c0_i32_0 = arith.constant 0 : i32
    %c0_i32_1 = arith.constant 0 : i32
    return %c0_i32, %c0_i32_0 : i32, i32
  }
  func.func @transform_3(%arg0: i32, %arg1: i32) -> (i32, i32) {
    %c0_i32 = arith.constant 0 : i32
    %c0_i32_0 = arith.constant 0 : i32
    %c0_i32_1 = arith.constant 0 : i32
    return %c0_i32, %c0_i32_0 : i32, i32
  }
  func.func @transform_4(%arg0: i32, %arg1: i32) -> (i32, i32, i32, i32) {
    %c0_i32 = arith.constant 0 : i32
    %c0_i32_0 = arith.constant 0 : i32
    %c0_i32_1 = arith.constant 0 : i32
    return %arg0, %arg1, %c0_i32, %c0_i32_0 : i32, i32, i32, i32
  }
}

module attributes {stable_mosaic.version = 11 : i64} {
  func.func @_conv_taps_kernel(%arg0: i32, %arg1: i32, %arg2: memref<1x18x18x4xbf16, #tpu.memory_space<vmem>>, %arg3: memref<36x4xbf16, #tpu.memory_space<vmem>>, %arg4: memref<1x4xf32, #tpu.memory_space<vmem>>, %arg5: memref<1x16x16x4xf32, #tpu.memory_space<vmem>>) attributes {dimension_semantics = [#tpu.dimension_semantics<parallel>, #tpu.dimension_semantics<parallel>], iteration_bounds = array<i64: 2, 1>, scalar_prefetch = 0 : i64, scratch_operands = 0 : i64, tpu.core_type = #tpu.core_type<tc>, window_params = [{transform_indices = @transform_0, window_bounds = array<i64: 1, 18, 18, 4>}, {pipeline_mode = #tpu.pipeline_mode<synchronous>, transform_indices = @transform_1, window_bounds = array<i64: 36, 4>}, {pipeline_mode = #tpu.pipeline_mode<synchronous>, transform_indices = @transform_2, window_bounds = array<i64: 1, 4>}, {transform_indices = @transform_3, window_bounds = array<i64: 1, 16, 16, 4>}]} {
    %c16_i32 = arith.constant 16 : i32
    %0 = arith.muli %arg1, %c16_i32 : i32
    %1 = tpu.assume_multiple %0, 16 : i32
    %c0_i32 = arith.constant 0 : i32
    %2 = arith.addi %1, %c0_i32 : i32
    %c0 = arith.constant 0 : index
    %3 = arith.index_cast %2 : i32 to index
    %c0_0 = arith.constant 0 : index
    %c0_1 = arith.constant 0 : index
    %4 = vector.load %arg2[%c0, %3, %c0_0, %c0_1] : memref<1x18x18x4xbf16, #tpu.memory_space<vmem>>, vector<1x16x16x4xbf16>
    %5 = vector.shape_cast %4 : vector<1x16x16x4xbf16> to vector<16x16x4xbf16>
    %c0_i32_2 = arith.constant 0 : i32
    %6 = arith.addi %1, %c0_i32_2 : i32
    %c0_3 = arith.constant 0 : index
    %7 = arith.index_cast %6 : i32 to index
    %c1 = arith.constant 1 : index
    %c0_4 = arith.constant 0 : index
    %8 = vector.load %arg2[%c0_3, %7, %c1, %c0_4] : memref<1x18x18x4xbf16, #tpu.memory_space<vmem>>, vector<1x16x16x4xbf16>
    %9 = vector.shape_cast %8 : vector<1x16x16x4xbf16> to vector<16x16x4xbf16>
    %c0_i32_5 = arith.constant 0 : i32
    %10 = arith.addi %1, %c0_i32_5 : i32
    %c0_6 = arith.constant 0 : index
    %11 = arith.index_cast %10 : i32 to index
    %c2 = arith.constant 2 : index
    %c0_7 = arith.constant 0 : index
    %12 = vector.load %arg2[%c0_6, %11, %c2, %c0_7] : memref<1x18x18x4xbf16, #tpu.memory_space<vmem>>, vector<1x16x16x4xbf16>
    %13 = vector.shape_cast %12 : vector<1x16x16x4xbf16> to vector<16x16x4xbf16>
    %c1_i32 = arith.constant 1 : i32
    %14 = arith.addi %1, %c1_i32 : i32
    %c0_8 = arith.constant 0 : index
    %15 = arith.index_cast %14 : i32 to index
    %c0_9 = arith.constant 0 : index
    %c0_10 = arith.constant 0 : index
    %16 = vector.load %arg2[%c0_8, %15, %c0_9, %c0_10] : memref<1x18x18x4xbf16, #tpu.memory_space<vmem>>, vector<1x16x16x4xbf16>
    %17 = vector.shape_cast %16 : vector<1x16x16x4xbf16> to vector<16x16x4xbf16>
    %c1_i32_11 = arith.constant 1 : i32
    %18 = arith.addi %1, %c1_i32_11 : i32
    %c0_12 = arith.constant 0 : index
    %19 = arith.index_cast %18 : i32 to index
    %c1_13 = arith.constant 1 : index
    %c0_14 = arith.constant 0 : index
    %20 = vector.load %arg2[%c0_12, %19, %c1_13, %c0_14] : memref<1x18x18x4xbf16, #tpu.memory_space<vmem>>, vector<1x16x16x4xbf16>
    %21 = vector.shape_cast %20 : vector<1x16x16x4xbf16> to vector<16x16x4xbf16>
    %c1_i32_15 = arith.constant 1 : i32
    %22 = arith.addi %1, %c1_i32_15 : i32
    %c0_16 = arith.constant 0 : index
    %23 = arith.index_cast %22 : i32 to index
    %c2_17 = arith.constant 2 : index
    %c0_18 = arith.constant 0 : index
    %24 = vector.load %arg2[%c0_16, %23, %c2_17, %c0_18] : memref<1x18x18x4xbf16, #tpu.memory_space<vmem>>, vector<1x16x16x4xbf16>
    %25 = vector.shape_cast %24 : vector<1x16x16x4xbf16> to vector<16x16x4xbf16>
    %c2_i32 = arith.constant 2 : i32
    %26 = arith.addi %1, %c2_i32 : i32
    %c0_19 = arith.constant 0 : index
    %27 = arith.index_cast %26 : i32 to index
    %c0_20 = arith.constant 0 : index
    %c0_21 = arith.constant 0 : index
    %28 = vector.load %arg2[%c0_19, %27, %c0_20, %c0_21] : memref<1x18x18x4xbf16, #tpu.memory_space<vmem>>, vector<1x16x16x4xbf16>
    %29 = vector.shape_cast %28 : vector<1x16x16x4xbf16> to vector<16x16x4xbf16>
    %c2_i32_22 = arith.constant 2 : i32
    %30 = arith.addi %1, %c2_i32_22 : i32
    %c0_23 = arith.constant 0 : index
    %31 = arith.index_cast %30 : i32 to index
    %c1_24 = arith.constant 1 : index
    %c0_25 = arith.constant 0 : index
    %32 = vector.load %arg2[%c0_23, %31, %c1_24, %c0_25] : memref<1x18x18x4xbf16, #tpu.memory_space<vmem>>, vector<1x16x16x4xbf16>
    %33 = vector.shape_cast %32 : vector<1x16x16x4xbf16> to vector<16x16x4xbf16>
    %c2_i32_26 = arith.constant 2 : i32
    %34 = arith.addi %1, %c2_i32_26 : i32
    %c0_27 = arith.constant 0 : index
    %35 = arith.index_cast %34 : i32 to index
    %c2_28 = arith.constant 2 : index
    %c0_29 = arith.constant 0 : index
    %36 = vector.load %arg2[%c0_27, %35, %c2_28, %c0_29] : memref<1x18x18x4xbf16, #tpu.memory_space<vmem>>, vector<1x16x16x4xbf16>
    %37 = vector.shape_cast %36 : vector<1x16x16x4xbf16> to vector<16x16x4xbf16>
    %38 = tpu.concatenate %5, %9, %13, %17, %21, %25, %29, %33, %37 in 2 : vector<16x16x4xbf16>, vector<16x16x4xbf16>, vector<16x16x4xbf16>, vector<16x16x4xbf16>, vector<16x16x4xbf16>, vector<16x16x4xbf16>, vector<16x16x4xbf16>, vector<16x16x4xbf16>, vector<16x16x4xbf16> -> vector<16x16x36xbf16>
    %39 = vector.shape_cast %38 : vector<16x16x36xbf16> to vector<256x36xbf16>
    %c0_30 = arith.constant 0 : index
    %c0_31 = arith.constant 0 : index
    %40 = vector.load %arg3[%c0_30, %c0_31] : memref<36x4xbf16, #tpu.memory_space<vmem>>, vector<36x4xbf16>
    %cst = arith.constant dense<0.000000e+00> : vector<256x4xf32>
    %41 = tpu.matmul %39, %40, %cst {dimension_numbers = #tpu.dot_dimension_numbers<[1], [0], [0], [1], [0, 0, 1, 1], [], []>} : vector<256x36xbf16>, vector<36x4xbf16>, vector<256x4xf32> -> vector<256x4xf32>
    %c0_32 = arith.constant 0 : index
    %c0_33 = arith.constant 0 : index
    %42 = vector.load %arg4[%c0_32, %c0_33] : memref<1x4xf32, #tpu.memory_space<vmem>>, vector<1x4xf32>
    %43 = vector.broadcast %42 : vector<1x4xf32> to vector<256x4xf32>
    %44 = arith.addf %41, %43 : vector<256x4xf32>
    %cst_34 = arith.constant 0.000000e+00 : f32
    %45 = vector.broadcast %cst_34 : f32 to vector<256x4xf32>
    %46 = arith.maximumf %44, %45 : vector<256x4xf32>
    %47 = vector.shape_cast %46 : vector<256x4xf32> to vector<16x16x4xf32>
    %c0_35 = arith.constant 0 : index
    %c0_36 = arith.constant 0 : index
    %c0_37 = arith.constant 0 : index
    %c0_38 = arith.constant 0 : index
    %48 = vector.load %arg5[%c0_35, %c0_36, %c0_37, %c0_38] : memref<1x16x16x4xf32, #tpu.memory_space<vmem>>, vector<1x16x16x4xf32>
    %49 = vector.shape_cast %48 : vector<1x16x16x4xf32> to vector<16x16x4xf32>
    %50 = vector.shape_cast %47 : vector<16x16x4xf32> to vector<1x16x16x4xf32>
    tpu.vector_store %arg5[%c0_35, %c0_36, %c0_37, %c0_38], %50 {strides = array<i32>} : memref<1x16x16x4xf32, #tpu.memory_space<vmem>>, vector<1x16x16x4xf32>,
    return
  }
  func.func @transform_0(%arg0: i32, %arg1: i32) -> (i32, i32, i32, i32) {
    %c0_i32 = arith.constant 0 : i32
    %c0_i32_0 = arith.constant 0 : i32
    %c0_i32_1 = arith.constant 0 : i32
    %c0_i32_2 = arith.constant 0 : i32
    return %arg0, %c0_i32, %c0_i32_0, %c0_i32_1 : i32, i32, i32, i32
  }
  func.func @transform_1(%arg0: i32, %arg1: i32) -> (i32, i32) {
    %c0_i32 = arith.constant 0 : i32
    %c0_i32_0 = arith.constant 0 : i32
    %c0_i32_1 = arith.constant 0 : i32
    return %c0_i32, %c0_i32_0 : i32, i32
  }
  func.func @transform_2(%arg0: i32, %arg1: i32) -> (i32, i32) {
    %c0_i32 = arith.constant 0 : i32
    %c0_i32_0 = arith.constant 0 : i32
    %c0_i32_1 = arith.constant 0 : i32
    return %c0_i32, %c0_i32_0 : i32, i32
  }
  func.func @transform_3(%arg0: i32, %arg1: i32) -> (i32, i32, i32, i32) {
    %c0_i32 = arith.constant 0 : i32
    %c0_i32_0 = arith.constant 0 : i32
    %c0_i32_1 = arith.constant 0 : i32
    return %arg0, %arg1, %c0_i32, %c0_i32_0 : i32, i32, i32, i32
  }
}

</mosaic_0001>

<llo_original>
// kernel: upblock_forward.3
$region0: #{upblock_forward.3}
  #allocation0 [shape = 'u32[]', space=smem, size = 0x4, offset = 0x4, fixed_abs, tag = 'smem constant byte address 0x4 - core index']
  #allocation1 [shape = 'u32[144,128]{1,0:T(1,128)}', space=vmem, size = 0x12000, scoped, tag = 'internal scratch']
  %s0 = inlined_call_operand.vmem [shape: bf16[2,9,9,8], index: 0, kind: input, shape index: {}]
  %s1 = inlined_call_operand.vmem [shape: bf16[32,32], index: 1, kind: input, shape index: {}]
  %s2 = inlined_call_operand.vmem [shape: f32[1,32], index: 2, kind: input, shape index: {}]
  %s3 = inlined_call_operand.vmem [shape: bf16[2,8,8,32], index: 3, kind: output, shape index: {}]
  %s4 = sld [smem:[#allocation0]]
  $region45: #{upblock_forward.3} parent=0
    _
  %s6 = ssub.s32 1, %s4
  %s7 = scalar_select 0, %s6, %s4
  loop: start=0, step=1, limit=4
  $region2: #{upblock_forward.3} parent=0 // loop_pre_header
    _
  $region3: #{upblock_forward.3} parent=0 // loop_header
    %s9 = sphi 0, %s13
    %p10 = scmp.ge.s32.totalorder %s9, 4
    %s16 = sphi 0, %s28
    %s17 = sphi 0, %s24
    %s18 = sphi 0, %s16
    %s19 = sphi 0, %s17
    %s20 = sphi 0, %s18
    %s21 = sphi 0, %s19
    %s31 = sphi 0, %s33
    %s34 = sphi 0, %s31
    %s35 = sphi 0, %s34
    %s51 = sphi 0, %s35
    %s55 = sphi 0, %s55
    %s57 = sphi 0, %s55
    %s58 = sphi 0, %s57
    %s72 = sphi 0, %s58
    %s76 = sphi 0, %s76
    %s78 = sphi 0, %s76
    %s79 = sphi 0, %s78
    %s93 = sphi 0, %s79
    %s101 = sphi 0, %s103
    %s104 = sphi 0, %s101
    %s105 = sphi 0, %s104
    %s121 = sphi 0, %s105
  $region4: #{upblock_forward.3} parent=0 // loop_header_branch
    %12 = sbr.rel (%p10) target = $region8
  $region5: #{upblock_forward.3} parent=0 // loop_body
    %s14 = ssub.s32 %s9, 1
    %s15 = ssub.s32 %s9, 2
    %s22 = sadd.s32 1, %s17
    %p23 = scmp.ge.s32.totalorder %s22, 1
    %s24 = scalar_select %p23, 0, %s22
    %s25 = sadd.s32 1, %s16
    %s26 = scalar_select %p23, %s25, %s16
    %p27 = scmp.ge.s32.totalorder %s26, 2
    %s28 = scalar_select %p27, 0, %s26
    %s29 = ssub.s32 %s16, %s28
    %p30 = scmp.eq.s32.totalorder %s29, 0
    %s32 = sadd.s32 %s31, 1
    %s33 = scalar_select %p30, %s31, %s32
    %p36 = pneg %p30
    %p37 = scmp.eq.s32.totalorder %s9, 1
    %p38 = por %p36, %p37
    %p39 = scmp.ne.s32.totalorder %s31, %s34
    %p40 = scmp.eq.s32.totalorder %s9, 0
    %p41 = por %p39, %p40
    %p42 = scmp.ne.s32.totalorder %s31, %s34
    %p43 = scmp.eq.s32.totalorder %s14, 1
    %p44 = por %p42, %p43
    %p45 = scmp.ne.s32.totalorder %s34, %s35
    %p46 = scmp.eq.s32.totalorder %s14, 0
    %p47 = por %p45, %p46
    %p48 = scmp.ne.s32.totalorder %s34, %s35
    %p49 = scmp.eq.s32.totalorder %s15, 1
    %p50 = por %p48, %p49
    %p52 = scmp.ne.s32.totalorder %s35, %s51
    %p53 = scmp.eq.s32.totalorder %s15, 0
    %p54 = por %p52, %p53
    %s56 = sadd.s32 %s55, 1
    %p59 = scmp.eq.s32.totalorder %s9, 1
    %p60 = scmp.ne.s32.totalorder %s55, %s57
    %p61 = scmp.eq.s32.totalorder %s9, 0
    %p62 = por %p60, %p61
    %p63 = scmp.ne.s32.totalorder %s55, %s57
    %p64 = scmp.eq.s32.totalorder %s14, 1
    %p65 = por %p63, %p64
    %p66 = scmp.ne.s32.totalorder %s57, %s58
    %p67 = scmp.eq.s32.totalorder %s14, 0
    %p68 = por %p66, %p67
    %p69 = scmp.ne.s32.totalorder %s57, %s58
    %p70 = scmp.eq.s32.totalorder %s15, 1
    %p71 = por %p69, %p70
    %p73 = scmp.ne.s32.totalorder %s58, %s72
    %p74 = scmp.eq.s32.totalorder %s15, 0
    %p75 = por %p73, %p74
    %s77 = sadd.s32 %s76, 1
    %p80 = scmp.eq.s32.totalorder %s9, 1
    %p81 = scmp.ne.s32.totalorder %s76, %s78
    %p82 = scmp.eq.s32.totalorder %s9, 0
    %p83 = por %p81, %p82
    %p84 = scmp.ne.s32.totalorder %s76, %s78
    %p85 = scmp.eq.s32.totalorder %s14, 1
    %p86 = por %p84, %p85
    %p87 = scmp.ne.s32.totalorder %s78, %s79
    %p88 = scmp.eq.s32.totalorder %s14, 0
    %p89 = por %p87, %p88
    %p90 = scmp.ne.s32.totalorder %s78, %s79
    %p91 = scmp.eq.s32.totalorder %s15, 1
    %p92 = por %p90, %p91
    %p94 = scmp.ne.s32.totalorder %s79, %s93
    %p95 = scmp.eq.s32.totalorder %s15, 0
    %p96 = por %p94, %p95
    %s97 = ssub.s32 %s16, %s28
    %s98 = ssub.s32 %s17, %s24
    %s99 = sor.u32 %s97, %s98
    %p100 = scmp.eq.s32.totalorder %s99, 0
    %s102 = sadd.s32 %s101, 1
    %s103 = scalar_select %p100, %s101, %s102
    %p106 = pneg %p100
    %p107 = scmp.eq.s32.totalorder %s9, 1
    %p108 = por %p106, %p107
    %p109 = scmp.ne.s32.totalorder %s101, %s104
    %p110 = scmp.eq.s32.totalorder %s9, 0
    %p111 = por %p109, %p110
    %p112 = scmp.ne.s32.totalorder %s101, %s104
    %p113 = scmp.eq.s32.totalorder %s14, 1
    %p114 = por %p112, %p113
    %p115 = scmp.ne.s32.totalorder %s104, %s105
    %p116 = scmp.eq.s32.totalorder %s14, 0
    %p117 = por %p115, %p116
    %p118 = scmp.ne.s32.totalorder %s104, %s105
    %p119 = scmp.eq.s32.totalorder %s15, 1
    %p120 = por %p118, %p119
    %p122 = scmp.ne.s32.totalorder %s105, %s121
    %p123 = scmp.eq.s32.totalorder %s15, 0
    %p124 = por %p122, %p123
    %p125 = scmp.le.s32.totalorder 1, %s9
    %p126 = scmp.lt.s32.totalorder %s9, 3
    %p127 = pnand %p125, %p126
    %p128 = pneg %p127
    // Predicated region
    $region9: #{upblock_forward.3} parent=5 // pred_check
      _
    $region10: #{upblock_forward.3} parent=5 // pred_check_branch
      %130 = sbr.rel (%p127) target = $region12
    $region11: #{upblock_forward.3} parent=5 // pred_region
      %s131 = ssub.s32 %s9, 1
      // Predicated region
      $region13: #{upblock_forward.3} parent=11 // pred_check
        %p132 = pneg %p68
      $region14: #{upblock_forward.3} parent=11 // pred_check_branch
        %134 = sbr.rel (%p132) target = $region16
      $region15: #{upblock_forward.3} parent=11 // pred_region
        _
      $region16: #{upblock_forward.3} parent=11 // pred_fallthru
        _
      // Predicated region
      $region17: #{upblock_forward.3} parent=11 // pred_check
        %p135 = pneg %p89
      $region18: #{upblock_forward.3} parent=11 // pred_check_branch
        %137 = sbr.rel (%p135) target = $region20
      $region19: #{upblock_forward.3} parent=11 // pred_region
        _
      $region20: #{upblock_forward.3} parent=11 // pred_fallthru
        _
    $region12: #{upblock_forward.3} parent=5 // pred_fallthru
      _
    %p138 = scmp.lt.s32.totalorder %s9, 2
    // Predicated region
    $region21: #{upblock_forward.3} parent=5 // pred_check
      %p139 = pneg %p138
    $region22: #{upblock_forward.3} parent=5 // pred_check_branch
      %141 = sbr.rel (%p139) target = $region24
    $region23: #{upblock_forward.3} parent=5 // pred_region
      // Predicated region
      $region25: #{upblock_forward.3} parent=23 // pred_check
        %p142 = pneg %p41
      $region26: #{upblock_forward.3} parent=23 // pred_check_branch
        %144 = sbr.rel (%p142) target = $region28
      $region27: #{upblock_forward.3} parent=23 // pred_region
        %p145 = scmp.lt.s32.totalorder %s16, 1
        %s146 = scalar_select %p145, %s16, 1
        %s147 = smul.addr %s146, 18
        %s148 = smul.addr %s147, 4
        %s149 = scalar_lea.vmem %s0, %s148
      $region28: #{upblock_forward.3} parent=23 // pred_fallthru
        _
    $region24: #{upblock_forward.3} parent=5 // pred_fallthru
      _
    %p150 = scmp.le.s32.totalorder 1, %s9
    %p151 = scmp.lt.s32.totalorder %s9, 3
    %p152 = pnand %p150, %p151
    %p153 = pneg %p152
    // Predicated region
    $region29: #{upblock_forward.3} parent=5 // pred_check
      _
    $region30: #{upblock_forward.3} parent=5 // pred_check_branch
      %155 = sbr.rel (%p152) target = $region32
    $region31: #{upblock_forward.3} parent=5 // pred_region
      %s156 = ssub.s32 %s9, 1
      %p157 = scmp.lt.s32.totalorder %s18, 1
      %s158 = scalar_select %p157, %s18, 1
      %s159 = smul.addr %s158, 18
      %s160 = smul.addr %s159, 4
      %s161 = scalar_lea.vmem %s0, %s160
      %p162 = pneg %p47
      %p163 = pneg %p44
      %p164 = pneg %p68
      %p165 = pneg %p65
      %p166 = pneg %p89
      %p167 = pneg %p86
      %p168 = pneg %p117
      %p169 = pneg %p114
      %s170 = smul.u32 8, %s19
      %p171 = scmp.lt.s32.totalorder %s18, 1
      %s172 = scalar_select %p171, %s18, 1
      %p173 = scmp.lt.s32.totalorder %s170, 7
      %s174 = scalar_select %p173, %s170, 7
      %s175 = smul.addr %s172, 8
      %s176 = sadd.s32 %s174, %s175
      %s177 = smul.addr %s176, 4
      %s178 = scalar_lea.vmem %s3, %s177
      %p179 = scmp.lt.s32.totalorder %s18, 1
      %s180 = scalar_select %p179, %s18, 1
      %s181 = smul.addr %s180, 18
      %s182 = smul.addr %s181, 4
      %s183 = scalar_lea.vmem %s0, %s182
      %s184 = smul.u32 8, %s19
      %p185 = scmp.lt.s32.totalorder %s18, 1
      %s186 = scalar_select %p185, %s18, 1
      %p187 = scmp.lt.s32.totalorder %s184, 7
      %s188 = scalar_select %p187, %s184, 7
      %s189 = smul.addr %s186, 8
      %s190 = sadd.s32 %s188, %s189
      %s191 = smul.addr %s190, 4
      %s192 = scalar_lea.vmem %s3, %s191
      %s193 = smul.u32 8, %s19
      %s195 = smul.u32 %s19, 8
      %s196 = smul.u32 %s195, 2
      %s197 = smul.addr %s196, 4
      %s198 = scalar_lea.vmem %s183, %s197
      %v199 = vld [vmem:[%s198] sm:$0xf]
      %v200 = vld [vmem:[%s198 + $0x8] sm:$0xf]
      %v201 = vld [vmem:[%s198 + $0x10] sm:$0xf]
      %v202 = vld [vmem:[%s198 + $0x18] sm:$0xf]
      %v203 = vld [vmem:[%s198 + $0x20] sm:$0xf]
      %v204 = vld [vmem:[%s198 + $0x28] sm:$0xf]
      %v205 = vld [vmem:[%s198 + $0x30] sm:$0xf]
      %v206 = vld [vmem:[%s198 + $0x38] sm:$0xf]
      %v207 = vld [vmem:[%s198 + $0x4] sm:$0x1]
      %v208 = vld [vmem:[%s198 + $0xc] sm:$0x1]
      %v209 = vld [vmem:[%s198 + $0x14] sm:$0x1]
      %v210 = vld [vmem:[%s198 + $0x1c] sm:$0x1]
      %v211 = vld [vmem:[%s198 + $0x24] sm:$0x1]
      %v212 = vld [vmem:[%s198 + $0x2c] sm:$0x1]
      %v213 = vld [vmem:[%s198 + $0x34] sm:$0x1]
      %v214 = vld [vmem:[%s198 + $0x3c] sm:$0x1]
      %s215 = sadd.s32 %s195, 1
      %s216 = smul.u32 %s215, 2
      %s217 = smul.addr %s216, 4
      %s218 = scalar_lea.vmem %s183, %s217
      %v219 = vld [vmem:[%s218] sm:$0xf]
      %v220 = vld [vmem:[%s218 + $0x8] sm:$0xf]
      %v221 = vld [vmem:[%s218 + $0x10] sm:$0xf]
      %v222 = vld [vmem:[%s218 + $0x18] sm:$0xf]
      %v223 = vld [vmem:[%s218 + $0x20] sm:$0xf]
      %v224 = vld [vmem:[%s218 + $0x28] sm:$0xf]
      %v225 = vld [vmem:[%s218 + $0x30] sm:$0xf]
      %v226 = vld [vmem:[%s218 + $0x38] sm:$0xf]
      %v227 = vld [vmem:[%s218 + $0x4] sm:$0x1]
      %v228 = vld [vmem:[%s218 + $0xc] sm:$0x1]
      %v229 = vld [vmem:[%s218 + $0x14] sm:$0x1]
      %v230 = vld [vmem:[%s218 + $0x1c] sm:$0x1]
      %v231 = vld [vmem:[%s218 + $0x24] sm:$0x1]
      %v232 = vld [vmem:[%s218 + $0x2c] sm:$0x1]
      %v233 = vld [vmem:[%s218 + $0x34] sm:$0x1]
      %v234 = vld [vmem:[%s218 + $0x3c] sm:$0x1]
      %v251 = vunpack.c.l.b16 %v199
      %v252 = vunpack.c.l.b16 %v207
      %v253 = vunpack.c.l.b16 %v200
      %v254 = vunpack.c.l.b16 %v208
      %v255 = vunpack.c.l.b16 %v201
      %v256 = vunpack.c.l.b16 %v209
      %v257 = vunpack.c.l.b16 %v202
      %v258 = vunpack.c.l.b16 %v210
      %v259 = vunpack.c.l.b16 %v203
      %v260 = vunpack.c.l.b16 %v211
      %v261 = vunpack.c.l.b16 %v204
      %v262 = vunpack.c.l.b16 %v212
      %v263 = vunpack.c.l.b16 %v205
      %v264 = vunpack.c.l.b16 %v213
      %v265 = vunpack.c.l.b16 %v206
      %v266 = vunpack.c.l.b16 %v214
      %v267 = vpack.c.b16 %v252, %v251
      %v268 = vpack.c.b16 %v254, %v253
      %v269 = vpack.c.b16 %v256, %v255
      %v270 = vpack.c.b16 %v258, %v257
      %v271 = vpack.c.b16 %v260, %v259
      %v272 = vpack.c.b16 %v262, %v261
      %v273 = vpack.c.b16 %v264, %v263
      %v274 = vpack.c.b16 %v266, %v265
      %v276 = vshrl.u32 %v267, 16
      %v278 = vshll.u32 %v267, 16
      %v280 = vrot.slane %v278, 1
      %v281 = vor.u32 %v276, %v280
      %v283 = vshrl.u32 %v268, 16
      %v285 = vshll.u32 %v268, 16
      %v287 = vrot.slane %v285, 1
      %v288 = vor.u32 %v283, %v287
      %v290 = vshrl.u32 %v269, 16
      %v292 = vshll.u32 %v269, 16
      %v294 = vrot.slane %v292, 1
      %v295 = vor.u32 %v290, %v294
      %v297 = vshrl.u32 %v270, 16
      %v299 = vshll.u32 %v270, 16
      %v301 = vrot.slane %v299, 1
      %v302 = vor.u32 %v297, %v301
      %v304 = vshrl.u32 %v271, 16
      %v306 = vshll.u32 %v271, 16
      %v308 = vrot.slane %v306, 1
      %v309 = vor.u32 %v304, %v308
      %v311 = vshrl.u32 %v272, 16
      %v313 = vshll.u32 %v272, 16
      %v315 = vrot.slane %v313, 1
      %v316 = vor.u32 %v311, %v315
      %v318 = vshrl.u32 %v273, 16
      %v320 = vshll.u32 %v273, 16
      %v322 = vrot.slane %v320, 1
      %v323 = vor.u32 %v318, %v322
      %v325 = vshrl.u32 %v274, 16
      %v327 = vshll.u32 %v274, 16
      %v329 = vrot.slane %v327, 1
      %v330 = vor.u32 %v325, %v329
      %331 = vrot.lane.b32.xlu0 %v281, 8
      %v332 = vpop.permute.xlu0 %331
      %333 = vrot.lane.b32.xlu0 %v288, 8
      %v334 = vpop.permute.xlu0 %333
      %335 = vrot.lane.b32.xlu0 %v295, 8
      %v336 = vpop.permute.xlu0 %335
      %337 = vrot.lane.b32.xlu0 %v302, 8
      %v338 = vpop.permute.xlu0 %337
      %339 = vrot.lane.b32.xlu0 %v309, 8
      %v340 = vpop.permute.xlu0 %339
      %341 = vrot.lane.b32.xlu0 %v316, 8
      %v342 = vpop.permute.xlu0 %341
      %343 = vrot.lane.b32.xlu0 %v323, 8
      %v344 = vpop.permute.xlu0 %343
      %345 = vrot.lane.b32.xlu0 %v330, 8
      %v346 = vpop.permute.xlu0 %345
      %v355 = vunpack.c.l.b16 %v219
      %v356 = vunpack.c.l.b16 %v220
      %v357 = vunpack.c.l.b16 %v221
      %v358 = vunpack.c.l.b16 %v222
      %v359 = vunpack.c.l.b16 %v223
      %v360 = vunpack.c.l.b16 %v224
      %v361 = vunpack.c.l.b16 %v225
      %v362 = vunpack.c.l.b16 %v226
      %v363 = vpack.c.b16 %v355, %v355
      %v364 = vpack.c.b16 %v356, %v356
      %v365 = vpack.c.b16 %v357, %v357
      %v366 = vpack.c.b16 %v358, %v358
      %v367 = vpack.c.b16 %v359, %v359
      %v368 = vpack.c.b16 %v360, %v360
      %v369 = vpack.c.b16 %v361, %v361
      %v370 = vpack.c.b16 %v362, %v362
      %371 = vrot.lane.b32.xlu0 %v363, 16
      %v372 = vpop.permute.xlu0 %371
      %373 = vrot.lane.b32.xlu0 %v364, 16
      %v374 = vpop.permute.xlu0 %373
      %375 = vrot.lane.b32.xlu0 %v365, 16
      %v376 = vpop.permute.xlu0 %375
      %377 = vrot.lane.b32.xlu0 %v366, 16
      %v378 = vpop.permute.xlu0 %377
      %379 = vrot.lane.b32.xlu0 %v367, 16
      %v380 = vpop.permute.xlu0 %379
      %381 = vrot.lane.b32.xlu0 %v368, 16
      %v382 = vpop.permute.xlu0 %381
      %383 = vrot.lane.b32.xlu0 %v369, 16
      %v384 = vpop.permute.xlu0 %383
      %385 = vrot.lane.b32.xlu0 %v370, 16
      %v386 = vpop.permute.xlu0 %385
      %v395 = vunpack.c.l.b16 %v227
      %v396 = vunpack.c.l.b16 %v228
      %v397 = vunpack.c.l.b16 %v229
      %v398 = vunpack.c.l.b16 %v230
      %v399 = vunpack.c.l.b16 %v231
      %v400 = vunpack.c.l.b16 %v232
      %v401 = vunpack.c.l.b16 %v233
      %v402 = vunpack.c.l.b16 %v234
      %v403 = vpack.c.b16 %v395, %v355
      %v404 = vpack.c.b16 %v396, %v356
      %v405 = vpack.c.b16 %v397, %v357
      %v406 = vpack.c.b16 %v398, %v358
      %v407 = vpack.c.b16 %v399, %v359
      %v408 = vpack.c.b16 %v400, %v360
      %v409 = vpack.c.b16 %v401, %v361
      %v410 = vpack.c.b16 %v402, %v362
      %v412 = vshrl.u32 %v403, 16
      %v414 = vshll.u32 %v403, 16
      %v416 = vrot.slane %v414, 1
      %v417 = vor.u32 %v412, %v416
      %v419 = vshrl.u32 %v404, 16
      %v421 = vshll.u32 %v404, 16
      %v423 = vrot.slane %v421, 1
      %v424 = vor.u32 %v419, %v423
      %v426 = vshrl.u32 %v405, 16
      %v428 = vshll.u32 %v405, 16
      %v430 = vrot.slane %v428, 1
      %v431 = vor.u32 %v426, %v430
      %v433 = vshrl.u32 %v406, 16
      %v435 = vshll.u32 %v406, 16
      %v437 = vrot.slane %v435, 1
      %v438 = vor.u32 %v433, %v437
      %v440 = vshrl.u32 %v407, 16
      %v442 = vshll.u32 %v407, 16
      %v444 = vrot.slane %v442, 1
      %v445 = vor.u32 %v440, %v444
      %v447 = vshrl.u32 %v408, 16
      %v449 = vshll.u32 %v408, 16
      %v451 = vrot.slane %v449, 1
      %v452 = vor.u32 %v447, %v451
      %v454 = vshrl.u32 %v409, 16
      %v456 = vshll.u32 %v409, 16
      %v458 = vrot.slane %v456, 1
      %v459 = vor.u32 %v454, %v458
      %v461 = vshrl.u32 %v410, 16
      %v463 = vshll.u32 %v410, 16
      %v465 = vrot.slane %v463, 1
      %v466 = vor.u32 %v461, %v465
      %467 = vrot.lane.b32.xlu0 %v417, 24
      %v468 = vpop.permute.xlu0 %467
      %469 = vrot.lane.b32.xlu0 %v424, 24
      %v470 = vpop.permute.xlu0 %469
      %471 = vrot.lane.b32.xlu0 %v431, 24
      %v472 = vpop.permute.xlu0 %471
      %473 = vrot.lane.b32.xlu0 %v438, 24
      %v474 = vpop.permute.xlu0 %473
      %475 = vrot.lane.b32.xlu0 %v445, 24
      %v476 = vpop.permute.xlu0 %475
      %477 = vrot.lane.b32.xlu0 %v452, 24
      %v478 = vpop.permute.xlu0 %477
      %479 = vrot.lane.b32.xlu0 %v459, 24
      %v480 = vpop.permute.xlu0 %479
      %481 = vrot.lane.b32.xlu0 %v466, 24
      %v482 = vpop.permute.xlu0 %481
      %vm483 = vcmask 64512
      %v486 = vsel %vm483, %v199, %v332
      %v489 = vsel %vm483, %v200, %v334
      %v492 = vsel %vm483, %v201, %v336
      %v495 = vsel %vm483, %v202, %v338
      %v498 = vsel %vm483, %v203, %v340
      %v501 = vsel %vm483, %v204, %v342
      %v504 = vsel %vm483, %v205, %v344
      %v507 = vsel %vm483, %v206, %v346
      %vm508 = vcmask 130048
      %v510 = vsel %vm508, %v486, %v372
      %v512 = vsel %vm508, %v489, %v374
      %v514 = vsel %vm508, %v492, %v376
      %v516 = vsel %vm508, %v495, %v378
      %v518 = vsel %vm508, %v498, %v380
      %v520 = vsel %vm508, %v501, %v382
      %v522 = vsel %vm508, %v504, %v384
      %v524 = vsel %vm508, %v507, %v386
      %vm525 = vcmask 195584
      %v527 = vsel %vm525, %v510, %v468
      %v529 = vsel %vm525, %v512, %v470
      %v531 = vsel %vm525, %v514, %v472
      %v533 = vsel %vm525, %v516, %v474
      %v535 = vsel %vm525, %v518, %v476
      %v537 = vsel %vm525, %v520, %v478
      %v539 = vsel %vm525, %v522, %v480
      %v541 = vsel %vm525, %v524, %v482
      %v542 = vld [vmem:[%s1] sm:$0xf]
      %v543 = vld [vmem:[%s1 + $0x4] sm:$0xf]
      %v544 = vld [vmem:[%s1 + $0x8] sm:$0xf]
      %v545 = vld [vmem:[%s1 + $0xc] sm:$0xf]
      %v546 = vld [vmem:[%s2] sm:$0x1]
      %v548 = vlaneseq
      %v549 = vshrl.u32 %v548, 7
      %v550 = vsub.s32 0, %v549
      %v551 = vrot.slane %v546, %v550
      %v561 = vunpack.c.l.b16 %v527
      %v562 = vunpack.c.l.b16 %v529
      %v563 = vunpack.c.l.b16 %v531
      %v564 = vunpack.c.l.b16 %v533
      %v565 = vunpack.c.l.b16 %v535
      %v566 = vunpack.c.l.b16 %v537
      %v567 = vunpack.c.l.b16 %v539
      %v568 = vunpack.c.l.b16 %v541
      %v569 = vpack.c.b16 %v562, %v561
      %v570 = vpack.c.b16 %v564, %v563
      %v571 = vpack.c.b16 %v566, %v565
      %v572 = vpack.c.b16 %v568, %v567
      %v577 = vunpack.c.l.b16 %v542
      %v578 = vunpack.c.l.b16 %v543
      %v579 = vunpack.c.l.b16 %v544
      %v580 = vunpack.c.l.b16 %v545
      %v581 = vpack.c.b16 %v578, %v577
      %v582 = vpack.c.b16 %v580, %v579
      %vm585 = vcmask 261120
      %v587 = vsel %vm585, %v569, 0
      %v590 = vsel %vm585, %v570, 0
      %v593 = vsel %vm585, %v571, 0
      %v596 = vsel %vm585, %v572, 0
      %598 = vmatprep.subr.bf16.mxu0 0
      %599 = vmatpush1.bf16.msra.mxu0 %v581
      %600 = vmatprep.subr.bf16.mxu0 0
      %601 = vmatpush1.bf16.msra.mxu0 %v582
      %602 = vmatprep.subr.bf16.mxu0 0
      %603 = vmatpush1.bf16.msra.mxu0 0
      %604 = vmatprep.subr.bf16.mxu0 0
      %605 = vmatpush1.bf16.msra.mxu0 0
      %606 = vmatprep.subr.bf16.mxu0 0
      %607 = vmatpush1.bf16.msra.mxu0 0
      %608 = vmatprep.subr.bf16.mxu0 0
      %609 = vmatpush1.bf16.msra.mxu0 0
      %610 = vmatprep.subr.bf16.mxu0 0
      %611 = vmatpush1.bf16.msra.mxu0 0
      %612 = vmatprep.subr.bf16.mxu0 0
      %613 = vmatpush1.bf16.msra.mxu0 0
      %614 = vmatprep.subr.bf16.mxu0 0
      %615 = vmatpush1.bf16.msra.mxu0 0
      %616 = vmatprep.subr.bf16.mxu0 0
      %617 = vmatpush1.bf16.msra.mxu0 0
      %618 = vmatprep.subr.bf16.mxu0 0
      %619 = vmatpush1.bf16.msra.mxu0 0
      %620 = vmatprep.subr.bf16.mxu0 0
      %621 = vmatpush1.bf16.msra.mxu0 0
      %622 = vmatprep.subr.bf16.mxu0 0
      %623 = vmatpush1.bf16.msra.mxu0 0
      %624 = vmatprep.subr.bf16.mxu0 0
      %625 = vmatpush1.bf16.msra.mxu0 0
      %626 = vmatprep.subr.bf16.mxu0 0
      %627 = vmatpush1.bf16.msra.mxu0 0
      %628 = vmatprep.subr.bf16.mxu0 0
      %629 = vmatpush1.bf16.msra.mxu0 0
      %630 = vmatprep.mubr.bf16.mxu0 0
      %631 = vmatmul.mubr.bf16.gmra.mrb[0].mxu0 %v587
      %v632 = vpop.f32.mrb[0].mxu0
      %v633 = vadd.f32 %v551, %v632
      %v634 = vpop.f32.mrb[0].mxu0
      %v635 = vpop.f32.mrb[0].mxu0
      %v636 = vadd.f32 %v551, %v635
      %v637 = vpop.f32.mrb[0].mxu0
      %638 = vmatprep.mubr.bf16.mxu0 0
      %639 = vmatmul.mubr.bf16.gmra.mrb[0].mxu0 %v590
      %v640 = vpop.f32.mrb[0].mxu0
      %v641 = vadd.f32 %v551, %v640
      %v642 = vpop.f32.mrb[0].mxu0
      %v643 = vpop.f32.mrb[0].mxu0
      %v644 = vadd.f32 %v551, %v643
      %v645 = vpop.f32.mrb[0].mxu0
      %646 = vmatprep.mubr.bf16.mxu0 0
      %647 = vmatmul.mubr.bf16.gmra.mrb[0].mxu0 %v593
      %v648 = vpop.f32.mrb[0].mxu0
      %v649 = vadd.f32 %v551, %v648
      %v650 = vpop.f32.mrb[0].mxu0
      %v651 = vpop.f32.mrb[0].mxu0
      %v652 = vadd.f32 %v551, %v651
      %v653 = vpop.f32.mrb[0].mxu0
      %654 = vmatprep.mubr.bf16.mxu0 0
      %655 = vmatmul.mubr.bf16.gmra.mrb[0].mxu0 %v596
      %v656 = vpop.f32.mrb[0].mxu0
      %v657 = vadd.f32 %v551, %v656
      %v658 = vpop.f32.mrb[0].mxu0
      %v659 = vpop.f32.mrb[0].mxu0
      %v660 = vadd.f32 %v551, %v659
      %v661 = vpop.f32.mrb[0].mxu0
      %662 = vdwg.mxu0
      %v663 = vpack.c.bf16 %v633, %v633
      %v664 = vpack.c.bf16 %v636, %v636
      %v665 = vpack.c.bf16 %v641, %v641
      %v666 = vpack.c.bf16 %v644, %v644
      %v667 = vpack.c.bf16 %v649, %v649
      %v668 = vpack.c.bf16 %v652, %v652
      %v669 = vpack.c.bf16 %v657, %v657
      %v670 = vpack.c.bf16 %v660, %v660
      %vm671 = vcmask 257024
      %672 = vst.msk [vmem:[%s192] sm:$0xf] %vm671, %v663
      %673 = vst.msk [vmem:[%s192 + $0x4] sm:$0xf] %vm671, %v664
      %674 = vst.msk [vmem:[%s192 + $0x8] sm:$0xf] %vm671, %v665
      %675 = vst.msk [vmem:[%s192 + $0xc] sm:$0xf] %vm671, %v666
      %676 = vst.msk [vmem:[%s192 + $0x10] sm:$0xf] %vm671, %v667
      %677 = vst.msk [vmem:[%s192 + $0x14] sm:$0xf] %vm671, %v668
      %678 = vst.msk [vmem:[%s192 + $0x18] sm:$0xf] %vm671, %v669
      %679 = vst.msk [vmem:[%s192 + $0x1c] sm:$0xf] %vm671, %v670
      %s680 = smul.u32 8, %s19
      %p681 = scmp.lt.s32.totalorder %s18, 1
      %s682 = scalar_select %p681, %s18, 1
      %p683 = scmp.lt.s32.totalorder %s680, 7
      %s684 = scalar_select %p683, %s680, 7
      %s685 = smul.addr %s682, 8
      %s686 = sadd.s32 %s684, %s685
      %s687 = smul.addr %s686, 4
      %s688 = scalar_lea.vmem %s3, %s687
      // Predicated region
      $region33: #{upblock_forward.3} parent=31 // pred_check
        %p689 = pneg %p114
      $region34: #{upblock_forward.3} parent=31 // pred_check_branch
        %691 = sbr.rel (%p689) target = $region36
      $region35: #{upblock_forward.3} parent=31 // pred_region
        %s692 = smul.u32 8, %s19
      $region36: #{upblock_forward.3} parent=31 // pred_fallthru
        _
    $region32: #{upblock_forward.3} parent=5 // pred_fallthru
      _
    %p693 = scmp.le.s32.totalorder 2, %s9
    // Predicated region
    $region37: #{upblock_forward.3} parent=5 // pred_check
      %p694 = pneg %p693
    $region38: #{upblock_forward.3} parent=5 // pred_check_branch
      %696 = sbr.rel (%p694) target = $region40
    $region39: #{upblock_forward.3} parent=5 // pred_region
      %s697 = ssub.s32 %s9, 2
      // Predicated region
      $region41: #{upblock_forward.3} parent=39 // pred_check
        %p698 = pneg %p120
      $region42: #{upblock_forward.3} parent=39 // pred_check_branch
        %700 = sbr.rel (%p698) target = $region44
      $region43: #{upblock_forward.3} parent=39 // pred_region
        %s701 = smul.u32 8, %s21
        %p702 = scmp.lt.s32.totalorder %s20, 1
        %s703 = scalar_select %p702, %s20, 1
        %p704 = scmp.lt.s32.totalorder %s701, 7
        %s705 = scalar_select %p704, %s701, 7
        %s706 = smul.addr %s703, 8
        %s707 = sadd.s32 %s705, %s706
        %s708 = smul.addr %s707, 4
        %s709 = scalar_lea.vmem %s3, %s708
      $region44: #{upblock_forward.3} parent=39 // pred_fallthru
        _
    $region40: #{upblock_forward.3} parent=5 // pred_fallthru
      _
  $region6: #{upblock_forward.3} parent=0 // loop_footer
    %s13 = sadd.s32 1, %s9
  $region7: #{upblock_forward.3} parent=0 // loop_footer_branch
    %8 = sbr.rel target = $region3
  $region8: #{upblock_forward.3} parent=0 // loop_exit
    _

// kernel: upblock_forward.5
$region0: #{upblock_forward.5}
  #allocation0 [shape = 'u32[]', space=smem, size = 0x4, offset = 0x4, fixed_abs, tag = 'smem constant byte address 0x4 - core index']
  #allocation1 [shape = 'u32[144,128]{1,0:T(1,128)}', space=vmem, size = 0x12000, scoped, tag = 'internal scratch']
  %s0 = inlined_call_operand.vmem [shape: bf16[2,18,18,4], index: 0, kind: input, shape index: {}]
  %s1 = inlined_call_operand.vmem [shape: bf16[36,4], index: 1, kind: input, shape index: {}]
  %s2 = inlined_call_operand.vmem [shape: f32[1,4], index: 2, kind: input, shape index: {}]
  %s3 = inlined_call_operand.vmem [shape: f32[2,16,16,4], index: 3, kind: output, shape index: {}]
  %s4 = sld [smem:[#allocation0]]
  $region45: #{upblock_forward.5} parent=0
    _
  %s6 = ssub.s32 1, %s4
  %s7 = scalar_select 0, %s6, %s4
  loop: start=0, step=1, limit=4
  $region2: #{upblock_forward.5} parent=0 // loop_pre_header
    _
  $region3: #{upblock_forward.5} parent=0 // loop_header
    %s9 = sphi 0, %s13
    %p10 = scmp.ge.s32.totalorder %s9, 4
    %s16 = sphi 0, %s28
    %s17 = sphi 0, %s24
    %s18 = sphi 0, %s16
    %s19 = sphi 0, %s17
    %s20 = sphi 0, %s18
    %s21 = sphi 0, %s19
    %s31 = sphi 0, %s33
    %s34 = sphi 0, %s31
    %s35 = sphi 0, %s34
    %s51 = sphi 0, %s35
    %s55 = sphi 0, %s55
    %s57 = sphi 0, %s55
    %s58 = sphi 0, %s57
    %s72 = sphi 0, %s58
    %s76 = sphi 0, %s76
    %s78 = sphi 0, %s76
    %s79 = sphi 0, %s78
    %s93 = sphi 0, %s79
    %s101 = sphi 0, %s103
    %s104 = sphi 0, %s101
    %s105 = sphi 0, %s104
    %s121 = sphi 0, %s105
  $region4: #{upblock_forward.5} parent=0 // loop_header_branch
    %12 = sbr.rel (%p10) target = $region8
  $region5: #{upblock_forward.5} parent=0 // loop_body
    %s14 = ssub.s32 %s9, 1
    %s15 = ssub.s32 %s9, 2
    %s22 = sadd.s32 1, %s17
    %p23 = scmp.ge.s32.totalorder %s22, 1
    %s24 = scalar_select %p23, 0, %s22
    %s25 = sadd.s32 1, %s16
    %s26 = scalar_select %p23, %s25, %s16
    %p27 = scmp.ge.s32.totalorder %s26, 2
    %s28 = scalar_select %p27, 0, %s26
    %s29 = ssub.s32 %s16, %s28
    %p30 = scmp.eq.s32.totalorder %s29, 0
    %s32 = sadd.s32 %s31, 1
    %s33 = scalar_select %p30, %s31, %s32
    %p36 = pneg %p30
    %p37 = scmp.eq.s32.totalorder %s9, 1
    %p38 = por %p36, %p37
    %p39 = scmp.ne.s32.totalorder %s31, %s34
    %p40 = scmp.eq.s32.totalorder %s9, 0
    %p41 = por %p39, %p40
    %p42 = scmp.ne.s32.totalorder %s31, %s34
    %p43 = scmp.eq.s32.totalorder %s14, 1
    %p44 = por %p42, %p43
    %p45 = scmp.ne.s32.totalorder %s34, %s35
    %p46 = scmp.eq.s32.totalorder %s14, 0
    %p47 = por %p45, %p46
    %p48 = scmp.ne.s32.totalorder %s34, %s35
    %p49 = scmp.eq.s32.totalorder %s15, 1
    %p50 = por %p48, %p49
    %p52 = scmp.ne.s32.totalorder %s35, %s51
    %p53 = scmp.eq.s32.totalorder %s15, 0
    %p54 = por %p52, %p53
    %s56 = sadd.s32 %s55, 1
    %p59 = scmp.eq.s32.totalorder %s9, 1
    %p60 = scmp.ne.s32.totalorder %s55, %s57
    %p61 = scmp.eq.s32.totalorder %s9, 0
    %p62 = por %p60, %p61
    %p63 = scmp.ne.s32.totalorder %s55, %s57
    %p64 = scmp.eq.s32.totalorder %s14, 1
    %p65 = por %p63, %p64
    %p66 = scmp.ne.s32.totalorder %s57, %s58
    %p67 = scmp.eq.s32.totalorder %s14, 0
    %p68 = por %p66, %p67
    %p69 = scmp.ne.s32.totalorder %s57, %s58
    %p70 = scmp.eq.s32.totalorder %s15, 1
    %p71 = por %p69, %p70
    %p73 = scmp.ne.s32.totalorder %s58, %s72
    %p74 = scmp.eq.s32.totalorder %s15, 0
    %p75 = por %p73, %p74
    %s77 = sadd.s32 %s76, 1
    %p80 = scmp.eq.s32.totalorder %s9, 1
    %p81 = scmp.ne.s32.totalorder %s76, %s78
    %p82 = scmp.eq.s32.totalorder %s9, 0
    %p83 = por %p81, %p82
    %p84 = scmp.ne.s32.totalorder %s76, %s78
    %p85 = scmp.eq.s32.totalorder %s14, 1
    %p86 = por %p84, %p85
    %p87 = scmp.ne.s32.totalorder %s78, %s79
    %p88 = scmp.eq.s32.totalorder %s14, 0
    %p89 = por %p87, %p88
    %p90 = scmp.ne.s32.totalorder %s78, %s79
    %p91 = scmp.eq.s32.totalorder %s15, 1
    %p92 = por %p90, %p91
    %p94 = scmp.ne.s32.totalorder %s79, %s93
    %p95 = scmp.eq.s32.totalorder %s15, 0
    %p96 = por %p94, %p95
    %s97 = ssub.s32 %s16, %s28
    %s98 = ssub.s32 %s17, %s24
    %s99 = sor.u32 %s97, %s98
    %p100 = scmp.eq.s32.totalorder %s99, 0
    %s102 = sadd.s32 %s101, 1
    %s103 = scalar_select %p100, %s101, %s102
    %p106 = pneg %p100
    %p107 = scmp.eq.s32.totalorder %s9, 1
    %p108 = por %p106, %p107
    %p109 = scmp.ne.s32.totalorder %s101, %s104
    %p110 = scmp.eq.s32.totalorder %s9, 0
    %p111 = por %p109, %p110
    %p112 = scmp.ne.s32.totalorder %s101, %s104
    %p113 = scmp.eq.s32.totalorder %s14, 1
    %p114 = por %p112, %p113
    %p115 = scmp.ne.s32.totalorder %s104, %s105
    %p116 = scmp.eq.s32.totalorder %s14, 0
    %p117 = por %p115, %p116
    %p118 = scmp.ne.s32.totalorder %s104, %s105
    %p119 = scmp.eq.s32.totalorder %s15, 1
    %p120 = por %p118, %p119
    %p122 = scmp.ne.s32.totalorder %s105, %s121
    %p123 = scmp.eq.s32.totalorder %s15, 0
    %p124 = por %p122, %p123
    %p125 = scmp.le.s32.totalorder 1, %s9
    %p126 = scmp.lt.s32.totalorder %s9, 3
    %p127 = pnand %p125, %p126
    %p128 = pneg %p127
    // Predicated region
    $region9: #{upblock_forward.5} parent=5 // pred_check
      _
    $region10: #{upblock_forward.5} parent=5 // pred_check_branch
      %130 = sbr.rel (%p127) target = $region12
    $region11: #{upblock_forward.5} parent=5 // pred_region
      %s131 = ssub.s32 %s9, 1
      // Predicated region
      $region13: #{upblock_forward.5} parent=11 // pred_check
        %p132 = pneg %p68
      $region14: #{upblock_forward.5} parent=11 // pred_check_branch
        %134 = sbr.rel (%p132) target = $region16
      $region15: #{upblock_forward.5} parent=11 // pred_region
        _
      $region16: #{upblock_forward.5} parent=11 // pred_fallthru
        _
      // Predicated region
      $region17: #{upblock_forward.5} parent=11 // pred_check
        %p135 = pneg %p89
      $region18: #{upblock_forward.5} parent=11 // pred_check_branch
        %137 = sbr.rel (%p135) target = $region20
      $region19: #{upblock_forward.5} parent=11 // pred_region
        _
      $region20: #{upblock_forward.5} parent=11 // pred_fallthru
        _
    $region12: #{upblock_forward.5} parent=5 // pred_fallthru
      _
    %p138 = scmp.lt.s32.totalorder %s9, 2
    // Predicated region
    $region21: #{upblock_forward.5} parent=5 // pred_check
      %p139 = pneg %p138
    $region22: #{upblock_forward.5} parent=5 // pred_check_branch
      %141 = sbr.rel (%p139) target = $region24
    $region23: #{upblock_forward.5} parent=5 // pred_region
      // Predicated region
      $region25: #{upblock_forward.5} parent=23 // pred_check
        %p142 = pneg %p41
      $region26: #{upblock_forward.5} parent=23 // pred_check_branch
        %144 = sbr.rel (%p142) target = $region28
      $region27: #{upblock_forward.5} parent=23 // pred_region
        %p145 = scmp.lt.s32.totalorder %s16, 1
        %s146 = scalar_select %p145, %s16, 1
        %s147 = smul.addr %s146, 54
        %s148 = smul.addr %s147, 4
        %s149 = scalar_lea.vmem %s0, %s148
      $region28: #{upblock_forward.5} parent=23 // pred_fallthru
        _
    $region24: #{upblock_forward.5} parent=5 // pred_fallthru
      _
    %p150 = scmp.le.s32.totalorder 1, %s9
    %p151 = scmp.lt.s32.totalorder %s9, 3
    %p152 = pnand %p150, %p151
    %p153 = pneg %p152
    // Predicated region
    $region29: #{upblock_forward.5} parent=5 // pred_check
      _
    $region30: #{upblock_forward.5} parent=5 // pred_check_branch
      %155 = sbr.rel (%p152) target = $region32
    $region31: #{upblock_forward.5} parent=5 // pred_region
      %s156 = ssub.s32 %s9, 1
      %p157 = scmp.lt.s32.totalorder %s18, 1
      %s158 = scalar_select %p157, %s18, 1
      %s159 = smul.addr %s158, 54
      %s160 = smul.addr %s159, 4
      %s161 = scalar_lea.vmem %s0, %s160
      %p162 = pneg %p47
      %p163 = pneg %p44
      %p164 = pneg %p68
      %p165 = pneg %p65
      %p166 = pneg %p89
      %p167 = pneg %p86
      %p168 = pneg %p117
      %p169 = pneg %p114
      %s170 = smul.u32 16, %s19
      %p171 = scmp.lt.s32.totalorder %s18, 1
      %s172 = scalar_select %p171, %s18, 1
      %p173 = scmp.lt.s32.totalorder %s170, 15
      %s174 = scalar_select %p173, %s170, 15
      %s175 = smul.addr %s174, 2
      %s176 = smul.addr %s172, 32
      %s177 = sadd.s32 %s175, %s176
      %s178 = smul.addr %s177, 8
      %s179 = scalar_lea.vmem %s3, %s178
      %p180 = scmp.lt.s32.totalorder %s18, 1
      %s181 = scalar_select %p180, %s18, 1
      %s182 = smul.addr %s181, 54
      %s183 = smul.addr %s182, 4
      %s184 = scalar_lea.vmem %s0, %s183
      %s185 = smul.u32 16, %s19
      %p186 = scmp.lt.s32.totalorder %s18, 1
      %s187 = scalar_select %p186, %s18, 1
      %p188 = scmp.lt.s32.totalorder %s185, 15
      %s189 = scalar_select %p188, %s185, 15
      %s190 = smul.addr %s189, 2
      %s191 = smul.addr %s187, 32
      %s192 = sadd.s32 %s190, %s191
      %s193 = smul.addr %s192, 8
      %s194 = scalar_lea.vmem %s3, %s193
      %s195 = smul.u32 16, %s19
      %s197 = smul.u32 %s19, 16
      %s198 = smul.u32 %s197, 3
      %s199 = smul.addr %s198, 4
      %s200 = scalar_lea.vmem %s184, %s199
      %v201 = vld [vmem:[%s200] sm:$0xf]
      %v202 = vld [vmem:[%s200 + $0x4] sm:$0xf]
      %v203 = vld [vmem:[%s200 + $0xc] sm:$0xf]
      %v204 = vld [vmem:[%s200 + $0x10] sm:$0xf]
      %v205 = vld [vmem:[%s200 + $0x18] sm:$0xf]
      %v206 = vld [vmem:[%s200 + $0x1c] sm:$0xf]
      %v207 = vld [vmem:[%s200 + $0x24] sm:$0xf]
      %v208 = vld [vmem:[%s200 + $0x28] sm:$0xf]
      %v209 = vld [vmem:[%s200 + $0x30] sm:$0xf]
      %v210 = vld [vmem:[%s200 + $0x34] sm:$0xf]
      %v211 = vld [vmem:[%s200 + $0x3c] sm:$0xf]
      %v212 = vld [vmem:[%s200 + $0x40] sm:$0xf]
      %v213 = vld [vmem:[%s200 + $0x48] sm:$0xf]
      %v214 = vld [vmem:[%s200 + $0x4c] sm:$0xf]
      %v215 = vld [vmem:[%s200 + $0x54] sm:$0xf]
      %v216 = vld [vmem:[%s200 + $0x58] sm:$0xf]
      %v217 = vld [vmem:[%s200 + $0x60] sm:$0xf]
      %v218 = vld [vmem:[%s200 + $0x64] sm:$0xf]
      %v219 = vld [vmem:[%s200 + $0x6c] sm:$0xf]
      %v220 = vld [vmem:[%s200 + $0x70] sm:$0xf]
      %v221 = vld [vmem:[%s200 + $0x78] sm:$0xf]
      %v222 = vld [vmem:[%s200 + $0x7c] sm:$0xf]
      %v223 = vld [vmem:[%s200 + $0x84] sm:$0xf]
      %v224 = vld [vmem:[%s200 + $0x88] sm:$0xf]
      %v225 = vld [vmem:[%s200 + $0x90] sm:$0xf]
      %v226 = vld [vmem:[%s200 + $0x94] sm:$0xf]
      %v227 = vld [vmem:[%s200 + $0x9c] sm:$0xf]
      %v228 = vld [vmem:[%s200 + $0xa0] sm:$0xf]
      %v229 = vld [vmem:[%s200 + $0xa8] sm:$0xf]
      %v230 = vld [vmem:[%s200 + $0xac] sm:$0xf]
      %v231 = vld [vmem:[%s200 + $0xb4] sm:$0xf]
      %v232 = vld [vmem:[%s200 + $0xb8] sm:$0xf]
      %v233 = vld [vmem:[%s200 + $0x8] sm:$0x1]
      %v234 = vld [vmem:[%s200 + $0x14] sm:$0x1]
      %v235 = vld [vmem:[%s200 + $0x20] sm:$0x1]
      %v236 = vld [vmem:[%s200 + $0x2c] sm:$0x1]
      %v237 = vld [vmem:[%s200 + $0x38] sm:$0x1]
      %v238 = vld [vmem:[%s200 + $0x44] sm:$0x1]
      %v239 = vld [vmem:[%s200 + $0x50] sm:$0x1]
      %v240 = vld [vmem:[%s200 + $0x5c] sm:$0x1]
      %v241 = vld [vmem:[%s200 + $0x68] sm:$0x1]
      %v242 = vld [vmem:[%s200 + $0x74] sm:$0x1]
      %v243 = vld [vmem:[%s200 + $0x80] sm:$0x1]
      %v244 = vld [vmem:[%s200 + $0x8c] sm:$0x1]
      %v245 = vld [vmem:[%s200 + $0x98] sm:$0x1]
      %v246 = vld [vmem:[%s200 + $0xa4] sm:$0x1]
      %v247 = vld [vmem:[%s200 + $0xb0] sm:$0x1]
      %v248 = vld [vmem:[%s200 + $0xbc] sm:$0x1]
      %v249 = vld [vmem:[%s200] sm:$0xe]
      %v250 = vld [vmem:[%s200 + $0xc] sm:$0xe]
      %v251 = vld [vmem:[%s200 + $0x18] sm:$0xe]
      %v252 = vld [vmem:[%s200 + $0x24] sm:$0xe]
      %v253 = vld [vmem:[%s200 + $0x30] sm:$0xe]
      %v254 = vld [vmem:[%s200 + $0x3c] sm:$0xe]
      %v255 = vld [vmem:[%s200 + $0x48] sm:$0xe]
      %v256 = vld [vmem:[%s200 + $0x54] sm:$0xe]
      %v257 = vld [vmem:[%s200 + $0x60] sm:$0xe]
      %v258 = vld [vmem:[%s200 + $0x6c] sm:$0xe]
      %v259 = vld [vmem:[%s200 + $0x78] sm:$0xe]
      %v260 = vld [vmem:[%s200 + $0x84] sm:$0xe]
      %v261 = vld [vmem:[%s200 + $0x90] sm:$0xe]
      %v262 = vld [vmem:[%s200 + $0x9c] sm:$0xe]
      %v263 = vld [vmem:[%s200 + $0xa8] sm:$0xe]
      %v264 = vld [vmem:[%s200 + $0xb4] sm:$0xe]
      %s265 = sadd.s32 %s197, 1
      %s266 = smul.u32 %s265, 3
      %s267 = smul.addr %s266, 4
      %s268 = scalar_lea.vmem %s184, %s267
      %v269 = vld [vmem:[%s268] sm:$0xf]
      %v270 = vld [vmem:[%s268 + $0x4] sm:$0xf]
      %v271 = vld [vmem:[%s268 + $0xc] sm:$0xf]
      %v272 = vld [vmem:[%s268 + $0x10] sm:$0xf]
      %v273 = vld [vmem:[%s268 + $0x18] sm:$0xf]
      %v274 = vld [vmem:[%s268 + $0x1c] sm:$0xf]
      %v275 = vld [vmem:[%s268 + $0x24] sm:$0xf]
      %v276 = vld [vmem:[%s268 + $0x28] sm:$0xf]
      %v277 = vld [vmem:[%s268 + $0x30] sm:$0xf]
      %v278 = vld [vmem:[%s268 + $0x34] sm:$0xf]
      %v279 = vld [vmem:[%s268 + $0x3c] sm:$0xf]
      %v280 = vld [vmem:[%s268 + $0x40] sm:$0xf]
      %v281 = vld [vmem:[%s268 + $0x48] sm:$0xf]
      %v282 = vld [vmem:[%s268 + $0x4c] sm:$0xf]
      %v283 = vld [vmem:[%s268 + $0x54] sm:$0xf]
      %v284 = vld [vmem:[%s268 + $0x58] sm:$0xf]
      %v285 = vld [vmem:[%s268 + $0x60] sm:$0xf]
      %v286 = vld [vmem:[%s268 + $0x64] sm:$0xf]
      %v287 = vld [vmem:[%s268 + $0x6c] sm:$0xf]
      %v288 = vld [vmem:[%s268 + $0x70] sm:$0xf]
      %v289 = vld [vmem:[%s268 + $0x78] sm:$0xf]
      %v290 = vld [vmem:[%s268 + $0x7c] sm:$0xf]
      %v291 = vld [vmem:[%s268 + $0x84] sm:$0xf]
      %v292 = vld [vmem:[%s268 + $0x88] sm:$0xf]
      %v293 = vld [vmem:[%s268 + $0x90] sm:$0xf]
      %v294 = vld [vmem:[%s268 + $0x94] sm:$0xf]
      %v295 = vld [vmem:[%s268 + $0x9c] sm:$0xf]
      %v296 = vld [vmem:[%s268 + $0xa0] sm:$0xf]
      %v297 = vld [vmem:[%s268 + $0xa8] sm:$0xf]
      %v298 = vld [vmem:[%s268 + $0xac] sm:$0xf]
      %v299 = vld [vmem:[%s268 + $0xb4] sm:$0xf]
      %v300 = vld [vmem:[%s268 + $0xb8] sm:$0xf]
      %v301 = vld [vmem:[%s268 + $0x8] sm:$0x1]
      %v302 = vld [vmem:[%s268 + $0x14] sm:$0x1]
      %v303 = vld [vmem:[%s268 + $0x20] sm:$0x1]
      %v304 = vld [vmem:[%s268 + $0x2c] sm:$0x1]
      %v305 = vld [vmem:[%s268 + $0x38] sm:$0x1]
      %v306 = vld [vmem:[%s268 + $0x44] sm:$0x1]
      %v307 = vld [vmem:[%s268 + $0x50] sm:$0x1]
      %v308 = vld [vmem:[%s268 + $0x5c] sm:$0x1]
      %v309 = vld [vmem:[%s268 + $0x68] sm:$0x1]
      %v310 = vld [vmem:[%s268 + $0x74] sm:$0x1]
      %v311 = vld [vmem:[%s268 + $0x80] sm:$0x1]
      %v312 = vld [vmem:[%s268 + $0x8c] sm:$0x1]
      %v313 = vld [vmem:[%s268 + $0x98] sm:$0x1]
      %v314 = vld [vmem:[%s268 + $0xa4] sm:$0x1]
      %v315 = vld [vmem:[%s268 + $0xb0] sm:$0x1]
      %v316 = vld [vmem:[%s268 + $0xbc] sm:$0x1]
      %v317 = vld [vmem:[%s268] sm:$0xe]
      %v318 = vld [vmem:[%s268 + $0xc] sm:$0xe]
      %v319 = vld [vmem:[%s268 + $0x18] sm:$0xe]
      %v320 = vld [vmem:[%s268 + $0x24] sm:$0xe]
      %v321 = vld [vmem:[%s268 + $0x30] sm:$0xe]
      %v322 = vld [vmem:[%s268 + $0x3c] sm:$0xe]
      %v323 = vld [vmem:[%s268 + $0x48] sm:$0xe]
      %v324 = vld [vmem:[%s268 + $0x54] sm:$0xe]
      %v325 = vld [vmem:[%s268 + $0x60] sm:$0xe]
      %v326 = vld [vmem:[%s268 + $0x6c] sm:$0xe]
      %v327 = vld [vmem:[%s268 + $0x78] sm:$0xe]
      %v328 = vld [vmem:[%s268 + $0x84] sm:$0xe]
      %v329 = vld [vmem:[%s268 + $0x90] sm:$0xe]
      %v330 = vld [vmem:[%s268 + $0x9c] sm:$0xe]
      %v331 = vld [vmem:[%s268 + $0xa8] sm:$0xe]
      %v332 = vld [vmem:[%s268 + $0xb4] sm:$0xe]
      %s333 = sadd.s32 %s197, 2
      %s334 = smul.u32 %s333, 3
      %s335 = smul.addr %s334, 4
      %s336 = scalar_lea.vmem %s184, %s335
      %v337 = vld [vmem:[%s336] sm:$0xf]
      %v338 = vld [vmem:[%s336 + $0x4] sm:$0xf]
      %v339 = vld [vmem:[%s336 + $0xc] sm:$0xf]
      %v340 = vld [vmem:[%s336 + $0x10] sm:$0xf]
      %v341 = vld [vmem:[%s336 + $0x18] sm:$0xf]
      %v342 = vld [vmem:[%s336 + $0x1c] sm:$0xf]
      %v343 = vld [vmem:[%s336 + $0x24] sm:$0xf]
      %v344 = vld [vmem:[%s336 + $0x28] sm:$0xf]
      %v345 = vld [vmem:[%s336 + $0x30] sm:$0xf]
      %v346 = vld [vmem:[%s336 + $0x34] sm:$0xf]
      %v347 = vld [vmem:[%s336 + $0x3c] sm:$0xf]
      %v348 = vld [vmem:[%s336 + $0x40] sm:$0xf]
      %v349 = vld [vmem:[%s336 + $0x48] sm:$0xf]
      %v350 = vld [vmem:[%s336 + $0x4c] sm:$0xf]
      %v351 = vld [vmem:[%s336 + $0x54] sm:$0xf]
      %v352 = vld [vmem:[%s336 + $0x58] sm:$0xf]
      %v353 = vld [vmem:[%s336 + $0x60] sm:$0xf]
      %v354 = vld [vmem:[%s336 + $0x64] sm:$0xf]
      %v355 = vld [vmem:[%s336 + $0x6c] sm:$0xf]
      %v356 = vld [vmem:[%s336 + $0x70] sm:$0xf]
      %v357 = vld [vmem:[%s336 + $0x78] sm:$0xf]
      %v358 = vld [vmem:[%s336 + $0x7c] sm:$0xf]
      %v359 = vld [vmem:[%s336 + $0x84] sm:$0xf]
      %v360 = vld [vmem:[%s336 + $0x88] sm:$0xf]
      %v361 = vld [vmem:[%s336 + $0x90] sm:$0xf]
      %v362 = vld [vmem:[%s336 + $0x94] sm:$0xf]
      %v363 = vld [vmem:[%s336 + $0x9c] sm:$0xf]
      %v364 = vld [vmem:[%s336 + $0xa0] sm:$0xf]
      %v365 = vld [vmem:[%s336 + $0xa8] sm:$0xf]
      %v366 = vld [vmem:[%s336 + $0xac] sm:$0xf]
      %v367 = vld [vmem:[%s336 + $0xb4] sm:$0xf]
      %v368 = vld [vmem:[%s336 + $0xb8] sm:$0xf]
      %v369 = vld [vmem:[%s336 + $0x8] sm:$0x1]
      %v370 = vld [vmem:[%s336 + $0x14] sm:$0x1]
      %v371 = vld [vmem:[%s336 + $0x20] sm:$0x1]
      %v372 = vld [vmem:[%s336 + $0x2c] sm:$0x1]
      %v373 = vld [vmem:[%s336 + $0x38] sm:$0x1]
      %v374 = vld [vmem:[%s336 + $0x44] sm:$0x1]
      %v375 = vld [vmem:[%s336 + $0x50] sm:$0x1]
      %v376 = vld [vmem:[%s336 + $0x5c] sm:$0x1]
      %v377 = vld [vmem:[%s336 + $0x68] sm:$0x1]
      %v378 = vld [vmem:[%s336 + $0x74] sm:$0x1]
      %v379 = vld [vmem:[%s336 + $0x80] sm:$0x1]
      %v380 = vld [vmem:[%s336 + $0x8c] sm:$0x1]
      %v381 = vld [vmem:[%s336 + $0x98] sm:$0x1]
      %v382 = vld [vmem:[%s336 + $0xa4] sm:$0x1]
      %v383 = vld [vmem:[%s336 + $0xb0] sm:$0x1]
      %v384 = vld [vmem:[%s336 + $0xbc] sm:$0x1]
      %v385 = vld [vmem:[%s336] sm:$0xe]
      %v386 = vld [vmem:[%s336 + $0xc] sm:$0xe]
      %v387 = vld [vmem:[%s336 + $0x18] sm:$0xe]
      %v388 = vld [vmem:[%s336 + $0x24] sm:$0xe]
      %v389 = vld [vmem:[%s336 + $0x30] sm:$0xe]
      %v390 = vld [vmem:[%s336 + $0x3c] sm:$0xe]
      %v391 = vld [vmem:[%s336 + $0x48] sm:$0xe]
      %v392 = vld [vmem:[%s336 + $0x54] sm:$0xe]
      %v393 = vld [vmem:[%s336 + $0x60] sm:$0xe]
      %v394 = vld [vmem:[%s336 + $0x6c] sm:$0xe]
      %v395 = vld [vmem:[%s336 + $0x78] sm:$0xe]
      %v396 = vld [vmem:[%s336 + $0x84] sm:$0xe]
      %v397 = vld [vmem:[%s336 + $0x90] sm:$0xe]
      %v398 = vld [vmem:[%s336 + $0x9c] sm:$0xe]
      %v399 = vld [vmem:[%s336 + $0xa8] sm:$0xe]
      %v400 = vld [vmem:[%s336 + $0xb4] sm:$0xe]
      %v433 = vunpack.c.l.b16 %v201
      %v434 = vunpack.c.l.b16 %v202
      %v435 = vunpack.c.l.b16 %v203
      %v436 = vunpack.c.l.b16 %v204
      %v437 = vunpack.c.l.b16 %v205
      %v438 = vunpack.c.l.b16 %v206
      %v439 = vunpack.c.l.b16 %v207
      %v440 = vunpack.c.l.b16 %v208
      %v441 = vunpack.c.l.b16 %v209
      %v442 = vunpack.c.l.b16 %v210
      %v443 = vunpack.c.l.b16 %v211
      %v444 = vunpack.c.l.b16 %v212
      %v445 = vunpack.c.l.b16 %v213
      %v446 = vunpack.c.l.b16 %v214
      %v447 = vunpack.c.l.b16 %v215
      %v448 = vunpack.c.l.b16 %v216
      %v449 = vunpack.c.l.b16 %v217
      %v450 = vunpack.c.l.b16 %v218
      %v451 = vunpack.c.l.b16 %v219
      %v452 = vunpack.c.l.b16 %v220
      %v453 = vunpack.c.l.b16 %v221
      %v454 = vunpack.c.l.b16 %v222
      %v455 = vunpack.c.l.b16 %v223
      %v456 = vunpack.c.l.b16 %v224
      %v457 = vunpack.c.l.b16 %v225
      %v458 = vunpack.c.l.b16 %v226
      %v459 = vunpack.c.l.b16 %v227
      %v460 = vunpack.c.l.b16 %v228
      %v461 = vunpack.c.l.b16 %v229
      %v462 = vunpack.c.l.b16 %v230
      %v463 = vunpack.c.l.b16 %v231
      %v464 = vunpack.c.l.b16 %v232
      %v465 = vpack.c.b16 %v434, %v433
      %v466 = vpack.c.b16 %v436, %v435
      %v467 = vpack.c.b16 %v438, %v437
      %v468 = vpack.c.b16 %v440, %v439
      %v469 = vpack.c.b16 %v442, %v441
      %v470 = vpack.c.b16 %v444, %v443
      %v471 = vpack.c.b16 %v446, %v445
      %v472 = vpack.c.b16 %v448, %v447
      %v473 = vpack.c.b16 %v450, %v449
      %v474 = vpack.c.b16 %v452, %v451
      %v475 = vpack.c.b16 %v454, %v453
      %v476 = vpack.c.b16 %v456, %v455
      %v477 = vpack.c.b16 %v458, %v457
      %v478 = vpack.c.b16 %v460, %v459
      %v479 = vpack.c.b16 %v462, %v461
      %v480 = vpack.c.b16 %v464, %v463
      %v497 = vunpack.c.l.b16 %v233
      %v498 = vunpack.c.l.b16 %v234
      %v499 = vunpack.c.l.b16 %v235
      %v500 = vunpack.c.l.b16 %v236
      %v501 = vunpack.c.l.b16 %v237
      %v502 = vunpack.c.l.b16 %v238
      %v503 = vunpack.c.l.b16 %v239
      %v504 = vunpack.c.l.b16 %v240
      %v505 = vunpack.c.l.b16 %v241
      %v506 = vunpack.c.l.b16 %v242
      %v507 = vunpack.c.l.b16 %v243
      %v508 = vunpack.c.l.b16 %v244
      %v509 = vunpack.c.l.b16 %v245
      %v510 = vunpack.c.l.b16 %v246
      %v511 = vunpack.c.l.b16 %v247
      %v512 = vunpack.c.l.b16 %v248
      %v513 = vpack.c.b16 %v497, %v497
      %v514 = vpack.c.b16 %v498, %v498
      %v515 = vpack.c.b16 %v499, %v499
      %v516 = vpack.c.b16 %v500, %v500
      %v517 = vpack.c.b16 %v501, %v501
      %v518 = vpack.c.b16 %v502, %v502
      %v519 = vpack.c.b16 %v503, %v503
      %v520 = vpack.c.b16 %v504, %v504
      %v521 = vpack.c.b16 %v505, %v505
      %v522 = vpack.c.b16 %v506, %v506
      %v523 = vpack.c.b16 %v507, %v507
      %v524 = vpack.c.b16 %v508, %v508
      %v525 = vpack.c.b16 %v509, %v509
      %v526 = vpack.c.b16 %v510, %v510
      %v527 = vpack.c.b16 %v511, %v511
      %v528 = vpack.c.b16 %v512, %v512
      %vm529 = vsmask.f32 7424
      %v531 = vshrl.u32 %v465, 16
      %v533 = vshll.u32 %v465, 16
      %v535 = vrot.slane %v533, 1
      %v536 = vor.u32 %v531, %v535
      %v538 = vshll.u32 %v513, 16
      %v540 = vrot.slane %v538, 1
      %v541 = vsel %vm529, %v536, %v540
      %v543 = vshrl.u32 %v466, 16
      %v545 = vshll.u32 %v466, 16
      %v547 = vrot.slane %v545, 1
      %v548 = vor.u32 %v543, %v547
      %v550 = vshll.u32 %v514, 16
      %v552 = vrot.slane %v550, 1
      %v553 = vsel %vm529, %v548, %v552
      %v555 = vshrl.u32 %v467, 16
      %v557 = vshll.u32 %v467, 16
      %v559 = vrot.slane %v557, 1
      %v560 = vor.u32 %v555, %v559
      %v562 = vshll.u32 %v515, 16
      %v564 = vrot.slane %v562, 1
      %v565 = vsel %vm529, %v560, %v564
      %v567 = vshrl.u32 %v468, 16
      %v569 = vshll.u32 %v468, 16
      %v571 = vrot.slane %v569, 1
      %v572 = vor.u32 %v567, %v571
      %v574 = vshll.u32 %v516, 16
      %v576 = vrot.slane %v574, 1
      %v577 = vsel %vm529, %v572, %v576
      %v579 = vshrl.u32 %v469, 16
      %v581 = vshll.u32 %v469, 16
      %v583 = vrot.slane %v581, 1
      %v584 = vor.u32 %v579, %v583
      %v586 = vshll.u32 %v517, 16
      %v588 = vrot.slane %v586, 1
      %v589 = vsel %vm529, %v584, %v588
      %v591 = vshrl.u32 %v470, 16
      %v593 = vshll.u32 %v470, 16
      %v595 = vrot.slane %v593, 1
      %v596 = vor.u32 %v591, %v595
      %v598 = vshll.u32 %v518, 16
      %v600 = vrot.slane %v598, 1
      %v601 = vsel %vm529, %v596, %v600
      %v603 = vshrl.u32 %v471, 16
      %v605 = vshll.u32 %v471, 16
      %v607 = vrot.slane %v605, 1
      %v608 = vor.u32 %v603, %v607
      %v610 = vshll.u32 %v519, 16
      %v612 = vrot.slane %v610, 1
      %v613 = vsel %vm529, %v608, %v612
      %v615 = vshrl.u32 %v472, 16
      %v617 = vshll.u32 %v472, 16
      %v619 = vrot.slane %v617, 1
      %v620 = vor.u32 %v615, %v619
      %v622 = vshll.u32 %v520, 16
      %v624 = vrot.slane %v622, 1
      %v625 = vsel %vm529, %v620, %v624
      %v627 = vshrl.u32 %v473, 16
      %v629 = vshll.u32 %v473, 16
      %v631 = vrot.slane %v629, 1
      %v632 = vor.u32 %v627, %v631
      %v634 = vshll.u32 %v521, 16
      %v636 = vrot.slane %v634, 1
      %v637 = vsel %vm529, %v632, %v636
      %v639 = vshrl.u32 %v474, 16
      %v641 = vshll.u32 %v474, 16
      %v643 = vrot.slane %v641, 1
      %v644 = vor.u32 %v639, %v643
      %v646 = vshll.u32 %v522, 16
      %v648 = vrot.slane %v646, 1
      %v649 = vsel %vm529, %v644, %v648
      %v651 = vshrl.u32 %v475, 16
      %v653 = vshll.u32 %v475, 16
      %v655 = vrot.slane %v653, 1
      %v656 = vor.u32 %v651, %v655
      %v658 = vshll.u32 %v523, 16
      %v660 = vrot.slane %v658, 1
      %v661 = vsel %vm529, %v656, %v660
      %v663 = vshrl.u32 %v476, 16
      %v665 = vshll.u32 %v476, 16
      %v667 = vrot.slane %v665, 1
      %v668 = vor.u32 %v663, %v667
      %v670 = vshll.u32 %v524, 16
      %v672 = vrot.slane %v670, 1
      %v673 = vsel %vm529, %v668, %v672
      %v675 = vshrl.u32 %v477, 16
      %v677 = vshll.u32 %v477, 16
      %v679 = vrot.slane %v677, 1
      %v680 = vor.u32 %v675, %v679
      %v682 = vshll.u32 %v525, 16
      %v684 = vrot.slane %v682, 1
      %v685 = vsel %vm529, %v680, %v684
      %v687 = vshrl.u32 %v478, 16
      %v689 = vshll.u32 %v478, 16
      %v691 = vrot.slane %v689, 1
      %v692 = vor.u32 %v687, %v691
      %v694 = vshll.u32 %v526, 16
      %v696 = vrot.slane %v694, 1
      %v697 = vsel %vm529, %v692, %v696
      %v699 = vshrl.u32 %v479, 16
      %v701 = vshll.u32 %v479, 16
      %v703 = vrot.slane %v701, 1
      %v704 = vor.u32 %v699, %v703
      %v706 = vshll.u32 %v527, 16
      %v708 = vrot.slane %v706, 1
      %v709 = vsel %vm529, %v704, %v708
      %v711 = vshrl.u32 %v480, 16
      %v713 = vshll.u32 %v480, 16
      %v715 = vrot.slane %v713, 1
      %v716 = vor.u32 %v711, %v715
      %v718 = vshll.u32 %v528, 16
      %v720 = vrot.slane %v718, 1
      %v721 = vsel %vm529, %v716, %v720
      %722 = vrot.lane.b32.xlu0 %v541, 4
      %v723 = vpop.permute.xlu0 %722
      %724 = vrot.lane.b32.xlu0 %v553, 4
      %v725 = vpop.permute.xlu0 %724
      %726 = vrot.lane.b32.xlu0 %v565, 4
      %v727 = vpop.permute.xlu0 %726
      %728 = vrot.lane.b32.xlu0 %v577, 4
      %v729 = vpop.permute.xlu0 %728
      %730 = vrot.lane.b32.xlu0 %v589, 4
      %v731 = vpop.permute.xlu0 %730
      %732 = vrot.lane.b32.xlu0 %v601, 4
      %v733 = vpop.permute.xlu0 %732
      %734 = vrot.lane.b32.xlu0 %v613, 4
      %v735 = vpop.permute.xlu0 %734
      %736 = vrot.lane.b32.xlu0 %v625, 4
      %v737 = vpop.permute.xlu0 %736
      %738 = vrot.lane.b32.xlu0 %v637, 4
      %v739 = vpop.permute.xlu0 %738
      %740 = vrot.lane.b32.xlu0 %v649, 4
      %v741 = vpop.permute.xlu0 %740
      %742 = vrot.lane.b32.xlu0 %v661, 4
      %v743 = vpop.permute.xlu0 %742
      %744 = vrot.lane.b32.xlu0 %v673, 4
      %v745 = vpop.permute.xlu0 %744
      %746 = vrot.lane.b32.xlu0 %v685, 4
      %v747 = vpop.permute.xlu0 %746
      %748 = vrot.lane.b32.xlu0 %v697, 4
      %v749 = vpop.permute.xlu0 %748
      %750 = vrot.lane.b32.xlu0 %v709, 4
      %v751 = vpop.permute.xlu0 %750
      %752 = vrot.lane.b32.xlu0 %v721, 4
      %v753 = vpop.permute.xlu0 %752
      %v770 = vunpack.c.l.b16 %v249
      %v771 = vunpack.c.l.b16 %v250
      %v772 = vunpack.c.l.b16 %v251
      %v773 = vunpack.c.l.b16 %v252
      %v774 = vunpack.c.l.b16 %v253
      %v775 = vunpack.c.l.b16 %v254
      %v776 = vunpack.c.l.b16 %v255
      %v777 = vunpack.c.l.b16 %v256
      %v778 = vunpack.c.l.b16 %v257
      %v779 = vunpack.c.l.b16 %v258
      %v780 = vunpack.c.l.b16 %v259
      %v781 = vunpack.c.l.b16 %v260
      %v782 = vunpack.c.l.b16 %v261
      %v783 = vunpack.c.l.b16 %v262
      %v784 = vunpack.c.l.b16 %v263
      %v785 = vunpack.c.l.b16 %v264
      %v786 = vpack.c.b16 %v434, %v770
      %v787 = vpack.c.b16 %v436, %v771
      %v788 = vpack.c.b16 %v438, %v772
      %v789 = vpack.c.b16 %v440, %v773
      %v790 = vpack.c.b16 %v442, %v774
      %v791 = vpack.c.b16 %v444, %v775
      %v792 = vpack.c.b16 %v446, %v776
      %v793 = vpack.c.b16 %v448, %v777
      %v794 = vpack.c.b16 %v450, %v778
      %v795 = vpack.c.b16 %v452, %v779
      %v796 = vpack.c.b16 %v454, %v780
      %v797 = vpack.c.b16 %v456, %v781
      %v798 = vpack.c.b16 %v458, %v782
      %v799 = vpack.c.b16 %v460, %v783
      %v800 = vpack.c.b16 %v462, %v784
      %v801 = vpack.c.b16 %v464, %v785
      %vm802 = vcmask 1046528
      %v803 = vrot.slane %v786, 1
      %v804 = vrot.slane %v513, 1
      %v805 = vsel %vm802, %v803, %v804
      %v806 = vrot.slane %v787, 1
      %v807 = vrot.slane %v514, 1
      %v808 = vsel %vm802, %v806, %v807
      %v809 = vrot.slane %v788, 1
      %v810 = vrot.slane %v515, 1
      %v811 = vsel %vm802, %v809, %v810
      %v812 = vrot.slane %v789, 1
      %v813 = vrot.slane %v516, 1
      %v814 = vsel %vm802, %v812, %v813
      %v815 = vrot.slane %v790, 1
      %v816 = vrot.slane %v517, 1
      %v817 = vsel %vm802, %v815, %v816
      %v818 = vrot.slane %v791, 1
      %v819 = vrot.slane %v518, 1
      %v820 = vsel %vm802, %v818, %v819
      %v821 = vrot.slane %v792, 1
      %v822 = vrot.slane %v519, 1
      %v823 = vsel %vm802, %v821, %v822
      %v824 = vrot.slane %v793, 1
      %v825 = vrot.slane %v520, 1
      %v826 = vsel %vm802, %v824, %v825
      %v827 = vrot.slane %v794, 1
      %v828 = vrot.slane %v521, 1
      %v829 = vsel %vm802, %v827, %v828
      %v830 = vrot.slane %v795, 1
      %v831 = vrot.slane %v522, 1
      %v832 = vsel %vm802, %v830, %v831
      %v833 = vrot.slane %v796, 1
      %v834 = vrot.slane %v523, 1
      %v835 = vsel %vm802, %v833, %v834
      %v836 = vrot.slane %v797, 1
      %v837 = vrot.slane %v524, 1
      %v838 = vsel %vm802, %v836, %v837
      %v839 = vrot.slane %v798, 1
      %v840 = vrot.slane %v525, 1
      %v841 = vsel %vm802, %v839, %v840
      %v842 = vrot.slane %v799, 1
      %v843 = vrot.slane %v526, 1
      %v844 = vsel %vm802, %v842, %v843
      %v845 = vrot.slane %v800, 1
      %v846 = vrot.slane %v527, 1
      %v847 = vsel %vm802, %v845, %v846
      %v848 = vrot.slane %v801, 1
      %v849 = vrot.slane %v528, 1
      %v850 = vsel %vm802, %v848, %v849
      %851 = vrot.lane.b32.xlu0 %v805, 8
      %v852 = vpop.permute.xlu0 %851
      %853 = vrot.lane.b32.xlu0 %v808, 8
      %v854 = vpop.permute.xlu0 %853
      %855 = vrot.lane.b32.xlu0 %v811, 8
      %v856 = vpop.permute.xlu0 %855
      %857 = vrot.lane.b32.xlu0 %v814, 8
      %v858 = vpop.permute.xlu0 %857
      %859 = vrot.lane.b32.xlu0 %v817, 8
      %v860 = vpop.permute.xlu0 %859
      %861 = vrot.lane.b32.xlu0 %v820, 8
      %v862 = vpop.permute.xlu0 %861
      %863 = vrot.lane.b32.xlu0 %v823, 8
      %v864 = vpop.permute.xlu0 %863
      %865 = vrot.lane.b32.xlu0 %v826, 8
      %v866 = vpop.permute.xlu0 %865
      %867 = vrot.lane.b32.xlu0 %v829, 8
      %v868 = vpop.permute.xlu0 %867
      %869 = vrot.lane.b32.xlu0 %v832, 8
      %v870 = vpop.permute.xlu0 %869
      %871 = vrot.lane.b32.xlu0 %v835, 8
      %v872 = vpop.permute.xlu0 %871
      %873 = vrot.lane.b32.xlu0 %v838, 8
      %v874 = vpop.permute.xlu0 %873
      %875 = vrot.lane.b32.xlu0 %v841, 8
      %v876 = vpop.permute.xlu0 %875
      %877 = vrot.lane.b32.xlu0 %v844, 8
      %v878 = vpop.permute.xlu0 %877
      %879 = vrot.lane.b32.xlu0 %v847, 8
      %v880 = vpop.permute.xlu0 %879
      %881 = vrot.lane.b32.xlu0 %v850, 8
      %v882 = vpop.permute.xlu0 %881
      %v915 = vunpack.c.l.b16 %v269
      %v916 = vunpack.c.l.b16 %v270
      %v917 = vunpack.c.l.b16 %v271
      %v918 = vunpack.c.l.b16 %v272
      %v919 = vunpack.c.l.b16 %v273
      %v920 = vunpack.c.l.b16 %v274
      %v921 = vunpack.c.l.b16 %v275
      %v922 = vunpack.c.l.b16 %v276
      %v923 = vunpack.c.l.b16 %v277
      %v924 = vunpack.c.l.b16 %v278
      %v925 = vunpack.c.l.b16 %v279
      %v926 = vunpack.c.l.b16 %v280
      %v927 = vunpack.c.l.b16 %v281
      %v928 = vunpack.c.l.b16 %v282
      %v929 = vunpack.c.l.b16 %v283
      %v930 = vunpack.c.l.b16 %v284
      %v931 = vunpack.c.l.b16 %v285
      %v932 = vunpack.c.l.b16 %v286
      %v933 = vunpack.c.l.b16 %v287
      %v934 = vunpack.c.l.b16 %v288
      %v935 = vunpack.c.l.b16 %v289
      %v936 = vunpack.c.l.b16 %v290
      %v937 = vunpack.c.l.b16 %v291
      %v938 = vunpack.c.l.b16 %v292
      %v939 = vunpack.c.l.b16 %v293
      %v940 = vunpack.c.l.b16 %v294
      %v941 = vunpack.c.l.b16 %v295
      %v942 = vunpack.c.l.b16 %v296
      %v943 = vunpack.c.l.b16 %v297
      %v944 = vunpack.c.l.b16 %v298
      %v945 = vunpack.c.l.b16 %v299
      %v946 = vunpack.c.l.b16 %v300
      %v947 = vpack.c.b16 %v916, %v915
      %v948 = vpack.c.b16 %v918, %v917
      %v949 = vpack.c.b16 %v920, %v919
      %v950 = vpack.c.b16 %v922, %v921
      %v951 = vpack.c.b16 %v924, %v923
      %v952 = vpack.c.b16 %v926, %v925
      %v953 = vpack.c.b16 %v928, %v927
      %v954 = vpack.c.b16 %v930, %v929
      %v955 = vpack.c.b16 %v932, %v931
      %v956 = vpack.c.b16 %v934, %v933
      %v957 = vpack.c.b16 %v936, %v935
      %v958 = vpack.c.b16 %v938, %v937
      %v959 = vpack.c.b16 %v940, %v939
      %v960 = vpack.c.b16 %v942, %v941
      %v961 = vpack.c.b16 %v944, %v943
      %v962 = vpack.c.b16 %v946, %v945
      %963 = vrot.lane.b32.xlu0 %v947, 12
      %v964 = vpop.permute.xlu0 %963
      %965 = vrot.lane.b32.xlu0 %v948, 12
      %v966 = vpop.permute.xlu0 %965
      %967 = vrot.lane.b32.xlu0 %v949, 12
      %v968 = vpop.permute.xlu0 %967
      %969 = vrot.lane.b32.xlu0 %v950, 12
      %v970 = vpop.permute.xlu0 %969
      %971 = vrot.lane.b32.xlu0 %v951, 12
      %v972 = vpop.permute.xlu0 %971
      %973 = vrot.lane.b32.xlu0 %v952, 12
      %v974 = vpop.permute.xlu0 %973
      %975 = vrot.lane.b32.xlu0 %v953, 12
      %v976 = vpop.permute.xlu0 %975
      %977 = vrot.lane.b32.xlu0 %v954, 12
      %v978 = vpop.permute.xlu0 %977
      %979 = vrot.lane.b32.xlu0 %v955, 12
      %v980 = vpop.permute.xlu0 %979
      %981 = vrot.lane.b32.xlu0 %v956, 12
      %v982 = vpop.permute.xlu0 %981
      %983 = vrot.lane.b32.xlu0 %v957, 12
      %v984 = vpop.permute.xlu0 %983
      %985 = vrot.lane.b32.xlu0 %v958, 12
      %v986 = vpop.permute.xlu0 %985
      %987 = vrot.lane.b32.xlu0 %v959, 12
      %v988 = vpop.permute.xlu0 %987
      %989 = vrot.lane.b32.xlu0 %v960, 12
      %v990 = vpop.permute.xlu0 %989
      %991 = vrot.lane.b32.xlu0 %v961, 12
      %v992 = vpop.permute.xlu0 %991
      %993 = vrot.lane.b32.xlu0 %v962, 12
      %v994 = vpop.permute.xlu0 %993
      %v1011 = vunpack.c.l.b16 %v301
      %v1012 = vunpack.c.l.b16 %v302
      %v1013 = vunpack.c.l.b16 %v303
      %v1014 = vunpack.c.l.b16 %v304
      %v1015 = vunpack.c.l.b16 %v305
      %v1016 = vunpack.c.l.b16 %v306
      %v1017 = vunpack.c.l.b16 %v307
      %v1018 = vunpack.c.l.b16 %v308
      %v1019 = vunpack.c.l.b16 %v309
      %v1020 = vunpack.c.l.b16 %v310
      %v1021 = vunpack.c.l.b16 %v311
      %v1022 = vunpack.c.l.b16 %v312
      %v1023 = vunpack.c.l.b16 %v313
      %v1024 = vunpack.c.l.b16 %v314
      %v1025 = vunpack.c.l.b16 %v315
      %v1026 = vunpack.c.l.b16 %v316
      %v1027 = vpack.c.b16 %v1011, %v1011
      %v1028 = vpack.c.b16 %v1012, %v1012
      %v1029 = vpack.c.b16 %v1013, %v1013
      %v1030 = vpack.c.b16 %v1014, %v1014
      %v1031 = vpack.c.b16 %v1015, %v1015
      %v1032 = vpack.c.b16 %v1016, %v1016
      %v1033 = vpack.c.b16 %v1017, %v1017
      %v1034 = vpack.c.b16 %v1018, %v1018
      %v1035 = vpack.c.b16 %v1019, %v1019
      %v1036 = vpack.c.b16 %v1020, %v1020
      %v1037 = vpack.c.b16 %v1021, %v1021
      %v1038 = vpack.c.b16 %v1022, %v1022
      %v1039 = vpack.c.b16 %v1023, %v1023
      %v1040 = vpack.c.b16 %v1024, %v1024
      %v1041 = vpack.c.b16 %v1025, %v1025
      %v1042 = vpack.c.b16 %v1026, %v1026
      %v1044 = vshrl.u32 %v947, 16
      %v1046 = vshll.u32 %v947, 16
      %v1048 = vrot.slane %v1046, 1
      %v1049 = vor.u32 %v1044, %v1048
      %v1051 = vshll.u32 %v1027, 16
      %v1053 = vrot.slane %v1051, 1
      %v1054 = vsel %vm529, %v1049, %v1053
      %v1056 = vshrl.u32 %v948, 16
      %v1058 = vshll.u32 %v948, 16
      %v1060 = vrot.slane %v1058, 1
      %v1061 = vor.u32 %v1056, %v1060
      %v1063 = vshll.u32 %v1028, 16
      %v1065 = vrot.slane %v1063, 1
      %v1066 = vsel %vm529, %v1061, %v1065
      %v1068 = vshrl.u32 %v949, 16
      %v1070 = vshll.u32 %v949, 16
      %v1072 = vrot.slane %v1070, 1
      %v1073 = vor.u32 %v1068, %v1072
      %v1075 = vshll.u32 %v1029, 16
      %v1077 = vrot.slane %v1075, 1
      %v1078 = vsel %vm529, %v1073, %v1077
      %v1080 = vshrl.u32 %v950, 16
      %v1082 = vshll.u32 %v950, 16
      %v1084 = vrot.slane %v1082, 1
      %v1085 = vor.u32 %v1080, %v1084
      %v1087 = vshll.u32 %v1030, 16
      %v1089 = vrot.slane %v1087, 1
      %v1090 = vsel %vm529, %v1085, %v1089
      %v1092 = vshrl.u32 %v951, 16
      %v1094 = vshll.u32 %v951, 16
      %v1096 = vrot.slane %v1094, 1
      %v1097 = vor.u32 %v1092, %v1096
      %v1099 = vshll.u32 %v1031, 16
      %v1101 = vrot.slane %v1099, 1
      %v1102 = vsel %vm529, %v1097, %v1101
      %v1104 = vshrl.u32 %v952, 16
      %v1106 = vshll.u32 %v952, 16
      %v1108 = vrot.slane %v1106, 1
      %v1109 = vor.u32 %v1104, %v1108
      %v1111 = vshll.u32 %v1032, 16
      %v1113 = vrot.slane %v1111, 1
      %v1114 = vsel %vm529, %v1109, %v1113
      %v1116 = vshrl.u32 %v953, 16
      %v1118 = vshll.u32 %v953, 16
      %v1120 = vrot.slane %v1118, 1
      %v1121 = vor.u32 %v1116, %v1120
      %v1123 = vshll.u32 %v1033, 16
      %v1125 = vrot.slane %v1123, 1
      %v1126 = vsel %vm529, %v1121, %v1125
      %v1128 = vshrl.u32 %v954, 16
      %v1130 = vshll.u32 %v954, 16
      %v1132 = vrot.slane %v1130, 1
      %v1133 = vor.u32 %v1128, %v1132
      %v1135 = vshll.u32 %v1034, 16
      %v1137 = vrot.slane %v1135, 1
      %v1138 = vsel %vm529, %v1133, %v1137
      %v1140 = vshrl.u32 %v955, 16
      %v1142 = vshll.u32 %v955, 16
      %v1144 = vrot.slane %v1142, 1
      %v1145 = vor.u32 %v1140, %v1144
      %v1147 = vshll.u32 %v1035, 16
      %v1149 = vrot.slane %v1147, 1
      %v1150 = vsel %vm529, %v1145, %v1149
      %v1152 = vshrl.u32 %v956, 16
      %v1154 = vshll.u32 %v956, 16
      %v1156 = vrot.slane %v1154, 1
      %v1157 = vor.u32 %v1152, %v1156
      %v1159 = vshll.u32 %v1036, 16
      %v1161 = vrot.slane %v1159, 1
      %v1162 = vsel %vm529, %v1157, %v1161
      %v1164 = vshrl.u32 %v957, 16
      %v1166 = vshll.u32 %v957, 16
      %v1168 = vrot.slane %v1166, 1
      %v1169 = vor.u32 %v1164, %v1168
      %v1171 = vshll.u32 %v1037, 16
      %v1173 = vrot.slane %v1171, 1
      %v1174 = vsel %vm529, %v1169, %v1173
      %v1176 = vshrl.u32 %v958, 16
      %v1178 = vshll.u32 %v958, 16
      %v1180 = vrot.slane %v1178, 1
      %v1181 = vor.u32 %v1176, %v1180
      %v1183 = vshll.u32 %v1038, 16
      %v1185 = vrot.slane %v1183, 1
      %v1186 = vsel %vm529, %v1181, %v1185
      %v1188 = vshrl.u32 %v959, 16
      %v1190 = vshll.u32 %v959, 16
      %v1192 = vrot.slane %v1190, 1
      %v1193 = vor.u32 %v1188, %v1192
      %v1195 = vshll.u32 %v1039, 16
      %v1197 = vrot.slane %v1195, 1
      %v1198 = vsel %vm529, %v1193, %v1197
      %v1200 = vshrl.u32 %v960, 16
      %v1202 = vshll.u32 %v960, 16
      %v1204 = vrot.slane %v1202, 1
      %v1205 = vor.u32 %v1200, %v1204
      %v1207 = vshll.u32 %v1040, 16
      %v1209 = vrot.slane %v1207, 1
      %v1210 = vsel %vm529, %v1205, %v1209
      %v1212 = vshrl.u32 %v961, 16
      %v1214 = vshll.u32 %v961, 16
      %v1216 = vrot.slane %v1214, 1
      %v1217 = vor.u32 %v1212, %v1216
      %v1219 = vshll.u32 %v1041, 16
      %v1221 = vrot.slane %v1219, 1
      %v1222 = vsel %vm529, %v1217, %v1221
      %v1224 = vshrl.u32 %v962, 16
      %v1226 = vshll.u32 %v962, 16
      %v1228 = vrot.slane %v1226, 1
      %v1229 = vor.u32 %v1224, %v1228
      %v1231 = vshll.u32 %v1042, 16
      %v1233 = vrot.slane %v1231, 1
      %v1234 = vsel %vm529, %v1229, %v1233
      %1235 = vrot.lane.b32.xlu0 %v1054, 16
      %v1236 = vpop.permute.xlu0 %1235
      %1237 = vrot.lane.b32.xlu0 %v1066, 16
      %v1238 = vpop.permute.xlu0 %1237
      %1239 = vrot.lane.b32.xlu0 %v1078, 16
      %v1240 = vpop.permute.xlu0 %1239
      %1241 = vrot.lane.b32.xlu0 %v1090, 16
      %v1242 = vpop.permute.xlu0 %1241
      %1243 = vrot.lane.b32.xlu0 %v1102, 16
      %v1244 = vpop.permute.xlu0 %1243
      %1245 = vrot.lane.b32.xlu0 %v1114, 16
      %v1246 = vpop.permute.xlu0 %1245
      %1247 = vrot.lane.b32.xlu0 %v1126, 16
      %v1248 = vpop.permute.xlu0 %1247
      %1249 = vrot.lane.b32.xlu0 %v1138, 16
      %v1250 = vpop.permute.xlu0 %1249
      %1251 = vrot.lane.b32.xlu0 %v1150, 16
      %v1252 = vpop.permute.xlu0 %1251
      %1253 = vrot.lane.b32.xlu0 %v1162, 16
      %v1254 = vpop.permute.xlu0 %1253
      %1255 = vrot.lane.b32.xlu0 %v1174, 16
      %v1256 = vpop.permute.xlu0 %1255
      %1257 = vrot.lane.b32.xlu0 %v1186, 16
      %v1258 = vpop.permute.xlu0 %1257
      %1259 = vrot.lane.b32.xlu0 %v1198, 16
      %v1260 = vpop.permute.xlu0 %1259
      %1261 = vrot.lane.b32.xlu0 %v1210, 16
      %v1262 = vpop.permute.xlu0 %1261
      %1263 = vrot.lane.b32.xlu0 %v1222, 16
      %v1264 = vpop.permute.xlu0 %1263
      %1265 = vrot.lane.b32.xlu0 %v1234, 16
      %v1266 = vpop.permute.xlu0 %1265
      %v1283 = vunpack.c.l.b16 %v317
      %v1284 = vunpack.c.l.b16 %v318
      %v1285 = vunpack.c.l.b16 %v319
      %v1286 = vunpack.c.l.b16 %v320
      %v1287 = vunpack.c.l.b16 %v321
      %v1288 = vunpack.c.l.b16 %v322
      %v1289 = vunpack.c.l.b16 %v323
      %v1290 = vunpack.c.l.b16 %v324
      %v1291 = vunpack.c.l.b16 %v325
      %v1292 = vunpack.c.l.b16 %v326
      %v1293 = vunpack.c.l.b16 %v327
      %v1294 = vunpack.c.l.b16 %v328
      %v1295 = vunpack.c.l.b16 %v329
      %v1296 = vunpack.c.l.b16 %v330
      %v1297 = vunpack.c.l.b16 %v331
      %v1298 = vunpack.c.l.b16 %v332
      %v1299 = vpack.c.b16 %v916, %v1283
      %v1300 = vpack.c.b16 %v918, %v1284
      %v1301 = vpack.c.b16 %v920, %v1285
      %v1302 = vpack.c.b16 %v922, %v1286
      %v1303 = vpack.c.b16 %v924, %v1287
      %v1304 = vpack.c.b16 %v926, %v1288
      %v1305 = vpack.c.b16 %v928, %v1289
      %v1306 = vpack.c.b16 %v930, %v1290
      %v1307 = vpack.c.b16 %v932, %v1291
      %v1308 = vpack.c.b16 %v934, %v1292
      %v1309 = vpack.c.b16 %v936, %v1293
      %v1310 = vpack.c.b16 %v938, %v1294
      %v1311 = vpack.c.b16 %v940, %v1295
      %v1312 = vpack.c.b16 %v942, %v1296
      %v1313 = vpack.c.b16 %v944, %v1297
      %v1314 = vpack.c.b16 %v946, %v1298
      %v1315 = vrot.slane %v1299, 1
      %v1316 = vrot.slane %v1027, 1
      %v1317 = vsel %vm802, %v1315, %v1316
      %v1318 = vrot.slane %v1300, 1
      %v1319 = vrot.slane %v1028, 1
      %v1320 = vsel %vm802, %v1318, %v1319
      %v1321 = vrot.slane %v1301, 1
      %v1322 = vrot.slane %v1029, 1
      %v1323 = vsel %vm802, %v1321, %v1322
      %v1324 = vrot.slane %v1302, 1
      %v1325 = vrot.slane %v1030, 1
      %v1326 = vsel %vm802, %v1324, %v1325
      %v1327 = vrot.slane %v1303, 1
      %v1328 = vrot.slane %v1031, 1
      %v1329 = vsel %vm802, %v1327, %v1328
      %v1330 = vrot.slane %v1304, 1
      %v1331 = vrot.slane %v1032, 1
      %v1332 = vsel %vm802, %v1330, %v1331
      %v1333 = vrot.slane %v1305, 1
      %v1334 = vrot.slane %v1033, 1
      %v1335 = vsel %vm802, %v1333, %v1334
      %v1336 = vrot.slane %v1306, 1
      %v1337 = vrot.slane %v1034, 1
      %v1338 = vsel %vm802, %v1336, %v1337
      %v1339 = vrot.slane %v1307, 1
      %v1340 = vrot.slane %v1035, 1
      %v1341 = vsel %vm802, %v1339, %v1340
      %v1342 = vrot.slane %v1308, 1
      %v1343 = vrot.slane %v1036, 1
      %v1344 = vsel %vm802, %v1342, %v1343
      %v1345 = vrot.slane %v1309, 1
      %v1346 = vrot.slane %v1037, 1
      %v1347 = vsel %vm802, %v1345, %v1346
      %v1348 = vrot.slane %v1310, 1
      %v1349 = vrot.slane %v1038, 1
      %v1350 = vsel %vm802, %v1348, %v1349
      %v1351 = vrot.slane %v1311, 1
      %v1352 = vrot.slane %v1039, 1
      %v1353 = vsel %vm802, %v1351, %v1352
      %v1354 = vrot.slane %v1312, 1
      %v1355 = vrot.slane %v1040, 1
      %v1356 = vsel %vm802, %v1354, %v1355
      %v1357 = vrot.slane %v1313, 1
      %v1358 = vrot.slane %v1041, 1
      %v1359 = vsel %vm802, %v1357, %v1358
      %v1360 = vrot.slane %v1314, 1
      %v1361 = vrot.slane %v1042, 1
      %v1362 = vsel %vm802, %v1360, %v1361
      %1363 = vrot.lane.b32.xlu0 %v1317, 20
      %v1364 = vpop.permute.xlu0 %1363
      %1365 = vrot.lane.b32.xlu0 %v1320, 20
      %v1366 = vpop.permute.xlu0 %1365
      %1367 = vrot.lane.b32.xlu0 %v1323, 20
      %v1368 = vpop.permute.xlu0 %1367
      %1369 = vrot.lane.b32.xlu0 %v1326, 20
      %v1370 = vpop.permute.xlu0 %1369
      %1371 = vrot.lane.b32.xlu0 %v1329, 20
      %v1372 = vpop.permute.xlu0 %1371
      %1373 = vrot.lane.b32.xlu0 %v1332, 20
      %v1374 = vpop.permute.xlu0 %1373
      %1375 = vrot.lane.b32.xlu0 %v1335, 20
      %v1376 = vpop.permute.xlu0 %1375
      %1377 = vrot.lane.b32.xlu0 %v1338, 20
      %v1378 = vpop.permute.xlu0 %1377
      %1379 = vrot.lane.b32.xlu0 %v1341, 20
      %v1380 = vpop.permute.xlu0 %1379
      %1381 = vrot.lane.b32.xlu0 %v1344, 20
      %v1382 = vpop.permute.xlu0 %1381
      %1383 = vrot.lane.b32.xlu0 %v1347, 20
      %v1384 = vpop.permute.xlu0 %1383
      %1385 = vrot.lane.b32.xlu0 %v1350, 20
      %v1386 = vpop.permute.xlu0 %1385
      %1387 = vrot.lane.b32.xlu0 %v1353, 20
      %v1388 = vpop.permute.xlu0 %1387
      %1389 = vrot.lane.b32.xlu0 %v1356, 20
      %v1390 = vpop.permute.xlu0 %1389
      %1391 = vrot.lane.b32.xlu0 %v1359, 20
      %v1392 = vpop.permute.xlu0 %1391
      %1393 = vrot.lane.b32.xlu0 %v1362, 20
      %v1394 = vpop.permute.xlu0 %1393
      %v1427 = vunpack.c.l.b16 %v337
      %v1428 = vunpack.c.l.b16 %v338
      %v1429 = vunpack.c.l.b16 %v339
      %v1430 = vunpack.c.l.b16 %v340
      %v1431 = vunpack.c.l.b16 %v341
      %v1432 = vunpack.c.l.b16 %v342
      %v1433 = vunpack.c.l.b16 %v343
      %v1434 = vunpack.c.l.b16 %v344
      %v1435 = vunpack.c.l.b16 %v345
      %v1436 = vunpack.c.l.b16 %v346
      %v1437 = vunpack.c.l.b16 %v347
      %v1438 = vunpack.c.l.b16 %v348
      %v1439 = vunpack.c.l.b16 %v349
      %v1440 = vunpack.c.l.b16 %v350
      %v1441 = vunpack.c.l.b16 %v351
      %v1442 = vunpack.c.l.b16 %v352
      %v1443 = vunpack.c.l.b16 %v353
      %v1444 = vunpack.c.l.b16 %v354
      %v1445 = vunpack.c.l.b16 %v355
      %v1446 = vunpack.c.l.b16 %v356
      %v1447 = vunpack.c.l.b16 %v357
      %v1448 = vunpack.c.l.b16 %v358
      %v1449 = vunpack.c.l.b16 %v359
      %v1450 = vunpack.c.l.b16 %v360
      %v1451 = vunpack.c.l.b16 %v361
      %v1452 = vunpack.c.l.b16 %v362
      %v1453 = vunpack.c.l.b16 %v363
      %v1454 = vunpack.c.l.b16 %v364
      %v1455 = vunpack.c.l.b16 %v365
      %v1456 = vunpack.c.l.b16 %v366
      %v1457 = vunpack.c.l.b16 %v367
      %v1458 = vunpack.c.l.b16 %v368
      %v1459 = vpack.c.b16 %v1428, %v1427
      %v1460 = vpack.c.b16 %v1430, %v1429
      %v1461 = vpack.c.b16 %v1432, %v1431
      %v1462 = vpack.c.b16 %v1434, %v1433
      %v1463 = vpack.c.b16 %v1436, %v1435
      %v1464 = vpack.c.b16 %v1438, %v1437
      %v1465 = vpack.c.b16 %v1440, %v1439
      %v1466 = vpack.c.b16 %v1442, %v1441
      %v1467 = vpack.c.b16 %v1444, %v1443
      %v1468 = vpack.c.b16 %v1446, %v1445
      %v1469 = vpack.c.b16 %v1448, %v1447
      %v1470 = vpack.c.b16 %v1450, %v1449
      %v1471 = vpack.c.b16 %v1452, %v1451
      %v1472 = vpack.c.b16 %v1454, %v1453
      %v1473 = vpack.c.b16 %v1456, %v1455
      %v1474 = vpack.c.b16 %v1458, %v1457
      %1475 = vrot.lane.b32.xlu0 %v1459, 24
      %v1476 = vpop.permute.xlu0 %1475
      %1477 = vrot.lane.b32.xlu0 %v1460, 24
      %v1478 = vpop.permute.xlu0 %1477
      %1479 = vrot.lane.b32.xlu0 %v1461, 24
      %v1480 = vpop.permute.xlu0 %1479
      %1481 = vrot.lane.b32.xlu0 %v1462, 24
      %v1482 = vpop.permute.xlu0 %1481
      %1483 = vrot.lane.b32.xlu0 %v1463, 24
      %v1484 = vpop.permute.xlu0 %1483
      %1485 = vrot.lane.b32.xlu0 %v1464, 24
      %v1486 = vpop.permute.xlu0 %1485
      %1487 = vrot.lane.b32.xlu0 %v1465, 24
      %v1488 = vpop.permute.xlu0 %1487
      %1489 = vrot.lane.b32.xlu0 %v1466, 24
      %v1490 = vpop.permute.xlu0 %1489
      %1491 = vrot.lane.b32.xlu0 %v1467, 24
      %v1492 = vpop.permute.xlu0 %1491
      %1493 = vrot.lane.b32.xlu0 %v1468, 24
      %v1494 = vpop.permute.xlu0 %1493
      %1495 = vrot.lane.b32.xlu0 %v1469, 24
      %v1496 = vpop.permute.xlu0 %1495
      %1497 = vrot.lane.b32.xlu0 %v1470, 24
      %v1498 = vpop.permute.xlu0 %1497
      %1499 = vrot.lane.b32.xlu0 %v1471, 24
      %v1500 = vpop.permute.xlu0 %1499
      %1501 = vrot.lane.b32.xlu0 %v1472, 24
      %v1502 = vpop.permute.xlu0 %1501
      %1503 = vrot.lane.b32.xlu0 %v1473, 24
      %v1504 = vpop.permute.xlu0 %1503
      %1505 = vrot.lane.b32.xlu0 %v1474, 24
      %v1506 = vpop.permute.xlu0 %1505
      %v1523 = vunpack.c.l.b16 %v369
      %v1524 = vunpack.c.l.b16 %v370
      %v1525 = vunpack.c.l.b16 %v371
      %v1526 = vunpack.c.l.b16 %v372
      %v1527 = vunpack.c.l.b16 %v373
      %v1528 = vunpack.c.l.b16 %v374
      %v1529 = vunpack.c.l.b16 %v375
      %v1530 = vunpack.c.l.b16 %v376
      %v1531 = vunpack.c.l.b16 %v377
      %v1532 = vunpack.c.l.b16 %v378
      %v1533 = vunpack.c.l.b16 %v379
      %v1534 = vunpack.c.l.b16 %v380
      %v1535 = vunpack.c.l.b16 %v381
      %v1536 = vunpack.c.l.b16 %v382
      %v1537 = vunpack.c.l.b16 %v383
      %v1538 = vunpack.c.l.b16 %v384
      %v1539 = vpack.c.b16 %v1523, %v1523
      %v1540 = vpack.c.b16 %v1524, %v1524
      %v1541 = vpack.c.b16 %v1525, %v1525
      %v1542 = vpack.c.b16 %v1526, %v1526
      %v1543 = vpack.c.b16 %v1527, %v1527
      %v1544 = vpack.c.b16 %v1528, %v1528
      %v1545 = vpack.c.b16 %v1529, %v1529
      %v1546 = vpack.c.b16 %v1530, %v1530
      %v1547 = vpack.c.b16 %v1531, %v1531
      %v1548 = vpack.c.b16 %v1532, %v1532
      %v1549 = vpack.c.b16 %v1533, %v1533
      %v1550 = vpack.c.b16 %v1534, %v1534
      %v1551 = vpack.c.b16 %v1535, %v1535
      %v1552 = vpack.c.b16 %v1536, %v1536
      %v1553 = vpack.c.b16 %v1537, %v1537
      %v1554 = vpack.c.b16 %v1538, %v1538
      %v1556 = vshrl.u32 %v1459, 16
      %v1558 = vshll.u32 %v1459, 16
      %v1560 = vrot.slane %v1558, 1
      %v1561 = vor.u32 %v1556, %v1560
      %v1563 = vshll.u32 %v1539, 16
      %v1565 = vrot.slane %v1563, 1
      %v1566 = vsel %vm529, %v1561, %v1565
      %v1568 = vshrl.u32 %v1460, 16
      %v1570 = vshll.u32 %v1460, 16
      %v1572 = vrot.slane %v1570, 1
      %v1573 = vor.u32 %v1568, %v1572
      %v1575 = vshll.u32 %v1540, 16
      %v1577 = vrot.slane %v1575, 1
      %v1578 = vsel %vm529, %v1573, %v1577
      %v1580 = vshrl.u32 %v1461, 16
      %v1582 = vshll.u32 %v1461, 16
      %v1584 = vrot.slane %v1582, 1
      %v1585 = vor.u32 %v1580, %v1584
      %v1587 = vshll.u32 %v1541, 16
      %v1589 = vrot.slane %v1587, 1
      %v1590 = vsel %vm529, %v1585, %v1589
      %v1592 = vshrl.u32 %v1462, 16
      %v1594 = vshll.u32 %v1462, 16
      %v1596 = vrot.slane %v1594, 1
      %v1597 = vor.u32 %v1592, %v1596
      %v1599 = vshll.u32 %v1542, 16
      %v1601 = vrot.slane %v1599, 1
      %v1602 = vsel %vm529, %v1597, %v1601
      %v1604 = vshrl.u32 %v1463, 16
      %v1606 = vshll.u32 %v1463, 16
      %v1608 = vrot.slane %v1606, 1
      %v1609 = vor.u32 %v1604, %v1608
      %v1611 = vshll.u32 %v1543, 16
      %v1613 = vrot.slane %v1611, 1
      %v1614 = vsel %vm529, %v1609, %v1613
      %v1616 = vshrl.u32 %v1464, 16
      %v1618 = vshll.u32 %v1464, 16
      %v1620 = vrot.slane %v1618, 1
      %v1621 = vor.u32 %v1616, %v1620
      %v1623 = vshll.u32 %v1544, 16
      %v1625 = vrot.slane %v1623, 1
      %v1626 = vsel %vm529, %v1621, %v1625
      %v1628 = vshrl.u32 %v1465, 16
      %v1630 = vshll.u32 %v1465, 16
      %v1632 = vrot.slane %v1630, 1
      %v1633 = vor.u32 %v1628, %v1632
      %v1635 = vshll.u32 %v1545, 16
      %v1637 = vrot.slane %v1635, 1
      %v1638 = vsel %vm529, %v1633, %v1637
      %v1640 = vshrl.u32 %v1466, 16
      %v1642 = vshll.u32 %v1466, 16
      %v1644 = vrot.slane %v1642, 1
      %v1645 = vor.u32 %v1640, %v1644
      %v1647 = vshll.u32 %v1546, 16
      %v1649 = vrot.slane %v1647, 1
      %v1650 = vsel %vm529, %v1645, %v1649
      %v1652 = vshrl.u32 %v1467, 16
      %v1654 = vshll.u32 %v1467, 16
      %v1656 = vrot.slane %v1654, 1
      %v1657 = vor.u32 %v1652, %v1656
      %v1659 = vshll.u32 %v1547, 16
      %v1661 = vrot.slane %v1659, 1
      %v1662 = vsel %vm529, %v1657, %v1661
      %v1664 = vshrl.u32 %v1468, 16
      %v1666 = vshll.u32 %v1468, 16
      %v1668 = vrot.slane %v1666, 1
      %v1669 = vor.u32 %v1664, %v1668
      %v1671 = vshll.u32 %v1548, 16
      %v1673 = vrot.slane %v1671, 1
      %v1674 = vsel %vm529, %v1669, %v1673
      %v1676 = vshrl.u32 %v1469, 16
      %v1678 = vshll.u32 %v1469, 16
      %v1680 = vrot.slane %v1678, 1
      %v1681 = vor.u32 %v1676, %v1680
      %v1683 = vshll.u32 %v1549, 16
      %v1685 = vrot.slane %v1683, 1
      %v1686 = vsel %vm529, %v1681, %v1685
      %v1688 = vshrl.u32 %v1470, 16
      %v1690 = vshll.u32 %v1470, 16
      %v1692 = vrot.slane %v1690, 1
      %v1693 = vor.u32 %v1688, %v1692
      %v1695 = vshll.u32 %v1550, 16
      %v1697 = vrot.slane %v1695, 1
      %v1698 = vsel %vm529, %v1693, %v1697
      %v1700 = vshrl.u32 %v1471, 16
      %v1702 = vshll.u32 %v1471, 16
      %v1704 = vrot.slane %v1702, 1
      %v1705 = vor.u32 %v1700, %v1704
      %v1707 = vshll.u32 %v1551, 16
      %v1709 = vrot.slane %v1707, 1
      %v1710 = vsel %vm529, %v1705, %v1709
      %v1712 = vshrl.u32 %v1472, 16
      %v1714 = vshll.u32 %v1472, 16
      %v1716 = vrot.slane %v1714, 1
      %v1717 = vor.u32 %v1712, %v1716
      %v1719 = vshll.u32 %v1552, 16
      %v1721 = vrot.slane %v1719, 1
      %v1722 = vsel %vm529, %v1717, %v1721
      %v1724 = vshrl.u32 %v1473, 16
      %v1726 = vshll.u32 %v1473, 16
      %v1728 = vrot.slane %v1726, 1
      %v1729 = vor.u32 %v1724, %v1728
      %v1731 = vshll.u32 %v1553, 16
      %v1733 = vrot.slane %v1731, 1
      %v1734 = vsel %vm529, %v1729, %v1733
      %v1736 = vshrl.u32 %v1474, 16
      %v1738 = vshll.u32 %v1474, 16
      %v1740 = vrot.slane %v1738, 1
      %v1741 = vor.u32 %v1736, %v1740
      %v1743 = vshll.u32 %v1554, 16
      %v1745 = vrot.slane %v1743, 1
      %v1746 = vsel %vm529, %v1741, %v1745
      %1747 = vrot.lane.b32.xlu0 %v1566, 28
      %v1748 = vpop.permute.xlu0 %1747
      %1749 = vrot.lane.b32.xlu0 %v1578, 28
      %v1750 = vpop.permute.xlu0 %1749
      %1751 = vrot.lane.b32.xlu0 %v1590, 28
      %v1752 = vpop.permute.xlu0 %1751
      %1753 = vrot.lane.b32.xlu0 %v1602, 28
      %v1754 = vpop.permute.xlu0 %1753
      %1755 = vrot.lane.b32.xlu0 %v1614, 28
      %v1756 = vpop.permute.xlu0 %1755
      %1757 = vrot.lane.b32.xlu0 %v1626, 28
      %v1758 = vpop.permute.xlu0 %1757
      %1759 = vrot.lane.b32.xlu0 %v1638, 28
      %v1760 = vpop.permute.xlu0 %1759
      %1761 = vrot.lane.b32.xlu0 %v1650, 28
      %v1762 = vpop.permute.xlu0 %1761
      %1763 = vrot.lane.b32.xlu0 %v1662, 28
      %v1764 = vpop.permute.xlu0 %1763
      %1765 = vrot.lane.b32.xlu0 %v1674, 28
      %v1766 = vpop.permute.xlu0 %1765
      %1767 = vrot.lane.b32.xlu0 %v1686, 28
      %v1768 = vpop.permute.xlu0 %1767
      %1769 = vrot.lane.b32.xlu0 %v1698, 28
      %v1770 = vpop.permute.xlu0 %1769
      %1771 = vrot.lane.b32.xlu0 %v1710, 28
      %v1772 = vpop.permute.xlu0 %1771
      %1773 = vrot.lane.b32.xlu0 %v1722, 28
      %v1774 = vpop.permute.xlu0 %1773
      %1775 = vrot.lane.b32.xlu0 %v1734, 28
      %v1776 = vpop.permute.xlu0 %1775
      %1777 = vrot.lane.b32.xlu0 %v1746, 28
      %v1778 = vpop.permute.xlu0 %1777
      %v1795 = vunpack.c.l.b16 %v385
      %v1796 = vunpack.c.l.b16 %v386
      %v1797 = vunpack.c.l.b16 %v387
      %v1798 = vunpack.c.l.b16 %v388
      %v1799 = vunpack.c.l.b16 %v389
      %v1800 = vunpack.c.l.b16 %v390
      %v1801 = vunpack.c.l.b16 %v391
      %v1802 = vunpack.c.l.b16 %v392
      %v1803 = vunpack.c.l.b16 %v393
      %v1804 = vunpack.c.l.b16 %v394
      %v1805 = vunpack.c.l.b16 %v395
      %v1806 = vunpack.c.l.b16 %v396
      %v1807 = vunpack.c.l.b16 %v397
      %v1808 = vunpack.c.l.b16 %v398
      %v1809 = vunpack.c.l.b16 %v399
      %v1810 = vunpack.c.l.b16 %v400
      %v1811 = vpack.c.b16 %v1428, %v1795
      %v1812 = vpack.c.b16 %v1430, %v1796
      %v1813 = vpack.c.b16 %v1432, %v1797
      %v1814 = vpack.c.b16 %v1434, %v1798
      %v1815 = vpack.c.b16 %v1436, %v1799
      %v1816 = vpack.c.b16 %v1438, %v1800
      %v1817 = vpack.c.b16 %v1440, %v1801
      %v1818 = vpack.c.b16 %v1442, %v1802
      %v1819 = vpack.c.b16 %v1444, %v1803
      %v1820 = vpack.c.b16 %v1446, %v1804
      %v1821 = vpack.c.b16 %v1448, %v1805
      %v1822 = vpack.c.b16 %v1450, %v1806
      %v1823 = vpack.c.b16 %v1452, %v1807
      %v1824 = vpack.c.b16 %v1454, %v1808
      %v1825 = vpack.c.b16 %v1456, %v1809
      %v1826 = vpack.c.b16 %v1458, %v1810
      %v1827 = vrot.slane %v1811, 1
      %v1828 = vrot.slane %v1539, 1
      %v1829 = vsel %vm802, %v1827, %v1828
      %v1830 = vrot.slane %v1812, 1
      %v1831 = vrot.slane %v1540, 1
      %v1832 = vsel %vm802, %v1830, %v1831
      %v1833 = vrot.slane %v1813, 1
      %v1834 = vrot.slane %v1541, 1
      %v1835 = vsel %vm802, %v1833, %v1834
      %v1836 = vrot.slane %v1814, 1
      %v1837 = vrot.slane %v1542, 1
      %v1838 = vsel %vm802, %v1836, %v1837
      %v1839 = vrot.slane %v1815, 1
      %v1840 = vrot.slane %v1543, 1
      %v1841 = vsel %vm802, %v1839, %v1840
      %v1842 = vrot.slane %v1816, 1
      %v1843 = vrot.slane %v1544, 1
      %v1844 = vsel %vm802, %v1842, %v1843
      %v1845 = vrot.slane %v1817, 1
      %v1846 = vrot.slane %v1545, 1
      %v1847 = vsel %vm802, %v1845, %v1846
      %v1848 = vrot.slane %v1818, 1
      %v1849 = vrot.slane %v1546, 1
      %v1850 = vsel %vm802, %v1848, %v1849
      %v1851 = vrot.slane %v1819, 1
      %v1852 = vrot.slane %v1547, 1
      %v1853 = vsel %vm802, %v1851, %v1852
      %v1854 = vrot.slane %v1820, 1
      %v1855 = vrot.slane %v1548, 1
      %v1856 = vsel %vm802, %v1854, %v1855
      %v1857 = vrot.slane %v1821, 1
      %v1858 = vrot.slane %v1549, 1
      %v1859 = vsel %vm802, %v1857, %v1858
      %v1860 = vrot.slane %v1822, 1
      %v1861 = vrot.slane %v1550, 1
      %v1862 = vsel %vm802, %v1860, %v1861
      %v1863 = vrot.slane %v1823, 1
      %v1864 = vrot.slane %v1551, 1
      %v1865 = vsel %vm802, %v1863, %v1864
      %v1866 = vrot.slane %v1824, 1
      %v1867 = vrot.slane %v1552, 1
      %v1868 = vsel %vm802, %v1866, %v1867
      %v1869 = vrot.slane %v1825, 1
      %v1870 = vrot.slane %v1553, 1
      %v1871 = vsel %vm802, %v1869, %v1870
      %v1872 = vrot.slane %v1826, 1
      %v1873 = vrot.slane %v1554, 1
      %v1874 = vsel %vm802, %v1872, %v1873
      %1875 = vrot.lane.b32.xlu0 %v1829, 32
      %v1876 = vpop.permute.xlu0 %1875
      %1877 = vrot.lane.b32.xlu0 %v1832, 32
      %v1878 = vpop.permute.xlu0 %1877
      %1879 = vrot.lane.b32.xlu0 %v1835, 32
      %v1880 = vpop.permute.xlu0 %1879
      %1881 = vrot.lane.b32.xlu0 %v1838, 32
      %v1882 = vpop.permute.xlu0 %1881
      %1883 = vrot.lane.b32.xlu0 %v1841, 32
      %v1884 = vpop.permute.xlu0 %1883
      %1885 = vrot.lane.b32.xlu0 %v1844, 32
      %v1886 = vpop.permute.xlu0 %1885
      %1887 = vrot.lane.b32.xlu0 %v1847, 32
      %v1888 = vpop.permute.xlu0 %1887
      %1889 = vrot.lane.b32.xlu0 %v1850, 32
      %v1890 = vpop.permute.xlu0 %1889
      %1891 = vrot.lane.b32.xlu0 %v1853, 32
      %v1892 = vpop.permute.xlu0 %1891
      %1893 = vrot.lane.b32.xlu0 %v1856, 32
      %v1894 = vpop.permute.xlu0 %1893
      %1895 = vrot.lane.b32.xlu0 %v1859, 32
      %v1896 = vpop.permute.xlu0 %1895
      %1897 = vrot.lane.b32.xlu0 %v1862, 32
      %v1898 = vpop.permute.xlu0 %1897
      %1899 = vrot.lane.b32.xlu0 %v1865, 32
      %v1900 = vpop.permute.xlu0 %1899
      %1901 = vrot.lane.b32.xlu0 %v1868, 32
      %v1902 = vpop.permute.xlu0 %1901
      %1903 = vrot.lane.b32.xlu0 %v1871, 32
      %v1904 = vpop.permute.xlu0 %1903
      %1905 = vrot.lane.b32.xlu0 %v1874, 32
      %v1906 = vpop.permute.xlu0 %1905
      %vm1907 = vcmask 31744
      %v1909 = vsel %vm1907, %v465, %v723
      %v1911 = vsel %vm1907, %v466, %v725
      %v1913 = vsel %vm1907, %v467, %v727
      %v1915 = vsel %vm1907, %v468, %v729
      %v1917 = vsel %vm1907, %v469, %v731
      %v1919 = vsel %vm1907, %v470, %v733
      %v1921 = vsel %vm1907, %v471, %v735
      %v1923 = vsel %vm1907, %v472, %v737
      %v1925 = vsel %vm1907, %v473, %v739
      %v1927 = vsel %vm1907, %v474, %v741
      %v1929 = vsel %vm1907, %v475, %v743
      %v1931 = vsel %vm1907, %v476, %v745
      %v1933 = vsel %vm1907, %v477, %v747
      %v1935 = vsel %vm1907, %v478, %v749
      %v1937 = vsel %vm1907, %v479, %v751
      %v1939 = vsel %vm1907, %v480, %v753
      %vm1940 = vcmask 64512
      %v1942 = vsel %vm1940, %v1909, %v852
      %v1944 = vsel %vm1940, %v1911, %v854
      %v1946 = vsel %vm1940, %v1913, %v856
      %v1948 = vsel %vm1940, %v1915, %v858
      %v1950 = vsel %vm1940, %v1917, %v860
      %v1952 = vsel %vm1940, %v1919, %v862
      %v1954 = vsel %vm1940, %v1921, %v864
      %v1956 = vsel %vm1940, %v1923, %v866
      %v1958 = vsel %vm1940, %v1925, %v868
      %v1960 = vsel %vm1940, %v1927, %v870
      %v1962 = vsel %vm1940, %v1929, %v872
      %v1964 = vsel %vm1940, %v1931, %v874
      %v1966 = vsel %vm1940, %v1933, %v876
      %v1968 = vsel %vm1940, %v1935, %v878
      %v1970 = vsel %vm1940, %v1937, %v880
      %v1972 = vsel %vm1940, %v1939, %v882
      %vm1973 = vcmask 97280
      %v1975 = vsel %vm1973, %v1942, %v964
      %v1977 = vsel %vm1973, %v1944, %v966
      %v1979 = vsel %vm1973, %v1946, %v968
      %v1981 = vsel %vm1973, %v1948, %v970
      %v1983 = vsel %vm1973, %v1950, %v972
      %v1985 = vsel %vm1973, %v1952, %v974
      %v1987 = vsel %vm1973, %v1954, %v976
      %v1989 = vsel %vm1973, %v1956, %v978
      %v1991 = vsel %vm1973, %v1958, %v980
      %v1993 = vsel %vm1973, %v1960, %v982
      %v1995 = vsel %vm1973, %v1962, %v984
      %v1997 = vsel %vm1973, %v1964, %v986
      %v1999 = vsel %vm1973, %v1966, %v988
      %v2001 = vsel %vm1973, %v1968, %v990
      %v2003 = vsel %vm1973, %v1970, %v992
      %v2005 = vsel %vm1973, %v1972, %v994
      %vm2006 = vcmask 130048
      %v2008 = vsel %vm2006, %v1975, %v1236
      %v2010 = vsel %vm2006, %v1977, %v1238
      %v2012 = vsel %vm2006, %v1979, %v1240
      %v2014 = vsel %vm2006, %v1981, %v1242
      %v2016 = vsel %vm2006, %v1983, %v1244
      %v2018 = vsel %vm2006, %v1985, %v1246
      %v2020 = vsel %vm2006, %v1987, %v1248
      %v2022 = vsel %vm2006, %v1989, %v1250
      %v2024 = vsel %vm2006, %v1991, %v1252
      %v2026 = vsel %vm2006, %v1993, %v1254
      %v2028 = vsel %vm2006, %v1995, %v1256
      %v2030 = vsel %vm2006, %v1997, %v1258
      %v2032 = vsel %vm2006, %v1999, %v1260
      %v2034 = vsel %vm2006, %v2001, %v1262
      %v2036 = vsel %vm2006, %v2003, %v1264
      %v2038 = vsel %vm2006, %v2005, %v1266
      %vm2039 = vcmask 162816
      %v2041 = vsel %vm2039, %v2008, %v1364
      %v2043 = vsel %vm2039, %v2010, %v1366
      %v2045 = vsel %vm2039, %v2012, %v1368
      %v2047 = vsel %vm2039, %v2014, %v1370
      %v2049 = vsel %vm2039, %v2016, %v1372
      %v2051 = vsel %vm2039, %v2018, %v1374
      %v2053 = vsel %vm2039, %v2020, %v1376
      %v2055 = vsel %vm2039, %v2022, %v1378
      %v2057 = vsel %vm2039, %v2024, %v1380
      %v2059 = vsel %vm2039, %v2026, %v1382
      %v2061 = vsel %vm2039, %v2028, %v1384
      %v2063 = vsel %vm2039, %v2030, %v1386
      %v2065 = vsel %vm2039, %v2032, %v1388
      %v2067 = vsel %vm2039, %v2034, %v1390
      %v2069 = vsel %vm2039, %v2036, %v1392
      %v2071 = vsel %vm2039, %v2038, %v1394
      %vm2072 = vcmask 195584
      %v2074 = vsel %vm2072, %v2041, %v1476
      %v2076 = vsel %vm2072, %v2043, %v1478
      %v2078 = vsel %vm2072, %v2045, %v1480
      %v2080 = vsel %vm2072, %v2047, %v1482
      %v2082 = vsel %vm2072, %v2049, %v1484
      %v2084 = vsel %vm2072, %v2051, %v1486
      %v2086 = vsel %vm2072, %v2053, %v1488
      %v2088 = vsel %vm2072, %v2055, %v1490
      %v2090 = vsel %vm2072, %v2057, %v1492
      %v2092 = vsel %vm2072, %v2059, %v1494
      %v2094 = vsel %vm2072, %v2061, %v1496
      %v2096 = vsel %vm2072, %v2063, %v1498
      %v2098 = vsel %vm2072, %v2065, %v1500
      %v2100 = vsel %vm2072, %v2067, %v1502
      %v2102 = vsel %vm2072, %v2069, %v1504
      %v2104 = vsel %vm2072, %v2071, %v1506
      %vm2105 = vcmask 228352
      %v2107 = vsel %vm2105, %v2074, %v1748
      %v2109 = vsel %vm2105, %v2076, %v1750
      %v2111 = vsel %vm2105, %v2078, %v1752
      %v2113 = vsel %vm2105, %v2080, %v1754
      %v2115 = vsel %vm2105, %v2082, %v1756
      %v2117 = vsel %vm2105, %v2084, %v1758
      %v2119 = vsel %vm2105, %v2086, %v1760
      %v2121 = vsel %vm2105, %v2088, %v1762
      %v2123 = vsel %vm2105, %v2090, %v1764
      %v2125 = vsel %vm2105, %v2092, %v1766
      %v2127 = vsel %vm2105, %v2094, %v1768
      %v2129 = vsel %vm2105, %v2096, %v1770
      %v2131 = vsel %vm2105, %v2098, %v1772
      %v2133 = vsel %vm2105, %v2100, %v1774
      %v2135 = vsel %vm2105, %v2102, %v1776
      %v2137 = vsel %vm2105, %v2104, %v1778
      %vm2138 = vcmask 261120
      %v2140 = vsel %vm2138, %v2107, %v1876
      %v2142 = vsel %vm2138, %v2109, %v1878
      %v2144 = vsel %vm2138, %v2111, %v1880
      %v2146 = vsel %vm2138, %v2113, %v1882
      %v2148 = vsel %vm2138, %v2115, %v1884
      %v2150 = vsel %vm2138, %v2117, %v1886
      %v2152 = vsel %vm2138, %v2119, %v1888
      %v2154 = vsel %vm2138, %v2121, %v1890
      %v2156 = vsel %vm2138, %v2123, %v1892
      %v2158 = vsel %vm2138, %v2125, %v1894
      %v2160 = vsel %vm2138, %v2127, %v1896
      %v2162 = vsel %vm2138, %v2129, %v1898
      %v2164 = vsel %vm2138, %v2131, %v1900
      %v2166 = vsel %vm2138, %v2133, %v1902
      %v2168 = vsel %vm2138, %v2135, %v1904
      %v2170 = vsel %vm2138, %v2137, %v1906
      %v2171 = vld [vmem:[%s1] sm:$0xf]
      %v2172 = vld [vmem:[%s1 + $0x4] sm:$0xf]
      %v2173 = vld [vmem:[%s1 + $0x8] sm:$0xf]
      %v2174 = vld [vmem:[%s1 + $0xc] sm:$0xf]
      %v2175 = vld [vmem:[%s1 + $0x10] sm:$0x3]
      %v2176 = vld [vmem:[%s2] sm:$0x1]
      %v2178 = vlaneseq
      %v2179 = vshrl.u32 %v2178, 7
      %v2180 = vsub.s32 0, %v2179
      %v2181 = vrot.slane %v2176, %v2180
      %v2188 = vunpack.c.l.b16 %v2171
      %v2189 = vunpack.c.l.b16 %v2172
      %v2190 = vunpack.c.l.b16 %v2173
      %v2191 = vunpack.c.l.b16 %v2174
      %v2192 = vunpack.c.l.b16 %v2175
      %v2193 = vpack.c.b16 %v2189, %v2188
      %v2194 = vpack.c.b16 %v2191, %v2190
      %v2195 = vpack.c.b16 %v2192, %v2192
      %vm2198 = vcmask 293888
      %v2199 = vsel %vm2198, %v2140, 0
      %v2201 = vsel %vm2198, %v2142, 0
      %v2203 = vsel %vm2198, %v2144, 0
      %v2205 = vsel %vm2198, %v2146, 0
      %v2207 = vsel %vm2198, %v2148, 0
      %v2209 = vsel %vm2198, %v2150, 0
      %v2211 = vsel %vm2198, %v2152, 0
      %v2213 = vsel %vm2198, %v2154, 0
      %v2215 = vsel %vm2198, %v2156, 0
      %v2217 = vsel %vm2198, %v2158, 0
      %v2219 = vsel %vm2198, %v2160, 0
      %v2221 = vsel %vm2198, %v2162, 0
      %v2223 = vsel %vm2198, %v2164, 0
      %v2225 = vsel %vm2198, %v2166, 0
      %v2227 = vsel %vm2198, %v2168, 0
      %v2229 = vsel %vm2198, %v2170, 0
      %vm2231 = vcmask 1041408
      %v2233 = vsel %vm2231, %v2195, 0
      %2235 = vmatprep.subr.bf16.mxu0 0
      %2236 = vmatpush1.bf16.msra.mxu0 %v2193
      %2237 = vmatprep.subr.bf16.mxu0 0
      %2238 = vmatpush1.bf16.msra.mxu0 %v2194
      %2239 = vmatprep.subr.bf16.mxu0 0
      %2240 = vmatpush1.bf16.msra.mxu0 %v2233
      %2241 = vmatprep.subr.bf16.mxu0 0
      %2242 = vmatpush1.bf16.msra.mxu0 0
      %2243 = vmatprep.subr.bf16.mxu0 0
      %2244 = vmatpush1.bf16.msra.mxu0 0
      %2245 = vmatprep.subr.bf16.mxu0 0
      %2246 = vmatpush1.bf16.msra.mxu0 0
      %2247 = vmatprep.subr.bf16.mxu0 0
      %2248 = vmatpush1.bf16.msra.mxu0 0
      %2249 = vmatprep.subr.bf16.mxu0 0
      %2250 = vmatpush1.bf16.msra.mxu0 0
      %2251 = vmatprep.subr.bf16.mxu0 0
      %2252 = vmatpush1.bf16.msra.mxu0 0
      %2253 = vmatprep.subr.bf16.mxu0 0
      %2254 = vmatpush1.bf16.msra.mxu0 0
      %2255 = vmatprep.subr.bf16.mxu0 0
      %2256 = vmatpush1.bf16.msra.mxu0 0
      %2257 = vmatprep.subr.bf16.mxu0 0
      %2258 = vmatpush1.bf16.msra.mxu0 0
      %2259 = vmatprep.subr.bf16.mxu0 0
      %2260 = vmatpush1.bf16.msra.mxu0 0
      %2261 = vmatprep.subr.bf16.mxu0 0
      %2262 = vmatpush1.bf16.msra.mxu0 0
      %2263 = vmatprep.subr.bf16.mxu0 0
      %2264 = vmatpush1.bf16.msra.mxu0 0
      %2265 = vmatprep.subr.bf16.mxu0 0
      %2266 = vmatpush1.bf16.msra.mxu0 0
      %2267 = vmatprep.mubr.bf16.mxu0 0
      %2268 = vmatmul.mubr.bf16.gmra.mrb[0].mxu0 %v2199
      %v2269 = vpop.f32.mrb[0].mxu0
      %v2270 = vadd.f32 %v2181, %v2269
      %v2271 = vpop.f32.mrb[0].mxu0
      %v2272 = vpop.f32.mrb[0].mxu0
      %v2273 = vadd.f32 %v2181, %v2272
      %v2274 = vpop.f32.mrb[0].mxu0
      %2275 = vmatprep.mubr.bf16.mxu0 0
      %2276 = vmatmul.mubr.bf16.gmra.mrb[0].mxu0 %v2201
      %v2277 = vpop.f32.mrb[0].mxu0
      %v2278 = vadd.f32 %v2181, %v2277
      %v2279 = vpop.f32.mrb[0].mxu0
      %v2280 = vpop.f32.mrb[0].mxu0
      %v2281 = vadd.f32 %v2181, %v2280
      %v2282 = vpop.f32.mrb[0].mxu0
      %2283 = vmatprep.mubr.bf16.mxu0 0
      %2284 = vmatmul.mubr.bf16.gmra.mrb[0].mxu0 %v2203
      %v2285 = vpop.f32.mrb[0].mxu0
      %v2286 = vadd.f32 %v2181, %v2285
      %v2287 = vpop.f32.mrb[0].mxu0
      %v2288 = vpop.f32.mrb[0].mxu0
      %v2289 = vadd.f32 %v2181, %v2288
      %v2290 = vpop.f32.mrb[0].mxu0
      %2291 = vmatprep.mubr.bf16.mxu0 0
      %2292 = vmatmul.mubr.bf16.gmra.mrb[0].mxu0 %v2205
      %v2293 = vpop.f32.mrb[0].mxu0
      %v2294 = vadd.f32 %v2181, %v2293
      %v2295 = vpop.f32.mrb[0].mxu0
      %v2296 = vpop.f32.mrb[0].mxu0
      %v2297 = vadd.f32 %v2181, %v2296
      %v2298 = vpop.f32.mrb[0].mxu0
      %2299 = vmatprep.mubr.bf16.mxu0 0
      %2300 = vmatmul.mubr.bf16.gmra.mrb[0].mxu0 %v2207
      %v2301 = vpop.f32.mrb[0].mxu0
      %v2302 = vadd.f32 %v2181, %v2301
      %v2303 = vpop.f32.mrb[0].mxu0
      %v2304 = vpop.f32.mrb[0].mxu0
      %v2305 = vadd.f32 %v2181, %v2304
      %v2306 = vpop.f32.mrb[0].mxu0
      %2307 = vmatprep.mubr.bf16.mxu0 0
      %2308 = vmatmul.mubr.bf16.gmra.mrb[0].mxu0 %v2209
      %v2309 = vpop.f32.mrb[0].mxu0
      %v2310 = vadd.f32 %v2181, %v2309
      %v2311 = vpop.f32.mrb[0].mxu0
      %v2312 = vpop.f32.mrb[0].mxu0
      %v2313 = vadd.f32 %v2181, %v2312
      %v2314 = vpop.f32.mrb[0].mxu0
      %2315 = vmatprep.mubr.bf16.mxu0 0
      %2316 = vmatmul.mubr.bf16.gmra.mrb[0].mxu0 %v2211
      %v2317 = vpop.f32.mrb[0].mxu0
      %v2318 = vadd.f32 %v2181, %v2317
      %v2319 = vpop.f32.mrb[0].mxu0
      %v2320 = vpop.f32.mrb[0].mxu0
      %v2321 = vadd.f32 %v2181, %v2320
      %v2322 = vpop.f32.mrb[0].mxu0
      %2323 = vmatprep.mubr.bf16.mxu0 0
      %2324 = vmatmul.mubr.bf16.gmra.mrb[0].mxu0 %v2213
      %v2325 = vpop.f32.mrb[0].mxu0
      %v2326 = vadd.f32 %v2181, %v2325
      %v2327 = vpop.f32.mrb[0].mxu0
      %v2328 = vpop.f32.mrb[0].mxu0
      %v2329 = vadd.f32 %v2181, %v2328
      %v2330 = vpop.f32.mrb[0].mxu0
      %2331 = vmatprep.mubr.bf16.mxu0 0
      %2332 = vmatmul.mubr.bf16.gmra.mrb[0].mxu0 %v2215
      %v2333 = vpop.f32.mrb[0].mxu0
      %v2334 = vadd.f32 %v2181, %v2333
      %v2335 = vpop.f32.mrb[0].mxu0
      %v2336 = vpop.f32.mrb[0].mxu0
      %v2337 = vadd.f32 %v2181, %v2336
      %v2338 = vpop.f32.mrb[0].mxu0
      %2339 = vmatprep.mubr.bf16.mxu0 0
      %2340 = vmatmul.mubr.bf16.gmra.mrb[0].mxu0 %v2217
      %v2341 = vpop.f32.mrb[0].mxu0
      %v2342 = vadd.f32 %v2181, %v2341
      %v2343 = vpop.f32.mrb[0].mxu0
      %v2344 = vpop.f32.mrb[0].mxu0
      %v2345 = vadd.f32 %v2181, %v2344
      %v2346 = vpop.f32.mrb[0].mxu0
      %2347 = vmatprep.mubr.bf16.mxu0 0
      %2348 = vmatmul.mubr.bf16.gmra.mrb[0].mxu0 %v2219
      %v2349 = vpop.f32.mrb[0].mxu0
      %v2350 = vadd.f32 %v2181, %v2349
      %v2351 = vpop.f32.mrb[0].mxu0
      %v2352 = vpop.f32.mrb[0].mxu0
      %v2353 = vadd.f32 %v2181, %v2352
      %v2354 = vpop.f32.mrb[0].mxu0
      %2355 = vmatprep.mubr.bf16.mxu0 0
      %2356 = vmatmul.mubr.bf16.gmra.mrb[0].mxu0 %v2221
      %v2357 = vpop.f32.mrb[0].mxu0
      %v2358 = vadd.f32 %v2181, %v2357
      %v2359 = vpop.f32.mrb[0].mxu0
      %v2360 = vpop.f32.mrb[0].mxu0
      %v2361 = vadd.f32 %v2181, %v2360
      %v2362 = vpop.f32.mrb[0].mxu0
      %2363 = vmatprep.mubr.bf16.mxu0 0
      %2364 = vmatmul.mubr.bf16.gmra.mrb[0].mxu0 %v2223
      %v2365 = vpop.f32.mrb[0].mxu0
      %v2366 = vadd.f32 %v2181, %v2365
      %v2367 = vpop.f32.mrb[0].mxu0
      %v2368 = vpop.f32.mrb[0].mxu0
      %v2369 = vadd.f32 %v2181, %v2368
      %v2370 = vpop.f32.mrb[0].mxu0
      %2371 = vmatprep.mubr.bf16.mxu0 0
      %2372 = vmatmul.mubr.bf16.gmra.mrb[0].mxu0 %v2225
      %v2373 = vpop.f32.mrb[0].mxu0
      %v2374 = vadd.f32 %v2181, %v2373
      %v2375 = vpop.f32.mrb[0].mxu0
      %v2376 = vpop.f32.mrb[0].mxu0
      %v2377 = vadd.f32 %v2181, %v2376
      %v2378 = vpop.f32.mrb[0].mxu0
      %2379 = vmatprep.mubr.bf16.mxu0 0
      %2380 = vmatmul.mubr.bf16.gmra.mrb[0].mxu0 %v2227
      %v2381 = vpop.f32.mrb[0].mxu0
      %v2382 = vadd.f32 %v2181, %v2381
      %v2383 = vpop.f32.mrb[0].mxu0
      %v2384 = vpop.f32.mrb[0].mxu0
      %v2385 = vadd.f32 %v2181, %v2384
      %v2386 = vpop.f32.mrb[0].mxu0
      %2387 = vmatprep.mubr.bf16.mxu0 0
      %2388 = vmatmul.mubr.bf16.gmra.mrb[0].mxu0 %v2229
      %v2389 = vpop.f32.mrb[0].mxu0
      %v2390 = vadd.f32 %v2181, %v2389
      %v2391 = vpop.f32.mrb[0].mxu0
      %v2392 = vpop.f32.mrb[0].mxu0
      %v2393 = vadd.f32 %v2181, %v2392
      %v2394 = vpop.f32.mrb[0].mxu0
      %2395 = vdwg.mxu0
      %v2396 = vmax.f32 %v2270, 0.0
      %v2397 = vmax.f32 %v2273, 0.0
      %v2398 = vmax.f32 %v2278, 0.0
      %v2399 = vmax.f32 %v2281, 0.0
      %v2400 = vmax.f32 %v2286, 0.0
      %v2401 = vmax.f32 %v2289, 0.0
      %v2402 = vmax.f32 %v2294, 0.0
      %v2403 = vmax.f32 %v2297, 0.0
      %v2404 = vmax.f32 %v2302, 0.0
      %v2405 = vmax.f32 %v2305, 0.0
      %v2406 = vmax.f32 %v2310, 0.0
      %v2407 = vmax.f32 %v2313, 0.0
      %v2408 = vmax.f32 %v2318, 0.0
      %v2409 = vmax.f32 %v2321, 0.0
      %v2410 = vmax.f32 %v2326, 0.0
      %v2411 = vmax.f32 %v2329, 0.0
      %v2412 = vmax.f32 %v2334, 0.0
      %v2413 = vmax.f32 %v2337, 0.0
      %v2414 = vmax.f32 %v2342, 0.0
      %v2415 = vmax.f32 %v2345, 0.0
      %v2416 = vmax.f32 %v2350, 0.0
      %v2417 = vmax.f32 %v2353, 0.0
      %v2418 = vmax.f32 %v2358, 0.0
      %v2419 = vmax.f32 %v2361, 0.0
      %v2420 = vmax.f32 %v2366, 0.0
      %v2421 = vmax.f32 %v2369, 0.0
      %v2422 = vmax.f32 %v2374, 0.0
      %v2423 = vmax.f32 %v2377, 0.0
      %v2424 = vmax.f32 %v2382, 0.0
      %v2425 = vmax.f32 %v2385, 0.0
      %v2426 = vmax.f32 %v2390, 0.0
      %v2427 = vmax.f32 %v2393, 0.0
      %2428 = vst.msk [vmem:[%s194] sm:$0xff] %vm1907, %v2396
      %2429 = vst.msk [vmem:[%s194 + $0x8] sm:$0xff] %vm1907, %v2397
      %2430 = vst.msk [vmem:[%s194 + $0x10] sm:$0xff] %vm1907, %v2398
      %2431 = vst.msk [vmem:[%s194 + $0x18] sm:$0xff] %vm1907, %v2399
      %2432 = vst.msk [vmem:[%s194 + $0x20] sm:$0xff] %vm1907, %v2400
      %2433 = vst.msk [vmem:[%s194 + $0x28] sm:$0xff] %vm1907, %v2401
      %2434 = vst.msk [vmem:[%s194 + $0x30] sm:$0xff] %vm1907, %v2402
      %2435 = vst.msk [vmem:[%s194 + $0x38] sm:$0xff] %vm1907, %v2403
      %2436 = vst.msk [vmem:[%s194 + $0x40] sm:$0xff] %vm1907, %v2404
      %2437 = vst.msk [vmem:[%s194 + $0x48] sm:$0xff] %vm1907, %v2405
      %2438 = vst.msk [vmem:[%s194 + $0x50] sm:$0xff] %vm1907, %v2406
      %2439 = vst.msk [vmem:[%s194 + $0x58] sm:$0xff] %vm1907, %v2407
      %2440 = vst.msk [vmem:[%s194 + $0x60] sm:$0xff] %vm1907, %v2408
      %2441 = vst.msk [vmem:[%s194 + $0x68] sm:$0xff] %vm1907, %v2409
      %2442 = vst.msk [vmem:[%s194 + $0x70] sm:$0xff] %vm1907, %v2410
      %2443 = vst.msk [vmem:[%s194 + $0x78] sm:$0xff] %vm1907, %v2411
      %2444 = vst.msk [vmem:[%s194 + $0x80] sm:$0xff] %vm1907, %v2412
      %2445 = vst.msk [vmem:[%s194 + $0x88] sm:$0xff] %vm1907, %v2413
      %2446 = vst.msk [vmem:[%s194 + $0x90] sm:$0xff] %vm1907, %v2414
      %2447 = vst.msk [vmem:[%s194 + $0x98] sm:$0xff] %vm1907, %v2415
      %2448 = vst.msk [vmem:[%s194 + $0xa0] sm:$0xff] %vm1907, %v2416
      %2449 = vst.msk [vmem:[%s194 + $0xa8] sm:$0xff] %vm1907, %v2417
      %2450 = vst.msk [vmem:[%s194 + $0xb0] sm:$0xff] %vm1907, %v2418
      %2451 = vst.msk [vmem:[%s194 + $0xb8] sm:$0xff] %vm1907, %v2419
      %2452 = vst.msk [vmem:[%s194 + $0xc0] sm:$0xff] %vm1907, %v2420
      %2453 = vst.msk [vmem:[%s194 + $0xc8] sm:$0xff] %vm1907, %v2421
      %2454 = vst.msk [vmem:[%s194 + $0xd0] sm:$0xff] %vm1907, %v2422
      %2455 = vst.msk [vmem:[%s194 + $0xd8] sm:$0xff] %vm1907, %v2423
      %2456 = vst.msk [vmem:[%s194 + $0xe0] sm:$0xff] %vm1907, %v2424
      %2457 = vst.msk [vmem:[%s194 + $0xe8] sm:$0xff] %vm1907, %v2425
      %2458 = vst.msk [vmem:[%s194 + $0xf0] sm:$0xff] %vm1907, %v2426
      %2459 = vst.msk [vmem:[%s194 + $0xf8] sm:$0xff] %vm1907, %v2427
      %s2460 = smul.u32 16, %s19
      %p2461 = scmp.lt.s32.totalorder %s18, 1
      %s2462 = scalar_select %p2461, %s18, 1
      %p2463 = scmp.lt.s32.totalorder %s2460, 15
      %s2464 = scalar_select %p2463, %s2460, 15
      %s2465 = smul.addr %s2464, 2
      %s2466 = smul.addr %s2462, 32
      %s2467 = sadd.s32 %s2465, %s2466
      %s2468 = smul.addr %s2467, 8
      %s2469 = scalar_lea.vmem %s3, %s2468
      // Predicated region
      $region33: #{upblock_forward.5} parent=31 // pred_check
        %p2470 = pneg %p114
      $region34: #{upblock_forward.5} parent=31 // pred_check_branch
        %2472 = sbr.rel (%p2470) target = $region36
      $region35: #{upblock_forward.5} parent=31 // pred_region
        %s2473 = smul.u32 16, %s19
      $region36: #{upblock_forward.5} parent=31 // pred_fallthru
        _
    $region32: #{upblock_forward.5} parent=5 // pred_fallthru
      _
    %p2474 = scmp.le.s32.totalorder 2, %s9
    // Predicated region
    $region37: #{upblock_forward.5} parent=5 // pred_check
      %p2475 = pneg %p2474
    $region38: #{upblock_forward.5} parent=5 // pred_check_branch
      %2477 = sbr.rel (%p2475) target = $region40
    $region39: #{upblock_forward.5} parent=5 // pred_region
      %s2478 = ssub.s32 %s9, 2
      // Predicated region
      $region41: #{upblock_forward.5} parent=39 // pred_check
        %p2479 = pneg %p120
      $region42: #{upblock_forward.5} parent=39 // pred_check_branch
        %2481 = sbr.rel (%p2479) target = $region44
      $region43: #{upblock_forward.5} parent=39 // pred_region
        %s2482 = smul.u32 16, %s21
        %p2483 = scmp.lt.s32.totalorder %s20, 1
        %s2484 = scalar_select %p2483, %s20, 1
        %p2485 = scmp.lt.s32.totalorder %s2482, 15
        %s2486 = scalar_select %p2485, %s2482, 15
        %s2487 = smul.addr %s2486, 2
        %s2488 = smul.addr %s2484, 32
        %s2489 = sadd.s32 %s2487, %s2488
        %s2490 = smul.addr %s2489, 8
        %s2491 = scalar_lea.vmem %s3, %s2490
      $region44: #{upblock_forward.5} parent=39 // pred_fallthru
        _
    $region40: #{upblock_forward.5} parent=5 // pred_fallthru
      _
  $region6: #{upblock_forward.5} parent=0 // loop_footer
    %s13 = sadd.s32 1, %s9
  $region7: #{upblock_forward.5} parent=0 // loop_footer_branch
    %8 = sbr.rel target = $region3
  $region8: #{upblock_forward.5} parent=0 // loop_exit
    _

// kernel: upblock_forward.4
$region0: #{upblock_forward.4}
  #allocation0 [shape = 'u32[]', space=smem, size = 0x4, offset = 0x4, fixed_abs, tag = 'smem constant byte address 0x4 - core index']
  #allocation1 [shape = 'u32[144,128]{1,0:T(1,128)}', space=vmem, size = 0x12000, scoped, tag = 'internal scratch']
  %s0 = inlined_call_operand.vmem [shape: bf16[2,18,18,4], index: 0, kind: input, shape index: {}]
  %s1 = inlined_call_operand.vmem [shape: bf16[2,18,18,8], index: 1, kind: input, shape index: {}]
  %s2 = inlined_call_operand.vmem [shape: bf16[108,4], index: 2, kind: input, shape index: {}]
  %s3 = inlined_call_operand.vmem [shape: f32[1,4], index: 3, kind: input, shape index: {}]
  %s4 = inlined_call_operand.vmem [shape: bf16[2,16,16,4], index: 4, kind: output, shape index: {}]
  %s5 = sld [smem:[#allocation0]]
  $region49: #{upblock_forward.4} parent=0
    _
  %s7 = ssub.s32 1, %s5
  %s8 = scalar_select 0, %s7, %s5
  loop: start=0, step=1, limit=4
  $region2: #{upblock_forward.4} parent=0 // loop_pre_header
    _
  $region3: #{upblock_forward.4} parent=0 // loop_header
    %s10 = sphi 0, %s14
    %p11 = scmp.ge.s32.totalorder %s10, 4
    %s17 = sphi 0, %s29
    %s18 = sphi 0, %s25
    %s19 = sphi 0, %s17
    %s20 = sphi 0, %s18
    %s21 = sphi 0, %s19
    %s22 = sphi 0, %s20
    %s32 = sphi 0, %s34
    %s35 = sphi 0, %s32
    %s36 = sphi 0, %s35
    %s52 = sphi 0, %s36
    %s58 = sphi 0, %s60
    %s61 = sphi 0, %s58
    %s62 = sphi 0, %s61
    %s78 = sphi 0, %s62
    %s82 = sphi 0, %s82
    %s84 = sphi 0, %s82
    %s85 = sphi 0, %s84
    %s99 = sphi 0, %s85
    %s103 = sphi 0, %s103
    %s105 = sphi 0, %s103
    %s106 = sphi 0, %s105
    %s120 = sphi 0, %s106
    %s128 = sphi 0, %s130
    %s131 = sphi 0, %s128
    %s132 = sphi 0, %s131
    %s148 = sphi 0, %s132
  $region4: #{upblock_forward.4} parent=0 // loop_header_branch
    %13 = sbr.rel (%p11) target = $region8
  $region5: #{upblock_forward.4} parent=0 // loop_body
    %s15 = ssub.s32 %s10, 1
    %s16 = ssub.s32 %s10, 2
    %s23 = sadd.s32 1, %s18
    %p24 = scmp.ge.s32.totalorder %s23, 1
    %s25 = scalar_select %p24, 0, %s23
    %s26 = sadd.s32 1, %s17
    %s27 = scalar_select %p24, %s26, %s17
    %p28 = scmp.ge.s32.totalorder %s27, 2
    %s29 = scalar_select %p28, 0, %s27
    %s30 = ssub.s32 %s17, %s29
    %p31 = scmp.eq.s32.totalorder %s30, 0
    %s33 = sadd.s32 %s32, 1
    %s34 = scalar_select %p31, %s32, %s33
    %p37 = pneg %p31
    %p38 = scmp.eq.s32.totalorder %s10, 1
    %p39 = por %p37, %p38
    %p40 = scmp.ne.s32.totalorder %s32, %s35
    %p41 = scmp.eq.s32.totalorder %s10, 0
    %p42 = por %p40, %p41
    %p43 = scmp.ne.s32.totalorder %s32, %s35
    %p44 = scmp.eq.s32.totalorder %s15, 1
    %p45 = por %p43, %p44
    %p46 = scmp.ne.s32.totalorder %s35, %s36
    %p47 = scmp.eq.s32.totalorder %s15, 0
    %p48 = por %p46, %p47
    %p49 = scmp.ne.s32.totalorder %s35, %s36
    %p50 = scmp.eq.s32.totalorder %s16, 1
    %p51 = por %p49, %p50
    %p53 = scmp.ne.s32.totalorder %s36, %s52
    %p54 = scmp.eq.s32.totalorder %s16, 0
    %p55 = por %p53, %p54
    %s56 = ssub.s32 %s17, %s29
    %p57 = scmp.eq.s32.totalorder %s56, 0
    %s59 = sadd.s32 %s58, 1
    %s60 = scalar_select %p57, %s58, %s59
    %p63 = pneg %p57
    %p64 = scmp.eq.s32.totalorder %s10, 1
    %p65 = por %p63, %p64
    %p66 = scmp.ne.s32.totalorder %s58, %s61
    %p67 = scmp.eq.s32.totalorder %s10, 0
    %p68 = por %p66, %p67
    %p69 = scmp.ne.s32.totalorder %s58, %s61
    %p70 = scmp.eq.s32.totalorder %s15, 1
    %p71 = por %p69, %p70
    %p72 = scmp.ne.s32.totalorder %s61, %s62
    %p73 = scmp.eq.s32.totalorder %s15, 0
    %p74 = por %p72, %p73
    %p75 = scmp.ne.s32.totalorder %s61, %s62
    %p76 = scmp.eq.s32.totalorder %s16, 1
    %p77 = por %p75, %p76
    %p79 = scmp.ne.s32.totalorder %s62, %s78
    %p80 = scmp.eq.s32.totalorder %s16, 0
    %p81 = por %p79, %p80
    %s83 = sadd.s32 %s82, 1
    %p86 = scmp.eq.s32.totalorder %s10, 1
    %p87 = scmp.ne.s32.totalorder %s82, %s84
    %p88 = scmp.eq.s32.totalorder %s10, 0
    %p89 = por %p87, %p88
    %p90 = scmp.ne.s32.totalorder %s82, %s84
    %p91 = scmp.eq.s32.totalorder %s15, 1
    %p92 = por %p90, %p91
    %p93 = scmp.ne.s32.totalorder %s84, %s85
    %p94 = scmp.eq.s32.totalorder %s15, 0
    %p95 = por %p93, %p94
    %p96 = scmp.ne.s32.totalorder %s84, %s85
    %p97 = scmp.eq.s32.totalorder %s16, 1
    %p98 = por %p96, %p97
    %p100 = scmp.ne.s32.totalorder %s85, %s99
    %p101 = scmp.eq.s32.totalorder %s16, 0
    %p102 = por %p100, %p101
    %s104 = sadd.s32 %s103, 1
    %p107 = scmp.eq.s32.totalorder %s10, 1
    %p108 = scmp.ne.s32.totalorder %s103, %s105
    %p109 = scmp.eq.s32.totalorder %s10, 0
    %p110 = por %p108, %p109
    %p111 = scmp.ne.s32.totalorder %s103, %s105
    %p112 = scmp.eq.s32.totalorder %s15, 1
    %p113 = por %p111, %p112
    %p114 = scmp.ne.s32.totalorder %s105, %s106
    %p115 = scmp.eq.s32.totalorder %s15, 0
    %p116 = por %p114, %p115
    %p117 = scmp.ne.s32.totalorder %s105, %s106
    %p118 = scmp.eq.s32.totalorder %s16, 1
    %p119 = por %p117, %p118
    %p121 = scmp.ne.s32.totalorder %s106, %s120
    %p122 = scmp.eq.s32.totalorder %s16, 0
    %p123 = por %p121, %p122
    %s124 = ssub.s32 %s17, %s29
    %s125 = ssub.s32 %s18, %s25
    %s126 = sor.u32 %s124, %s125
    %p127 = scmp.eq.s32.totalorder %s126, 0
    %s129 = sadd.s32 %s128, 1
    %s130 = scalar_select %p127, %s128, %s129
    %p133 = pneg %p127
    %p134 = scmp.eq.s32.totalorder %s10, 1
    %p135 = por %p133, %p134
    %p136 = scmp.ne.s32.totalorder %s128, %s131
    %p137 = scmp.eq.s32.totalorder %s10, 0
    %p138 = por %p136, %p137
    %p139 = scmp.ne.s32.totalorder %s128, %s131
    %p140 = scmp.eq.s32.totalorder %s15, 1
    %p141 = por %p139, %p140
    %p142 = scmp.ne.s32.totalorder %s131, %s132
    %p143 = scmp.eq.s32.totalorder %s15, 0
    %p144 = por %p142, %p143
    %p145 = scmp.ne.s32.totalorder %s131, %s132
    %p146 = scmp.eq.s32.totalorder %s16, 1
    %p147 = por %p145, %p146
    %p149 = scmp.ne.s32.totalorder %s132, %s148
    %p150 = scmp.eq.s32.totalorder %s16, 0
    %p151 = por %p149, %p150
    %p152 = scmp.le.s32.totalorder 1, %s10
    %p153 = scmp.lt.s32.totalorder %s10, 3
    %p154 = pnand %p152, %p153
    %p155 = pneg %p154
    // Predicated region
    $region9: #{upblock_forward.4} parent=5 // pred_check
      _
    $region10: #{upblock_forward.4} parent=5 // pred_check_branch
      %157 = sbr.rel (%p154) target = $region12
    $region11: #{upblock_forward.4} parent=5 // pred_region
      %s158 = ssub.s32 %s10, 1
      // Predicated region
      $region13: #{upblock_forward.4} parent=11 // pred_check
        %p159 = pneg %p95
      $region14: #{upblock_forward.4} parent=11 // pred_check_branch
        %161 = sbr.rel (%p159) target = $region16
      $region15: #{upblock_forward.4} parent=11 // pred_region
        _
      $region16: #{upblock_forward.4} parent=11 // pred_fallthru
        _
      // Predicated region
      $region17: #{upblock_forward.4} parent=11 // pred_check
        %p162 = pneg %p116
      $region18: #{upblock_forward.4} parent=11 // pred_check_branch
        %164 = sbr.rel (%p162) target = $region20
      $region19: #{upblock_forward.4} parent=11 // pred_region
        _
      $region20: #{upblock_forward.4} parent=11 // pred_fallthru
        _
    $region12: #{upblock_forward.4} parent=5 // pred_fallthru
      _
    %p165 = scmp.lt.s32.totalorder %s10, 2
    // Predicated region
    $region21: #{upblock_forward.4} parent=5 // pred_check
      %p166 = pneg %p165
    $region22: #{upblock_forward.4} parent=5 // pred_check_branch
      %168 = sbr.rel (%p166) target = $region24
    $region23: #{upblock_forward.4} parent=5 // pred_region
      // Predicated region
      $region25: #{upblock_forward.4} parent=23 // pred_check
        %p169 = pneg %p42
      $region26: #{upblock_forward.4} parent=23 // pred_check_branch
        %171 = sbr.rel (%p169) target = $region28
      $region27: #{upblock_forward.4} parent=23 // pred_region
        %p172 = scmp.lt.s32.totalorder %s17, 1
        %s173 = scalar_select %p172, %s17, 1
        %s174 = smul.addr %s173, 54
        %s175 = smul.addr %s174, 4
        %s176 = scalar_lea.vmem %s0, %s175
      $region28: #{upblock_forward.4} parent=23 // pred_fallthru
        _
      // Predicated region
      $region29: #{upblock_forward.4} parent=23 // pred_check
        %p177 = pneg %p68
      $region30: #{upblock_forward.4} parent=23 // pred_check_branch
        %179 = sbr.rel (%p177) target = $region32
      $region31: #{upblock_forward.4} parent=23 // pred_region
        %p180 = scmp.lt.s32.totalorder %s17, 1
        %s181 = scalar_select %p180, %s17, 1
        %s182 = smul.addr %s181, 54
        %s183 = smul.addr %s182, 4
        %s184 = scalar_lea.vmem %s1, %s183
      $region32: #{upblock_forward.4} parent=23 // pred_fallthru
        _
    $region24: #{upblock_forward.4} parent=5 // pred_fallthru
      _
    %p185 = scmp.le.s32.totalorder 1, %s10
    %p186 = scmp.lt.s32.totalorder %s10, 3
    %p187 = pnand %p185, %p186
    %p188 = pneg %p187
    // Predicated region
    $region33: #{upblock_forward.4} parent=5 // pred_check
      _
    $region34: #{upblock_forward.4} parent=5 // pred_check_branch
      %190 = sbr.rel (%p187) target = $region36
    $region35: #{upblock_forward.4} parent=5 // pred_region
      %s191 = ssub.s32 %s10, 1
      %p192 = scmp.lt.s32.totalorder %s19, 1
      %s193 = scalar_select %p192, %s19, 1
      %s194 = smul.addr %s193, 54
      %s195 = smul.addr %s194, 4
      %s196 = scalar_lea.vmem %s0, %s195
      %p197 = pneg %p48
      %p198 = pneg %p45
      %p199 = scmp.lt.s32.totalorder %s19, 1
      %s200 = scalar_select %p199, %s19, 1
      %s201 = smul.addr %s200, 54
      %s202 = smul.addr %s201, 4
      %s203 = scalar_lea.vmem %s1, %s202
      %p204 = pneg %p74
      %p205 = pneg %p71
      %p206 = pneg %p95
      %p207 = pneg %p92
      %p208 = pneg %p116
      %p209 = pneg %p113
      %p210 = pneg %p144
      %p211 = pneg %p141
      %s212 = smul.u32 16, %s20
      %p213 = scmp.lt.s32.totalorder %s19, 1
      %s214 = scalar_select %p213, %s19, 1
      %p215 = scmp.lt.s32.totalorder %s212, 15
      %s216 = scalar_select %p215, %s212, 15
      %s217 = smul.addr %s216, 2
      %s218 = smul.addr %s214, 32
      %s219 = sadd.s32 %s217, %s218
      %s220 = smul.addr %s219, 4
      %s221 = scalar_lea.vmem %s4, %s220
      %p222 = scmp.lt.s32.totalorder %s19, 1
      %s223 = scalar_select %p222, %s19, 1
      %s224 = smul.addr %s223, 54
      %s225 = smul.addr %s224, 4
      %s226 = scalar_lea.vmem %s0, %s225
      %p227 = scmp.lt.s32.totalorder %s19, 1
      %s228 = scalar_select %p227, %s19, 1
      %s229 = smul.addr %s228, 54
      %s230 = smul.addr %s229, 4
      %s231 = scalar_lea.vmem %s1, %s230
      %s232 = smul.u32 16, %s20
      %p233 = scmp.lt.s32.totalorder %s19, 1
      %s234 = scalar_select %p233, %s19, 1
      %p235 = scmp.lt.s32.totalorder %s232, 15
      %s236 = scalar_select %p235, %s232, 15
      %s237 = smul.addr %s236, 2
      %s238 = smul.addr %s234, 32
      %s239 = sadd.s32 %s237, %s238
      %s240 = smul.addr %s239, 4
      %s241 = scalar_lea.vmem %s4, %s240
      %s242 = smul.u32 16, %s20
      %s244 = smul.u32 %s20, 16
      %s245 = smul.u32 %s244, 3
      %s246 = smul.addr %s245, 4
      %s247 = scalar_lea.vmem %s226, %s246
      %v248 = vld [vmem:[%s247] sm:$0xf]
      %v249 = vld [vmem:[%s247 + $0x4] sm:$0xf]
      %v250 = vld [vmem:[%s247 + $0xc] sm:$0xf]
      %v251 = vld [vmem:[%s247 + $0x10] sm:$0xf]
      %v252 = vld [vmem:[%s247 + $0x18] sm:$0xf]
      %v253 = vld [vmem:[%s247 + $0x1c] sm:$0xf]
      %v254 = vld [vmem:[%s247 + $0x24] sm:$0xf]
      %v255 = vld [vmem:[%s247 + $0x28] sm:$0xf]
      %v256 = vld [vmem:[%s247 + $0x30] sm:$0xf]
      %v257 = vld [vmem:[%s247 + $0x34] sm:$0xf]
      %v258 = vld [vmem:[%s247 + $0x3c] sm:$0xf]
      %v259 = vld [vmem:[%s247 + $0x40] sm:$0xf]
      %v260 = vld [vmem:[%s247 + $0x48] sm:$0xf]
      %v261 = vld [vmem:[%s247 + $0x4c] sm:$0xf]
      %v262 = vld [vmem:[%s247 + $0x54] sm:$0xf]
      %v263 = vld [vmem:[%s247 + $0x58] sm:$0xf]
      %v264 = vld [vmem:[%s247 + $0x60] sm:$0xf]
      %v265 = vld [vmem:[%s247 + $0x64] sm:$0xf]
      %v266 = vld [vmem:[%s247 + $0x6c] sm:$0xf]
      %v267 = vld [vmem:[%s247 + $0x70] sm:$0xf]
      %v268 = vld [vmem:[%s247 + $0x78] sm:$0xf]
      %v269 = vld [vmem:[%s247 + $0x7c] sm:$0xf]
      %v270 = vld [vmem:[%s247 + $0x84] sm:$0xf]
      %v271 = vld [vmem:[%s247 + $0x88] sm:$0xf]
      %v272 = vld [vmem:[%s247 + $0x90] sm:$0xf]
      %v273 = vld [vmem:[%s247 + $0x94] sm:$0xf]
      %v274 = vld [vmem:[%s247 + $0x9c] sm:$0xf]
      %v275 = vld [vmem:[%s247 + $0xa0] sm:$0xf]
      %v276 = vld [vmem:[%s247 + $0xa8] sm:$0xf]
      %v277 = vld [vmem:[%s247 + $0xac] sm:$0xf]
      %v278 = vld [vmem:[%s247 + $0xb4] sm:$0xf]
      %v279 = vld [vmem:[%s247 + $0xb8] sm:$0xf]
      %v280 = vld [vmem:[%s247 + $0x8] sm:$0x1]
      %v281 = vld [vmem:[%s247 + $0x14] sm:$0x1]
      %v282 = vld [vmem:[%s247 + $0x20] sm:$0x1]
      %v283 = vld [vmem:[%s247 + $0x2c] sm:$0x1]
      %v284 = vld [vmem:[%s247 + $0x38] sm:$0x1]
      %v285 = vld [vmem:[%s247 + $0x44] sm:$0x1]
      %v286 = vld [vmem:[%s247 + $0x50] sm:$0x1]
      %v287 = vld [vmem:[%s247 + $0x5c] sm:$0x1]
      %v288 = vld [vmem:[%s247 + $0x68] sm:$0x1]
      %v289 = vld [vmem:[%s247 + $0x74] sm:$0x1]
      %v290 = vld [vmem:[%s247 + $0x80] sm:$0x1]
      %v291 = vld [vmem:[%s247 + $0x8c] sm:$0x1]
      %v292 = vld [vmem:[%s247 + $0x98] sm:$0x1]
      %v293 = vld [vmem:[%s247 + $0xa4] sm:$0x1]
      %v294 = vld [vmem:[%s247 + $0xb0] sm:$0x1]
      %v295 = vld [vmem:[%s247 + $0xbc] sm:$0x1]
      %v296 = vld [vmem:[%s247] sm:$0xe]
      %v297 = vld [vmem:[%s247 + $0xc] sm:$0xe]
      %v298 = vld [vmem:[%s247 + $0x18] sm:$0xe]
      %v299 = vld [vmem:[%s247 + $0x24] sm:$0xe]
      %v300 = vld [vmem:[%s247 + $0x30] sm:$0xe]
      %v301 = vld [vmem:[%s247 + $0x3c] sm:$0xe]
      %v302 = vld [vmem:[%s247 + $0x48] sm:$0xe]
      %v303 = vld [vmem:[%s247 + $0x54] sm:$0xe]
      %v304 = vld [vmem:[%s247 + $0x60] sm:$0xe]
      %v305 = vld [vmem:[%s247 + $0x6c] sm:$0xe]
      %v306 = vld [vmem:[%s247 + $0x78] sm:$0xe]
      %v307 = vld [vmem:[%s247 + $0x84] sm:$0xe]
      %v308 = vld [vmem:[%s247 + $0x90] sm:$0xe]
      %v309 = vld [vmem:[%s247 + $0x9c] sm:$0xe]
      %v310 = vld [vmem:[%s247 + $0xa8] sm:$0xe]
      %v311 = vld [vmem:[%s247 + $0xb4] sm:$0xe]
      %s312 = sadd.s32 %s244, 1
      %s313 = smul.u32 %s312, 3
      %s314 = smul.addr %s313, 4
      %s315 = scalar_lea.vmem %s226, %s314
      %v316 = vld [vmem:[%s315] sm:$0xf]
      %v317 = vld [vmem:[%s315 + $0x4] sm:$0xf]
      %v318 = vld [vmem:[%s315 + $0xc] sm:$0xf]
      %v319 = vld [vmem:[%s315 + $0x10] sm:$0xf]
      %v320 = vld [vmem:[%s315 + $0x18] sm:$0xf]
      %v321 = vld [vmem:[%s315 + $0x1c] sm:$0xf]
      %v322 = vld [vmem:[%s315 + $0x24] sm:$0xf]
      %v323 = vld [vmem:[%s315 + $0x28] sm:$0xf]
      %v324 = vld [vmem:[%s315 + $0x30] sm:$0xf]
      %v325 = vld [vmem:[%s315 + $0x34] sm:$0xf]
      %v326 = vld [vmem:[%s315 + $0x3c] sm:$0xf]
      %v327 = vld [vmem:[%s315 + $0x40] sm:$0xf]
      %v328 = vld [vmem:[%s315 + $0x48] sm:$0xf]
      %v329 = vld [vmem:[%s315 + $0x4c] sm:$0xf]
      %v330 = vld [vmem:[%s315 + $0x54] sm:$0xf]
      %v331 = vld [vmem:[%s315 + $0x58] sm:$0xf]
      %v332 = vld [vmem:[%s315 + $0x60] sm:$0xf]
      %v333 = vld [vmem:[%s315 + $0x64] sm:$0xf]
      %v334 = vld [vmem:[%s315 + $0x6c] sm:$0xf]
      %v335 = vld [vmem:[%s315 + $0x70] sm:$0xf]
      %v336 = vld [vmem:[%s315 + $0x78] sm:$0xf]
      %v337 = vld [vmem:[%s315 + $0x7c] sm:$0xf]
      %v338 = vld [vmem:[%s315 + $0x84] sm:$0xf]
      %v339 = vld [vmem:[%s315 + $0x88] sm:$0xf]
      %v340 = vld [vmem:[%s315 + $0x90] sm:$0xf]
      %v341 = vld [vmem:[%s315 + $0x94] sm:$0xf]
      %v342 = vld [vmem:[%s315 + $0x9c] sm:$0xf]
      %v343 = vld [vmem:[%s315 + $0xa0] sm:$0xf]
      %v344 = vld [vmem:[%s315 + $0xa8] sm:$0xf]
      %v345 = vld [vmem:[%s315 + $0xac] sm:$0xf]
      %v346 = vld [vmem:[%s315 + $0xb4] sm:$0xf]
      %v347 = vld [vmem:[%s315 + $0xb8] sm:$0xf]
      %v348 = vld [vmem:[%s315 + $0x8] sm:$0x1]
      %v349 = vld [vmem:[%s315 + $0x14] sm:$0x1]
      %v350 = vld [vmem:[%s315 + $0x20] sm:$0x1]
      %v351 = vld [vmem:[%s315 + $0x2c] sm:$0x1]
      %v352 = vld [vmem:[%s315 + $0x38] sm:$0x1]
      %v353 = vld [vmem:[%s315 + $0x44] sm:$0x1]
      %v354 = vld [vmem:[%s315 + $0x50] sm:$0x1]
      %v355 = vld [vmem:[%s315 + $0x5c] sm:$0x1]
      %v356 = vld [vmem:[%s315 + $0x68] sm:$0x1]
      %v357 = vld [vmem:[%s315 + $0x74] sm:$0x1]
      %v358 = vld [vmem:[%s315 + $0x80] sm:$0x1]
      %v359 = vld [vmem:[%s315 + $0x8c] sm:$0x1]
      %v360 = vld [vmem:[%s315 + $0x98] sm:$0x1]
      %v361 = vld [vmem:[%s315 + $0xa4] sm:$0x1]
      %v362 = vld [vmem:[%s315 + $0xb0] sm:$0x1]
      %v363 = vld [vmem:[%s315 + $0xbc] sm:$0x1]
      %v364 = vld [vmem:[%s315] sm:$0xe]
      %v365 = vld [vmem:[%s315 + $0xc] sm:$0xe]
      %v366 = vld [vmem:[%s315 + $0x18] sm:$0xe]
      %v367 = vld [vmem:[%s315 + $0x24] sm:$0xe]
      %v368 = vld [vmem:[%s315 + $0x30] sm:$0xe]
      %v369 = vld [vmem:[%s315 + $0x3c] sm:$0xe]
      %v370 = vld [vmem:[%s315 + $0x48] sm:$0xe]
      %v371 = vld [vmem:[%s315 + $0x54] sm:$0xe]
      %v372 = vld [vmem:[%s315 + $0x60] sm:$0xe]
      %v373 = vld [vmem:[%s315 + $0x6c] sm:$0xe]
      %v374 = vld [vmem:[%s315 + $0x78] sm:$0xe]
      %v375 = vld [vmem:[%s315 + $0x84] sm:$0xe]
      %v376 = vld [vmem:[%s315 + $0x90] sm:$0xe]
      %v377 = vld [vmem:[%s315 + $0x9c] sm:$0xe]
      %v378 = vld [vmem:[%s315 + $0xa8] sm:$0xe]
      %v379 = vld [vmem:[%s315 + $0xb4] sm:$0xe]
      %s380 = sadd.s32 %s244, 2
      %s381 = smul.u32 %s380, 3
      %s382 = smul.addr %s381, 4
      %s383 = scalar_lea.vmem %s226, %s382
      %v384 = vld [vmem:[%s383] sm:$0xf]
      %v385 = vld [vmem:[%s383 + $0x4] sm:$0xf]
      %v386 = vld [vmem:[%s383 + $0xc] sm:$0xf]
      %v387 = vld [vmem:[%s383 + $0x10] sm:$0xf]
      %v388 = vld [vmem:[%s383 + $0x18] sm:$0xf]
      %v389 = vld [vmem:[%s383 + $0x1c] sm:$0xf]
      %v390 = vld [vmem:[%s383 + $0x24] sm:$0xf]
      %v391 = vld [vmem:[%s383 + $0x28] sm:$0xf]
      %v392 = vld [vmem:[%s383 + $0x30] sm:$0xf]
      %v393 = vld [vmem:[%s383 + $0x34] sm:$0xf]
      %v394 = vld [vmem:[%s383 + $0x3c] sm:$0xf]
      %v395 = vld [vmem:[%s383 + $0x40] sm:$0xf]
      %v396 = vld [vmem:[%s383 + $0x48] sm:$0xf]
      %v397 = vld [vmem:[%s383 + $0x4c] sm:$0xf]
      %v398 = vld [vmem:[%s383 + $0x54] sm:$0xf]
      %v399 = vld [vmem:[%s383 + $0x58] sm:$0xf]
      %v400 = vld [vmem:[%s383 + $0x60] sm:$0xf]
      %v401 = vld [vmem:[%s383 + $0x64] sm:$0xf]
      %v402 = vld [vmem:[%s383 + $0x6c] sm:$0xf]
      %v403 = vld [vmem:[%s383 + $0x70] sm:$0xf]
      %v404 = vld [vmem:[%s383 + $0x78] sm:$0xf]
      %v405 = vld [vmem:[%s383 + $0x7c] sm:$0xf]
      %v406 = vld [vmem:[%s383 + $0x84] sm:$0xf]
      %v407 = vld [vmem:[%s383 + $0x88] sm:$0xf]
      %v408 = vld [vmem:[%s383 + $0x90] sm:$0xf]
      %v409 = vld [vmem:[%s383 + $0x94] sm:$0xf]
      %v410 = vld [vmem:[%s383 + $0x9c] sm:$0xf]
      %v411 = vld [vmem:[%s383 + $0xa0] sm:$0xf]
      %v412 = vld [vmem:[%s383 + $0xa8] sm:$0xf]
      %v413 = vld [vmem:[%s383 + $0xac] sm:$0xf]
      %v414 = vld [vmem:[%s383 + $0xb4] sm:$0xf]
      %v415 = vld [vmem:[%s383 + $0xb8] sm:$0xf]
      %v416 = vld [vmem:[%s383 + $0x8] sm:$0x1]
      %v417 = vld [vmem:[%s383 + $0x14] sm:$0x1]
      %v418 = vld [vmem:[%s383 + $0x20] sm:$0x1]
      %v419 = vld [vmem:[%s383 + $0x2c] sm:$0x1]
      %v420 = vld [vmem:[%s383 + $0x38] sm:$0x1]
      %v421 = vld [vmem:[%s383 + $0x44] sm:$0x1]
      %v422 = vld [vmem:[%s383 + $0x50] sm:$0x1]
      %v423 = vld [vmem:[%s383 + $0x5c] sm:$0x1]
      %v424 = vld [vmem:[%s383 + $0x68] sm:$0x1]
      %v425 = vld [vmem:[%s383 + $0x74] sm:$0x1]
      %v426 = vld [vmem:[%s383 + $0x80] sm:$0x1]
      %v427 = vld [vmem:[%s383 + $0x8c] sm:$0x1]
      %v428 = vld [vmem:[%s383 + $0x98] sm:$0x1]
      %v429 = vld [vmem:[%s383 + $0xa4] sm:$0x1]
      %v430 = vld [vmem:[%s383 + $0xb0] sm:$0x1]
      %v431 = vld [vmem:[%s383 + $0xbc] sm:$0x1]
      %v432 = vld [vmem:[%s383] sm:$0xe]
      %v433 = vld [vmem:[%s383 + $0xc] sm:$0xe]
      %v434 = vld [vmem:[%s383 + $0x18] sm:$0xe]
      %v435 = vld [vmem:[%s383 + $0x24] sm:$0xe]
      %v436 = vld [vmem:[%s383 + $0x30] sm:$0xe]
      %v437 = vld [vmem:[%s383 + $0x3c] sm:$0xe]
      %v438 = vld [vmem:[%s383 + $0x48] sm:$0xe]
      %v439 = vld [vmem:[%s383 + $0x54] sm:$0xe]
      %v440 = vld [vmem:[%s383 + $0x60] sm:$0xe]
      %v441 = vld [vmem:[%s383 + $0x6c] sm:$0xe]
      %v442 = vld [vmem:[%s383 + $0x78] sm:$0xe]
      %v443 = vld [vmem:[%s383 + $0x84] sm:$0xe]
      %v444 = vld [vmem:[%s383 + $0x90] sm:$0xe]
      %v445 = vld [vmem:[%s383 + $0x9c] sm:$0xe]
      %v446 = vld [vmem:[%s383 + $0xa8] sm:$0xe]
      %v447 = vld [vmem:[%s383 + $0xb4] sm:$0xe]
      %s448 = smul.addr %s245, 4
      %s449 = scalar_lea.vmem %s231, %s448
      %v450 = vld [vmem:[%s449] sm:$0xf]
      %v451 = vld [vmem:[%s449 + $0x4] sm:$0xf]
      %v452 = vld [vmem:[%s449 + $0xc] sm:$0xf]
      %v453 = vld [vmem:[%s449 + $0x10] sm:$0xf]
      %v454 = vld [vmem:[%s449 + $0x18] sm:$0xf]
      %v455 = vld [vmem:[%s449 + $0x1c] sm:$0xf]
      %v456 = vld [vmem:[%s449 + $0x24] sm:$0xf]
      %v457 = vld [vmem:[%s449 + $0x28] sm:$0xf]
      %v458 = vld [vmem:[%s449 + $0x30] sm:$0xf]
      %v459 = vld [vmem:[%s449 + $0x34] sm:$0xf]
      %v460 = vld [vmem:[%s449 + $0x3c] sm:$0xf]
      %v461 = vld [vmem:[%s449 + $0x40] sm:$0xf]
      %v462 = vld [vmem:[%s449 + $0x48] sm:$0xf]
      %v463 = vld [vmem:[%s449 + $0x4c] sm:$0xf]
      %v464 = vld [vmem:[%s449 + $0x54] sm:$0xf]
      %v465 = vld [vmem:[%s449 + $0x58] sm:$0xf]
      %v466 = vld [vmem:[%s449 + $0x60] sm:$0xf]
      %v467 = vld [vmem:[%s449 + $0x64] sm:$0xf]
      %v468 = vld [vmem:[%s449 + $0x6c] sm:$0xf]
      %v469 = vld [vmem:[%s449 + $0x70] sm:$0xf]
      %v470 = vld [vmem:[%s449 + $0x78] sm:$0xf]
      %v471 = vld [vmem:[%s449 + $0x7c] sm:$0xf]
      %v472 = vld [vmem:[%s449 + $0x84] sm:$0xf]
      %v473 = vld [vmem:[%s449 + $0x88] sm:$0xf]
      %v474 = vld [vmem:[%s449 + $0x90] sm:$0xf]
      %v475 = vld [vmem:[%s449 + $0x94] sm:$0xf]
      %v476 = vld [vmem:[%s449 + $0x9c] sm:$0xf]
      %v477 = vld [vmem:[%s449 + $0xa0] sm:$0xf]
      %v478 = vld [vmem:[%s449 + $0xa8] sm:$0xf]
      %v479 = vld [vmem:[%s449 + $0xac] sm:$0xf]
      %v480 = vld [vmem:[%s449 + $0xb4] sm:$0xf]
      %v481 = vld [vmem:[%s449 + $0xb8] sm:$0xf]
      %v482 = vld [vmem:[%s449 + $0x8] sm:$0x1]
      %v483 = vld [vmem:[%s449 + $0x14] sm:$0x1]
      %v484 = vld [vmem:[%s449 + $0x20] sm:$0x1]
      %v485 = vld [vmem:[%s449 + $0x2c] sm:$0x1]
      %v486 = vld [vmem:[%s449 + $0x38] sm:$0x1]
      %v487 = vld [vmem:[%s449 + $0x44] sm:$0x1]
      %v488 = vld [vmem:[%s449 + $0x50] sm:$0x1]
      %v489 = vld [vmem:[%s449 + $0x5c] sm:$0x1]
      %v490 = vld [vmem:[%s449 + $0x68] sm:$0x1]
      %v491 = vld [vmem:[%s449 + $0x74] sm:$0x1]
      %v492 = vld [vmem:[%s449 + $0x80] sm:$0x1]
      %v493 = vld [vmem:[%s449 + $0x8c] sm:$0x1]
      %v494 = vld [vmem:[%s449 + $0x98] sm:$0x1]
      %v495 = vld [vmem:[%s449 + $0xa4] sm:$0x1]
      %v496 = vld [vmem:[%s449 + $0xb0] sm:$0x1]
      %v497 = vld [vmem:[%s449 + $0xbc] sm:$0x1]
      %v498 = vld [vmem:[%s449] sm:$0xe]
      %v499 = vld [vmem:[%s449 + $0xc] sm:$0xe]
      %v500 = vld [vmem:[%s449 + $0x18] sm:$0xe]
      %v501 = vld [vmem:[%s449 + $0x24] sm:$0xe]
      %v502 = vld [vmem:[%s449 + $0x30] sm:$0xe]
      %v503 = vld [vmem:[%s449 + $0x3c] sm:$0xe]
      %v504 = vld [vmem:[%s449 + $0x48] sm:$0xe]
      %v505 = vld [vmem:[%s449 + $0x54] sm:$0xe]
      %v506 = vld [vmem:[%s449 + $0x60] sm:$0xe]
      %v507 = vld [vmem:[%s449 + $0x6c] sm:$0xe]
      %v508 = vld [vmem:[%s449 + $0x78] sm:$0xe]
      %v509 = vld [vmem:[%s449 + $0x84] sm:$0xe]
      %v510 = vld [vmem:[%s449 + $0x90] sm:$0xe]
      %v511 = vld [vmem:[%s449 + $0x9c] sm:$0xe]
      %v512 = vld [vmem:[%s449 + $0xa8] sm:$0xe]
      %v513 = vld [vmem:[%s449 + $0xb4] sm:$0xe]
      %s514 = smul.addr %s313, 4
      %s515 = scalar_lea.vmem %s231, %s514
      %v516 = vld [vmem:[%s515] sm:$0xf]
      %v517 = vld [vmem:[%s515 + $0x4] sm:$0xf]
      %v518 = vld [vmem:[%s515 + $0xc] sm:$0xf]
      %v519 = vld [vmem:[%s515 + $0x10] sm:$0xf]
      %v520 = vld [vmem:[%s515 + $0x18] sm:$0xf]
      %v521 = vld [vmem:[%s515 + $0x1c] sm:$0xf]
      %v522 = vld [vmem:[%s515 + $0x24] sm:$0xf]
      %v523 = vld [vmem:[%s515 + $0x28] sm:$0xf]
      %v524 = vld [vmem:[%s515 + $0x30] sm:$0xf]
      %v525 = vld [vmem:[%s515 + $0x34] sm:$0xf]
      %v526 = vld [vmem:[%s515 + $0x3c] sm:$0xf]
      %v527 = vld [vmem:[%s515 + $0x40] sm:$0xf]
      %v528 = vld [vmem:[%s515 + $0x48] sm:$0xf]
      %v529 = vld [vmem:[%s515 + $0x4c] sm:$0xf]
      %v530 = vld [vmem:[%s515 + $0x54] sm:$0xf]
      %v531 = vld [vmem:[%s515 + $0x58] sm:$0xf]
      %v532 = vld [vmem:[%s515 + $0x60] sm:$0xf]
      %v533 = vld [vmem:[%s515 + $0x64] sm:$0xf]
      %v534 = vld [vmem:[%s515 + $0x6c] sm:$0xf]
      %v535 = vld [vmem:[%s515 + $0x70] sm:$0xf]
      %v536 = vld [vmem:[%s515 + $0x78] sm:$0xf]
      %v537 = vld [vmem:[%s515 + $0x7c] sm:$0xf]
      %v538 = vld [vmem:[%s515 + $0x84] sm:$0xf]
      %v539 = vld [vmem:[%s515 + $0x88] sm:$0xf]
      %v540 = vld [vmem:[%s515 + $0x90] sm:$0xf]
      %v541 = vld [vmem:[%s515 + $0x94] sm:$0xf]
      %v542 = vld [vmem:[%s515 + $0x9c] sm:$0xf]
      %v543 = vld [vmem:[%s515 + $0xa0] sm:$0xf]
      %v544 = vld [vmem:[%s515 + $0xa8] sm:$0xf]
      %v545 = vld [vmem:[%s515 + $0xac] sm:$0xf]
      %v546 = vld [vmem:[%s515 + $0xb4] sm:$0xf]
      %v547 = vld [vmem:[%s515 + $0xb8] sm:$0xf]
      %v548 = vld [vmem:[%s515 + $0x8] sm:$0x1]
      %v549 = vld [vmem:[%s515 + $0x14] sm:$0x1]
      %v550 = vld [vmem:[%s515 + $0x20] sm:$0x1]
      %v551 = vld [vmem:[%s515 + $0x2c] sm:$0x1]
      %v552 = vld [vmem:[%s515 + $0x38] sm:$0x1]
      %v553 = vld [vmem:[%s515 + $0x44] sm:$0x1]
      %v554 = vld [vmem:[%s515 + $0x50] sm:$0x1]
      %v555 = vld [vmem:[%s515 + $0x5c] sm:$0x1]
      %v556 = vld [vmem:[%s515 + $0x68] sm:$0x1]
      %v557 = vld [vmem:[%s515 + $0x74] sm:$0x1]
      %v558 = vld [vmem:[%s515 + $0x80] sm:$0x1]
      %v559 = vld [vmem:[%s515 + $0x8c] sm:$0x1]
      %v560 = vld [vmem:[%s515 + $0x98] sm:$0x1]
      %v561 = vld [vmem:[%s515 + $0xa4] sm:$0x1]
      %v562 = vld [vmem:[%s515 + $0xb0] sm:$0x1]
      %v563 = vld [vmem:[%s515 + $0xbc] sm:$0x1]
      %v564 = vld [vmem:[%s515] sm:$0xe]
      %v565 = vld [vmem:[%s515 + $0xc] sm:$0xe]
      %v566 = vld [vmem:[%s515 + $0x18] sm:$0xe]
      %v567 = vld [vmem:[%s515 + $0x24] sm:$0xe]
      %v568 = vld [vmem:[%s515 + $0x30] sm:$0xe]
      %v569 = vld [vmem:[%s515 + $0x3c] sm:$0xe]
      %v570 = vld [vmem:[%s515 + $0x48] sm:$0xe]
      %v571 = vld [vmem:[%s515 + $0x54] sm:$0xe]
      %v572 = vld [vmem:[%s515 + $0x60] sm:$0xe]
      %v573 = vld [vmem:[%s515 + $0x6c] sm:$0xe]
      %v574 = vld [vmem:[%s515 + $0x78] sm:$0xe]
      %v575 = vld [vmem:[%s515 + $0x84] sm:$0xe]
      %v576 = vld [vmem:[%s515 + $0x90] sm:$0xe]
      %v577 = vld [vmem:[%s515 + $0x9c] sm:$0xe]
      %v578 = vld [vmem:[%s515 + $0xa8] sm:$0xe]
      %v579 = vld [vmem:[%s515 + $0xb4] sm:$0xe]
      %s580 = smul.addr %s381, 4
      %s581 = scalar_lea.vmem %s231, %s580
      %v582 = vld [vmem:[%s581] sm:$0xf]
      %v583 = vld [vmem:[%s581 + $0x4] sm:$0xf]
      %v584 = vld [vmem:[%s581 + $0xc] sm:$0xf]
      %v585 = vld [vmem:[%s581 + $0x10] sm:$0xf]
      %v586 = vld [vmem:[%s581 + $0x18] sm:$0xf]
      %v587 = vld [vmem:[%s581 + $0x1c] sm:$0xf]
      %v588 = vld [vmem:[%s581 + $0x24] sm:$0xf]
      %v589 = vld [vmem:[%s581 + $0x28] sm:$0xf]
      %v590 = vld [vmem:[%s581 + $0x30] sm:$0xf]
      %v591 = vld [vmem:[%s581 + $0x34] sm:$0xf]
      %v592 = vld [vmem:[%s581 + $0x3c] sm:$0xf]
      %v593 = vld [vmem:[%s581 + $0x40] sm:$0xf]
      %v594 = vld [vmem:[%s581 + $0x48] sm:$0xf]
      %v595 = vld [vmem:[%s581 + $0x4c] sm:$0xf]
      %v596 = vld [vmem:[%s581 + $0x54] sm:$0xf]
      %v597 = vld [vmem:[%s581 + $0x58] sm:$0xf]
      %v598 = vld [vmem:[%s581 + $0x60] sm:$0xf]
      %v599 = vld [vmem:[%s581 + $0x64] sm:$0xf]
      %v600 = vld [vmem:[%s581 + $0x6c] sm:$0xf]
      %v601 = vld [vmem:[%s581 + $0x70] sm:$0xf]
      %v602 = vld [vmem:[%s581 + $0x78] sm:$0xf]
      %v603 = vld [vmem:[%s581 + $0x7c] sm:$0xf]
      %v604 = vld [vmem:[%s581 + $0x84] sm:$0xf]
      %v605 = vld [vmem:[%s581 + $0x88] sm:$0xf]
      %v606 = vld [vmem:[%s581 + $0x90] sm:$0xf]
      %v607 = vld [vmem:[%s581 + $0x94] sm:$0xf]
      %v608 = vld [vmem:[%s581 + $0x9c] sm:$0xf]
      %v609 = vld [vmem:[%s581 + $0xa0] sm:$0xf]
      %v610 = vld [vmem:[%s581 + $0xa8] sm:$0xf]
      %v611 = vld [vmem:[%s581 + $0xac] sm:$0xf]
      %v612 = vld [vmem:[%s581 + $0xb4] sm:$0xf]
      %v613 = vld [vmem:[%s581 + $0xb8] sm:$0xf]
      %v614 = vld [vmem:[%s581 + $0x8] sm:$0x1]
      %v615 = vld [vmem:[%s581 + $0x14] sm:$0x1]
      %v616 = vld [vmem:[%s581 + $0x20] sm:$0x1]
      %v617 = vld [vmem:[%s581 + $0x2c] sm:$0x1]
      %v618 = vld [vmem:[%s581 + $0x38] sm:$0x1]
      %v619 = vld [vmem:[%s581 + $0x44] sm:$0x1]
      %v620 = vld [vmem:[%s581 + $0x50] sm:$0x1]
      %v621 = vld [vmem:[%s581 + $0x5c] sm:$0x1]
      %v622 = vld [vmem:[%s581 + $0x68] sm:$0x1]
      %v623 = vld [vmem:[%s581 + $0x74] sm:$0x1]
      %v624 = vld [vmem:[%s581 + $0x80] sm:$0x1]
      %v625 = vld [vmem:[%s581 + $0x8c] sm:$0x1]
      %v626 = vld [vmem:[%s581 + $0x98] sm:$0x1]
      %v627 = vld [vmem:[%s581 + $0xa4] sm:$0x1]
      %v628 = vld [vmem:[%s581 + $0xb0] sm:$0x1]
      %v629 = vld [vmem:[%s581 + $0xbc] sm:$0x1]
      %v630 = vld [vmem:[%s581] sm:$0xe]
      %v631 = vld [vmem:[%s581 + $0xc] sm:$0xe]
      %v632 = vld [vmem:[%s581 + $0x18] sm:$0xe]
      %v633 = vld [vmem:[%s581 + $0x24] sm:$0xe]
      %v634 = vld [vmem:[%s581 + $0x30] sm:$0xe]
      %v635 = vld [vmem:[%s581 + $0x3c] sm:$0xe]
      %v636 = vld [vmem:[%s581 + $0x48] sm:$0xe]
      %v637 = vld [vmem:[%s581 + $0x54] sm:$0xe]
      %v638 = vld [vmem:[%s581 + $0x60] sm:$0xe]
      %v639 = vld [vmem:[%s581 + $0x6c] sm:$0xe]
      %v640 = vld [vmem:[%s581 + $0x78] sm:$0xe]
      %v641 = vld [vmem:[%s581 + $0x84] sm:$0xe]
      %v642 = vld [vmem:[%s581 + $0x90] sm:$0xe]
      %v643 = vld [vmem:[%s581 + $0x9c] sm:$0xe]
      %v644 = vld [vmem:[%s581 + $0xa8] sm:$0xe]
      %v645 = vld [vmem:[%s581 + $0xb4] sm:$0xe]
      %v678 = vunpack.c.l.b16 %v248
      %v679 = vunpack.c.l.b16 %v249
      %v680 = vunpack.c.l.b16 %v250
      %v681 = vunpack.c.l.b16 %v251
      %v682 = vunpack.c.l.b16 %v252
      %v683 = vunpack.c.l.b16 %v253
      %v684 = vunpack.c.l.b16 %v254
      %v685 = vunpack.c.l.b16 %v255
      %v686 = vunpack.c.l.b16 %v256
      %v687 = vunpack.c.l.b16 %v257
      %v688 = vunpack.c.l.b16 %v258
      %v689 = vunpack.c.l.b16 %v259
      %v690 = vunpack.c.l.b16 %v260
      %v691 = vunpack.c.l.b16 %v261
      %v692 = vunpack.c.l.b16 %v262
      %v693 = vunpack.c.l.b16 %v263
      %v694 = vunpack.c.l.b16 %v264
      %v695 = vunpack.c.l.b16 %v265
      %v696 = vunpack.c.l.b16 %v266
      %v697 = vunpack.c.l.b16 %v267
      %v698 = vunpack.c.l.b16 %v268
      %v699 = vunpack.c.l.b16 %v269
      %v700 = vunpack.c.l.b16 %v270
      %v701 = vunpack.c.l.b16 %v271
      %v702 = vunpack.c.l.b16 %v272
      %v703 = vunpack.c.l.b16 %v273
      %v704 = vunpack.c.l.b16 %v274
      %v705 = vunpack.c.l.b16 %v275
      %v706 = vunpack.c.l.b16 %v276
      %v707 = vunpack.c.l.b16 %v277
      %v708 = vunpack.c.l.b16 %v278
      %v709 = vunpack.c.l.b16 %v279
      %v710 = vpack.c.b16 %v679, %v678
      %v711 = vpack.c.b16 %v681, %v680
      %v712 = vpack.c.b16 %v683, %v682
      %v713 = vpack.c.b16 %v685, %v684
      %v714 = vpack.c.b16 %v687, %v686
      %v715 = vpack.c.b16 %v689, %v688
      %v716 = vpack.c.b16 %v691, %v690
      %v717 = vpack.c.b16 %v693, %v692
      %v718 = vpack.c.b16 %v695, %v694
      %v719 = vpack.c.b16 %v697, %v696
      %v720 = vpack.c.b16 %v699, %v698
      %v721 = vpack.c.b16 %v701, %v700
      %v722 = vpack.c.b16 %v703, %v702
      %v723 = vpack.c.b16 %v705, %v704
      %v724 = vpack.c.b16 %v707, %v706
      %v725 = vpack.c.b16 %v709, %v708
      %v742 = vunpack.c.l.b16 %v280
      %v743 = vunpack.c.l.b16 %v281
      %v744 = vunpack.c.l.b16 %v282
      %v745 = vunpack.c.l.b16 %v283
      %v746 = vunpack.c.l.b16 %v284
      %v747 = vunpack.c.l.b16 %v285
      %v748 = vunpack.c.l.b16 %v286
      %v749 = vunpack.c.l.b16 %v287
      %v750 = vunpack.c.l.b16 %v288
      %v751 = vunpack.c.l.b16 %v289
      %v752 = vunpack.c.l.b16 %v290
      %v753 = vunpack.c.l.b16 %v291
      %v754 = vunpack.c.l.b16 %v292
      %v755 = vunpack.c.l.b16 %v293
      %v756 = vunpack.c.l.b16 %v294
      %v757 = vunpack.c.l.b16 %v295
      %v758 = vpack.c.b16 %v742, %v742
      %v759 = vpack.c.b16 %v743, %v743
      %v760 = vpack.c.b16 %v744, %v744
      %v761 = vpack.c.b16 %v745, %v745
      %v762 = vpack.c.b16 %v746, %v746
      %v763 = vpack.c.b16 %v747, %v747
      %v764 = vpack.c.b16 %v748, %v748
      %v765 = vpack.c.b16 %v749, %v749
      %v766 = vpack.c.b16 %v750, %v750
      %v767 = vpack.c.b16 %v751, %v751
      %v768 = vpack.c.b16 %v752, %v752
      %v769 = vpack.c.b16 %v753, %v753
      %v770 = vpack.c.b16 %v754, %v754
      %v771 = vpack.c.b16 %v755, %v755
      %v772 = vpack.c.b16 %v756, %v756
      %v773 = vpack.c.b16 %v757, %v757
      %vm774 = vsmask.f32 7424
      %v776 = vshrl.u32 %v710, 16
      %v778 = vshll.u32 %v710, 16
      %v780 = vrot.slane %v778, 1
      %v781 = vor.u32 %v776, %v780
      %v783 = vshll.u32 %v758, 16
      %v785 = vrot.slane %v783, 1
      %v786 = vsel %vm774, %v781, %v785
      %v788 = vshrl.u32 %v711, 16
      %v790 = vshll.u32 %v711, 16
      %v792 = vrot.slane %v790, 1
      %v793 = vor.u32 %v788, %v792
      %v795 = vshll.u32 %v759, 16
      %v797 = vrot.slane %v795, 1
      %v798 = vsel %vm774, %v793, %v797
      %v800 = vshrl.u32 %v712, 16
      %v802 = vshll.u32 %v712, 16
      %v804 = vrot.slane %v802, 1
      %v805 = vor.u32 %v800, %v804
      %v807 = vshll.u32 %v760, 16
      %v809 = vrot.slane %v807, 1
      %v810 = vsel %vm774, %v805, %v809
      %v812 = vshrl.u32 %v713, 16
      %v814 = vshll.u32 %v713, 16
      %v816 = vrot.slane %v814, 1
      %v817 = vor.u32 %v812, %v816
      %v819 = vshll.u32 %v761, 16
      %v821 = vrot.slane %v819, 1
      %v822 = vsel %vm774, %v817, %v821
      %v824 = vshrl.u32 %v714, 16
      %v826 = vshll.u32 %v714, 16
      %v828 = vrot.slane %v826, 1
      %v829 = vor.u32 %v824, %v828
      %v831 = vshll.u32 %v762, 16
      %v833 = vrot.slane %v831, 1
      %v834 = vsel %vm774, %v829, %v833
      %v836 = vshrl.u32 %v715, 16
      %v838 = vshll.u32 %v715, 16
      %v840 = vrot.slane %v838, 1
      %v841 = vor.u32 %v836, %v840
      %v843 = vshll.u32 %v763, 16
      %v845 = vrot.slane %v843, 1
      %v846 = vsel %vm774, %v841, %v845
      %v848 = vshrl.u32 %v716, 16
      %v850 = vshll.u32 %v716, 16
      %v852 = vrot.slane %v850, 1
      %v853 = vor.u32 %v848, %v852
      %v855 = vshll.u32 %v764, 16
      %v857 = vrot.slane %v855, 1
      %v858 = vsel %vm774, %v853, %v857
      %v860 = vshrl.u32 %v717, 16
      %v862 = vshll.u32 %v717, 16
      %v864 = vrot.slane %v862, 1
      %v865 = vor.u32 %v860, %v864
      %v867 = vshll.u32 %v765, 16
      %v869 = vrot.slane %v867, 1
      %v870 = vsel %vm774, %v865, %v869
      %v872 = vshrl.u32 %v718, 16
      %v874 = vshll.u32 %v718, 16
      %v876 = vrot.slane %v874, 1
      %v877 = vor.u32 %v872, %v876
      %v879 = vshll.u32 %v766, 16
      %v881 = vrot.slane %v879, 1
      %v882 = vsel %vm774, %v877, %v881
      %v884 = vshrl.u32 %v719, 16
      %v886 = vshll.u32 %v719, 16
      %v888 = vrot.slane %v886, 1
      %v889 = vor.u32 %v884, %v888
      %v891 = vshll.u32 %v767, 16
      %v893 = vrot.slane %v891, 1
      %v894 = vsel %vm774, %v889, %v893
      %v896 = vshrl.u32 %v720, 16
      %v898 = vshll.u32 %v720, 16
      %v900 = vrot.slane %v898, 1
      %v901 = vor.u32 %v896, %v900
      %v903 = vshll.u32 %v768, 16
      %v905 = vrot.slane %v903, 1
      %v906 = vsel %vm774, %v901, %v905
      %v908 = vshrl.u32 %v721, 16
      %v910 = vshll.u32 %v721, 16
      %v912 = vrot.slane %v910, 1
      %v913 = vor.u32 %v908, %v912
      %v915 = vshll.u32 %v769, 16
      %v917 = vrot.slane %v915, 1
      %v918 = vsel %vm774, %v913, %v917
      %v920 = vshrl.u32 %v722, 16
      %v922 = vshll.u32 %v722, 16
      %v924 = vrot.slane %v922, 1
      %v925 = vor.u32 %v920, %v924
      %v927 = vshll.u32 %v770, 16
      %v929 = vrot.slane %v927, 1
      %v930 = vsel %vm774, %v925, %v929
      %v932 = vshrl.u32 %v723, 16
      %v934 = vshll.u32 %v723, 16
      %v936 = vrot.slane %v934, 1
      %v937 = vor.u32 %v932, %v936
      %v939 = vshll.u32 %v771, 16
      %v941 = vrot.slane %v939, 1
      %v942 = vsel %vm774, %v937, %v941
      %v944 = vshrl.u32 %v724, 16
      %v946 = vshll.u32 %v724, 16
      %v948 = vrot.slane %v946, 1
      %v949 = vor.u32 %v944, %v948
      %v951 = vshll.u32 %v772, 16
      %v953 = vrot.slane %v951, 1
      %v954 = vsel %vm774, %v949, %v953
      %v956 = vshrl.u32 %v725, 16
      %v958 = vshll.u32 %v725, 16
      %v960 = vrot.slane %v958, 1
      %v961 = vor.u32 %v956, %v960
      %v963 = vshll.u32 %v773, 16
      %v965 = vrot.slane %v963, 1
      %v966 = vsel %vm774, %v961, %v965
      %967 = vrot.lane.b32.xlu0 %v786, 4
      %v968 = vpop.permute.xlu0 %967
      %969 = vrot.lane.b32.xlu0 %v798, 4
      %v970 = vpop.permute.xlu0 %969
      %971 = vrot.lane.b32.xlu0 %v810, 4
      %v972 = vpop.permute.xlu0 %971
      %973 = vrot.lane.b32.xlu0 %v822, 4
      %v974 = vpop.permute.xlu0 %973
      %975 = vrot.lane.b32.xlu0 %v834, 4
      %v976 = vpop.permute.xlu0 %975
      %977 = vrot.lane.b32.xlu0 %v846, 4
      %v978 = vpop.permute.xlu0 %977
      %979 = vrot.lane.b32.xlu0 %v858, 4
      %v980 = vpop.permute.xlu0 %979
      %981 = vrot.lane.b32.xlu0 %v870, 4
      %v982 = vpop.permute.xlu0 %981
      %983 = vrot.lane.b32.xlu0 %v882, 4
      %v984 = vpop.permute.xlu0 %983
      %985 = vrot.lane.b32.xlu0 %v894, 4
      %v986 = vpop.permute.xlu0 %985
      %987 = vrot.lane.b32.xlu0 %v906, 4
      %v988 = vpop.permute.xlu0 %987
      %989 = vrot.lane.b32.xlu0 %v918, 4
      %v990 = vpop.permute.xlu0 %989
      %991 = vrot.lane.b32.xlu0 %v930, 4
      %v992 = vpop.permute.xlu0 %991
      %993 = vrot.lane.b32.xlu0 %v942, 4
      %v994 = vpop.permute.xlu0 %993
      %995 = vrot.lane.b32.xlu0 %v954, 4
      %v996 = vpop.permute.xlu0 %995
      %997 = vrot.lane.b32.xlu0 %v966, 4
      %v998 = vpop.permute.xlu0 %997
      %v1015 = vunpack.c.l.b16 %v296
      %v1016 = vunpack.c.l.b16 %v297
      %v1017 = vunpack.c.l.b16 %v298
      %v1018 = vunpack.c.l.b16 %v299
      %v1019 = vunpack.c.l.b16 %v300
      %v1020 = vunpack.c.l.b16 %v301
      %v1021 = vunpack.c.l.b16 %v302
      %v1022 = vunpack.c.l.b16 %v303
      %v1023 = vunpack.c.l.b16 %v304
      %v1024 = vunpack.c.l.b16 %v305
      %v1025 = vunpack.c.l.b16 %v306
      %v1026 = vunpack.c.l.b16 %v307
      %v1027 = vunpack.c.l.b16 %v308
      %v1028 = vunpack.c.l.b16 %v309
      %v1029 = vunpack.c.l.b16 %v310
      %v1030 = vunpack.c.l.b16 %v311
      %v1031 = vpack.c.b16 %v679, %v1015
      %v1032 = vpack.c.b16 %v681, %v1016
      %v1033 = vpack.c.b16 %v683, %v1017
      %v1034 = vpack.c.b16 %v685, %v1018
      %v1035 = vpack.c.b16 %v687, %v1019
      %v1036 = vpack.c.b16 %v689, %v1020
      %v1037 = vpack.c.b16 %v691, %v1021
      %v1038 = vpack.c.b16 %v693, %v1022
      %v1039 = vpack.c.b16 %v695, %v1023
      %v1040 = vpack.c.b16 %v697, %v1024
      %v1041 = vpack.c.b16 %v699, %v1025
      %v1042 = vpack.c.b16 %v701, %v1026
      %v1043 = vpack.c.b16 %v703, %v1027
      %v1044 = vpack.c.b16 %v705, %v1028
      %v1045 = vpack.c.b16 %v707, %v1029
      %v1046 = vpack.c.b16 %v709, %v1030
      %vm1047 = vcmask 1046528
      %v1048 = vrot.slane %v1031, 1
      %v1049 = vrot.slane %v758, 1
      %v1050 = vsel %vm1047, %v1048, %v1049
      %v1051 = vrot.slane %v1032, 1
      %v1052 = vrot.slane %v759, 1
      %v1053 = vsel %vm1047, %v1051, %v1052
      %v1054 = vrot.slane %v1033, 1
      %v1055 = vrot.slane %v760, 1
      %v1056 = vsel %vm1047, %v1054, %v1055
      %v1057 = vrot.slane %v1034, 1
      %v1058 = vrot.slane %v761, 1
      %v1059 = vsel %vm1047, %v1057, %v1058
      %v1060 = vrot.slane %v1035, 1
      %v1061 = vrot.slane %v762, 1
      %v1062 = vsel %vm1047, %v1060, %v1061
      %v1063 = vrot.slane %v1036, 1
      %v1064 = vrot.slane %v763, 1
      %v1065 = vsel %vm1047, %v1063, %v1064
      %v1066 = vrot.slane %v1037, 1
      %v1067 = vrot.slane %v764, 1
      %v1068 = vsel %vm1047, %v1066, %v1067
      %v1069 = vrot.slane %v1038, 1
      %v1070 = vrot.slane %v765, 1
      %v1071 = vsel %vm1047, %v1069, %v1070
      %v1072 = vrot.slane %v1039, 1
      %v1073 = vrot.slane %v766, 1
      %v1074 = vsel %vm1047, %v1072, %v1073
      %v1075 = vrot.slane %v1040, 1
      %v1076 = vrot.slane %v767, 1
      %v1077 = vsel %vm1047, %v1075, %v1076
      %v1078 = vrot.slane %v1041, 1
      %v1079 = vrot.slane %v768, 1
      %v1080 = vsel %vm1047, %v1078, %v1079
      %v1081 = vrot.slane %v1042, 1
      %v1082 = vrot.slane %v769, 1
      %v1083 = vsel %vm1047, %v1081, %v1082
      %v1084 = vrot.slane %v1043, 1
      %v1085 = vrot.slane %v770, 1
      %v1086 = vsel %vm1047, %v1084, %v1085
      %v1087 = vrot.slane %v1044, 1
      %v1088 = vrot.slane %v771, 1
      %v1089 = vsel %vm1047, %v1087, %v1088
      %v1090 = vrot.slane %v1045, 1
      %v1091 = vrot.slane %v772, 1
      %v1092 = vsel %vm1047, %v1090, %v1091
      %v1093 = vrot.slane %v1046, 1
      %v1094 = vrot.slane %v773, 1
      %v1095 = vsel %vm1047, %v1093, %v1094
      %1096 = vrot.lane.b32.xlu0 %v1050, 8
      %v1097 = vpop.permute.xlu0 %1096
      %1098 = vrot.lane.b32.xlu0 %v1053, 8
      %v1099 = vpop.permute.xlu0 %1098
      %1100 = vrot.lane.b32.xlu0 %v1056, 8
      %v1101 = vpop.permute.xlu0 %1100
      %1102 = vrot.lane.b32.xlu0 %v1059, 8
      %v1103 = vpop.permute.xlu0 %1102
      %1104 = vrot.lane.b32.xlu0 %v1062, 8
      %v1105 = vpop.permute.xlu0 %1104
      %1106 = vrot.lane.b32.xlu0 %v1065, 8
      %v1107 = vpop.permute.xlu0 %1106
      %1108 = vrot.lane.b32.xlu0 %v1068, 8
      %v1109 = vpop.permute.xlu0 %1108
      %1110 = vrot.lane.b32.xlu0 %v1071, 8
      %v1111 = vpop.permute.xlu0 %1110
      %1112 = vrot.lane.b32.xlu0 %v1074, 8
      %v1113 = vpop.permute.xlu0 %1112
      %1114 = vrot.lane.b32.xlu0 %v1077, 8
      %v1115 = vpop.permute.xlu0 %1114
      %1116 = vrot.lane.b32.xlu0 %v1080, 8
      %v1117 = vpop.permute.xlu0 %1116
      %1118 = vrot.lane.b32.xlu0 %v1083, 8
      %v1119 = vpop.permute.xlu0 %1118
      %1120 = vrot.lane.b32.xlu0 %v1086, 8
      %v1121 = vpop.permute.xlu0 %1120
      %1122 = vrot.lane.b32.xlu0 %v1089, 8
      %v1123 = vpop.permute.xlu0 %1122
      %1124 = vrot.lane.b32.xlu0 %v1092, 8
      %v1125 = vpop.permute.xlu0 %1124
      %1126 = vrot.lane.b32.xlu0 %v1095, 8
      %v1127 = vpop.permute.xlu0 %1126
      %v1160 = vunpack.c.l.b16 %v316
      %v1161 = vunpack.c.l.b16 %v317
      %v1162 = vunpack.c.l.b16 %v318
      %v1163 = vunpack.c.l.b16 %v319
      %v1164 = vunpack.c.l.b16 %v320
      %v1165 = vunpack.c.l.b16 %v321
      %v1166 = vunpack.c.l.b16 %v322
      %v1167 = vunpack.c.l.b16 %v323
      %v1168 = vunpack.c.l.b16 %v324
      %v1169 = vunpack.c.l.b16 %v325
      %v1170 = vunpack.c.l.b16 %v326
      %v1171 = vunpack.c.l.b16 %v327
      %v1172 = vunpack.c.l.b16 %v328
      %v1173 = vunpack.c.l.b16 %v329
      %v1174 = vunpack.c.l.b16 %v330
      %v1175 = vunpack.c.l.b16 %v331
      %v1176 = vunpack.c.l.b16 %v332
      %v1177 = vunpack.c.l.b16 %v333
      %v1178 = vunpack.c.l.b16 %v334
      %v1179 = vunpack.c.l.b16 %v335
      %v1180 = vunpack.c.l.b16 %v336
      %v1181 = vunpack.c.l.b16 %v337
      %v1182 = vunpack.c.l.b16 %v338
      %v1183 = vunpack.c.l.b16 %v339
      %v1184 = vunpack.c.l.b16 %v340
      %v1185 = vunpack.c.l.b16 %v341
      %v1186 = vunpack.c.l.b16 %v342
      %v1187 = vunpack.c.l.b16 %v343
      %v1188 = vunpack.c.l.b16 %v344
      %v1189 = vunpack.c.l.b16 %v345
      %v1190 = vunpack.c.l.b16 %v346
      %v1191 = vunpack.c.l.b16 %v347
      %v1192 = vpack.c.b16 %v1161, %v1160
      %v1193 = vpack.c.b16 %v1163, %v1162
      %v1194 = vpack.c.b16 %v1165, %v1164
      %v1195 = vpack.c.b16 %v1167, %v1166
      %v1196 = vpack.c.b16 %v1169, %v1168
      %v1197 = vpack.c.b16 %v1171, %v1170
      %v1198 = vpack.c.b16 %v1173, %v1172
      %v1199 = vpack.c.b16 %v1175, %v1174
      %v1200 = vpack.c.b16 %v1177, %v1176
      %v1201 = vpack.c.b16 %v1179, %v1178
      %v1202 = vpack.c.b16 %v1181, %v1180
      %v1203 = vpack.c.b16 %v1183, %v1182
      %v1204 = vpack.c.b16 %v1185, %v1184
      %v1205 = vpack.c.b16 %v1187, %v1186
      %v1206 = vpack.c.b16 %v1189, %v1188
      %v1207 = vpack.c.b16 %v1191, %v1190
      %1208 = vrot.lane.b32.xlu0 %v1192, 12
      %v1209 = vpop.permute.xlu0 %1208
      %1210 = vrot.lane.b32.xlu0 %v1193, 12
      %v1211 = vpop.permute.xlu0 %1210
      %1212 = vrot.lane.b32.xlu0 %v1194, 12
      %v1213 = vpop.permute.xlu0 %1212
      %1214 = vrot.lane.b32.xlu0 %v1195, 12
      %v1215 = vpop.permute.xlu0 %1214
      %1216 = vrot.lane.b32.xlu0 %v1196, 12
      %v1217 = vpop.permute.xlu0 %1216
      %1218 = vrot.lane.b32.xlu0 %v1197, 12
      %v1219 = vpop.permute.xlu0 %1218
      %1220 = vrot.lane.b32.xlu0 %v1198, 12
      %v1221 = vpop.permute.xlu0 %1220
      %1222 = vrot.lane.b32.xlu0 %v1199, 12
      %v1223 = vpop.permute.xlu0 %1222
      %1224 = vrot.lane.b32.xlu0 %v1200, 12
      %v1225 = vpop.permute.xlu0 %1224
      %1226 = vrot.lane.b32.xlu0 %v1201, 12
      %v1227 = vpop.permute.xlu0 %1226
      %1228 = vrot.lane.b32.xlu0 %v1202, 12
      %v1229 = vpop.permute.xlu0 %1228
      %1230 = vrot.lane.b32.xlu0 %v1203, 12
      %v1231 = vpop.permute.xlu0 %1230
      %1232 = vrot.lane.b32.xlu0 %v1204, 12
      %v1233 = vpop.permute.xlu0 %1232
      %1234 = vrot.lane.b32.xlu0 %v1205, 12
      %v1235 = vpop.permute.xlu0 %1234
      %1236 = vrot.lane.b32.xlu0 %v1206, 12
      %v1237 = vpop.permute.xlu0 %1236
      %1238 = vrot.lane.b32.xlu0 %v1207, 12
      %v1239 = vpop.permute.xlu0 %1238
      %v1256 = vunpack.c.l.b16 %v348
      %v1257 = vunpack.c.l.b16 %v349
      %v1258 = vunpack.c.l.b16 %v350
      %v1259 = vunpack.c.l.b16 %v351
      %v1260 = vunpack.c.l.b16 %v352
      %v1261 = vunpack.c.l.b16 %v353
      %v1262 = vunpack.c.l.b16 %v354
      %v1263 = vunpack.c.l.b16 %v355
      %v1264 = vunpack.c.l.b16 %v356
      %v1265 = vunpack.c.l.b16 %v357
      %v1266 = vunpack.c.l.b16 %v358
      %v1267 = vunpack.c.l.b16 %v359
      %v1268 = vunpack.c.l.b16 %v360
      %v1269 = vunpack.c.l.b16 %v361
      %v1270 = vunpack.c.l.b16 %v362
      %v1271 = vunpack.c.l.b16 %v363
      %v1272 = vpack.c.b16 %v1256, %v1256
      %v1273 = vpack.c.b16 %v1257, %v1257
      %v1274 = vpack.c.b16 %v1258, %v1258
      %v1275 = vpack.c.b16 %v1259, %v1259
      %v1276 = vpack.c.b16 %v1260, %v1260
      %v1277 = vpack.c.b16 %v1261, %v1261
      %v1278 = vpack.c.b16 %v1262, %v1262
      %v1279 = vpack.c.b16 %v1263, %v1263
      %v1280 = vpack.c.b16 %v1264, %v1264
      %v1281 = vpack.c.b16 %v1265, %v1265
      %v1282 = vpack.c.b16 %v1266, %v1266
      %v1283 = vpack.c.b16 %v1267, %v1267
      %v1284 = vpack.c.b16 %v1268, %v1268
      %v1285 = vpack.c.b16 %v1269, %v1269
      %v1286 = vpack.c.b16 %v1270, %v1270
      %v1287 = vpack.c.b16 %v1271, %v1271
      %v1289 = vshrl.u32 %v1192, 16
      %v1291 = vshll.u32 %v1192, 16
      %v1293 = vrot.slane %v1291, 1
      %v1294 = vor.u32 %v1289, %v1293
      %v1296 = vshll.u32 %v1272, 16
      %v1298 = vrot.slane %v1296, 1
      %v1299 = vsel %vm774, %v1294, %v1298
      %v1301 = vshrl.u32 %v1193, 16
      %v1303 = vshll.u32 %v1193, 16
      %v1305 = vrot.slane %v1303, 1
      %v1306 = vor.u32 %v1301, %v1305
      %v1308 = vshll.u32 %v1273, 16
      %v1310 = vrot.slane %v1308, 1
      %v1311 = vsel %vm774, %v1306, %v1310
      %v1313 = vshrl.u32 %v1194, 16
      %v1315 = vshll.u32 %v1194, 16
      %v1317 = vrot.slane %v1315, 1
      %v1318 = vor.u32 %v1313, %v1317
      %v1320 = vshll.u32 %v1274, 16
      %v1322 = vrot.slane %v1320, 1
      %v1323 = vsel %vm774, %v1318, %v1322
      %v1325 = vshrl.u32 %v1195, 16
      %v1327 = vshll.u32 %v1195, 16
      %v1329 = vrot.slane %v1327, 1
      %v1330 = vor.u32 %v1325, %v1329
      %v1332 = vshll.u32 %v1275, 16
      %v1334 = vrot.slane %v1332, 1
      %v1335 = vsel %vm774, %v1330, %v1334
      %v1337 = vshrl.u32 %v1196, 16
      %v1339 = vshll.u32 %v1196, 16
      %v1341 = vrot.slane %v1339, 1
      %v1342 = vor.u32 %v1337, %v1341
      %v1344 = vshll.u32 %v1276, 16
      %v1346 = vrot.slane %v1344, 1
      %v1347 = vsel %vm774, %v1342, %v1346
      %v1349 = vshrl.u32 %v1197, 16
      %v1351 = vshll.u32 %v1197, 16
      %v1353 = vrot.slane %v1351, 1
      %v1354 = vor.u32 %v1349, %v1353
      %v1356 = vshll.u32 %v1277, 16
      %v1358 = vrot.slane %v1356, 1
      %v1359 = vsel %vm774, %v1354, %v1358
      %v1361 = vshrl.u32 %v1198, 16
      %v1363 = vshll.u32 %v1198, 16
      %v1365 = vrot.slane %v1363, 1
      %v1366 = vor.u32 %v1361, %v1365
      %v1368 = vshll.u32 %v1278, 16
      %v1370 = vrot.slane %v1368, 1
      %v1371 = vsel %vm774, %v1366, %v1370
      %v1373 = vshrl.u32 %v1199, 16
      %v1375 = vshll.u32 %v1199, 16
      %v1377 = vrot.slane %v1375, 1
      %v1378 = vor.u32 %v1373, %v1377
      %v1380 = vshll.u32 %v1279, 16
      %v1382 = vrot.slane %v1380, 1
      %v1383 = vsel %vm774, %v1378, %v1382
      %v1385 = vshrl.u32 %v1200, 16
      %v1387 = vshll.u32 %v1200, 16
      %v1389 = vrot.slane %v1387, 1
      %v1390 = vor.u32 %v1385, %v1389
      %v1392 = vshll.u32 %v1280, 16
      %v1394 = vrot.slane %v1392, 1
      %v1395 = vsel %vm774, %v1390, %v1394
      %v1397 = vshrl.u32 %v1201, 16
      %v1399 = vshll.u32 %v1201, 16
      %v1401 = vrot.slane %v1399, 1
      %v1402 = vor.u32 %v1397, %v1401
      %v1404 = vshll.u32 %v1281, 16
      %v1406 = vrot.slane %v1404, 1
      %v1407 = vsel %vm774, %v1402, %v1406
      %v1409 = vshrl.u32 %v1202, 16
      %v1411 = vshll.u32 %v1202, 16
      %v1413 = vrot.slane %v1411, 1
      %v1414 = vor.u32 %v1409, %v1413
      %v1416 = vshll.u32 %v1282, 16
      %v1418 = vrot.slane %v1416, 1
      %v1419 = vsel %vm774, %v1414, %v1418
      %v1421 = vshrl.u32 %v1203, 16
      %v1423 = vshll.u32 %v1203, 16
      %v1425 = vrot.slane %v1423, 1
      %v1426 = vor.u32 %v1421, %v1425
      %v1428 = vshll.u32 %v1283, 16
      %v1430 = vrot.slane %v1428, 1
      %v1431 = vsel %vm774, %v1426, %v1430
      %v1433 = vshrl.u32 %v1204, 16
      %v1435 = vshll.u32 %v1204, 16
      %v1437 = vrot.slane %v1435, 1
      %v1438 = vor.u32 %v1433, %v1437
      %v1440 = vshll.u32 %v1284, 16
      %v1442 = vrot.slane %v1440, 1
      %v1443 = vsel %vm774, %v1438, %v1442
      %v1445 = vshrl.u32 %v1205, 16
      %v1447 = vshll.u32 %v1205, 16
      %v1449 = vrot.slane %v1447, 1
      %v1450 = vor.u32 %v1445, %v1449
      %v1452 = vshll.u32 %v1285, 16
      %v1454 = vrot.slane %v1452, 1
      %v1455 = vsel %vm774, %v1450, %v1454
      %v1457 = vshrl.u32 %v1206, 16
      %v1459 = vshll.u32 %v1206, 16
      %v1461 = vrot.slane %v1459, 1
      %v1462 = vor.u32 %v1457, %v1461
      %v1464 = vshll.u32 %v1286, 16
      %v1466 = vrot.slane %v1464, 1
      %v1467 = vsel %vm774, %v1462, %v1466
      %v1469 = vshrl.u32 %v1207, 16
      %v1471 = vshll.u32 %v1207, 16
      %v1473 = vrot.slane %v1471, 1
      %v1474 = vor.u32 %v1469, %v1473
      %v1476 = vshll.u32 %v1287, 16
      %v1478 = vrot.slane %v1476, 1
      %v1479 = vsel %vm774, %v1474, %v1478
      %1480 = vrot.lane.b32.xlu0 %v1299, 16
      %v1481 = vpop.permute.xlu0 %1480
      %1482 = vrot.lane.b32.xlu0 %v1311, 16
      %v1483 = vpop.permute.xlu0 %1482
      %1484 = vrot.lane.b32.xlu0 %v1323, 16
      %v1485 = vpop.permute.xlu0 %1484
      %1486 = vrot.lane.b32.xlu0 %v1335, 16
      %v1487 = vpop.permute.xlu0 %1486
      %1488 = vrot.lane.b32.xlu0 %v1347, 16
      %v1489 = vpop.permute.xlu0 %1488
      %1490 = vrot.lane.b32.xlu0 %v1359, 16
      %v1491 = vpop.permute.xlu0 %1490
      %1492 = vrot.lane.b32.xlu0 %v1371, 16
      %v1493 = vpop.permute.xlu0 %1492
      %1494 = vrot.lane.b32.xlu0 %v1383, 16
      %v1495 = vpop.permute.xlu0 %1494
      %1496 = vrot.lane.b32.xlu0 %v1395, 16
      %v1497 = vpop.permute.xlu0 %1496
      %1498 = vrot.lane.b32.xlu0 %v1407, 16
      %v1499 = vpop.permute.xlu0 %1498
      %1500 = vrot.lane.b32.xlu0 %v1419, 16
      %v1501 = vpop.permute.xlu0 %1500
      %1502 = vrot.lane.b32.xlu0 %v1431, 16
      %v1503 = vpop.permute.xlu0 %1502
      %1504 = vrot.lane.b32.xlu0 %v1443, 16
      %v1505 = vpop.permute.xlu0 %1504
      %1506 = vrot.lane.b32.xlu0 %v1455, 16
      %v1507 = vpop.permute.xlu0 %1506
      %1508 = vrot.lane.b32.xlu0 %v1467, 16
      %v1509 = vpop.permute.xlu0 %1508
      %1510 = vrot.lane.b32.xlu0 %v1479, 16
      %v1511 = vpop.permute.xlu0 %1510
      %v1528 = vunpack.c.l.b16 %v364
      %v1529 = vunpack.c.l.b16 %v365
      %v1530 = vunpack.c.l.b16 %v366
      %v1531 = vunpack.c.l.b16 %v367
      %v1532 = vunpack.c.l.b16 %v368
      %v1533 = vunpack.c.l.b16 %v369
      %v1534 = vunpack.c.l.b16 %v370
      %v1535 = vunpack.c.l.b16 %v371
      %v1536 = vunpack.c.l.b16 %v372
      %v1537 = vunpack.c.l.b16 %v373
      %v1538 = vunpack.c.l.b16 %v374
      %v1539 = vunpack.c.l.b16 %v375
      %v1540 = vunpack.c.l.b16 %v376
      %v1541 = vunpack.c.l.b16 %v377
      %v1542 = vunpack.c.l.b16 %v378
      %v1543 = vunpack.c.l.b16 %v379
      %v1544 = vpack.c.b16 %v1161, %v1528
      %v1545 = vpack.c.b16 %v1163, %v1529
      %v1546 = vpack.c.b16 %v1165, %v1530
      %v1547 = vpack.c.b16 %v1167, %v1531
      %v1548 = vpack.c.b16 %v1169, %v1532
      %v1549 = vpack.c.b16 %v1171, %v1533
      %v1550 = vpack.c.b16 %v1173, %v1534
      %v1551 = vpack.c.b16 %v1175, %v1535
      %v1552 = vpack.c.b16 %v1177, %v1536
      %v1553 = vpack.c.b16 %v1179, %v1537
      %v1554 = vpack.c.b16 %v1181, %v1538
      %v1555 = vpack.c.b16 %v1183, %v1539
      %v1556 = vpack.c.b16 %v1185, %v1540
      %v1557 = vpack.c.b16 %v1187, %v1541
      %v1558 = vpack.c.b16 %v1189, %v1542
      %v1559 = vpack.c.b16 %v1191, %v1543
      %v1560 = vrot.slane %v1544, 1
      %v1561 = vrot.slane %v1272, 1
      %v1562 = vsel %vm1047, %v1560, %v1561
      %v1563 = vrot.slane %v1545, 1
      %v1564 = vrot.slane %v1273, 1
      %v1565 = vsel %vm1047, %v1563, %v1564
      %v1566 = vrot.slane %v1546, 1
      %v1567 = vrot.slane %v1274, 1
      %v1568 = vsel %vm1047, %v1566, %v1567
      %v1569 = vrot.slane %v1547, 1
      %v1570 = vrot.slane %v1275, 1
      %v1571 = vsel %vm1047, %v1569, %v1570
      %v1572 = vrot.slane %v1548, 1
      %v1573 = vrot.slane %v1276, 1
      %v1574 = vsel %vm1047, %v1572, %v1573
      %v1575 = vrot.slane %v1549, 1
      %v1576 = vrot.slane %v1277, 1
      %v1577 = vsel %vm1047, %v1575, %v1576
      %v1578 = vrot.slane %v1550, 1
      %v1579 = vrot.slane %v1278, 1
      %v1580 = vsel %vm1047, %v1578, %v1579
      %v1581 = vrot.slane %v1551, 1
      %v1582 = vrot.slane %v1279, 1
      %v1583 = vsel %vm1047, %v1581, %v1582
      %v1584 = vrot.slane %v1552, 1
      %v1585 = vrot.slane %v1280, 1
      %v1586 = vsel %vm1047, %v1584, %v1585
      %v1587 = vrot.slane %v1553, 1
      %v1588 = vrot.slane %v1281, 1
      %v1589 = vsel %vm1047, %v1587, %v1588
      %v1590 = vrot.slane %v1554, 1
      %v1591 = vrot.slane %v1282, 1
      %v1592 = vsel %vm1047, %v1590, %v1591
      %v1593 = vrot.slane %v1555, 1
      %v1594 = vrot.slane %v1283, 1
      %v1595 = vsel %vm1047, %v1593, %v1594
      %v1596 = vrot.slane %v1556, 1
      %v1597 = vrot.slane %v1284, 1
      %v1598 = vsel %vm1047, %v1596, %v1597
      %v1599 = vrot.slane %v1557, 1
      %v1600 = vrot.slane %v1285, 1
      %v1601 = vsel %vm1047, %v1599, %v1600
      %v1602 = vrot.slane %v1558, 1
      %v1603 = vrot.slane %v1286, 1
      %v1604 = vsel %vm1047, %v1602, %v1603
      %v1605 = vrot.slane %v1559, 1
      %v1606 = vrot.slane %v1287, 1
      %v1607 = vsel %vm1047, %v1605, %v1606
      %1608 = vrot.lane.b32.xlu0 %v1562, 20
      %v1609 = vpop.permute.xlu0 %1608
      %1610 = vrot.lane.b32.xlu0 %v1565, 20
      %v1611 = vpop.permute.xlu0 %1610
      %1612 = vrot.lane.b32.xlu0 %v1568, 20
      %v1613 = vpop.permute.xlu0 %1612
      %1614 = vrot.lane.b32.xlu0 %v1571, 20
      %v1615 = vpop.permute.xlu0 %1614
      %1616 = vrot.lane.b32.xlu0 %v1574, 20
      %v1617 = vpop.permute.xlu0 %1616
      %1618 = vrot.lane.b32.xlu0 %v1577, 20
      %v1619 = vpop.permute.xlu0 %1618
      %1620 = vrot.lane.b32.xlu0 %v1580, 20
      %v1621 = vpop.permute.xlu0 %1620
      %1622 = vrot.lane.b32.xlu0 %v1583, 20
      %v1623 = vpop.permute.xlu0 %1622
      %1624 = vrot.lane.b32.xlu0 %v1586, 20
      %v1625 = vpop.permute.xlu0 %1624
      %1626 = vrot.lane.b32.xlu0 %v1589, 20
      %v1627 = vpop.permute.xlu0 %1626
      %1628 = vrot.lane.b32.xlu0 %v1592, 20
      %v1629 = vpop.permute.xlu0 %1628
      %1630 = vrot.lane.b32.xlu0 %v1595, 20
      %v1631 = vpop.permute.xlu0 %1630
      %1632 = vrot.lane.b32.xlu0 %v1598, 20
      %v1633 = vpop.permute.xlu0 %1632
      %1634 = vrot.lane.b32.xlu0 %v1601, 20
      %v1635 = vpop.permute.xlu0 %1634
      %1636 = vrot.lane.b32.xlu0 %v1604, 20
      %v1637 = vpop.permute.xlu0 %1636
      %1638 = vrot.lane.b32.xlu0 %v1607, 20
      %v1639 = vpop.permute.xlu0 %1638
      %v1672 = vunpack.c.l.b16 %v384
      %v1673 = vunpack.c.l.b16 %v385
      %v1674 = vunpack.c.l.b16 %v386
      %v1675 = vunpack.c.l.b16 %v387
      %v1676 = vunpack.c.l.b16 %v388
      %v1677 = vunpack.c.l.b16 %v389
      %v1678 = vunpack.c.l.b16 %v390
      %v1679 = vunpack.c.l.b16 %v391
      %v1680 = vunpack.c.l.b16 %v392
      %v1681 = vunpack.c.l.b16 %v393
      %v1682 = vunpack.c.l.b16 %v394
      %v1683 = vunpack.c.l.b16 %v395
      %v1684 = vunpack.c.l.b16 %v396
      %v1685 = vunpack.c.l.b16 %v397
      %v1686 = vunpack.c.l.b16 %v398
      %v1687 = vunpack.c.l.b16 %v399
      %v1688 = vunpack.c.l.b16 %v400
      %v1689 = vunpack.c.l.b16 %v401
      %v1690 = vunpack.c.l.b16 %v402
      %v1691 = vunpack.c.l.b16 %v403
      %v1692 = vunpack.c.l.b16 %v404
      %v1693 = vunpack.c.l.b16 %v405
      %v1694 = vunpack.c.l.b16 %v406
      %v1695 = vunpack.c.l.b16 %v407
      %v1696 = vunpack.c.l.b16 %v408
      %v1697 = vunpack.c.l.b16 %v409
      %v1698 = vunpack.c.l.b16 %v410
      %v1699 = vunpack.c.l.b16 %v411
      %v1700 = vunpack.c.l.b16 %v412
      %v1701 = vunpack.c.l.b16 %v413
      %v1702 = vunpack.c.l.b16 %v414
      %v1703 = vunpack.c.l.b16 %v415
      %v1704 = vpack.c.b16 %v1673, %v1672
      %v1705 = vpack.c.b16 %v1675, %v1674
      %v1706 = vpack.c.b16 %v1677, %v1676
      %v1707 = vpack.c.b16 %v1679, %v1678
      %v1708 = vpack.c.b16 %v1681, %v1680
      %v1709 = vpack.c.b16 %v1683, %v1682
      %v1710 = vpack.c.b16 %v1685, %v1684
      %v1711 = vpack.c.b16 %v1687, %v1686
      %v1712 = vpack.c.b16 %v1689, %v1688
      %v1713 = vpack.c.b16 %v1691, %v1690
      %v1714 = vpack.c.b16 %v1693, %v1692
      %v1715 = vpack.c.b16 %v1695, %v1694
      %v1716 = vpack.c.b16 %v1697, %v1696
      %v1717 = vpack.c.b16 %v1699, %v1698
      %v1718 = vpack.c.b16 %v1701, %v1700
      %v1719 = vpack.c.b16 %v1703, %v1702
      %1720 = vrot.lane.b32.xlu0 %v1704, 24
      %v1721 = vpop.permute.xlu0 %1720
      %1722 = vrot.lane.b32.xlu0 %v1705, 24
      %v1723 = vpop.permute.xlu0 %1722
      %1724 = vrot.lane.b32.xlu0 %v1706, 24
      %v1725 = vpop.permute.xlu0 %1724
      %1726 = vrot.lane.b32.xlu0 %v1707, 24
      %v1727 = vpop.permute.xlu0 %1726
      %1728 = vrot.lane.b32.xlu0 %v1708, 24
      %v1729 = vpop.permute.xlu0 %1728
      %1730 = vrot.lane.b32.xlu0 %v1709, 24
      %v1731 = vpop.permute.xlu0 %1730
      %1732 = vrot.lane.b32.xlu0 %v1710, 24
      %v1733 = vpop.permute.xlu0 %1732
      %1734 = vrot.lane.b32.xlu0 %v1711, 24
      %v1735 = vpop.permute.xlu0 %1734
      %1736 = vrot.lane.b32.xlu0 %v1712, 24
      %v1737 = vpop.permute.xlu0 %1736
      %1738 = vrot.lane.b32.xlu0 %v1713, 24
      %v1739 = vpop.permute.xlu0 %1738
      %1740 = vrot.lane.b32.xlu0 %v1714, 24
      %v1741 = vpop.permute.xlu0 %1740
      %1742 = vrot.lane.b32.xlu0 %v1715, 24
      %v1743 = vpop.permute.xlu0 %1742
      %1744 = vrot.lane.b32.xlu0 %v1716, 24
      %v1745 = vpop.permute.xlu0 %1744
      %1746 = vrot.lane.b32.xlu0 %v1717, 24
      %v1747 = vpop.permute.xlu0 %1746
      %1748 = vrot.lane.b32.xlu0 %v1718, 24
      %v1749 = vpop.permute.xlu0 %1748
      %1750 = vrot.lane.b32.xlu0 %v1719, 24
      %v1751 = vpop.permute.xlu0 %1750
      %v1768 = vunpack.c.l.b16 %v416
      %v1769 = vunpack.c.l.b16 %v417
      %v1770 = vunpack.c.l.b16 %v418
      %v1771 = vunpack.c.l.b16 %v419
      %v1772 = vunpack.c.l.b16 %v420
      %v1773 = vunpack.c.l.b16 %v421
      %v1774 = vunpack.c.l.b16 %v422
      %v1775 = vunpack.c.l.b16 %v423
      %v1776 = vunpack.c.l.b16 %v424
      %v1777 = vunpack.c.l.b16 %v425
      %v1778 = vunpack.c.l.b16 %v426
      %v1779 = vunpack.c.l.b16 %v427
      %v1780 = vunpack.c.l.b16 %v428
      %v1781 = vunpack.c.l.b16 %v429
      %v1782 = vunpack.c.l.b16 %v430
      %v1783 = vunpack.c.l.b16 %v431
      %v1784 = vpack.c.b16 %v1768, %v1768
      %v1785 = vpack.c.b16 %v1769, %v1769
      %v1786 = vpack.c.b16 %v1770, %v1770
      %v1787 = vpack.c.b16 %v1771, %v1771
      %v1788 = vpack.c.b16 %v1772, %v1772
      %v1789 = vpack.c.b16 %v1773, %v1773
      %v1790 = vpack.c.b16 %v1774, %v1774
      %v1791 = vpack.c.b16 %v1775, %v1775
      %v1792 = vpack.c.b16 %v1776, %v1776
      %v1793 = vpack.c.b16 %v1777, %v1777
      %v1794 = vpack.c.b16 %v1778, %v1778
      %v1795 = vpack.c.b16 %v1779, %v1779
      %v1796 = vpack.c.b16 %v1780, %v1780
      %v1797 = vpack.c.b16 %v1781, %v1781
      %v1798 = vpack.c.b16 %v1782, %v1782
      %v1799 = vpack.c.b16 %v1783, %v1783
      %v1801 = vshrl.u32 %v1704, 16
      %v1803 = vshll.u32 %v1704, 16
      %v1805 = vrot.slane %v1803, 1
      %v1806 = vor.u32 %v1801, %v1805
      %v1808 = vshll.u32 %v1784, 16
      %v1810 = vrot.slane %v1808, 1
      %v1811 = vsel %vm774, %v1806, %v1810
      %v1813 = vshrl.u32 %v1705, 16
      %v1815 = vshll.u32 %v1705, 16
      %v1817 = vrot.slane %v1815, 1
      %v1818 = vor.u32 %v1813, %v1817
      %v1820 = vshll.u32 %v1785, 16
      %v1822 = vrot.slane %v1820, 1
      %v1823 = vsel %vm774, %v1818, %v1822
      %v1825 = vshrl.u32 %v1706, 16
      %v1827 = vshll.u32 %v1706, 16
      %v1829 = vrot.slane %v1827, 1
      %v1830 = vor.u32 %v1825, %v1829
      %v1832 = vshll.u32 %v1786, 16
      %v1834 = vrot.slane %v1832, 1
      %v1835 = vsel %vm774, %v1830, %v1834
      %v1837 = vshrl.u32 %v1707, 16
      %v1839 = vshll.u32 %v1707, 16
      %v1841 = vrot.slane %v1839, 1
      %v1842 = vor.u32 %v1837, %v1841
      %v1844 = vshll.u32 %v1787, 16
      %v1846 = vrot.slane %v1844, 1
      %v1847 = vsel %vm774, %v1842, %v1846
      %v1849 = vshrl.u32 %v1708, 16
      %v1851 = vshll.u32 %v1708, 16
      %v1853 = vrot.slane %v1851, 1
      %v1854 = vor.u32 %v1849, %v1853
      %v1856 = vshll.u32 %v1788, 16
      %v1858 = vrot.slane %v1856, 1
      %v1859 = vsel %vm774, %v1854, %v1858
      %v1861 = vshrl.u32 %v1709, 16
      %v1863 = vshll.u32 %v1709, 16
      %v1865 = vrot.slane %v1863, 1
      %v1866 = vor.u32 %v1861, %v1865
      %v1868 = vshll.u32 %v1789, 16
      %v1870 = vrot.slane %v1868, 1
      %v1871 = vsel %vm774, %v1866, %v1870
      %v1873 = vshrl.u32 %v1710, 16
      %v1875 = vshll.u32 %v1710, 16
      %v1877 = vrot.slane %v1875, 1
      %v1878 = vor.u32 %v1873, %v1877
      %v1880 = vshll.u32 %v1790, 16
      %v1882 = vrot.slane %v1880, 1
      %v1883 = vsel %vm774, %v1878, %v1882
      %v1885 = vshrl.u32 %v1711, 16
      %v1887 = vshll.u32 %v1711, 16
      %v1889 = vrot.slane %v1887, 1
      %v1890 = vor.u32 %v1885, %v1889
      %v1892 = vshll.u32 %v1791, 16
      %v1894 = vrot.slane %v1892, 1
      %v1895 = vsel %vm774, %v1890, %v1894
      %v1897 = vshrl.u32 %v1712, 16
      %v1899 = vshll.u32 %v1712, 16
      %v1901 = vrot.slane %v1899, 1
      %v1902 = vor.u32 %v1897, %v1901
      %v1904 = vshll.u32 %v1792, 16
      %v1906 = vrot.slane %v1904, 1
      %v1907 = vsel %vm774, %v1902, %v1906
      %v1909 = vshrl.u32 %v1713, 16
      %v1911 = vshll.u32 %v1713, 16
      %v1913 = vrot.slane %v1911, 1
      %v1914 = vor.u32 %v1909, %v1913
      %v1916 = vshll.u32 %v1793, 16
      %v1918 = vrot.slane %v1916, 1
      %v1919 = vsel %vm774, %v1914, %v1918
      %v1921 = vshrl.u32 %v1714, 16
      %v1923 = vshll.u32 %v1714, 16
      %v1925 = vrot.slane %v1923, 1
      %v1926 = vor.u32 %v1921, %v1925
      %v1928 = vshll.u32 %v1794, 16
      %v1930 = vrot.slane %v1928, 1
      %v1931 = vsel %vm774, %v1926, %v1930
      %v1933 = vshrl.u32 %v1715, 16
      %v1935 = vshll.u32 %v1715, 16
      %v1937 = vrot.slane %v1935, 1
      %v1938 = vor.u32 %v1933, %v1937
      %v1940 = vshll.u32 %v1795, 16
      %v1942 = vrot.slane %v1940, 1
      %v1943 = vsel %vm774, %v1938, %v1942
      %v1945 = vshrl.u32 %v1716, 16
      %v1947 = vshll.u32 %v1716, 16
      %v1949 = vrot.slane %v1947, 1
      %v1950 = vor.u32 %v1945, %v1949
      %v1952 = vshll.u32 %v1796, 16
      %v1954 = vrot.slane %v1952, 1
      %v1955 = vsel %vm774, %v1950, %v1954
      %v1957 = vshrl.u32 %v1717, 16
      %v1959 = vshll.u32 %v1717, 16
      %v1961 = vrot.slane %v1959, 1
      %v1962 = vor.u32 %v1957, %v1961
      %v1964 = vshll.u32 %v1797, 16
      %v1966 = vrot.slane %v1964, 1
      %v1967 = vsel %vm774, %v1962, %v1966
      %v1969 = vshrl.u32 %v1718, 16
      %v1971 = vshll.u32 %v1718, 16
      %v1973 = vrot.slane %v1971, 1
      %v1974 = vor.u32 %v1969, %v1973
      %v1976 = vshll.u32 %v1798, 16
      %v1978 = vrot.slane %v1976, 1
      %v1979 = vsel %vm774, %v1974, %v1978
      %v1981 = vshrl.u32 %v1719, 16
      %v1983 = vshll.u32 %v1719, 16
      %v1985 = vrot.slane %v1983, 1
      %v1986 = vor.u32 %v1981, %v1985
      %v1988 = vshll.u32 %v1799, 16
      %v1990 = vrot.slane %v1988, 1
      %v1991 = vsel %vm774, %v1986, %v1990
      %1992 = vrot.lane.b32.xlu0 %v1811, 28
      %v1993 = vpop.permute.xlu0 %1992
      %1994 = vrot.lane.b32.xlu0 %v1823, 28
      %v1995 = vpop.permute.xlu0 %1994
      %1996 = vrot.lane.b32.xlu0 %v1835, 28
      %v1997 = vpop.permute.xlu0 %1996
      %1998 = vrot.lane.b32.xlu0 %v1847, 28
      %v1999 = vpop.permute.xlu0 %1998
      %2000 = vrot.lane.b32.xlu0 %v1859, 28
      %v2001 = vpop.permute.xlu0 %2000
      %2002 = vrot.lane.b32.xlu0 %v1871, 28
      %v2003 = vpop.permute.xlu0 %2002
      %2004 = vrot.lane.b32.xlu0 %v1883, 28
      %v2005 = vpop.permute.xlu0 %2004
      %2006 = vrot.lane.b32.xlu0 %v1895, 28
      %v2007 = vpop.permute.xlu0 %2006
      %2008 = vrot.lane.b32.xlu0 %v1907, 28
      %v2009 = vpop.permute.xlu0 %2008
      %2010 = vrot.lane.b32.xlu0 %v1919, 28
      %v2011 = vpop.permute.xlu0 %2010
      %2012 = vrot.lane.b32.xlu0 %v1931, 28
      %v2013 = vpop.permute.xlu0 %2012
      %2014 = vrot.lane.b32.xlu0 %v1943, 28
      %v2015 = vpop.permute.xlu0 %2014
      %2016 = vrot.lane.b32.xlu0 %v1955, 28
      %v2017 = vpop.permute.xlu0 %2016
      %2018 = vrot.lane.b32.xlu0 %v1967, 28
      %v2019 = vpop.permute.xlu0 %2018
      %2020 = vrot.lane.b32.xlu0 %v1979, 28
      %v2021 = vpop.permute.xlu0 %2020
      %2022 = vrot.lane.b32.xlu0 %v1991, 28
      %v2023 = vpop.permute.xlu0 %2022
      %v2040 = vunpack.c.l.b16 %v432
      %v2041 = vunpack.c.l.b16 %v433
      %v2042 = vunpack.c.l.b16 %v434
      %v2043 = vunpack.c.l.b16 %v435
      %v2044 = vunpack.c.l.b16 %v436
      %v2045 = vunpack.c.l.b16 %v437
      %v2046 = vunpack.c.l.b16 %v438
      %v2047 = vunpack.c.l.b16 %v439
      %v2048 = vunpack.c.l.b16 %v440
      %v2049 = vunpack.c.l.b16 %v441
      %v2050 = vunpack.c.l.b16 %v442
      %v2051 = vunpack.c.l.b16 %v443
      %v2052 = vunpack.c.l.b16 %v444
      %v2053 = vunpack.c.l.b16 %v445
      %v2054 = vunpack.c.l.b16 %v446
      %v2055 = vunpack.c.l.b16 %v447
      %v2056 = vpack.c.b16 %v1673, %v2040
      %v2057 = vpack.c.b16 %v1675, %v2041
      %v2058 = vpack.c.b16 %v1677, %v2042
      %v2059 = vpack.c.b16 %v1679, %v2043
      %v2060 = vpack.c.b16 %v1681, %v2044
      %v2061 = vpack.c.b16 %v1683, %v2045
      %v2062 = vpack.c.b16 %v1685, %v2046
      %v2063 = vpack.c.b16 %v1687, %v2047
      %v2064 = vpack.c.b16 %v1689, %v2048
      %v2065 = vpack.c.b16 %v1691, %v2049
      %v2066 = vpack.c.b16 %v1693, %v2050
      %v2067 = vpack.c.b16 %v1695, %v2051
      %v2068 = vpack.c.b16 %v1697, %v2052
      %v2069 = vpack.c.b16 %v1699, %v2053
      %v2070 = vpack.c.b16 %v1701, %v2054
      %v2071 = vpack.c.b16 %v1703, %v2055
      %v2072 = vrot.slane %v2056, 1
      %v2073 = vrot.slane %v1784, 1
      %v2074 = vsel %vm1047, %v2072, %v2073
      %v2075 = vrot.slane %v2057, 1
      %v2076 = vrot.slane %v1785, 1
      %v2077 = vsel %vm1047, %v2075, %v2076
      %v2078 = vrot.slane %v2058, 1
      %v2079 = vrot.slane %v1786, 1
      %v2080 = vsel %vm1047, %v2078, %v2079
      %v2081 = vrot.slane %v2059, 1
      %v2082 = vrot.slane %v1787, 1
      %v2083 = vsel %vm1047, %v2081, %v2082
      %v2084 = vrot.slane %v2060, 1
      %v2085 = vrot.slane %v1788, 1
      %v2086 = vsel %vm1047, %v2084, %v2085
      %v2087 = vrot.slane %v2061, 1
      %v2088 = vrot.slane %v1789, 1
      %v2089 = vsel %vm1047, %v2087, %v2088
      %v2090 = vrot.slane %v2062, 1
      %v2091 = vrot.slane %v1790, 1
      %v2092 = vsel %vm1047, %v2090, %v2091
      %v2093 = vrot.slane %v2063, 1
      %v2094 = vrot.slane %v1791, 1
      %v2095 = vsel %vm1047, %v2093, %v2094
      %v2096 = vrot.slane %v2064, 1
      %v2097 = vrot.slane %v1792, 1
      %v2098 = vsel %vm1047, %v2096, %v2097
      %v2099 = vrot.slane %v2065, 1
      %v2100 = vrot.slane %v1793, 1
      %v2101 = vsel %vm1047, %v2099, %v2100
      %v2102 = vrot.slane %v2066, 1
      %v2103 = vrot.slane %v1794, 1
      %v2104 = vsel %vm1047, %v2102, %v2103
      %v2105 = vrot.slane %v2067, 1
      %v2106 = vrot.slane %v1795, 1
      %v2107 = vsel %vm1047, %v2105, %v2106
      %v2108 = vrot.slane %v2068, 1
      %v2109 = vrot.slane %v1796, 1
      %v2110 = vsel %vm1047, %v2108, %v2109
      %v2111 = vrot.slane %v2069, 1
      %v2112 = vrot.slane %v1797, 1
      %v2113 = vsel %vm1047, %v2111, %v2112
      %v2114 = vrot.slane %v2070, 1
      %v2115 = vrot.slane %v1798, 1
      %v2116 = vsel %vm1047, %v2114, %v2115
      %v2117 = vrot.slane %v2071, 1
      %v2118 = vrot.slane %v1799, 1
      %v2119 = vsel %vm1047, %v2117, %v2118
      %2120 = vrot.lane.b32.xlu0 %v2074, 32
      %v2121 = vpop.permute.xlu0 %2120
      %2122 = vrot.lane.b32.xlu0 %v2077, 32
      %v2123 = vpop.permute.xlu0 %2122
      %2124 = vrot.lane.b32.xlu0 %v2080, 32
      %v2125 = vpop.permute.xlu0 %2124
      %2126 = vrot.lane.b32.xlu0 %v2083, 32
      %v2127 = vpop.permute.xlu0 %2126
      %2128 = vrot.lane.b32.xlu0 %v2086, 32
      %v2129 = vpop.permute.xlu0 %2128
      %2130 = vrot.lane.b32.xlu0 %v2089, 32
      %v2131 = vpop.permute.xlu0 %2130
      %2132 = vrot.lane.b32.xlu0 %v2092, 32
      %v2133 = vpop.permute.xlu0 %2132
      %2134 = vrot.lane.b32.xlu0 %v2095, 32
      %v2135 = vpop.permute.xlu0 %2134
      %2136 = vrot.lane.b32.xlu0 %v2098, 32
      %v2137 = vpop.permute.xlu0 %2136
      %2138 = vrot.lane.b32.xlu0 %v2101, 32
      %v2139 = vpop.permute.xlu0 %2138
      %2140 = vrot.lane.b32.xlu0 %v2104, 32
      %v2141 = vpop.permute.xlu0 %2140
      %2142 = vrot.lane.b32.xlu0 %v2107, 32
      %v2143 = vpop.permute.xlu0 %2142
      %2144 = vrot.lane.b32.xlu0 %v2110, 32
      %v2145 = vpop.permute.xlu0 %2144
      %2146 = vrot.lane.b32.xlu0 %v2113, 32
      %v2147 = vpop.permute.xlu0 %2146
      %2148 = vrot.lane.b32.xlu0 %v2116, 32
      %v2149 = vpop.permute.xlu0 %2148
      %2150 = vrot.lane.b32.xlu0 %v2119, 32
      %v2151 = vpop.permute.xlu0 %2150
      %v2184 = vunpack.c.l.b16 %v450
      %v2185 = vunpack.c.l.b16 %v451
      %v2186 = vunpack.c.l.b16 %v452
      %v2187 = vunpack.c.l.b16 %v453
      %v2188 = vunpack.c.l.b16 %v454
      %v2189 = vunpack.c.l.b16 %v455
      %v2190 = vunpack.c.l.b16 %v456
      %v2191 = vunpack.c.l.b16 %v457
      %v2192 = vunpack.c.l.b16 %v458
      %v2193 = vunpack.c.l.b16 %v459
      %v2194 = vunpack.c.l.b16 %v460
      %v2195 = vunpack.c.l.b16 %v461
      %v2196 = vunpack.c.l.b16 %v462
      %v2197 = vunpack.c.l.b16 %v463
      %v2198 = vunpack.c.l.b16 %v464
      %v2199 = vunpack.c.l.b16 %v465
      %v2200 = vunpack.c.l.b16 %v466
      %v2201 = vunpack.c.l.b16 %v467
      %v2202 = vunpack.c.l.b16 %v468
      %v2203 = vunpack.c.l.b16 %v469
      %v2204 = vunpack.c.l.b16 %v470
      %v2205 = vunpack.c.l.b16 %v471
      %v2206 = vunpack.c.l.b16 %v472
      %v2207 = vunpack.c.l.b16 %v473
      %v2208 = vunpack.c.l.b16 %v474
      %v2209 = vunpack.c.l.b16 %v475
      %v2210 = vunpack.c.l.b16 %v476
      %v2211 = vunpack.c.l.b16 %v477
      %v2212 = vunpack.c.l.b16 %v478
      %v2213 = vunpack.c.l.b16 %v479
      %v2214 = vunpack.c.l.b16 %v480
      %v2215 = vunpack.c.l.b16 %v481
      %v2216 = vpack.c.b16 %v2185, %v2184
      %v2217 = vpack.c.b16 %v2187, %v2186
      %v2218 = vpack.c.b16 %v2189, %v2188
      %v2219 = vpack.c.b16 %v2191, %v2190
      %v2220 = vpack.c.b16 %v2193, %v2192
      %v2221 = vpack.c.b16 %v2195, %v2194
      %v2222 = vpack.c.b16 %v2197, %v2196
      %v2223 = vpack.c.b16 %v2199, %v2198
      %v2224 = vpack.c.b16 %v2201, %v2200
      %v2225 = vpack.c.b16 %v2203, %v2202
      %v2226 = vpack.c.b16 %v2205, %v2204
      %v2227 = vpack.c.b16 %v2207, %v2206
      %v2228 = vpack.c.b16 %v2209, %v2208
      %v2229 = vpack.c.b16 %v2211, %v2210
      %v2230 = vpack.c.b16 %v2213, %v2212
      %v2231 = vpack.c.b16 %v2215, %v2214
      %2232 = vrot.lane.b32.xlu0 %v2216, 36
      %v2233 = vpop.permute.xlu0 %2232
      %2234 = vrot.lane.b32.xlu0 %v2217, 36
      %v2235 = vpop.permute.xlu0 %2234
      %2236 = vrot.lane.b32.xlu0 %v2218, 36
      %v2237 = vpop.permute.xlu0 %2236
      %2238 = vrot.lane.b32.xlu0 %v2219, 36
      %v2239 = vpop.permute.xlu0 %2238
      %2240 = vrot.lane.b32.xlu0 %v2220, 36
      %v2241 = vpop.permute.xlu0 %2240
      %2242 = vrot.lane.b32.xlu0 %v2221, 36
      %v2243 = vpop.permute.xlu0 %2242
      %2244 = vrot.lane.b32.xlu0 %v2222, 36
      %v2245 = vpop.permute.xlu0 %2244
      %2246 = vrot.lane.b32.xlu0 %v2223, 36
      %v2247 = vpop.permute.xlu0 %2246
      %2248 = vrot.lane.b32.xlu0 %v2224, 36
      %v2249 = vpop.permute.xlu0 %2248
      %2250 = vrot.lane.b32.xlu0 %v2225, 36
      %v2251 = vpop.permute.xlu0 %2250
      %2252 = vrot.lane.b32.xlu0 %v2226, 36
      %v2253 = vpop.permute.xlu0 %2252
      %2254 = vrot.lane.b32.xlu0 %v2227, 36
      %v2255 = vpop.permute.xlu0 %2254
      %2256 = vrot.lane.b32.xlu0 %v2228, 36
      %v2257 = vpop.permute.xlu0 %2256
      %2258 = vrot.lane.b32.xlu0 %v2229, 36
      %v2259 = vpop.permute.xlu0 %2258
      %2260 = vrot.lane.b32.xlu0 %v2230, 36
      %v2261 = vpop.permute.xlu0 %2260
      %2262 = vrot.lane.b32.xlu0 %v2231, 36
      %v2263 = vpop.permute.xlu0 %2262
      %v2280 = vunpack.c.l.b16 %v482
      %v2281 = vunpack.c.l.b16 %v483
      %v2282 = vunpack.c.l.b16 %v484
      %v2283 = vunpack.c.l.b16 %v485
      %v2284 = vunpack.c.l.b16 %v486
      %v2285 = vunpack.c.l.b16 %v487
      %v2286 = vunpack.c.l.b16 %v488
      %v2287 = vunpack.c.l.b16 %v489
      %v2288 = vunpack.c.l.b16 %v490
      %v2289 = vunpack.c.l.b16 %v491
      %v2290 = vunpack.c.l.b16 %v492
      %v2291 = vunpack.c.l.b16 %v493
      %v2292 = vunpack.c.l.b16 %v494
      %v2293 = vunpack.c.l.b16 %v495
      %v2294 = vunpack.c.l.b16 %v496
      %v2295 = vunpack.c.l.b16 %v497
      %v2296 = vpack.c.b16 %v2280, %v2280
      %v2297 = vpack.c.b16 %v2281, %v2281
      %v2298 = vpack.c.b16 %v2282, %v2282
      %v2299 = vpack.c.b16 %v2283, %v2283
      %v2300 = vpack.c.b16 %v2284, %v2284
      %v2301 = vpack.c.b16 %v2285, %v2285
      %v2302 = vpack.c.b16 %v2286, %v2286
      %v2303 = vpack.c.b16 %v2287, %v2287
      %v2304 = vpack.c.b16 %v2288, %v2288
      %v2305 = vpack.c.b16 %v2289, %v2289
      %v2306 = vpack.c.b16 %v2290, %v2290
      %v2307 = vpack.c.b16 %v2291, %v2291
      %v2308 = vpack.c.b16 %v2292, %v2292
      %v2309 = vpack.c.b16 %v2293, %v2293
      %v2310 = vpack.c.b16 %v2294, %v2294
      %v2311 = vpack.c.b16 %v2295, %v2295
      %v2313 = vshrl.u32 %v2216, 16
      %v2315 = vshll.u32 %v2216, 16
      %v2317 = vrot.slane %v2315, 1
      %v2318 = vor.u32 %v2313, %v2317
      %v2320 = vshll.u32 %v2296, 16
      %v2322 = vrot.slane %v2320, 1
      %v2323 = vsel %vm774, %v2318, %v2322
      %v2325 = vshrl.u32 %v2217, 16
      %v2327 = vshll.u32 %v2217, 16
      %v2329 = vrot.slane %v2327, 1
      %v2330 = vor.u32 %v2325, %v2329
      %v2332 = vshll.u32 %v2297, 16
      %v2334 = vrot.slane %v2332, 1
      %v2335 = vsel %vm774, %v2330, %v2334
      %v2337 = vshrl.u32 %v2218, 16
      %v2339 = vshll.u32 %v2218, 16
      %v2341 = vrot.slane %v2339, 1
      %v2342 = vor.u32 %v2337, %v2341
      %v2344 = vshll.u32 %v2298, 16
      %v2346 = vrot.slane %v2344, 1
      %v2347 = vsel %vm774, %v2342, %v2346
      %v2349 = vshrl.u32 %v2219, 16
      %v2351 = vshll.u32 %v2219, 16
      %v2353 = vrot.slane %v2351, 1
      %v2354 = vor.u32 %v2349, %v2353
      %v2356 = vshll.u32 %v2299, 16
      %v2358 = vrot.slane %v2356, 1
      %v2359 = vsel %vm774, %v2354, %v2358
      %v2361 = vshrl.u32 %v2220, 16
      %v2363 = vshll.u32 %v2220, 16
      %v2365 = vrot.slane %v2363, 1
      %v2366 = vor.u32 %v2361, %v2365
      %v2368 = vshll.u32 %v2300, 16
      %v2370 = vrot.slane %v2368, 1
      %v2371 = vsel %vm774, %v2366, %v2370
      %v2373 = vshrl.u32 %v2221, 16
      %v2375 = vshll.u32 %v2221, 16
      %v2377 = vrot.slane %v2375, 1
      %v2378 = vor.u32 %v2373, %v2377
      %v2380 = vshll.u32 %v2301, 16
      %v2382 = vrot.slane %v2380, 1
      %v2383 = vsel %vm774, %v2378, %v2382
      %v2385 = vshrl.u32 %v2222, 16
      %v2387 = vshll.u32 %v2222, 16
      %v2389 = vrot.slane %v2387, 1
      %v2390 = vor.u32 %v2385, %v2389
      %v2392 = vshll.u32 %v2302, 16
      %v2394 = vrot.slane %v2392, 1
      %v2395 = vsel %vm774, %v2390, %v2394
      %v2397 = vshrl.u32 %v2223, 16
      %v2399 = vshll.u32 %v2223, 16
      %v2401 = vrot.slane %v2399, 1
      %v2402 = vor.u32 %v2397, %v2401
      %v2404 = vshll.u32 %v2303, 16
      %v2406 = vrot.slane %v2404, 1
      %v2407 = vsel %vm774, %v2402, %v2406
      %v2409 = vshrl.u32 %v2224, 16
      %v2411 = vshll.u32 %v2224, 16
      %v2413 = vrot.slane %v2411, 1
      %v2414 = vor.u32 %v2409, %v2413
      %v2416 = vshll.u32 %v2304, 16
      %v2418 = vrot.slane %v2416, 1
      %v2419 = vsel %vm774, %v2414, %v2418
      %v2421 = vshrl.u32 %v2225, 16
      %v2423 = vshll.u32 %v2225, 16
      %v2425 = vrot.slane %v2423, 1
      %v2426 = vor.u32 %v2421, %v2425
      %v2428 = vshll.u32 %v2305, 16
      %v2430 = vrot.slane %v2428, 1
      %v2431 = vsel %vm774, %v2426, %v2430
      %v2433 = vshrl.u32 %v2226, 16
      %v2435 = vshll.u32 %v2226, 16
      %v2437 = vrot.slane %v2435, 1
      %v2438 = vor.u32 %v2433, %v2437
      %v2440 = vshll.u32 %v2306, 16
      %v2442 = vrot.slane %v2440, 1
      %v2443 = vsel %vm774, %v2438, %v2442
      %v2445 = vshrl.u32 %v2227, 16
      %v2447 = vshll.u32 %v2227, 16
      %v2449 = vrot.slane %v2447, 1
      %v2450 = vor.u32 %v2445, %v2449
      %v2452 = vshll.u32 %v2307, 16
      %v2454 = vrot.slane %v2452, 1
      %v2455 = vsel %vm774, %v2450, %v2454
      %v2457 = vshrl.u32 %v2228, 16
      %v2459 = vshll.u32 %v2228, 16
      %v2461 = vrot.slane %v2459, 1
      %v2462 = vor.u32 %v2457, %v2461
      %v2464 = vshll.u32 %v2308, 16
      %v2466 = vrot.slane %v2464, 1
      %v2467 = vsel %vm774, %v2462, %v2466
      %v2469 = vshrl.u32 %v2229, 16
      %v2471 = vshll.u32 %v2229, 16
      %v2473 = vrot.slane %v2471, 1
      %v2474 = vor.u32 %v2469, %v2473
      %v2476 = vshll.u32 %v2309, 16
      %v2478 = vrot.slane %v2476, 1
      %v2479 = vsel %vm774, %v2474, %v2478
      %v2481 = vshrl.u32 %v2230, 16
      %v2483 = vshll.u32 %v2230, 16
      %v2485 = vrot.slane %v2483, 1
      %v2486 = vor.u32 %v2481, %v2485
      %v2488 = vshll.u32 %v2310, 16
      %v2490 = vrot.slane %v2488, 1
      %v2491 = vsel %vm774, %v2486, %v2490
      %v2493 = vshrl.u32 %v2231, 16
      %v2495 = vshll.u32 %v2231, 16
      %v2497 = vrot.slane %v2495, 1
      %v2498 = vor.u32 %v2493, %v2497
      %v2500 = vshll.u32 %v2311, 16
      %v2502 = vrot.slane %v2500, 1
      %v2503 = vsel %vm774, %v2498, %v2502
      %2504 = vrot.lane.b32.xlu0 %v2323, 44
      %v2505 = vpop.permute.xlu0 %2504
      %2506 = vrot.lane.b32.xlu0 %v2335, 44
      %v2507 = vpop.permute.xlu0 %2506
      %2508 = vrot.lane.b32.xlu0 %v2347, 44
      %v2509 = vpop.permute.xlu0 %2508
      %2510 = vrot.lane.b32.xlu0 %v2359, 44
      %v2511 = vpop.permute.xlu0 %2510
      %2512 = vrot.lane.b32.xlu0 %v2371, 44
      %v2513 = vpop.permute.xlu0 %2512
      %2514 = vrot.lane.b32.xlu0 %v2383, 44
      %v2515 = vpop.permute.xlu0 %2514
      %2516 = vrot.lane.b32.xlu0 %v2395, 44
      %v2517 = vpop.permute.xlu0 %2516
      %2518 = vrot.lane.b32.xlu0 %v2407, 44
      %v2519 = vpop.permute.xlu0 %2518
      %2520 = vrot.lane.b32.xlu0 %v2419, 44
      %v2521 = vpop.permute.xlu0 %2520
      %2522 = vrot.lane.b32.xlu0 %v2431, 44
      %v2523 = vpop.permute.xlu0 %2522
      %2524 = vrot.lane.b32.xlu0 %v2443, 44
      %v2525 = vpop.permute.xlu0 %2524
      %2526 = vrot.lane.b32.xlu0 %v2455, 44
      %v2527 = vpop.permute.xlu0 %2526
      %2528 = vrot.lane.b32.xlu0 %v2467, 44
      %v2529 = vpop.permute.xlu0 %2528
      %2530 = vrot.lane.b32.xlu0 %v2479, 44
      %v2531 = vpop.permute.xlu0 %2530
      %2532 = vrot.lane.b32.xlu0 %v2491, 44
      %v2533 = vpop.permute.xlu0 %2532
      %2534 = vrot.lane.b32.xlu0 %v2503, 44
      %v2535 = vpop.permute.xlu0 %2534
      %v2552 = vunpack.c.l.b16 %v498
      %v2553 = vunpack.c.l.b16 %v499
      %v2554 = vunpack.c.l.b16 %v500
      %v2555 = vunpack.c.l.b16 %v501
      %v2556 = vunpack.c.l.b16 %v502
      %v2557 = vunpack.c.l.b16 %v503
      %v2558 = vunpack.c.l.b16 %v504
      %v2559 = vunpack.c.l.b16 %v505
      %v2560 = vunpack.c.l.b16 %v506
      %v2561 = vunpack.c.l.b16 %v507
      %v2562 = vunpack.c.l.b16 %v508
      %v2563 = vunpack.c.l.b16 %v509
      %v2564 = vunpack.c.l.b16 %v510
      %v2565 = vunpack.c.l.b16 %v511
      %v2566 = vunpack.c.l.b16 %v512
      %v2567 = vunpack.c.l.b16 %v513
      %v2568 = vpack.c.b16 %v2185, %v2552
      %v2569 = vpack.c.b16 %v2187, %v2553
      %v2570 = vpack.c.b16 %v2189, %v2554
      %v2571 = vpack.c.b16 %v2191, %v2555
      %v2572 = vpack.c.b16 %v2193, %v2556
      %v2573 = vpack.c.b16 %v2195, %v2557
      %v2574 = vpack.c.b16 %v2197, %v2558
      %v2575 = vpack.c.b16 %v2199, %v2559
      %v2576 = vpack.c.b16 %v2201, %v2560
      %v2577 = vpack.c.b16 %v2203, %v2561
      %v2578 = vpack.c.b16 %v2205, %v2562
      %v2579 = vpack.c.b16 %v2207, %v2563
      %v2580 = vpack.c.b16 %v2209, %v2564
      %v2581 = vpack.c.b16 %v2211, %v2565
      %v2582 = vpack.c.b16 %v2213, %v2566
      %v2583 = vpack.c.b16 %v2215, %v2567
      %v2584 = vrot.slane %v2568, 1
      %v2585 = vrot.slane %v2296, 1
      %v2586 = vsel %vm1047, %v2584, %v2585
      %v2587 = vrot.slane %v2569, 1
      %v2588 = vrot.slane %v2297, 1
      %v2589 = vsel %vm1047, %v2587, %v2588
      %v2590 = vrot.slane %v2570, 1
      %v2591 = vrot.slane %v2298, 1
      %v2592 = vsel %vm1047, %v2590, %v2591
      %v2593 = vrot.slane %v2571, 1
      %v2594 = vrot.slane %v2299, 1
      %v2595 = vsel %vm1047, %v2593, %v2594
      %v2596 = vrot.slane %v2572, 1
      %v2597 = vrot.slane %v2300, 1
      %v2598 = vsel %vm1047, %v2596, %v2597
      %v2599 = vrot.slane %v2573, 1
      %v2600 = vrot.slane %v2301, 1
      %v2601 = vsel %vm1047, %v2599, %v2600
      %v2602 = vrot.slane %v2574, 1
      %v2603 = vrot.slane %v2302, 1
      %v2604 = vsel %vm1047, %v2602, %v2603
      %v2605 = vrot.slane %v2575, 1
      %v2606 = vrot.slane %v2303, 1
      %v2607 = vsel %vm1047, %v2605, %v2606
      %v2608 = vrot.slane %v2576, 1
      %v2609 = vrot.slane %v2304, 1
      %v2610 = vsel %vm1047, %v2608, %v2609
      %v2611 = vrot.slane %v2577, 1
      %v2612 = vrot.slane %v2305, 1
      %v2613 = vsel %vm1047, %v2611, %v2612
      %v2614 = vrot.slane %v2578, 1
      %v2615 = vrot.slane %v2306, 1
      %v2616 = vsel %vm1047, %v2614, %v2615
      %v2617 = vrot.slane %v2579, 1
      %v2618 = vrot.slane %v2307, 1
      %v2619 = vsel %vm1047, %v2617, %v2618
      %v2620 = vrot.slane %v2580, 1
      %v2621 = vrot.slane %v2308, 1
      %v2622 = vsel %vm1047, %v2620, %v2621
      %v2623 = vrot.slane %v2581, 1
      %v2624 = vrot.slane %v2309, 1
      %v2625 = vsel %vm1047, %v2623, %v2624
      %v2626 = vrot.slane %v2582, 1
      %v2627 = vrot.slane %v2310, 1
      %v2628 = vsel %vm1047, %v2626, %v2627
      %v2629 = vrot.slane %v2583, 1
      %v2630 = vrot.slane %v2311, 1
      %v2631 = vsel %vm1047, %v2629, %v2630
      %2632 = vrot.lane.b32.xlu0 %v2586, 52
      %v2633 = vpop.permute.xlu0 %2632
      %2634 = vrot.lane.b32.xlu0 %v2589, 52
      %v2635 = vpop.permute.xlu0 %2634
      %2636 = vrot.lane.b32.xlu0 %v2592, 52
      %v2637 = vpop.permute.xlu0 %2636
      %2638 = vrot.lane.b32.xlu0 %v2595, 52
      %v2639 = vpop.permute.xlu0 %2638
      %2640 = vrot.lane.b32.xlu0 %v2598, 52
      %v2641 = vpop.permute.xlu0 %2640
      %2642 = vrot.lane.b32.xlu0 %v2601, 52
      %v2643 = vpop.permute.xlu0 %2642
      %2644 = vrot.lane.b32.xlu0 %v2604, 52
      %v2645 = vpop.permute.xlu0 %2644
      %2646 = vrot.lane.b32.xlu0 %v2607, 52
      %v2647 = vpop.permute.xlu0 %2646
      %2648 = vrot.lane.b32.xlu0 %v2610, 52
      %v2649 = vpop.permute.xlu0 %2648
      %2650 = vrot.lane.b32.xlu0 %v2613, 52
      %v2651 = vpop.permute.xlu0 %2650
      %2652 = vrot.lane.b32.xlu0 %v2616, 52
      %v2653 = vpop.permute.xlu0 %2652
      %2654 = vrot.lane.b32.xlu0 %v2619, 52
      %v2655 = vpop.permute.xlu0 %2654
      %2656 = vrot.lane.b32.xlu0 %v2622, 52
      %v2657 = vpop.permute.xlu0 %2656
      %2658 = vrot.lane.b32.xlu0 %v2625, 52
      %v2659 = vpop.permute.xlu0 %2658
      %2660 = vrot.lane.b32.xlu0 %v2628, 52
      %v2661 = vpop.permute.xlu0 %2660
      %2662 = vrot.lane.b32.xlu0 %v2631, 52
      %v2663 = vpop.permute.xlu0 %2662
      %v2696 = vunpack.c.l.b16 %v516
      %v2697 = vunpack.c.l.b16 %v517
      %v2698 = vunpack.c.l.b16 %v518
      %v2699 = vunpack.c.l.b16 %v519
      %v2700 = vunpack.c.l.b16 %v520
      %v2701 = vunpack.c.l.b16 %v521
      %v2702 = vunpack.c.l.b16 %v522
      %v2703 = vunpack.c.l.b16 %v523
      %v2704 = vunpack.c.l.b16 %v524
      %v2705 = vunpack.c.l.b16 %v525
      %v2706 = vunpack.c.l.b16 %v526
      %v2707 = vunpack.c.l.b16 %v527
      %v2708 = vunpack.c.l.b16 %v528
      %v2709 = vunpack.c.l.b16 %v529
      %v2710 = vunpack.c.l.b16 %v530
      %v2711 = vunpack.c.l.b16 %v531
      %v2712 = vunpack.c.l.b16 %v532
      %v2713 = vunpack.c.l.b16 %v533
      %v2714 = vunpack.c.l.b16 %v534
      %v2715 = vunpack.c.l.b16 %v535
      %v2716 = vunpack.c.l.b16 %v536
      %v2717 = vunpack.c.l.b16 %v537
      %v2718 = vunpack.c.l.b16 %v538
      %v2719 = vunpack.c.l.b16 %v539
      %v2720 = vunpack.c.l.b16 %v540
      %v2721 = vunpack.c.l.b16 %v541
      %v2722 = vunpack.c.l.b16 %v542
      %v2723 = vunpack.c.l.b16 %v543
      %v2724 = vunpack.c.l.b16 %v544
      %v2725 = vunpack.c.l.b16 %v545
      %v2726 = vunpack.c.l.b16 %v546
      %v2727 = vunpack.c.l.b16 %v547
      %v2728 = vpack.c.b16 %v2697, %v2696
      %v2729 = vpack.c.b16 %v2699, %v2698
      %v2730 = vpack.c.b16 %v2701, %v2700
      %v2731 = vpack.c.b16 %v2703, %v2702
      %v2732 = vpack.c.b16 %v2705, %v2704
      %v2733 = vpack.c.b16 %v2707, %v2706
      %v2734 = vpack.c.b16 %v2709, %v2708
      %v2735 = vpack.c.b16 %v2711, %v2710
      %v2736 = vpack.c.b16 %v2713, %v2712
      %v2737 = vpack.c.b16 %v2715, %v2714
      %v2738 = vpack.c.b16 %v2717, %v2716
      %v2739 = vpack.c.b16 %v2719, %v2718
      %v2740 = vpack.c.b16 %v2721, %v2720
      %v2741 = vpack.c.b16 %v2723, %v2722
      %v2742 = vpack.c.b16 %v2725, %v2724
      %v2743 = vpack.c.b16 %v2727, %v2726
      %2744 = vrot.lane.b32.xlu0 %v2728, 60
      %v2745 = vpop.permute.xlu0 %2744
      %2746 = vrot.lane.b32.xlu0 %v2729, 60
      %v2747 = vpop.permute.xlu0 %2746
      %2748 = vrot.lane.b32.xlu0 %v2730, 60
      %v2749 = vpop.permute.xlu0 %2748
      %2750 = vrot.lane.b32.xlu0 %v2731, 60
      %v2751 = vpop.permute.xlu0 %2750
      %2752 = vrot.lane.b32.xlu0 %v2732, 60
      %v2753 = vpop.permute.xlu0 %2752
      %2754 = vrot.lane.b32.xlu0 %v2733, 60
      %v2755 = vpop.permute.xlu0 %2754
      %2756 = vrot.lane.b32.xlu0 %v2734, 60
      %v2757 = vpop.permute.xlu0 %2756
      %2758 = vrot.lane.b32.xlu0 %v2735, 60
      %v2759 = vpop.permute.xlu0 %2758
      %2760 = vrot.lane.b32.xlu0 %v2736, 60
      %v2761 = vpop.permute.xlu0 %2760
      %2762 = vrot.lane.b32.xlu0 %v2737, 60
      %v2763 = vpop.permute.xlu0 %2762
      %2764 = vrot.lane.b32.xlu0 %v2738, 60
      %v2765 = vpop.permute.xlu0 %2764
      %2766 = vrot.lane.b32.xlu0 %v2739, 60
      %v2767 = vpop.permute.xlu0 %2766
      %2768 = vrot.lane.b32.xlu0 %v2740, 60
      %v2769 = vpop.permute.xlu0 %2768
      %2770 = vrot.lane.b32.xlu0 %v2741, 60
      %v2771 = vpop.permute.xlu0 %2770
      %2772 = vrot.lane.b32.xlu0 %v2742, 60
      %v2773 = vpop.permute.xlu0 %2772
      %2774 = vrot.lane.b32.xlu0 %v2743, 60
      %v2775 = vpop.permute.xlu0 %2774
      %v2792 = vunpack.c.l.b16 %v548
      %v2793 = vunpack.c.l.b16 %v549
      %v2794 = vunpack.c.l.b16 %v550
      %v2795 = vunpack.c.l.b16 %v551
      %v2796 = vunpack.c.l.b16 %v552
      %v2797 = vunpack.c.l.b16 %v553
      %v2798 = vunpack.c.l.b16 %v554
      %v2799 = vunpack.c.l.b16 %v555
      %v2800 = vunpack.c.l.b16 %v556
      %v2801 = vunpack.c.l.b16 %v557
      %v2802 = vunpack.c.l.b16 %v558
      %v2803 = vunpack.c.l.b16 %v559
      %v2804 = vunpack.c.l.b16 %v560
      %v2805 = vunpack.c.l.b16 %v561
      %v2806 = vunpack.c.l.b16 %v562
      %v2807 = vunpack.c.l.b16 %v563
      %v2808 = vpack.c.b16 %v2792, %v2792
      %v2809 = vpack.c.b16 %v2793, %v2793
      %v2810 = vpack.c.b16 %v2794, %v2794
      %v2811 = vpack.c.b16 %v2795, %v2795
      %v2812 = vpack.c.b16 %v2796, %v2796
      %v2813 = vpack.c.b16 %v2797, %v2797
      %v2814 = vpack.c.b16 %v2798, %v2798
      %v2815 = vpack.c.b16 %v2799, %v2799
      %v2816 = vpack.c.b16 %v2800, %v2800
      %v2817 = vpack.c.b16 %v2801, %v2801
      %v2818 = vpack.c.b16 %v2802, %v2802
      %v2819 = vpack.c.b16 %v2803, %v2803
      %v2820 = vpack.c.b16 %v2804, %v2804
      %v2821 = vpack.c.b16 %v2805, %v2805
      %v2822 = vpack.c.b16 %v2806, %v2806
      %v2823 = vpack.c.b16 %v2807, %v2807
      %v2825 = vshrl.u32 %v2728, 16
      %v2827 = vshll.u32 %v2728, 16
      %v2829 = vrot.slane %v2827, 1
      %v2830 = vor.u32 %v2825, %v2829
      %v2832 = vshll.u32 %v2808, 16
      %v2834 = vrot.slane %v2832, 1
      %v2835 = vsel %vm774, %v2830, %v2834
      %v2837 = vshrl.u32 %v2729, 16
      %v2839 = vshll.u32 %v2729, 16
      %v2841 = vrot.slane %v2839, 1
      %v2842 = vor.u32 %v2837, %v2841
      %v2844 = vshll.u32 %v2809, 16
      %v2846 = vrot.slane %v2844, 1
      %v2847 = vsel %vm774, %v2842, %v2846
      %v2849 = vshrl.u32 %v2730, 16
      %v2851 = vshll.u32 %v2730, 16
      %v2853 = vrot.slane %v2851, 1
      %v2854 = vor.u32 %v2849, %v2853
      %v2856 = vshll.u32 %v2810, 16
      %v2858 = vrot.slane %v2856, 1
      %v2859 = vsel %vm774, %v2854, %v2858
      %v2861 = vshrl.u32 %v2731, 16
      %v2863 = vshll.u32 %v2731, 16
      %v2865 = vrot.slane %v2863, 1
      %v2866 = vor.u32 %v2861, %v2865
      %v2868 = vshll.u32 %v2811, 16
      %v2870 = vrot.slane %v2868, 1
      %v2871 = vsel %vm774, %v2866, %v2870
      %v2873 = vshrl.u32 %v2732, 16
      %v2875 = vshll.u32 %v2732, 16
      %v2877 = vrot.slane %v2875, 1
      %v2878 = vor.u32 %v2873, %v2877
      %v2880 = vshll.u32 %v2812, 16
      %v2882 = vrot.slane %v2880, 1
      %v2883 = vsel %vm774, %v2878, %v2882
      %v2885 = vshrl.u32 %v2733, 16
      %v2887 = vshll.u32 %v2733, 16
      %v2889 = vrot.slane %v2887, 1
      %v2890 = vor.u32 %v2885, %v2889
      %v2892 = vshll.u32 %v2813, 16
      %v2894 = vrot.slane %v2892, 1
      %v2895 = vsel %vm774, %v2890, %v2894
      %v2897 = vshrl.u32 %v2734, 16
      %v2899 = vshll.u32 %v2734, 16
      %v2901 = vrot.slane %v2899, 1
      %v2902 = vor.u32 %v2897, %v2901
      %v2904 = vshll.u32 %v2814, 16
      %v2906 = vrot.slane %v2904, 1
      %v2907 = vsel %vm774, %v2902, %v2906
      %v2909 = vshrl.u32 %v2735, 16
      %v2911 = vshll.u32 %v2735, 16
      %v2913 = vrot.slane %v2911, 1
      %v2914 = vor.u32 %v2909, %v2913
      %v2916 = vshll.u32 %v2815, 16
      %v2918 = vrot.slane %v2916, 1
      %v2919 = vsel %vm774, %v2914, %v2918
      %v2921 = vshrl.u32 %v2736, 16
      %v2923 = vshll.u32 %v2736, 16
      %v2925 = vrot.slane %v2923, 1
      %v2926 = vor.u32 %v2921, %v2925
      %v2928 = vshll.u32 %v2816, 16
      %v2930 = vrot.slane %v2928, 1
      %v2931 = vsel %vm774, %v2926, %v2930
      %v2933 = vshrl.u32 %v2737, 16
      %v2935 = vshll.u32 %v2737, 16
      %v2937 = vrot.slane %v2935, 1
      %v2938 = vor.u32 %v2933, %v2937
      %v2940 = vshll.u32 %v2817, 16
      %v2942 = vrot.slane %v2940, 1
      %v2943 = vsel %vm774, %v2938, %v2942
      %v2945 = vshrl.u32 %v2738, 16
      %v2947 = vshll.u32 %v2738, 16
      %v2949 = vrot.slane %v2947, 1
      %v2950 = vor.u32 %v2945, %v2949
      %v2952 = vshll.u32 %v2818, 16
      %v2954 = vrot.slane %v2952, 1
      %v2955 = vsel %vm774, %v2950, %v2954
      %v2957 = vshrl.u32 %v2739, 16
      %v2959 = vshll.u32 %v2739, 16
      %v2961 = vrot.slane %v2959, 1
      %v2962 = vor.u32 %v2957, %v2961
      %v2964 = vshll.u32 %v2819, 16
      %v2966 = vrot.slane %v2964, 1
      %v2967 = vsel %vm774, %v2962, %v2966
      %v2969 = vshrl.u32 %v2740, 16
      %v2971 = vshll.u32 %v2740, 16
      %v2973 = vrot.slane %v2971, 1
      %v2974 = vor.u32 %v2969, %v2973
      %v2976 = vshll.u32 %v2820, 16
      %v2978 = vrot.slane %v2976, 1
      %v2979 = vsel %vm774, %v2974, %v2978
      %v2981 = vshrl.u32 %v2741, 16
      %v2983 = vshll.u32 %v2741, 16
      %v2985 = vrot.slane %v2983, 1
      %v2986 = vor.u32 %v2981, %v2985
      %v2988 = vshll.u32 %v2821, 16
      %v2990 = vrot.slane %v2988, 1
      %v2991 = vsel %vm774, %v2986, %v2990
      %v2993 = vshrl.u32 %v2742, 16
      %v2995 = vshll.u32 %v2742, 16
      %v2997 = vrot.slane %v2995, 1
      %v2998 = vor.u32 %v2993, %v2997
      %v3000 = vshll.u32 %v2822, 16
      %v3002 = vrot.slane %v3000, 1
      %v3003 = vsel %vm774, %v2998, %v3002
      %v3005 = vshrl.u32 %v2743, 16
      %v3007 = vshll.u32 %v2743, 16
      %v3009 = vrot.slane %v3007, 1
      %v3010 = vor.u32 %v3005, %v3009
      %v3012 = vshll.u32 %v2823, 16
      %v3014 = vrot.slane %v3012, 1
      %v3015 = vsel %vm774, %v3010, %v3014
      %3016 = vrot.lane.b32.xlu0 %v2835, 68
      %v3017 = vpop.permute.xlu0 %3016
      %3018 = vrot.lane.b32.xlu0 %v2847, 68
      %v3019 = vpop.permute.xlu0 %3018
      %3020 = vrot.lane.b32.xlu0 %v2859, 68
      %v3021 = vpop.permute.xlu0 %3020
      %3022 = vrot.lane.b32.xlu0 %v2871, 68
      %v3023 = vpop.permute.xlu0 %3022
      %3024 = vrot.lane.b32.xlu0 %v2883, 68
      %v3025 = vpop.permute.xlu0 %3024
      %3026 = vrot.lane.b32.xlu0 %v2895, 68
      %v3027 = vpop.permute.xlu0 %3026
      %3028 = vrot.lane.b32.xlu0 %v2907, 68
      %v3029 = vpop.permute.xlu0 %3028
      %3030 = vrot.lane.b32.xlu0 %v2919, 68
      %v3031 = vpop.permute.xlu0 %3030
      %3032 = vrot.lane.b32.xlu0 %v2931, 68
      %v3033 = vpop.permute.xlu0 %3032
      %3034 = vrot.lane.b32.xlu0 %v2943, 68
      %v3035 = vpop.permute.xlu0 %3034
      %3036 = vrot.lane.b32.xlu0 %v2955, 68
      %v3037 = vpop.permute.xlu0 %3036
      %3038 = vrot.lane.b32.xlu0 %v2967, 68
      %v3039 = vpop.permute.xlu0 %3038
      %3040 = vrot.lane.b32.xlu0 %v2979, 68
      %v3041 = vpop.permute.xlu0 %3040
      %3042 = vrot.lane.b32.xlu0 %v2991, 68
      %v3043 = vpop.permute.xlu0 %3042
      %3044 = vrot.lane.b32.xlu0 %v3003, 68
      %v3045 = vpop.permute.xlu0 %3044
      %3046 = vrot.lane.b32.xlu0 %v3015, 68
      %v3047 = vpop.permute.xlu0 %3046
      %v3064 = vunpack.c.l.b16 %v564
      %v3065 = vunpack.c.l.b16 %v565
      %v3066 = vunpack.c.l.b16 %v566
      %v3067 = vunpack.c.l.b16 %v567
      %v3068 = vunpack.c.l.b16 %v568
      %v3069 = vunpack.c.l.b16 %v569
      %v3070 = vunpack.c.l.b16 %v570
      %v3071 = vunpack.c.l.b16 %v571
      %v3072 = vunpack.c.l.b16 %v572
      %v3073 = vunpack.c.l.b16 %v573
      %v3074 = vunpack.c.l.b16 %v574
      %v3075 = vunpack.c.l.b16 %v575
      %v3076 = vunpack.c.l.b16 %v576
      %v3077 = vunpack.c.l.b16 %v577
      %v3078 = vunpack.c.l.b16 %v578
      %v3079 = vunpack.c.l.b16 %v579
      %v3080 = vpack.c.b16 %v2697, %v3064
      %v3081 = vpack.c.b16 %v2699, %v3065
      %v3082 = vpack.c.b16 %v2701, %v3066
      %v3083 = vpack.c.b16 %v2703, %v3067
      %v3084 = vpack.c.b16 %v2705, %v3068
      %v3085 = vpack.c.b16 %v2707, %v3069
      %v3086 = vpack.c.b16 %v2709, %v3070
      %v3087 = vpack.c.b16 %v2711, %v3071
      %v3088 = vpack.c.b16 %v2713, %v3072
      %v3089 = vpack.c.b16 %v2715, %v3073
      %v3090 = vpack.c.b16 %v2717, %v3074
      %v3091 = vpack.c.b16 %v2719, %v3075
      %v3092 = vpack.c.b16 %v2721, %v3076
      %v3093 = vpack.c.b16 %v2723, %v3077
      %v3094 = vpack.c.b16 %v2725, %v3078
      %v3095 = vpack.c.b16 %v2727, %v3079
      %v3096 = vrot.slane %v3080, 1
      %v3097 = vrot.slane %v2808, 1
      %v3098 = vsel %vm1047, %v3096, %v3097
      %v3099 = vrot.slane %v3081, 1
      %v3100 = vrot.slane %v2809, 1
      %v3101 = vsel %vm1047, %v3099, %v3100
      %v3102 = vrot.slane %v3082, 1
      %v3103 = vrot.slane %v2810, 1
      %v3104 = vsel %vm1047, %v3102, %v3103
      %v3105 = vrot.slane %v3083, 1
      %v3106 = vrot.slane %v2811, 1
      %v3107 = vsel %vm1047, %v3105, %v3106
      %v3108 = vrot.slane %v3084, 1
      %v3109 = vrot.slane %v2812, 1
      %v3110 = vsel %vm1047, %v3108, %v3109
      %v3111 = vrot.slane %v3085, 1
      %v3112 = vrot.slane %v2813, 1
      %v3113 = vsel %vm1047, %v3111, %v3112
      %v3114 = vrot.slane %v3086, 1
      %v3115 = vrot.slane %v2814, 1
      %v3116 = vsel %vm1047, %v3114, %v3115
      %v3117 = vrot.slane %v3087, 1
      %v3118 = vrot.slane %v2815, 1
      %v3119 = vsel %vm1047, %v3117, %v3118
      %v3120 = vrot.slane %v3088, 1
      %v3121 = vrot.slane %v2816, 1
      %v3122 = vsel %vm1047, %v3120, %v3121
      %v3123 = vrot.slane %v3089, 1
      %v3124 = vrot.slane %v2817, 1
      %v3125 = vsel %vm1047, %v3123, %v3124
      %v3126 = vrot.slane %v3090, 1
      %v3127 = vrot.slane %v2818, 1
      %v3128 = vsel %vm1047, %v3126, %v3127
      %v3129 = vrot.slane %v3091, 1
      %v3130 = vrot.slane %v2819, 1
      %v3131 = vsel %vm1047, %v3129, %v3130
      %v3132 = vrot.slane %v3092, 1
      %v3133 = vrot.slane %v2820, 1
      %v3134 = vsel %vm1047, %v3132, %v3133
      %v3135 = vrot.slane %v3093, 1
      %v3136 = vrot.slane %v2821, 1
      %v3137 = vsel %vm1047, %v3135, %v3136
      %v3138 = vrot.slane %v3094, 1
      %v3139 = vrot.slane %v2822, 1
      %v3140 = vsel %vm1047, %v3138, %v3139
      %v3141 = vrot.slane %v3095, 1
      %v3142 = vrot.slane %v2823, 1
      %v3143 = vsel %vm1047, %v3141, %v3142
      %3144 = vrot.lane.b32.xlu0 %v3098, 76
      %v3145 = vpop.permute.xlu0 %3144
      %3146 = vrot.lane.b32.xlu0 %v3101, 76
      %v3147 = vpop.permute.xlu0 %3146
      %3148 = vrot.lane.b32.xlu0 %v3104, 76
      %v3149 = vpop.permute.xlu0 %3148
      %3150 = vrot.lane.b32.xlu0 %v3107, 76
      %v3151 = vpop.permute.xlu0 %3150
      %3152 = vrot.lane.b32.xlu0 %v3110, 76
      %v3153 = vpop.permute.xlu0 %3152
      %3154 = vrot.lane.b32.xlu0 %v3113, 76
      %v3155 = vpop.permute.xlu0 %3154
      %3156 = vrot.lane.b32.xlu0 %v3116, 76
      %v3157 = vpop.permute.xlu0 %3156
      %3158 = vrot.lane.b32.xlu0 %v3119, 76
      %v3159 = vpop.permute.xlu0 %3158
      %3160 = vrot.lane.b32.xlu0 %v3122, 76
      %v3161 = vpop.permute.xlu0 %3160
      %3162 = vrot.lane.b32.xlu0 %v3125, 76
      %v3163 = vpop.permute.xlu0 %3162
      %3164 = vrot.lane.b32.xlu0 %v3128, 76
      %v3165 = vpop.permute.xlu0 %3164
      %3166 = vrot.lane.b32.xlu0 %v3131, 76
      %v3167 = vpop.permute.xlu0 %3166
      %3168 = vrot.lane.b32.xlu0 %v3134, 76
      %v3169 = vpop.permute.xlu0 %3168
      %3170 = vrot.lane.b32.xlu0 %v3137, 76
      %v3171 = vpop.permute.xlu0 %3170
      %3172 = vrot.lane.b32.xlu0 %v3140, 76
      %v3173 = vpop.permute.xlu0 %3172
      %3174 = vrot.lane.b32.xlu0 %v3143, 76
      %v3175 = vpop.permute.xlu0 %3174
      %v3208 = vunpack.c.l.b16 %v582
      %v3209 = vunpack.c.l.b16 %v583
      %v3210 = vunpack.c.l.b16 %v584
      %v3211 = vunpack.c.l.b16 %v585
      %v3212 = vunpack.c.l.b16 %v586
      %v3213 = vunpack.c.l.b16 %v587
      %v3214 = vunpack.c.l.b16 %v588
      %v3215 = vunpack.c.l.b16 %v589
      %v3216 = vunpack.c.l.b16 %v590
      %v3217 = vunpack.c.l.b16 %v591
      %v3218 = vunpack.c.l.b16 %v592
      %v3219 = vunpack.c.l.b16 %v593
      %v3220 = vunpack.c.l.b16 %v594
      %v3221 = vunpack.c.l.b16 %v595
      %v3222 = vunpack.c.l.b16 %v596
      %v3223 = vunpack.c.l.b16 %v597
      %v3224 = vunpack.c.l.b16 %v598
      %v3225 = vunpack.c.l.b16 %v599
      %v3226 = vunpack.c.l.b16 %v600
      %v3227 = vunpack.c.l.b16 %v601
      %v3228 = vunpack.c.l.b16 %v602
      %v3229 = vunpack.c.l.b16 %v603
      %v3230 = vunpack.c.l.b16 %v604
      %v3231 = vunpack.c.l.b16 %v605
      %v3232 = vunpack.c.l.b16 %v606
      %v3233 = vunpack.c.l.b16 %v607
      %v3234 = vunpack.c.l.b16 %v608
      %v3235 = vunpack.c.l.b16 %v609
      %v3236 = vunpack.c.l.b16 %v610
      %v3237 = vunpack.c.l.b16 %v611
      %v3238 = vunpack.c.l.b16 %v612
      %v3239 = vunpack.c.l.b16 %v613
      %v3240 = vpack.c.b16 %v3209, %v3208
      %v3241 = vpack.c.b16 %v3211, %v3210
      %v3242 = vpack.c.b16 %v3213, %v3212
      %v3243 = vpack.c.b16 %v3215, %v3214
      %v3244 = vpack.c.b16 %v3217, %v3216
      %v3245 = vpack.c.b16 %v3219, %v3218
      %v3246 = vpack.c.b16 %v3221, %v3220
      %v3247 = vpack.c.b16 %v3223, %v3222
      %v3248 = vpack.c.b16 %v3225, %v3224
      %v3249 = vpack.c.b16 %v3227, %v3226
      %v3250 = vpack.c.b16 %v3229, %v3228
      %v3251 = vpack.c.b16 %v3231, %v3230
      %v3252 = vpack.c.b16 %v3233, %v3232
      %v3253 = vpack.c.b16 %v3235, %v3234
      %v3254 = vpack.c.b16 %v3237, %v3236
      %v3255 = vpack.c.b16 %v3239, %v3238
      %3256 = vrot.lane.b32.xlu0 %v3240, 84
      %v3257 = vpop.permute.xlu0 %3256
      %3258 = vrot.lane.b32.xlu0 %v3241, 84
      %v3259 = vpop.permute.xlu0 %3258
      %3260 = vrot.lane.b32.xlu0 %v3242, 84
      %v3261 = vpop.permute.xlu0 %3260
      %3262 = vrot.lane.b32.xlu0 %v3243, 84
      %v3263 = vpop.permute.xlu0 %3262
      %3264 = vrot.lane.b32.xlu0 %v3244, 84
      %v3265 = vpop.permute.xlu0 %3264
      %3266 = vrot.lane.b32.xlu0 %v3245, 84
      %v3267 = vpop.permute.xlu0 %3266
      %3268 = vrot.lane.b32.xlu0 %v3246, 84
      %v3269 = vpop.permute.xlu0 %3268
      %3270 = vrot.lane.b32.xlu0 %v3247, 84
      %v3271 = vpop.permute.xlu0 %3270
      %3272 = vrot.lane.b32.xlu0 %v3248, 84
      %v3273 = vpop.permute.xlu0 %3272
      %3274 = vrot.lane.b32.xlu0 %v3249, 84
      %v3275 = vpop.permute.xlu0 %3274
      %3276 = vrot.lane.b32.xlu0 %v3250, 84
      %v3277 = vpop.permute.xlu0 %3276
      %3278 = vrot.lane.b32.xlu0 %v3251, 84
      %v3279 = vpop.permute.xlu0 %3278
      %3280 = vrot.lane.b32.xlu0 %v3252, 84
      %v3281 = vpop.permute.xlu0 %3280
      %3282 = vrot.lane.b32.xlu0 %v3253, 84
      %v3283 = vpop.permute.xlu0 %3282
      %3284 = vrot.lane.b32.xlu0 %v3254, 84
      %v3285 = vpop.permute.xlu0 %3284
      %3286 = vrot.lane.b32.xlu0 %v3255, 84
      %v3287 = vpop.permute.xlu0 %3286
      %vm3288 = vcmask 31744
      %v3290 = vsel %vm3288, %v710, %v968
      %v3292 = vsel %vm3288, %v711, %v970
      %v3294 = vsel %vm3288, %v712, %v972
      %v3296 = vsel %vm3288, %v713, %v974
      %v3298 = vsel %vm3288, %v714, %v976
      %v3300 = vsel %vm3288, %v715, %v978
      %v3302 = vsel %vm3288, %v716, %v980
      %v3304 = vsel %vm3288, %v717, %v982
      %v3306 = vsel %vm3288, %v718, %v984
      %v3308 = vsel %vm3288, %v719, %v986
      %v3310 = vsel %vm3288, %v720, %v988
      %v3312 = vsel %vm3288, %v721, %v990
      %v3314 = vsel %vm3288, %v722, %v992
      %v3316 = vsel %vm3288, %v723, %v994
      %v3318 = vsel %vm3288, %v724, %v996
      %v3320 = vsel %vm3288, %v725, %v998
      %vm3321 = vcmask 64512
      %v3323 = vsel %vm3321, %v3290, %v1097
      %v3325 = vsel %vm3321, %v3292, %v1099
      %v3327 = vsel %vm3321, %v3294, %v1101
      %v3329 = vsel %vm3321, %v3296, %v1103
      %v3331 = vsel %vm3321, %v3298, %v1105
      %v3333 = vsel %vm3321, %v3300, %v1107
      %v3335 = vsel %vm3321, %v3302, %v1109
      %v3337 = vsel %vm3321, %v3304, %v1111
      %v3339 = vsel %vm3321, %v3306, %v1113
      %v3341 = vsel %vm3321, %v3308, %v1115
      %v3343 = vsel %vm3321, %v3310, %v1117
      %v3345 = vsel %vm3321, %v3312, %v1119
      %v3347 = vsel %vm3321, %v3314, %v1121
      %v3349 = vsel %vm3321, %v3316, %v1123
      %v3351 = vsel %vm3321, %v3318, %v1125
      %v3353 = vsel %vm3321, %v3320, %v1127
      %vm3354 = vcmask 97280
      %v3356 = vsel %vm3354, %v3323, %v1209
      %v3358 = vsel %vm3354, %v3325, %v1211
      %v3360 = vsel %vm3354, %v3327, %v1213
      %v3362 = vsel %vm3354, %v3329, %v1215
      %v3364 = vsel %vm3354, %v3331, %v1217
      %v3366 = vsel %vm3354, %v3333, %v1219
      %v3368 = vsel %vm3354, %v3335, %v1221
      %v3370 = vsel %vm3354, %v3337, %v1223
      %v3372 = vsel %vm3354, %v3339, %v1225
      %v3374 = vsel %vm3354, %v3341, %v1227
      %v3376 = vsel %vm3354, %v3343, %v1229
      %v3378 = vsel %vm3354, %v3345, %v1231
      %v3380 = vsel %vm3354, %v3347, %v1233
      %v3382 = vsel %vm3354, %v3349, %v1235
      %v3384 = vsel %vm3354, %v3351, %v1237
      %v3386 = vsel %vm3354, %v3353, %v1239
      %vm3387 = vcmask 130048
      %v3389 = vsel %vm3387, %v3356, %v1481
      %v3391 = vsel %vm3387, %v3358, %v1483
      %v3393 = vsel %vm3387, %v3360, %v1485
      %v3395 = vsel %vm3387, %v3362, %v1487
      %v3397 = vsel %vm3387, %v3364, %v1489
      %v3399 = vsel %vm3387, %v3366, %v1491
      %v3401 = vsel %vm3387, %v3368, %v1493
      %v3403 = vsel %vm3387, %v3370, %v1495
      %v3405 = vsel %vm3387, %v3372, %v1497
      %v3407 = vsel %vm3387, %v3374, %v1499
      %v3409 = vsel %vm3387, %v3376, %v1501
      %v3411 = vsel %vm3387, %v3378, %v1503
      %v3413 = vsel %vm3387, %v3380, %v1505
      %v3415 = vsel %vm3387, %v3382, %v1507
      %v3417 = vsel %vm3387, %v3384, %v1509
      %v3419 = vsel %vm3387, %v3386, %v1511
      %vm3420 = vcmask 162816
      %v3422 = vsel %vm3420, %v3389, %v1609
      %v3424 = vsel %vm3420, %v3391, %v1611
      %v3426 = vsel %vm3420, %v3393, %v1613
      %v3428 = vsel %vm3420, %v3395, %v1615
      %v3430 = vsel %vm3420, %v3397, %v1617
      %v3432 = vsel %vm3420, %v3399, %v1619
      %v3434 = vsel %vm3420, %v3401, %v1621
      %v3436 = vsel %vm3420, %v3403, %v1623
      %v3438 = vsel %vm3420, %v3405, %v1625
      %v3440 = vsel %vm3420, %v3407, %v1627
      %v3442 = vsel %vm3420, %v3409, %v1629
      %v3444 = vsel %vm3420, %v3411, %v1631
      %v3446 = vsel %vm3420, %v3413, %v1633
      %v3448 = vsel %vm3420, %v3415, %v1635
      %v3450 = vsel %vm3420, %v3417, %v1637
      %v3452 = vsel %vm3420, %v3419, %v1639
      %vm3453 = vcmask 195584
      %v3455 = vsel %vm3453, %v3422, %v1721
      %v3457 = vsel %vm3453, %v3424, %v1723
      %v3459 = vsel %vm3453, %v3426, %v1725
      %v3461 = vsel %vm3453, %v3428, %v1727
      %v3463 = vsel %vm3453, %v3430, %v1729
      %v3465 = vsel %vm3453, %v3432, %v1731
      %v3467 = vsel %vm3453, %v3434, %v1733
      %v3469 = vsel %vm3453, %v3436, %v1735
      %v3471 = vsel %vm3453, %v3438, %v1737
      %v3473 = vsel %vm3453, %v3440, %v1739
      %v3475 = vsel %vm3453, %v3442, %v1741
      %v3477 = vsel %vm3453, %v3444, %v1743
      %v3479 = vsel %vm3453, %v3446, %v1745
      %v3481 = vsel %vm3453, %v3448, %v1747
      %v3483 = vsel %vm3453, %v3450, %v1749
      %v3485 = vsel %vm3453, %v3452, %v1751
      %vm3486 = vcmask 228352
      %v3488 = vsel %vm3486, %v3455, %v1993
      %v3490 = vsel %vm3486, %v3457, %v1995
      %v3492 = vsel %vm3486, %v3459, %v1997
      %v3494 = vsel %vm3486, %v3461, %v1999
      %v3496 = vsel %vm3486, %v3463, %v2001
      %v3498 = vsel %vm3486, %v3465, %v2003
      %v3500 = vsel %vm3486, %v3467, %v2005
      %v3502 = vsel %vm3486, %v3469, %v2007
      %v3504 = vsel %vm3486, %v3471, %v2009
      %v3506 = vsel %vm3486, %v3473, %v2011
      %v3508 = vsel %vm3486, %v3475, %v2013
      %v3510 = vsel %vm3486, %v3477, %v2015
      %v3512 = vsel %vm3486, %v3479, %v2017
      %v3514 = vsel %vm3486, %v3481, %v2019
      %v3516 = vsel %vm3486, %v3483, %v2021
      %v3518 = vsel %vm3486, %v3485, %v2023
      %vm3519 = vcmask 261120
      %v3521 = vsel %vm3519, %v3488, %v2121
      %v3523 = vsel %vm3519, %v3490, %v2123
      %v3525 = vsel %vm3519, %v3492, %v2125
      %v3527 = vsel %vm3519, %v3494, %v2127
      %v3529 = vsel %vm3519, %v3496, %v2129
      %v3531 = vsel %vm3519, %v3498, %v2131
      %v3533 = vsel %vm3519, %v3500, %v2133
      %v3535 = vsel %vm3519, %v3502, %v2135
      %v3537 = vsel %vm3519, %v3504, %v2137
      %v3539 = vsel %vm3519, %v3506, %v2139
      %v3541 = vsel %vm3519, %v3508, %v2141
      %v3543 = vsel %vm3519, %v3510, %v2143
      %v3545 = vsel %vm3519, %v3512, %v2145
      %v3547 = vsel %vm3519, %v3514, %v2147
      %v3549 = vsel %vm3519, %v3516, %v2149
      %v3551 = vsel %vm3519, %v3518, %v2151
      %vm3552 = vcmask 293888
      %v3554 = vsel %vm3552, %v3521, %v2233
      %v3556 = vsel %vm3552, %v3523, %v2235
      %v3558 = vsel %vm3552, %v3525, %v2237
      %v3560 = vsel %vm3552, %v3527, %v2239
      %v3562 = vsel %vm3552, %v3529, %v2241
      %v3564 = vsel %vm3552, %v3531, %v2243
      %v3566 = vsel %vm3552, %v3533, %v2245
      %v3568 = vsel %vm3552, %v3535, %v2247
      %v3570 = vsel %vm3552, %v3537, %v2249
      %v3572 = vsel %vm3552, %v3539, %v2251
      %v3574 = vsel %vm3552, %v3541, %v2253
      %v3576 = vsel %vm3552, %v3543, %v2255
      %v3578 = vsel %vm3552, %v3545, %v2257
      %v3580 = vsel %vm3552, %v3547, %v2259
      %v3582 = vsel %vm3552, %v3549, %v2261
      %v3584 = vsel %vm3552, %v3551, %v2263
      %vm3585 = vcmask 359424
      %v3587 = vsel %vm3585, %v3554, %v2505
      %v3589 = vsel %vm3585, %v3556, %v2507
      %v3591 = vsel %vm3585, %v3558, %v2509
      %v3593 = vsel %vm3585, %v3560, %v2511
      %v3595 = vsel %vm3585, %v3562, %v2513
      %v3597 = vsel %vm3585, %v3564, %v2515
      %v3599 = vsel %vm3585, %v3566, %v2517
      %v3601 = vsel %vm3585, %v3568, %v2519
      %v3603 = vsel %vm3585, %v3570, %v2521
      %v3605 = vsel %vm3585, %v3572, %v2523
      %v3607 = vsel %vm3585, %v3574, %v2525
      %v3609 = vsel %vm3585, %v3576, %v2527
      %v3611 = vsel %vm3585, %v3578, %v2529
      %v3613 = vsel %vm3585, %v3580, %v2531
      %v3615 = vsel %vm3585, %v3582, %v2533
      %v3617 = vsel %vm3585, %v3584, %v2535
      %vm3618 = vcmask 424960
      %v3620 = vsel %vm3618, %v3587, %v2633
      %v3622 = vsel %vm3618, %v3589, %v2635
      %v3624 = vsel %vm3618, %v3591, %v2637
      %v3626 = vsel %vm3618, %v3593, %v2639
      %v3628 = vsel %vm3618, %v3595, %v2641
      %v3630 = vsel %vm3618, %v3597, %v2643
      %v3632 = vsel %vm3618, %v3599, %v2645
      %v3634 = vsel %vm3618, %v3601, %v2647
      %v3636 = vsel %vm3618, %v3603, %v2649
      %v3638 = vsel %vm3618, %v3605, %v2651
      %v3640 = vsel %vm3618, %v3607, %v2653
      %v3642 = vsel %vm3618, %v3609, %v2655
      %v3644 = vsel %vm3618, %v3611, %v2657
      %v3646 = vsel %vm3618, %v3613, %v2659
      %v3648 = vsel %vm3618, %v3615, %v2661
      %v3650 = vsel %vm3618, %v3617, %v2663
      %vm3651 = vcmask 490496
      %v3653 = vsel %vm3651, %v3620, %v2745
      %v3655 = vsel %vm3651, %v3622, %v2747
      %v3657 = vsel %vm3651, %v3624, %v2749
      %v3659 = vsel %vm3651, %v3626, %v2751
      %v3661 = vsel %vm3651, %v3628, %v2753
      %v3663 = vsel %vm3651, %v3630, %v2755
      %v3665 = vsel %vm3651, %v3632, %v2757
      %v3667 = vsel %vm3651, %v3634, %v2759
      %v3669 = vsel %vm3651, %v3636, %v2761
      %v3671 = vsel %vm3651, %v3638, %v2763
      %v3673 = vsel %vm3651, %v3640, %v2765
      %v3675 = vsel %vm3651, %v3642, %v2767
      %v3677 = vsel %vm3651, %v3644, %v2769
      %v3679 = vsel %vm3651, %v3646, %v2771
      %v3681 = vsel %vm3651, %v3648, %v2773
      %v3683 = vsel %vm3651, %v3650, %v2775
      %vm3684 = vcmask 556032
      %v3686 = vsel %vm3684, %v3653, %v3017
      %v3688 = vsel %vm3684, %v3655, %v3019
      %v3690 = vsel %vm3684, %v3657, %v3021
      %v3692 = vsel %vm3684, %v3659, %v3023
      %v3694 = vsel %vm3684, %v3661, %v3025
      %v3696 = vsel %vm3684, %v3663, %v3027
      %v3698 = vsel %vm3684, %v3665, %v3029
      %v3700 = vsel %vm3684, %v3667, %v3031
      %v3702 = vsel %vm3684, %v3669, %v3033
      %v3704 = vsel %vm3684, %v3671, %v3035
      %v3706 = vsel %vm3684, %v3673, %v3037
      %v3708 = vsel %vm3684, %v3675, %v3039
      %v3710 = vsel %vm3684, %v3677, %v3041
      %v3712 = vsel %vm3684, %v3679, %v3043
      %v3714 = vsel %vm3684, %v3681, %v3045
      %v3716 = vsel %vm3684, %v3683, %v3047
      %vm3717 = vcmask 621568
      %v3719 = vsel %vm3717, %v3686, %v3145
      %v3721 = vsel %vm3717, %v3688, %v3147
      %v3723 = vsel %vm3717, %v3690, %v3149
      %v3725 = vsel %vm3717, %v3692, %v3151
      %v3727 = vsel %vm3717, %v3694, %v3153
      %v3729 = vsel %vm3717, %v3696, %v3155
      %v3731 = vsel %vm3717, %v3698, %v3157
      %v3733 = vsel %vm3717, %v3700, %v3159
      %v3735 = vsel %vm3717, %v3702, %v3161
      %v3737 = vsel %vm3717, %v3704, %v3163
      %v3739 = vsel %vm3717, %v3706, %v3165
      %v3741 = vsel %vm3717, %v3708, %v3167
      %v3743 = vsel %vm3717, %v3710, %v3169
      %v3745 = vsel %vm3717, %v3712, %v3171
      %v3747 = vsel %vm3717, %v3714, %v3173
      %v3749 = vsel %vm3717, %v3716, %v3175
      %vm3750 = vcmask 687104
      %v3752 = vsel %vm3750, %v3719, %v3257
      %v3754 = vsel %vm3750, %v3721, %v3259
      %v3756 = vsel %vm3750, %v3723, %v3261
      %v3758 = vsel %vm3750, %v3725, %v3263
      %v3760 = vsel %vm3750, %v3727, %v3265
      %v3762 = vsel %vm3750, %v3729, %v3267
      %v3764 = vsel %vm3750, %v3731, %v3269
      %v3766 = vsel %vm3750, %v3733, %v3271
      %v3768 = vsel %vm3750, %v3735, %v3273
      %v3770 = vsel %vm3750, %v3737, %v3275
      %v3772 = vsel %vm3750, %v3739, %v3277
      %v3774 = vsel %vm3750, %v3741, %v3279
      %v3776 = vsel %vm3750, %v3743, %v3281
      %v3778 = vsel %vm3750, %v3745, %v3283
      %v3780 = vsel %vm3750, %v3747, %v3285
      %v3782 = vsel %vm3750, %v3749, %v3287
      %v3799 = vunpack.c.l.b16 %v614
      %v3800 = vunpack.c.l.b16 %v615
      %v3801 = vunpack.c.l.b16 %v616
      %v3802 = vunpack.c.l.b16 %v617
      %v3803 = vunpack.c.l.b16 %v618
      %v3804 = vunpack.c.l.b16 %v619
      %v3805 = vunpack.c.l.b16 %v620
      %v3806 = vunpack.c.l.b16 %v621
      %v3807 = vunpack.c.l.b16 %v622
      %v3808 = vunpack.c.l.b16 %v623
      %v3809 = vunpack.c.l.b16 %v624
      %v3810 = vunpack.c.l.b16 %v625
      %v3811 = vunpack.c.l.b16 %v626
      %v3812 = vunpack.c.l.b16 %v627
      %v3813 = vunpack.c.l.b16 %v628
      %v3814 = vunpack.c.l.b16 %v629
      %v3815 = vpack.c.b16 %v3799, %v3799
      %v3816 = vpack.c.b16 %v3800, %v3800
      %v3817 = vpack.c.b16 %v3801, %v3801
      %v3818 = vpack.c.b16 %v3802, %v3802
      %v3819 = vpack.c.b16 %v3803, %v3803
      %v3820 = vpack.c.b16 %v3804, %v3804
      %v3821 = vpack.c.b16 %v3805, %v3805
      %v3822 = vpack.c.b16 %v3806, %v3806
      %v3823 = vpack.c.b16 %v3807, %v3807
      %v3824 = vpack.c.b16 %v3808, %v3808
      %v3825 = vpack.c.b16 %v3809, %v3809
      %v3826 = vpack.c.b16 %v3810, %v3810
      %v3827 = vpack.c.b16 %v3811, %v3811
      %v3828 = vpack.c.b16 %v3812, %v3812
      %v3829 = vpack.c.b16 %v3813, %v3813
      %v3830 = vpack.c.b16 %v3814, %v3814
      %v3847 = vunpack.c.l.b16 %v630
      %v3848 = vunpack.c.l.b16 %v631
      %v3849 = vunpack.c.l.b16 %v632
      %v3850 = vunpack.c.l.b16 %v633
      %v3851 = vunpack.c.l.b16 %v634
      %v3852 = vunpack.c.l.b16 %v635
      %v3853 = vunpack.c.l.b16 %v636
      %v3854 = vunpack.c.l.b16 %v637
      %v3855 = vunpack.c.l.b16 %v638
      %v3856 = vunpack.c.l.b16 %v639
      %v3857 = vunpack.c.l.b16 %v640
      %v3858 = vunpack.c.l.b16 %v641
      %v3859 = vunpack.c.l.b16 %v642
      %v3860 = vunpack.c.l.b16 %v643
      %v3861 = vunpack.c.l.b16 %v644
      %v3862 = vunpack.c.l.b16 %v645
      %v3863 = vpack.c.b16 %v3209, %v3847
      %v3864 = vpack.c.b16 %v3211, %v3848
      %v3865 = vpack.c.b16 %v3213, %v3849
      %v3866 = vpack.c.b16 %v3215, %v3850
      %v3867 = vpack.c.b16 %v3217, %v3851
      %v3868 = vpack.c.b16 %v3219, %v3852
      %v3869 = vpack.c.b16 %v3221, %v3853
      %v3870 = vpack.c.b16 %v3223, %v3854
      %v3871 = vpack.c.b16 %v3225, %v3855
      %v3872 = vpack.c.b16 %v3227, %v3856
      %v3873 = vpack.c.b16 %v3229, %v3857
      %v3874 = vpack.c.b16 %v3231, %v3858
      %v3875 = vpack.c.b16 %v3233, %v3859
      %v3876 = vpack.c.b16 %v3235, %v3860
      %v3877 = vpack.c.b16 %v3237, %v3861
      %v3878 = vpack.c.b16 %v3239, %v3862
      %v3880 = vshrl.u32 %v3863, 16
      %v3882 = vshll.u32 %v3863, 16
      %v3884 = vrot.slane %v3882, 1
      %v3885 = vor.u32 %v3880, %v3884
      %v3887 = vshll.u32 %v3815, 16
      %v3889 = vrot.slane %v3887, 1
      %v3890 = vsel %vm774, %v3885, %v3889
      %v3891 = vshrl.u32 %v3815, 16
      %v3894 = vshrl.u32 %v3864, 16
      %v3896 = vshll.u32 %v3864, 16
      %v3898 = vrot.slane %v3896, 1
      %v3899 = vor.u32 %v3894, %v3898
      %v3901 = vshll.u32 %v3816, 16
      %v3903 = vrot.slane %v3901, 1
      %v3904 = vsel %vm774, %v3899, %v3903
      %v3905 = vshrl.u32 %v3816, 16
      %v3908 = vshrl.u32 %v3865, 16
      %v3910 = vshll.u32 %v3865, 16
      %v3912 = vrot.slane %v3910, 1
      %v3913 = vor.u32 %v3908, %v3912
      %v3915 = vshll.u32 %v3817, 16
      %v3917 = vrot.slane %v3915, 1
      %v3918 = vsel %vm774, %v3913, %v3917
      %v3919 = vshrl.u32 %v3817, 16
      %v3922 = vshrl.u32 %v3866, 16
      %v3924 = vshll.u32 %v3866, 16
      %v3926 = vrot.slane %v3924, 1
      %v3927 = vor.u32 %v3922, %v3926
      %v3929 = vshll.u32 %v3818, 16
      %v3931 = vrot.slane %v3929, 1
      %v3932 = vsel %vm774, %v3927, %v3931
      %v3933 = vshrl.u32 %v3818, 16
      %v3936 = vshrl.u32 %v3867, 16
      %v3938 = vshll.u32 %v3867, 16
      %v3940 = vrot.slane %v3938, 1
      %v3941 = vor.u32 %v3936, %v3940
      %v3943 = vshll.u32 %v3819, 16
      %v3945 = vrot.slane %v3943, 1
      %v3946 = vsel %vm774, %v3941, %v3945
      %v3947 = vshrl.u32 %v3819, 16
      %v3950 = vshrl.u32 %v3868, 16
      %v3952 = vshll.u32 %v3868, 16
      %v3954 = vrot.slane %v3952, 1
      %v3955 = vor.u32 %v3950, %v3954
      %v3957 = vshll.u32 %v3820, 16
      %v3959 = vrot.slane %v3957, 1
      %v3960 = vsel %vm774, %v3955, %v3959
      %v3961 = vshrl.u32 %v3820, 16
      %v3964 = vshrl.u32 %v3869, 16
      %v3966 = vshll.u32 %v3869, 16
      %v3968 = vrot.slane %v3966, 1
      %v3969 = vor.u32 %v3964, %v3968
      %v3971 = vshll.u32 %v3821, 16
      %v3973 = vrot.slane %v3971, 1
      %v3974 = vsel %vm774, %v3969, %v3973
      %v3975 = vshrl.u32 %v3821, 16
      %v3978 = vshrl.u32 %v3870, 16
      %v3980 = vshll.u32 %v3870, 16
      %v3982 = vrot.slane %v3980, 1
      %v3983 = vor.u32 %v3978, %v3982
      %v3985 = vshll.u32 %v3822, 16
      %v3987 = vrot.slane %v3985, 1
      %v3988 = vsel %vm774, %v3983, %v3987
      %v3989 = vshrl.u32 %v3822, 16
      %v3992 = vshrl.u32 %v3871, 16
      %v3994 = vshll.u32 %v3871, 16
      %v3996 = vrot.slane %v3994, 1
      %v3997 = vor.u32 %v3992, %v3996
      %v3999 = vshll.u32 %v3823, 16
      %v4001 = vrot.slane %v3999, 1
      %v4002 = vsel %vm774, %v3997, %v4001
      %v4003 = vshrl.u32 %v3823, 16
      %v4006 = vshrl.u32 %v3872, 16
      %v4008 = vshll.u32 %v3872, 16
      %v4010 = vrot.slane %v4008, 1
      %v4011 = vor.u32 %v4006, %v4010
      %v4013 = vshll.u32 %v3824, 16
      %v4015 = vrot.slane %v4013, 1
      %v4016 = vsel %vm774, %v4011, %v4015
      %v4017 = vshrl.u32 %v3824, 16
      %v4020 = vshrl.u32 %v3873, 16
      %v4022 = vshll.u32 %v3873, 16
      %v4024 = vrot.slane %v4022, 1
      %v4025 = vor.u32 %v4020, %v4024
      %v4027 = vshll.u32 %v3825, 16
      %v4029 = vrot.slane %v4027, 1
      %v4030 = vsel %vm774, %v4025, %v4029
      %v4031 = vshrl.u32 %v3825, 16
      %v4034 = vshrl.u32 %v3874, 16
      %v4036 = vshll.u32 %v3874, 16
      %v4038 = vrot.slane %v4036, 1
      %v4039 = vor.u32 %v4034, %v4038
      %v4041 = vshll.u32 %v3826, 16
      %v4043 = vrot.slane %v4041, 1
      %v4044 = vsel %vm774, %v4039, %v4043
      %v4045 = vshrl.u32 %v3826, 16
      %v4048 = vshrl.u32 %v3875, 16
      %v4050 = vshll.u32 %v3875, 16
      %v4052 = vrot.slane %v4050, 1
      %v4053 = vor.u32 %v4048, %v4052
      %v4055 = vshll.u32 %v3827, 16
      %v4057 = vrot.slane %v4055, 1
      %v4058 = vsel %vm774, %v4053, %v4057
      %v4059 = vshrl.u32 %v3827, 16
      %v4062 = vshrl.u32 %v3876, 16
      %v4064 = vshll.u32 %v3876, 16
      %v4066 = vrot.slane %v4064, 1
      %v4067 = vor.u32 %v4062, %v4066
      %v4069 = vshll.u32 %v3828, 16
      %v4071 = vrot.slane %v4069, 1
      %v4072 = vsel %vm774, %v4067, %v4071
      %v4073 = vshrl.u32 %v3828, 16
      %v4076 = vshrl.u32 %v3877, 16
      %v4078 = vshll.u32 %v3877, 16
      %v4080 = vrot.slane %v4078, 1
      %v4081 = vor.u32 %v4076, %v4080
      %v4083 = vshll.u32 %v3829, 16
      %v4085 = vrot.slane %v4083, 1
      %v4086 = vsel %vm774, %v4081, %v4085
      %v4087 = vshrl.u32 %v3829, 16
      %v4090 = vshrl.u32 %v3878, 16
      %v4092 = vshll.u32 %v3878, 16
      %v4094 = vrot.slane %v4092, 1
      %v4095 = vor.u32 %v4090, %v4094
      %v4097 = vshll.u32 %v3830, 16
      %v4099 = vrot.slane %v4097, 1
      %v4100 = vsel %vm774, %v4095, %v4099
      %v4101 = vshrl.u32 %v3830, 16
      %4103 = vrot.lane.b32.xlu0 %v3890, 8
      %v4104 = vpop.permute.xlu0 %4103
      %4105 = vrot.lane.b32.xlu0 %v3891, 8
      %v4106 = vpop.permute.xlu0 %4105
      %4107 = vrot.lane.b32.xlu0 %v3904, 8
      %v4108 = vpop.permute.xlu0 %4107
      %4109 = vrot.lane.b32.xlu0 %v3905, 8
      %v4110 = vpop.permute.xlu0 %4109
      %4111 = vrot.lane.b32.xlu0 %v3918, 8
      %v4112 = vpop.permute.xlu0 %4111
      %4113 = vrot.lane.b32.xlu0 %v3919, 8
      %v4114 = vpop.permute.xlu0 %4113
      %4115 = vrot.lane.b32.xlu0 %v3932, 8
      %v4116 = vpop.permute.xlu0 %4115
      %4117 = vrot.lane.b32.xlu0 %v3933, 8
      %v4118 = vpop.permute.xlu0 %4117
      %4119 = vrot.lane.b32.xlu0 %v3946, 8
      %v4120 = vpop.permute.xlu0 %4119
      %4121 = vrot.lane.b32.xlu0 %v3947, 8
      %v4122 = vpop.permute.xlu0 %4121
      %4123 = vrot.lane.b32.xlu0 %v3960, 8
      %v4124 = vpop.permute.xlu0 %4123
      %4125 = vrot.lane.b32.xlu0 %v3961, 8
      %v4126 = vpop.permute.xlu0 %4125
      %4127 = vrot.lane.b32.xlu0 %v3974, 8
      %v4128 = vpop.permute.xlu0 %4127
      %4129 = vrot.lane.b32.xlu0 %v3975, 8
      %v4130 = vpop.permute.xlu0 %4129
      %4131 = vrot.lane.b32.xlu0 %v3988, 8
      %v4132 = vpop.permute.xlu0 %4131
      %4133 = vrot.lane.b32.xlu0 %v3989, 8
      %v4134 = vpop.permute.xlu0 %4133
      %4135 = vrot.lane.b32.xlu0 %v4002, 8
      %v4136 = vpop.permute.xlu0 %4135
      %4137 = vrot.lane.b32.xlu0 %v4003, 8
      %v4138 = vpop.permute.xlu0 %4137
      %4139 = vrot.lane.b32.xlu0 %v4016, 8
      %v4140 = vpop.permute.xlu0 %4139
      %4141 = vrot.lane.b32.xlu0 %v4017, 8
      %v4142 = vpop.permute.xlu0 %4141
      %4143 = vrot.lane.b32.xlu0 %v4030, 8
      %v4144 = vpop.permute.xlu0 %4143
      %4145 = vrot.lane.b32.xlu0 %v4031, 8
      %v4146 = vpop.permute.xlu0 %4145
      %4147 = vrot.lane.b32.xlu0 %v4044, 8
      %v4148 = vpop.permute.xlu0 %4147
      %4149 = vrot.lane.b32.xlu0 %v4045, 8
      %v4150 = vpop.permute.xlu0 %4149
      %4151 = vrot.lane.b32.xlu0 %v4058, 8
      %v4152 = vpop.permute.xlu0 %4151
      %4153 = vrot.lane.b32.xlu0 %v4059, 8
      %v4154 = vpop.permute.xlu0 %4153
      %4155 = vrot.lane.b32.xlu0 %v4072, 8
      %v4156 = vpop.permute.xlu0 %4155
      %4157 = vrot.lane.b32.xlu0 %v4073, 8
      %v4158 = vpop.permute.xlu0 %4157
      %4159 = vrot.lane.b32.xlu0 %v4086, 8
      %v4160 = vpop.permute.xlu0 %4159
      %4161 = vrot.lane.b32.xlu0 %v4087, 8
      %v4162 = vpop.permute.xlu0 %4161
      %4163 = vrot.lane.b32.xlu0 %v4100, 8
      %v4164 = vpop.permute.xlu0 %4163
      %4165 = vrot.lane.b32.xlu0 %v4101, 8
      %v4166 = vpop.permute.xlu0 %4165
      %v4169 = vsel %vm3321, %v3240, %v4104
      %v4171 = vsel %vm3321, %v3815, %v4106
      %v4174 = vsel %vm3321, %v3241, %v4108
      %v4176 = vsel %vm3321, %v3816, %v4110
      %v4179 = vsel %vm3321, %v3242, %v4112
      %v4181 = vsel %vm3321, %v3817, %v4114
      %v4184 = vsel %vm3321, %v3243, %v4116
      %v4186 = vsel %vm3321, %v3818, %v4118
      %v4189 = vsel %vm3321, %v3244, %v4120
      %v4191 = vsel %vm3321, %v3819, %v4122
      %v4194 = vsel %vm3321, %v3245, %v4124
      %v4196 = vsel %vm3321, %v3820, %v4126
      %v4199 = vsel %vm3321, %v3246, %v4128
      %v4201 = vsel %vm3321, %v3821, %v4130
      %v4204 = vsel %vm3321, %v3247, %v4132
      %v4206 = vsel %vm3321, %v3822, %v4134
      %v4209 = vsel %vm3321, %v3248, %v4136
      %v4211 = vsel %vm3321, %v3823, %v4138
      %v4214 = vsel %vm3321, %v3249, %v4140
      %v4216 = vsel %vm3321, %v3824, %v4142
      %v4219 = vsel %vm3321, %v3250, %v4144
      %v4221 = vsel %vm3321, %v3825, %v4146
      %v4224 = vsel %vm3321, %v3251, %v4148
      %v4226 = vsel %vm3321, %v3826, %v4150
      %v4229 = vsel %vm3321, %v3252, %v4152
      %v4231 = vsel %vm3321, %v3827, %v4154
      %v4234 = vsel %vm3321, %v3253, %v4156
      %v4236 = vsel %vm3321, %v3828, %v4158
      %v4239 = vsel %vm3321, %v3254, %v4160
      %v4241 = vsel %vm3321, %v3829, %v4162
      %v4244 = vsel %vm3321, %v3255, %v4164
      %v4246 = vsel %vm3321, %v3830, %v4166
      %v4247 = vshrl.u32 %v4169, 16
      %v4249 = vshll.u32 %v4169, 16
      %v4251 = vrot.slane %v4249, 1
      %v4252 = vor.u32 %v4247, %v4251
      %v4253 = vshll.u32 %v4171, 16
      %v4255 = vrot.slane %v4253, 1
      %v4256 = vsel %vm774, %v4252, %v4255
      %v4257 = vshrl.u32 %v4174, 16
      %v4259 = vshll.u32 %v4174, 16
      %v4261 = vrot.slane %v4259, 1
      %v4262 = vor.u32 %v4257, %v4261
      %v4263 = vshll.u32 %v4176, 16
      %v4265 = vrot.slane %v4263, 1
      %v4266 = vsel %vm774, %v4262, %v4265
      %v4267 = vshrl.u32 %v4179, 16
      %v4269 = vshll.u32 %v4179, 16
      %v4271 = vrot.slane %v4269, 1
      %v4272 = vor.u32 %v4267, %v4271
      %v4273 = vshll.u32 %v4181, 16
      %v4275 = vrot.slane %v4273, 1
      %v4276 = vsel %vm774, %v4272, %v4275
      %v4277 = vshrl.u32 %v4184, 16
      %v4279 = vshll.u32 %v4184, 16
      %v4281 = vrot.slane %v4279, 1
      %v4282 = vor.u32 %v4277, %v4281
      %v4283 = vshll.u32 %v4186, 16
      %v4285 = vrot.slane %v4283, 1
      %v4286 = vsel %vm774, %v4282, %v4285
      %v4287 = vshrl.u32 %v4189, 16
      %v4289 = vshll.u32 %v4189, 16
      %v4291 = vrot.slane %v4289, 1
      %v4292 = vor.u32 %v4287, %v4291
      %v4293 = vshll.u32 %v4191, 16
      %v4295 = vrot.slane %v4293, 1
      %v4296 = vsel %vm774, %v4292, %v4295
      %v4297 = vshrl.u32 %v4194, 16
      %v4299 = vshll.u32 %v4194, 16
      %v4301 = vrot.slane %v4299, 1
      %v4302 = vor.u32 %v4297, %v4301
      %v4303 = vshll.u32 %v4196, 16
      %v4305 = vrot.slane %v4303, 1
      %v4306 = vsel %vm774, %v4302, %v4305
      %v4307 = vshrl.u32 %v4199, 16
      %v4309 = vshll.u32 %v4199, 16
      %v4311 = vrot.slane %v4309, 1
      %v4312 = vor.u32 %v4307, %v4311
      %v4313 = vshll.u32 %v4201, 16
      %v4315 = vrot.slane %v4313, 1
      %v4316 = vsel %vm774, %v4312, %v4315
      %v4317 = vshrl.u32 %v4204, 16
      %v4319 = vshll.u32 %v4204, 16
      %v4321 = vrot.slane %v4319, 1
      %v4322 = vor.u32 %v4317, %v4321
      %v4323 = vshll.u32 %v4206, 16
      %v4325 = vrot.slane %v4323, 1
      %v4326 = vsel %vm774, %v4322, %v4325
      %v4327 = vshrl.u32 %v4209, 16
      %v4329 = vshll.u32 %v4209, 16
      %v4331 = vrot.slane %v4329, 1
      %v4332 = vor.u32 %v4327, %v4331
      %v4333 = vshll.u32 %v4211, 16
      %v4335 = vrot.slane %v4333, 1
      %v4336 = vsel %vm774, %v4332, %v4335
      %v4337 = vshrl.u32 %v4214, 16
      %v4339 = vshll.u32 %v4214, 16
      %v4341 = vrot.slane %v4339, 1
      %v4342 = vor.u32 %v4337, %v4341
      %v4343 = vshll.u32 %v4216, 16
      %v4345 = vrot.slane %v4343, 1
      %v4346 = vsel %vm774, %v4342, %v4345
      %v4347 = vshrl.u32 %v4219, 16
      %v4349 = vshll.u32 %v4219, 16
      %v4351 = vrot.slane %v4349, 1
      %v4352 = vor.u32 %v4347, %v4351
      %v4353 = vshll.u32 %v4221, 16
      %v4355 = vrot.slane %v4353, 1
      %v4356 = vsel %vm774, %v4352, %v4355
      %v4357 = vshrl.u32 %v4224, 16
      %v4359 = vshll.u32 %v4224, 16
      %v4361 = vrot.slane %v4359, 1
      %v4362 = vor.u32 %v4357, %v4361
      %v4363 = vshll.u32 %v4226, 16
      %v4365 = vrot.slane %v4363, 1
      %v4366 = vsel %vm774, %v4362, %v4365
      %v4367 = vshrl.u32 %v4229, 16
      %v4369 = vshll.u32 %v4229, 16
      %v4371 = vrot.slane %v4369, 1
      %v4372 = vor.u32 %v4367, %v4371
      %v4373 = vshll.u32 %v4231, 16
      %v4375 = vrot.slane %v4373, 1
      %v4376 = vsel %vm774, %v4372, %v4375
      %v4377 = vshrl.u32 %v4234, 16
      %v4379 = vshll.u32 %v4234, 16
      %v4381 = vrot.slane %v4379, 1
      %v4382 = vor.u32 %v4377, %v4381
      %v4383 = vshll.u32 %v4236, 16
      %v4385 = vrot.slane %v4383, 1
      %v4386 = vsel %vm774, %v4382, %v4385
      %v4387 = vshrl.u32 %v4239, 16
      %v4389 = vshll.u32 %v4239, 16
      %v4391 = vrot.slane %v4389, 1
      %v4392 = vor.u32 %v4387, %v4391
      %v4393 = vshll.u32 %v4241, 16
      %v4395 = vrot.slane %v4393, 1
      %v4396 = vsel %vm774, %v4392, %v4395
      %v4397 = vshrl.u32 %v4244, 16
      %v4399 = vshll.u32 %v4244, 16
      %v4401 = vrot.slane %v4399, 1
      %v4402 = vor.u32 %v4397, %v4401
      %v4403 = vshll.u32 %v4246, 16
      %v4405 = vrot.slane %v4403, 1
      %v4406 = vsel %vm774, %v4402, %v4405
      %4407 = vrot.lane.b32.xlu0 %v4256, 92
      %v4408 = vpop.permute.xlu0 %4407
      %4409 = vrot.lane.b32.xlu0 %v4266, 92
      %v4410 = vpop.permute.xlu0 %4409
      %4411 = vrot.lane.b32.xlu0 %v4276, 92
      %v4412 = vpop.permute.xlu0 %4411
      %4413 = vrot.lane.b32.xlu0 %v4286, 92
      %v4414 = vpop.permute.xlu0 %4413
      %4415 = vrot.lane.b32.xlu0 %v4296, 92
      %v4416 = vpop.permute.xlu0 %4415
      %4417 = vrot.lane.b32.xlu0 %v4306, 92
      %v4418 = vpop.permute.xlu0 %4417
      %4419 = vrot.lane.b32.xlu0 %v4316, 92
      %v4420 = vpop.permute.xlu0 %4419
      %4421 = vrot.lane.b32.xlu0 %v4326, 92
      %v4422 = vpop.permute.xlu0 %4421
      %4423 = vrot.lane.b32.xlu0 %v4336, 92
      %v4424 = vpop.permute.xlu0 %4423
      %4425 = vrot.lane.b32.xlu0 %v4346, 92
      %v4426 = vpop.permute.xlu0 %4425
      %4427 = vrot.lane.b32.xlu0 %v4356, 92
      %v4428 = vpop.permute.xlu0 %4427
      %4429 = vrot.lane.b32.xlu0 %v4366, 92
      %v4430 = vpop.permute.xlu0 %4429
      %4431 = vrot.lane.b32.xlu0 %v4376, 92
      %v4432 = vpop.permute.xlu0 %4431
      %4433 = vrot.lane.b32.xlu0 %v4386, 92
      %v4434 = vpop.permute.xlu0 %4433
      %4435 = vrot.lane.b32.xlu0 %v4396, 92
      %v4436 = vpop.permute.xlu0 %4435
      %4437 = vrot.lane.b32.xlu0 %v4406, 92
      %v4438 = vpop.permute.xlu0 %4437
      %vm4439 = vcmask 752640
      %v4441 = vsel %vm4439, %v3752, %v4408
      %v4443 = vsel %vm4439, %v3754, %v4410
      %v4445 = vsel %vm4439, %v3756, %v4412
      %v4447 = vsel %vm4439, %v3758, %v4414
      %v4449 = vsel %vm4439, %v3760, %v4416
      %v4451 = vsel %vm4439, %v3762, %v4418
      %v4453 = vsel %vm4439, %v3764, %v4420
      %v4455 = vsel %vm4439, %v3766, %v4422
      %v4457 = vsel %vm4439, %v3768, %v4424
      %v4459 = vsel %vm4439, %v3770, %v4426
      %v4461 = vsel %vm4439, %v3772, %v4428
      %v4463 = vsel %vm4439, %v3774, %v4430
      %v4465 = vsel %vm4439, %v3776, %v4432
      %v4467 = vsel %vm4439, %v3778, %v4434
      %v4469 = vsel %vm4439, %v3780, %v4436
      %v4471 = vsel %vm4439, %v3782, %v4438
      %v4472 = vld [vmem:[%s2] sm:$0xf]
      %v4473 = vld [vmem:[%s2 + $0x4] sm:$0xf]
      %v4474 = vld [vmem:[%s2 + $0x8] sm:$0xf]
      %v4475 = vld [vmem:[%s2 + $0xc] sm:$0xf]
      %v4476 = vld [vmem:[%s2 + $0x10] sm:$0xf]
      %v4477 = vld [vmem:[%s2 + $0x14] sm:$0xf]
      %v4478 = vld [vmem:[%s2 + $0x18] sm:$0xf]
      %v4479 = vld [vmem:[%s2 + $0x1c] sm:$0xf]
      %v4480 = vld [vmem:[%s2 + $0x20] sm:$0xf]
      %v4481 = vld [vmem:[%s2 + $0x24] sm:$0xf]
      %v4482 = vld [vmem:[%s2 + $0x28] sm:$0xf]
      %v4483 = vld [vmem:[%s2 + $0x2c] sm:$0xf]
      %v4484 = vld [vmem:[%s2 + $0x30] sm:$0xf]
      %v4485 = vld [vmem:[%s2 + $0x34] sm:$0x3]
      %v4486 = vld [vmem:[%s3] sm:$0x1]
      %v4488 = vlaneseq
      %v4489 = vshrl.u32 %v4488, 7
      %v4490 = vsub.s32 0, %v4489
      %v4491 = vrot.slane %v4486, %v4490
      %v4507 = vunpack.c.l.b16 %v4472
      %v4508 = vunpack.c.l.b16 %v4473
      %v4509 = vunpack.c.l.b16 %v4474
      %v4510 = vunpack.c.l.b16 %v4475
      %v4511 = vunpack.c.l.b16 %v4476
      %v4512 = vunpack.c.l.b16 %v4477
      %v4513 = vunpack.c.l.b16 %v4478
      %v4514 = vunpack.c.l.b16 %v4479
      %v4515 = vunpack.c.l.b16 %v4480
      %v4516 = vunpack.c.l.b16 %v4481
      %v4517 = vunpack.c.l.b16 %v4482
      %v4518 = vunpack.c.l.b16 %v4483
      %v4519 = vunpack.c.l.b16 %v4484
      %v4520 = vunpack.c.l.b16 %v4485
      %v4521 = vpack.c.b16 %v4508, %v4507
      %v4522 = vpack.c.b16 %v4510, %v4509
      %v4523 = vpack.c.b16 %v4512, %v4511
      %v4524 = vpack.c.b16 %v4514, %v4513
      %v4525 = vpack.c.b16 %v4516, %v4515
      %v4526 = vpack.c.b16 %v4518, %v4517
      %v4527 = vpack.c.b16 %v4520, %v4519
      %vm4534 = vcmask 883712
      %v4535 = vsel %vm4534, %v4441, 0
      %v4537 = vsel %vm4534, %v4443, 0
      %v4539 = vsel %vm4534, %v4445, 0
      %v4541 = vsel %vm4534, %v4447, 0
      %v4543 = vsel %vm4534, %v4449, 0
      %v4545 = vsel %vm4534, %v4451, 0
      %v4547 = vsel %vm4534, %v4453, 0
      %v4549 = vsel %vm4534, %v4455, 0
      %v4551 = vsel %vm4534, %v4457, 0
      %v4553 = vsel %vm4534, %v4459, 0
      %v4555 = vsel %vm4534, %v4461, 0
      %v4557 = vsel %vm4534, %v4463, 0
      %v4559 = vsel %vm4534, %v4465, 0
      %v4561 = vsel %vm4534, %v4467, 0
      %v4563 = vsel %vm4534, %v4469, 0
      %v4565 = vsel %vm4534, %v4471, 0
      %vm4567 = vcmask 1045504
      %v4569 = vsel %vm4567, %v4527, 0
      %4571 = vmatprep.subr.bf16.mxu0 0
      %4572 = vmatpush1.bf16.msra.mxu0 %v4521
      %4573 = vmatprep.subr.bf16.mxu0 0
      %4574 = vmatpush1.bf16.msra.mxu0 %v4522
      %4575 = vmatprep.subr.bf16.mxu0 0
      %4576 = vmatpush1.bf16.msra.mxu0 %v4523
      %4577 = vmatprep.subr.bf16.mxu0 0
      %4578 = vmatpush1.bf16.msra.mxu0 %v4524
      %4579 = vmatprep.subr.bf16.mxu0 0
      %4580 = vmatpush1.bf16.msra.mxu0 %v4525
      %4581 = vmatprep.subr.bf16.mxu0 0
      %4582 = vmatpush1.bf16.msra.mxu0 %v4526
      %4583 = vmatprep.subr.bf16.mxu0 0
      %4584 = vmatpush1.bf16.msra.mxu0 %v4569
      %4585 = vmatprep.subr.bf16.mxu0 0
      %4586 = vmatpush1.bf16.msra.mxu0 0
      %4587 = vmatprep.subr.bf16.mxu0 0
      %4588 = vmatpush1.bf16.msra.mxu0 0
      %4589 = vmatprep.subr.bf16.mxu0 0
      %4590 = vmatpush1.bf16.msra.mxu0 0
      %4591 = vmatprep.subr.bf16.mxu0 0
      %4592 = vmatpush1.bf16.msra.mxu0 0
      %4593 = vmatprep.subr.bf16.mxu0 0
      %4594 = vmatpush1.bf16.msra.mxu0 0
      %4595 = vmatprep.subr.bf16.mxu0 0
      %4596 = vmatpush1.bf16.msra.mxu0 0
      %4597 = vmatprep.subr.bf16.mxu0 0
      %4598 = vmatpush1.bf16.msra.mxu0 0
      %4599 = vmatprep.subr.bf16.mxu0 0
      %4600 = vmatpush1.bf16.msra.mxu0 0
      %4601 = vmatprep.subr.bf16.mxu0 0
      %4602 = vmatpush1.bf16.msra.mxu0 0
      %4603 = vmatprep.mubr.bf16.mxu0 0
      %4604 = vmatmul.mubr.bf16.gmra.mrb[0].mxu0 %v4535
      %v4605 = vpop.f32.mrb[0].mxu0
      %v4606 = vadd.f32 %v4491, %v4605
      %v4607 = vpop.f32.mrb[0].mxu0
      %v4608 = vpop.f32.mrb[0].mxu0
      %v4609 = vadd.f32 %v4491, %v4608
      %v4610 = vpop.f32.mrb[0].mxu0
      %4611 = vmatprep.mubr.bf16.mxu0 0
      %4612 = vmatmul.mubr.bf16.gmra.mrb[0].mxu0 %v4537
      %v4613 = vpop.f32.mrb[0].mxu0
      %v4614 = vadd.f32 %v4491, %v4613
      %v4615 = vpop.f32.mrb[0].mxu0
      %v4616 = vpop.f32.mrb[0].mxu0
      %v4617 = vadd.f32 %v4491, %v4616
      %v4618 = vpop.f32.mrb[0].mxu0
      %4619 = vmatprep.mubr.bf16.mxu0 0
      %4620 = vmatmul.mubr.bf16.gmra.mrb[0].mxu0 %v4539
      %v4621 = vpop.f32.mrb[0].mxu0
      %v4622 = vadd.f32 %v4491, %v4621
      %v4623 = vpop.f32.mrb[0].mxu0
      %v4624 = vpop.f32.mrb[0].mxu0
      %v4625 = vadd.f32 %v4491, %v4624
      %v4626 = vpop.f32.mrb[0].mxu0
      %4627 = vmatprep.mubr.bf16.mxu0 0
      %4628 = vmatmul.mubr.bf16.gmra.mrb[0].mxu0 %v4541
      %v4629 = vpop.f32.mrb[0].mxu0
      %v4630 = vadd.f32 %v4491, %v4629
      %v4631 = vpop.f32.mrb[0].mxu0
      %v4632 = vpop.f32.mrb[0].mxu0
      %v4633 = vadd.f32 %v4491, %v4632
      %v4634 = vpop.f32.mrb[0].mxu0
      %4635 = vmatprep.mubr.bf16.mxu0 0
      %4636 = vmatmul.mubr.bf16.gmra.mrb[0].mxu0 %v4543
      %v4637 = vpop.f32.mrb[0].mxu0
      %v4638 = vadd.f32 %v4491, %v4637
      %v4639 = vpop.f32.mrb[0].mxu0
      %v4640 = vpop.f32.mrb[0].mxu0
      %v4641 = vadd.f32 %v4491, %v4640
      %v4642 = vpop.f32.mrb[0].mxu0
      %4643 = vmatprep.mubr.bf16.mxu0 0
      %4644 = vmatmul.mubr.bf16.gmra.mrb[0].mxu0 %v4545
      %v4645 = vpop.f32.mrb[0].mxu0
      %v4646 = vadd.f32 %v4491, %v4645
      %v4647 = vpop.f32.mrb[0].mxu0
      %v4648 = vpop.f32.mrb[0].mxu0
      %v4649 = vadd.f32 %v4491, %v4648
      %v4650 = vpop.f32.mrb[0].mxu0
      %4651 = vmatprep.mubr.bf16.mxu0 0
      %4652 = vmatmul.mubr.bf16.gmra.mrb[0].mxu0 %v4547
      %v4653 = vpop.f32.mrb[0].mxu0
      %v4654 = vadd.f32 %v4491, %v4653
      %v4655 = vpop.f32.mrb[0].mxu0
      %v4656 = vpop.f32.mrb[0].mxu0
      %v4657 = vadd.f32 %v4491, %v4656
      %v4658 = vpop.f32.mrb[0].mxu0
      %4659 = vmatprep.mubr.bf16.mxu0 0
      %4660 = vmatmul.mubr.bf16.gmra.mrb[0].mxu0 %v4549
      %v4661 = vpop.f32.mrb[0].mxu0
      %v4662 = vadd.f32 %v4491, %v4661
      %v4663 = vpop.f32.mrb[0].mxu0
      %v4664 = vpop.f32.mrb[0].mxu0
      %v4665 = vadd.f32 %v4491, %v4664
      %v4666 = vpop.f32.mrb[0].mxu0
      %4667 = vmatprep.mubr.bf16.mxu0 0
      %4668 = vmatmul.mubr.bf16.gmra.mrb[0].mxu0 %v4551
      %v4669 = vpop.f32.mrb[0].mxu0
      %v4670 = vadd.f32 %v4491, %v4669
      %v4671 = vpop.f32.mrb[0].mxu0
      %v4672 = vpop.f32.mrb[0].mxu0
      %v4673 = vadd.f32 %v4491, %v4672
      %v4674 = vpop.f32.mrb[0].mxu0
      %4675 = vmatprep.mubr.bf16.mxu0 0
      %4676 = vmatmul.mubr.bf16.gmra.mrb[0].mxu0 %v4553
      %v4677 = vpop.f32.mrb[0].mxu0
      %v4678 = vadd.f32 %v4491, %v4677
      %v4679 = vpop.f32.mrb[0].mxu0
      %v4680 = vpop.f32.mrb[0].mxu0
      %v4681 = vadd.f32 %v4491, %v4680
      %v4682 = vpop.f32.mrb[0].mxu0
      %4683 = vmatprep.mubr.bf16.mxu0 0
      %4684 = vmatmul.mubr.bf16.gmra.mrb[0].mxu0 %v4555
      %v4685 = vpop.f32.mrb[0].mxu0
      %v4686 = vadd.f32 %v4491, %v4685
      %v4687 = vpop.f32.mrb[0].mxu0
      %v4688 = vpop.f32.mrb[0].mxu0
      %v4689 = vadd.f32 %v4491, %v4688
      %v4690 = vpop.f32.mrb[0].mxu0
      %4691 = vmatprep.mubr.bf16.mxu0 0
      %4692 = vmatmul.mubr.bf16.gmra.mrb[0].mxu0 %v4557
      %v4693 = vpop.f32.mrb[0].mxu0
      %v4694 = vadd.f32 %v4491, %v4693
      %v4695 = vpop.f32.mrb[0].mxu0
      %v4696 = vpop.f32.mrb[0].mxu0
      %v4697 = vadd.f32 %v4491, %v4696
      %v4698 = vpop.f32.mrb[0].mxu0
      %4699 = vmatprep.mubr.bf16.mxu0 0
      %4700 = vmatmul.mubr.bf16.gmra.mrb[0].mxu0 %v4559
      %v4701 = vpop.f32.mrb[0].mxu0
      %v4702 = vadd.f32 %v4491, %v4701
      %v4703 = vpop.f32.mrb[0].mxu0
      %v4704 = vpop.f32.mrb[0].mxu0
      %v4705 = vadd.f32 %v4491, %v4704
      %v4706 = vpop.f32.mrb[0].mxu0
      %4707 = vmatprep.mubr.bf16.mxu0 0
      %4708 = vmatmul.mubr.bf16.gmra.mrb[0].mxu0 %v4561
      %v4709 = vpop.f32.mrb[0].mxu0
      %v4710 = vadd.f32 %v4491, %v4709
      %v4711 = vpop.f32.mrb[0].mxu0
      %v4712 = vpop.f32.mrb[0].mxu0
      %v4713 = vadd.f32 %v4491, %v4712
      %v4714 = vpop.f32.mrb[0].mxu0
      %4715 = vmatprep.mubr.bf16.mxu0 0
      %4716 = vmatmul.mubr.bf16.gmra.mrb[0].mxu0 %v4563
      %v4717 = vpop.f32.mrb[0].mxu0
      %v4718 = vadd.f32 %v4491, %v4717
      %v4719 = vpop.f32.mrb[0].mxu0
      %v4720 = vpop.f32.mrb[0].mxu0
      %v4721 = vadd.f32 %v4491, %v4720
      %v4722 = vpop.f32.mrb[0].mxu0
      %4723 = vmatprep.mubr.bf16.mxu0 0
      %4724 = vmatmul.mubr.bf16.gmra.mrb[0].mxu0 %v4565
      %v4725 = vpop.f32.mrb[0].mxu0
      %v4726 = vadd.f32 %v4491, %v4725
      %v4727 = vpop.f32.mrb[0].mxu0
      %v4728 = vpop.f32.mrb[0].mxu0
      %v4729 = vadd.f32 %v4491, %v4728
      %v4730 = vpop.f32.mrb[0].mxu0
      %4731 = vdwg.mxu0
      %v4732 = vmax.f32 %v4606, 0.0
      %v4733 = vmax.f32 %v4609, 0.0
      %v4734 = vmax.f32 %v4614, 0.0
      %v4735 = vmax.f32 %v4617, 0.0
      %v4736 = vmax.f32 %v4622, 0.0
      %v4737 = vmax.f32 %v4625, 0.0
      %v4738 = vmax.f32 %v4630, 0.0
      %v4739 = vmax.f32 %v4633, 0.0
      %v4740 = vmax.f32 %v4638, 0.0
      %v4741 = vmax.f32 %v4641, 0.0
      %v4742 = vmax.f32 %v4646, 0.0
      %v4743 = vmax.f32 %v4649, 0.0
      %v4744 = vmax.f32 %v4654, 0.0
      %v4745 = vmax.f32 %v4657, 0.0
      %v4746 = vmax.f32 %v4662, 0.0
      %v4747 = vmax.f32 %v4665, 0.0
      %v4748 = vmax.f32 %v4670, 0.0
      %v4749 = vmax.f32 %v4673, 0.0
      %v4750 = vmax.f32 %v4678, 0.0
      %v4751 = vmax.f32 %v4681, 0.0
      %v4752 = vmax.f32 %v4686, 0.0
      %v4753 = vmax.f32 %v4689, 0.0
      %v4754 = vmax.f32 %v4694, 0.0
      %v4755 = vmax.f32 %v4697, 0.0
      %v4756 = vmax.f32 %v4702, 0.0
      %v4757 = vmax.f32 %v4705, 0.0
      %v4758 = vmax.f32 %v4710, 0.0
      %v4759 = vmax.f32 %v4713, 0.0
      %v4760 = vmax.f32 %v4718, 0.0
      %v4761 = vmax.f32 %v4721, 0.0
      %v4762 = vmax.f32 %v4726, 0.0
      %v4763 = vmax.f32 %v4729, 0.0
      %v4764 = vpack.c.bf16 %v4733, %v4732
      %v4765 = vpack.c.bf16 %v4735, %v4734
      %v4766 = vpack.c.bf16 %v4737, %v4736
      %v4767 = vpack.c.bf16 %v4739, %v4738
      %v4768 = vpack.c.bf16 %v4741, %v4740
      %v4769 = vpack.c.bf16 %v4743, %v4742
      %v4770 = vpack.c.bf16 %v4745, %v4744
      %v4771 = vpack.c.bf16 %v4747, %v4746
      %v4772 = vpack.c.bf16 %v4749, %v4748
      %v4773 = vpack.c.bf16 %v4751, %v4750
      %v4774 = vpack.c.bf16 %v4753, %v4752
      %v4775 = vpack.c.bf16 %v4755, %v4754
      %v4776 = vpack.c.bf16 %v4757, %v4756
      %v4777 = vpack.c.bf16 %v4759, %v4758
      %v4778 = vpack.c.bf16 %v4761, %v4760
      %v4779 = vpack.c.bf16 %v4763, %v4762
      %v4796 = vunpack.c.l.b16 %v4764
      %v4797 = vunpack.c.h.b16 %v4764
      %v4798 = vunpack.c.l.b16 %v4765
      %v4799 = vunpack.c.h.b16 %v4765
      %v4800 = vunpack.c.l.b16 %v4766
      %v4801 = vunpack.c.h.b16 %v4766
      %v4802 = vunpack.c.l.b16 %v4767
      %v4803 = vunpack.c.h.b16 %v4767
      %v4804 = vunpack.c.l.b16 %v4768
      %v4805 = vunpack.c.h.b16 %v4768
      %v4806 = vunpack.c.l.b16 %v4769
      %v4807 = vunpack.c.h.b16 %v4769
      %v4808 = vunpack.c.l.b16 %v4770
      %v4809 = vunpack.c.h.b16 %v4770
      %v4810 = vunpack.c.l.b16 %v4771
      %v4811 = vunpack.c.h.b16 %v4771
      %v4812 = vunpack.c.l.b16 %v4772
      %v4813 = vunpack.c.h.b16 %v4772
      %v4814 = vunpack.c.l.b16 %v4773
      %v4815 = vunpack.c.h.b16 %v4773
      %v4816 = vunpack.c.l.b16 %v4774
      %v4817 = vunpack.c.h.b16 %v4774
      %v4818 = vunpack.c.l.b16 %v4775
      %v4819 = vunpack.c.h.b16 %v4775
      %v4820 = vunpack.c.l.b16 %v4776
      %v4821 = vunpack.c.h.b16 %v4776
      %v4822 = vunpack.c.l.b16 %v4777
      %v4823 = vunpack.c.h.b16 %v4777
      %v4824 = vunpack.c.l.b16 %v4778
      %v4825 = vunpack.c.h.b16 %v4778
      %v4826 = vunpack.c.l.b16 %v4779
      %v4827 = vunpack.c.h.b16 %v4779
      %v4828 = vpack.c.b16 %v4796, %v4796
      %v4829 = vpack.c.b16 %v4797, %v4797
      %v4830 = vpack.c.b16 %v4798, %v4798
      %v4831 = vpack.c.b16 %v4799, %v4799
      %v4832 = vpack.c.b16 %v4800, %v4800
      %v4833 = vpack.c.b16 %v4801, %v4801
      %v4834 = vpack.c.b16 %v4802, %v4802
      %v4835 = vpack.c.b16 %v4803, %v4803
      %v4836 = vpack.c.b16 %v4804, %v4804
      %v4837 = vpack.c.b16 %v4805, %v4805
      %v4838 = vpack.c.b16 %v4806, %v4806
      %v4839 = vpack.c.b16 %v4807, %v4807
      %v4840 = vpack.c.b16 %v4808, %v4808
      %v4841 = vpack.c.b16 %v4809, %v4809
      %v4842 = vpack.c.b16 %v4810, %v4810
      %v4843 = vpack.c.b16 %v4811, %v4811
      %v4844 = vpack.c.b16 %v4812, %v4812
      %v4845 = vpack.c.b16 %v4813, %v4813
      %v4846 = vpack.c.b16 %v4814, %v4814
      %v4847 = vpack.c.b16 %v4815, %v4815
      %v4848 = vpack.c.b16 %v4816, %v4816
      %v4849 = vpack.c.b16 %v4817, %v4817
      %v4850 = vpack.c.b16 %v4818, %v4818
      %v4851 = vpack.c.b16 %v4819, %v4819
      %v4852 = vpack.c.b16 %v4820, %v4820
      %v4853 = vpack.c.b16 %v4821, %v4821
      %v4854 = vpack.c.b16 %v4822, %v4822
      %v4855 = vpack.c.b16 %v4823, %v4823
      %v4856 = vpack.c.b16 %v4824, %v4824
      %v4857 = vpack.c.b16 %v4825, %v4825
      %v4858 = vpack.c.b16 %v4826, %v4826
      %v4859 = vpack.c.b16 %v4827, %v4827
      %vm4892 = vcmask 27648
      %4893 = vst.msk [vmem:[%s241] sm:$0xf] %vm4892, %v4828
      %4894 = vst.msk [vmem:[%s241 + $0x4] sm:$0xf] %vm4892, %v4829
      %4895 = vst.msk [vmem:[%s241 + $0x8] sm:$0xf] %vm4892, %v4830
      %4896 = vst.msk [vmem:[%s241 + $0xc] sm:$0xf] %vm4892, %v4831
      %4897 = vst.msk [vmem:[%s241 + $0x10] sm:$0xf] %vm4892, %v4832
      %4898 = vst.msk [vmem:[%s241 + $0x14] sm:$0xf] %vm4892, %v4833
      %4899 = vst.msk [vmem:[%s241 + $0x18] sm:$0xf] %vm4892, %v4834
      %4900 = vst.msk [vmem:[%s241 + $0x1c] sm:$0xf] %vm4892, %v4835
      %4901 = vst.msk [vmem:[%s241 + $0x20] sm:$0xf] %vm4892, %v4836
      %4902 = vst.msk [vmem:[%s241 + $0x24] sm:$0xf] %vm4892, %v4837
      %4903 = vst.msk [vmem:[%s241 + $0x28] sm:$0xf] %vm4892, %v4838
      %4904 = vst.msk [vmem:[%s241 + $0x2c] sm:$0xf] %vm4892, %v4839
      %4905 = vst.msk [vmem:[%s241 + $0x30] sm:$0xf] %vm4892, %v4840
      %4906 = vst.msk [vmem:[%s241 + $0x34] sm:$0xf] %vm4892, %v4841
      %4907 = vst.msk [vmem:[%s241 + $0x38] sm:$0xf] %vm4892, %v4842
      %4908 = vst.msk [vmem:[%s241 + $0x3c] sm:$0xf] %vm4892, %v4843
      %4909 = vst.msk [vmem:[%s241 + $0x40] sm:$0xf] %vm4892, %v4844
      %4910 = vst.msk [vmem:[%s241 + $0x44] sm:$0xf] %vm4892, %v4845
      %4911 = vst.msk [vmem:[%s241 + $0x48] sm:$0xf] %vm4892, %v4846
      %4912 = vst.msk [vmem:[%s241 + $0x4c] sm:$0xf] %vm4892, %v4847
      %4913 = vst.msk [vmem:[%s241 + $0x50] sm:$0xf] %vm4892, %v4848
      %4914 = vst.msk [vmem:[%s241 + $0x54] sm:$0xf] %vm4892, %v4849
      %4915 = vst.msk [vmem:[%s241 + $0x58] sm:$0xf] %vm4892, %v4850
      %4916 = vst.msk [vmem:[%s241 + $0x5c] sm:$0xf] %vm4892, %v4851
      %4917 = vst.msk [vmem:[%s241 + $0x60] sm:$0xf] %vm4892, %v4852
      %4918 = vst.msk [vmem:[%s241 + $0x64] sm:$0xf] %vm4892, %v4853
      %4919 = vst.msk [vmem:[%s241 + $0x68] sm:$0xf] %vm4892, %v4854
      %4920 = vst.msk [vmem:[%s241 + $0x6c] sm:$0xf] %vm4892, %v4855
      %4921 = vst.msk [vmem:[%s241 + $0x70] sm:$0xf] %vm4892, %v4856
      %4922 = vst.msk [vmem:[%s241 + $0x74] sm:$0xf] %vm4892, %v4857
      %4923 = vst.msk [vmem:[%s241 + $0x78] sm:$0xf] %vm4892, %v4858
      %4924 = vst.msk [vmem:[%s241 + $0x7c] sm:$0xf] %vm4892, %v4859
      %s4925 = smul.u32 16, %s20
      %p4926 = scmp.lt.s32.totalorder %s19, 1
      %s4927 = scalar_select %p4926, %s19, 1
      %p4928 = scmp.lt.s32.totalorder %s4925, 15
      %s4929 = scalar_select %p4928, %s4925, 15
      %s4930 = smul.addr %s4929, 2
      %s4931 = smul.addr %s4927, 32
      %s4932 = sadd.s32 %s4930, %s4931
      %s4933 = smul.addr %s4932, 4
      %s4934 = scalar_lea.vmem %s4, %s4933
      // Predicated region
      $region37: #{upblock_forward.4} parent=35 // pred_check
        %p4935 = pneg %p141
      $region38: #{upblock_forward.4} parent=35 // pred_check_branch
        %4937 = sbr.rel (%p4935) target = $region40
      $region39: #{upblock_forward.4} parent=35 // pred_region
        %s4938 = smul.u32 16, %s20
      $region40: #{upblock_forward.4} parent=35 // pred_fallthru
        _
    $region36: #{upblock_forward.4} parent=5 // pred_fallthru
      _
    %p4939 = scmp.le.s32.totalorder 2, %s10
    // Predicated region
    $region41: #{upblock_forward.4} parent=5 // pred_check
      %p4940 = pneg %p4939
    $region42: #{upblock_forward.4} parent=5 // pred_check_branch
      %4942 = sbr.rel (%p4940) target = $region44
    $region43: #{upblock_forward.4} parent=5 // pred_region
      %s4943 = ssub.s32 %s10, 2
      // Predicated region
      $region45: #{upblock_forward.4} parent=43 // pred_check
        %p4944 = pneg %p147
      $region46: #{upblock_forward.4} parent=43 // pred_check_branch
        %4946 = sbr.rel (%p4944) target = $region48
      $region47: #{upblock_forward.4} parent=43 // pred_region
        %s4947 = smul.u32 16, %s22
        %p4948 = scmp.lt.s32.totalorder %s21, 1
        %s4949 = scalar_select %p4948, %s21, 1
        %p4950 = scmp.lt.s32.totalorder %s4947, 15
        %s4951 = scalar_select %p4950, %s4947, 15
        %s4952 = smul.addr %s4951, 2
        %s4953 = smul.addr %s4949, 32
        %s4954 = sadd.s32 %s4952, %s4953
        %s4955 = smul.addr %s4954, 4
        %s4956 = scalar_lea.vmem %s4, %s4955
      $region48: #{upblock_forward.4} parent=43 // pred_fallthru
        _
    $region44: #{upblock_forward.4} parent=5 // pred_fallthru
      _
  $region6: #{upblock_forward.4} parent=0 // loop_footer
    %s14 = sadd.s32 1, %s10
  $region7: #{upblock_forward.4} parent=0 // loop_footer_branch
    %9 = sbr.rel target = $region3
  $region8: #{upblock_forward.4} parent=0 // loop_exit
    _

</llo_original>
